<compile_context>
chip_gen: v5e
topology: v5e:2x2
jax: 0.10.0
libtpu: 0.0.40
codegen_flags: <defaults>
</compile_context>

<pallas_src>
import functools

import jax
import jax.numpy as jnp
import numpy as np
from jax import lax
from jax.experimental import pallas as pl
from jax.experimental.pallas import tpu as pltpu

N_ACTIONS = 4


def _round_up(x, m):
    return (x + m - 1) // m * m


# ----------------------------------------------------------------------------
# Pallas kernels
# ----------------------------------------------------------------------------
def _linear(x, w, b=None, *, relu=False, out_dtype=jnp.float32):
    """y = act(x @ w [+ b]).  x:(M,K) bf16, w:(K,N) bf16, b:(1,N) f32 or None."""
    M, K = x.shape
    N = w.shape[1]
    has_bias = b is not None

    # Tile M only when it is big enough to threaten VMEM (v7x: 64 MiB total).
    if M > 1024:
        tm = 512
        Mp = _round_up(M, tm)
        if Mp != M:
            x = jnp.pad(x, ((0, Mp - M), (0, 0)))
    else:
        tm, Mp = M, M
    grid = (Mp // tm,)

    def kernel(*refs):
        if has_bias:
            x_ref, w_ref, b_ref, o_ref = refs
        else:
            x_ref, w_ref, o_ref = refs
        acc = jnp.dot(x_ref[...], w_ref[...], preferred_element_type=jnp.float32)
        if has_bias:
            acc = acc + b_ref[...]
        if relu:
            acc = jnp.maximum(acc, 0.0)
        o_ref[...] = acc.astype(o_ref.dtype)

    in_specs = [
        pl.BlockSpec((tm, K), lambda i: (i, 0)),
        pl.BlockSpec((K, N), lambda i: (0, 0)),
    ]
    operands = [x, w]
    if has_bias:
        in_specs.append(pl.BlockSpec((1, N), lambda i: (0, 0)))
        operands.append(b)

    out = pl.pallas_call(
        kernel,
        out_shape=jax.ShapeDtypeStruct((Mp, N), out_dtype),
        grid=grid,
        in_specs=in_specs,
        out_specs=pl.BlockSpec((tm, N), lambda i: (i, 0)),
        compiler_params=pltpu.CompilerParams(
            dimension_semantics=("parallel",),
        ),
    )(*operands)
    return out[:M] if Mp != M else out


def _head(feats, w1, b1, w2, b2):
    """Fused fc1 -> ReLU -> (eval dropout) -> fc2.

    feats:(B,K) bf16, w1:(K,H) bf16, b1:(1,H) f32, w2:(H,A) bf16, b2:(1,A) f32.
    Returns (q:(B,A) f32, h:(B,H) f32).
    """
    B, K = feats.shape
    H = w1.shape[1]
    A = w2.shape[1]

    def kernel(x_ref, w1_ref, b1_ref, w2_ref, b2_ref, q_ref, h_ref):
        h = jnp.dot(x_ref[...], w1_ref[...], preferred_element_type=jnp.float32)
        h = jnp.maximum(h + b1_ref[...], 0.0)
        # TODO(synk): training-mode dropout (pltpu.prng_*) not implemented;
        #             eval-mode dropout is the identity.
        q = jnp.dot(h.astype(w2_ref.dtype), w2_ref[...],
                    preferred_element_type=jnp.float32)
        q_ref[...] = (q + b2_ref[...]).astype(q_ref.dtype)
        h_ref[...] = h.astype(h_ref.dtype)

    return pl.pallas_call(
        kernel,
        out_shape=(jax.ShapeDtypeStruct((B, A), jnp.float32),
                   jax.ShapeDtypeStruct((B, H), jnp.float32)),
        grid=(1,),
        in_specs=[
            pl.BlockSpec((B, K), lambda i: (0, 0)),
            pl.BlockSpec((K, H), lambda i: (0, 0)),
            pl.BlockSpec((1, H), lambda i: (0, 0)),
            pl.BlockSpec((H, A), lambda i: (0, 0)),
            pl.BlockSpec((1, A), lambda i: (0, 0)),
        ],
        out_specs=[
            pl.BlockSpec((B, A), lambda i: (0, 0)),
            pl.BlockSpec((B, H), lambda i: (0, 0)),
        ],
        compiler_params=pltpu.CompilerParams(
            dimension_semantics=("arbitrary",),
        ),
    )(feats, w1, b1, w2, b2)


# ----------------------------------------------------------------------------
# Glue: im2col (plain JAX, bf16) + parameter prep
# ----------------------------------------------------------------------------
def _im2col(x, kh, kw, stride):
    """x:(B,H,W,C) -> ((B, Ho*Wo, kh*kw*C), Ho, Wo). Patch order = (kh, kw, C)."""
    B, H, W, C = x.shape
    Ho = (H - kh) // stride + 1
    Wo = (W - kw) // stride + 1
    cols = []
    for i in range(kh):
        for j in range(kw):
            cols.append(x[:, i:i + stride * Ho:stride, j:j + stride * Wo:stride, :])
    patches = jnp.stack(cols, axis=-2)                 # (B, Ho, Wo, kh*kw, C)
    return patches.reshape(B, Ho * Wo, kh * kw * C), Ho, Wo


def _conv_w_to_mat(w):
    """(out_c, in_c, kh, kw) -> (kh*kw*in_c, out_c), matching _im2col ordering."""
    oc, ic, kh, kw = w.shape
    return jnp.transpose(w, (2, 3, 1, 0)).reshape(kh * kw * ic, oc)


def init_params(key, n_actions=N_ACTIONS):
    """PyTorch-shaped parameters (deterministic, Kaiming-normal, zero biases)."""
    ks = jax.random.split(key, 5)

    def kaiming(k, shape, fan_in):
        return jax.random.normal(k, shape, jnp.float32) * np.sqrt(2.0 / fan_in)

    return {
        "conv1_w": kaiming(ks[0], (32, 4, 8, 8), 4 * 8 * 8),
        "conv2_w": kaiming(ks[1], (64, 32, 4, 4), 32 * 4 * 4),
        "conv3_w": kaiming(ks[2], (64, 64, 3, 3), 64 * 3 * 3),
        "fc1_w":   kaiming(ks[3], (512, 64 * 7 * 7), 64 * 7 * 7),
        "fc1_b":   jnp.zeros((512,), jnp.float32),
        "fc2_w":   kaiming(ks[4], (n_actions, 512), 512),
        "fc2_b":   jnp.zeros((n_actions,), jnp.float32),
    }


def prepare_params(params):
    """One-time conversion to the kernel layout (bf16, matmul-form weights)."""
    # conv1: fold the /255 input scaling into the weights.
    w1 = (_conv_w_to_mat(params["conv1_w"]) * (1.0 / 255.0)).astype(jnp.bfloat16)
    w2 = _conv_w_to_mat(params["conv2_w"]).astype(jnp.bfloat16)
    w3 = _conv_w_to_mat(params["conv3_w"]).astype(jnp.bfloat16)
    # fc1.weight is (512, 3136) with K in PyTorch NCHW-flatten order (C,H,W).
    # Permute K to NHWC-flatten order (H,W,C) so no activation transpose is needed.
    fw = params["fc1_w"].reshape(512, 64, 7, 7)
    fw = jnp.transpose(fw, (2, 3, 1, 0)).reshape(7 * 7 * 64, 512)
    return {
        "w1": w1, "w2": w2, "w3": w3,
        "fc1_w": fw.astype(jnp.bfloat16),
        "fc1_b": params["fc1_b"].reshape(1, -1).astype(jnp.float32),
        "fc2_w": jnp.transpose(params["fc2_w"]).astype(jnp.bfloat16),
        "fc2_b": params["fc2_b"].reshape(1, -1).astype(jnp.float32),
    }


# ----------------------------------------------------------------------------
# Forward pass (eval mode: dropout is identity)
# ----------------------------------------------------------------------------
def forward(prep, x_nchw, last_layer=False):
    B = x_nchw.shape[0]

    # NCHW uint8 -> NHWC bf16 (0..255 are exact in bf16; /255 folded into conv1 w).
    x = jnp.transpose(x_nchw, (0, 2, 3, 1)).astype(jnp.bfloat16)

    # conv1: 8x8, stride 4, no bias
    p1, H1, W1 = _im2col(x, 8, 8, 4)
    h = _linear(p1.reshape(B * H1 * W1, -1), prep["w1"],
                relu=True, out_dtype=jnp.bfloat16)
    h = h.reshape(B, H1, W1, 32)

    # conv2: 4x4, stride 2, no bias
    p2, H2, W2 = _im2col(h, 4, 4, 2)
    h = _linear(p2.reshape(B * H2 * W2, -1), prep["w2"],
                relu=True, out_dtype=jnp.bfloat16)
    h = h.reshape(B, H2, W2, 64)

    # conv3: 3x3, stride 1, no bias
    p3, H3, W3 = _im2col(h, 3, 3, 1)
    h = _linear(p3.reshape(B * H3 * W3, -1), prep["w3"],
                relu=True, out_dtype=jnp.bfloat16)

    # NHWC flatten (fc1 weight K already permuted to match -> no transpose).
    feats = h.reshape(B, H3 * W3 * 64)

    # fc1 + ReLU + fc2, fused in one kernel.
    q, h512 = _head(feats, prep["fc1_w"], prep["fc1_b"],
                    prep["fc2_w"], prep["fc2_b"])
    if last_layer:
        return q, h512
    return q


# ----------------------------------------------------------------------------
# Pure-JAX reference (exactly mirrors the PyTorch module, f32)
# ----------------------------------------------------------------------------
def _ref_forward(params, x_nchw):
    dn = ("NCHW", "OIHW", "NCHW")
    x = x_nchw.astype(jnp.float32) / 255.0
    h = jax.nn.relu(lax.conv_general_dilated(x, params["conv1_w"], (4, 4), "VALID",
                                             dimension_numbers=dn))
    h = jax.nn.relu(lax.conv_general_dilated(h, params["conv2_w"], (2, 2), "VALID",
                                             dimension_numbers=dn))
    h = jax.nn.relu(lax.conv_general_dilated(h, params["conv3_w"], (1, 1), "VALID",
                                             dimension_numbers=dn))
    feats = h.reshape(x.shape[0], -1)                  # NCHW flatten == torch .view
    h1 = jax.nn.relu(feats @ params["fc1_w"].T + params["fc1_b"])
    return h1 @ params["fc2_w"].T + params["fc2_b"]


# ----------------------------------------------------------------------------
if __name__ == "__main__":
    key = jax.random.PRNGKey(0)
    kp, kx = jax.random.split(key)
    params = init_params(kp)
    prep = prepare_params(params)

    B = 2
    # Atari-style uint8 frames; 84x84 is implied by fc1 = Linear(64*7*7, 512).
    x = jax.random.randint(kx, (B, 4, 84, 84), 0, 256, dtype=jnp.int32).astype(jnp.uint8)

    fwd = jax.jit(functools.partial(forward, last_layer=False))
    q = jax.block_until_ready(fwd(prep, x))
    assert q.shape == (B, N_ACTIONS) and q.dtype == jnp.float32

    fwd_ll = jax.jit(functools.partial(forward, last_layer=True))
    q2, feats512 = jax.block_until_ready(fwd_ll(prep, x))
    assert q2.shape == (B, N_ACTIONS) and feats512.shape == (B, 512)

    ref = _ref_forward(params, x)
    err = float(jnp.max(jnp.abs(q - ref)))
    scale = float(jnp.max(jnp.abs(ref))) + 1.0
    assert err <= 5e-2 * scale, f"mismatch vs reference: err={err}, scale={scale}"

    print("KERNEL_OK")
</pallas_src>

<mosaic_0001>
module attributes {stable_mosaic.version = 11 : i64} {
  func.func @kernel(%arg0: i32, %arg1: memref<800x256xbf16, #tpu.memory_space<vmem>>, %arg2: memref<256x32xbf16, #tpu.memory_space<vmem>>, %arg3: memref<800x32xbf16, #tpu.memory_space<vmem>>) attributes {dimension_semantics = [#tpu.dimension_semantics<parallel>], iteration_bounds = array<i64: 1>, scalar_prefetch = 0 : i64, scratch_operands = 0 : i64, tpu.core_type = #tpu.core_type<tc>, window_params = [{transform_indices = @transform_0, window_bounds = array<i64: 800, 256>}, {pipeline_mode = #tpu.pipeline_mode<synchronous>, transform_indices = @transform_1, window_bounds = array<i64: 256, 32>}, {transform_indices = @transform_2, window_bounds = array<i64: 800, 32>}]} {
    %c0 = arith.constant 0 : index
    %c0_0 = arith.constant 0 : index
    %0 = vector.load %arg1[%c0, %c0_0] : memref<800x256xbf16, #tpu.memory_space<vmem>>, vector<800x256xbf16>
    %c0_1 = arith.constant 0 : index
    %c0_2 = arith.constant 0 : index
    %1 = vector.load %arg2[%c0_1, %c0_2] : memref<256x32xbf16, #tpu.memory_space<vmem>>, vector<256x32xbf16>
    %cst = arith.constant dense<0.000000e+00> : vector<800x32xf32>
    %2 = tpu.matmul %0, %1, %cst {dimension_numbers = #tpu.dot_dimension_numbers<[1], [0], [0], [1], [0, 0, 1, 1], [], []>} : vector<800x256xbf16>, vector<256x32xbf16>, vector<800x32xf32> -> vector<800x32xf32>
    %cst_3 = arith.constant 0.000000e+00 : f32
    %3 = vector.broadcast %cst_3 : f32 to vector<800x32xf32>
    %4 = arith.maximumf %2, %3 : vector<800x32xf32>
    %5 = arith.truncf %4 : vector<800x32xf32> to vector<800x32xbf16>
    %c0_4 = arith.constant 0 : index
    %c0_5 = arith.constant 0 : index
    %6 = vector.load %arg3[%c0_4, %c0_5] : memref<800x32xbf16, #tpu.memory_space<vmem>>, vector<800x32xbf16>
    tpu.vector_store %arg3[%c0_4, %c0_5], %5 {strides = array<i32>} : memref<800x32xbf16, #tpu.memory_space<vmem>>, vector<800x32xbf16>,
    return
  }
  func.func @transform_0(%arg0: i32) -> (i32, i32) {
    %c0_i32 = arith.constant 0 : i32
    %c0_i32_0 = arith.constant 0 : i32
    return %arg0, %c0_i32 : i32, i32
  }
  func.func @transform_1(%arg0: i32) -> (i32, i32) {
    %c0_i32 = arith.constant 0 : i32
    %c0_i32_0 = arith.constant 0 : i32
    %c0_i32_1 = arith.constant 0 : i32
    return %c0_i32, %c0_i32_0 : i32, i32
  }
  func.func @transform_2(%arg0: i32) -> (i32, i32) {
    %c0_i32 = arith.constant 0 : i32
    %c0_i32_0 = arith.constant 0 : i32
    return %arg0, %c0_i32 : i32, i32
  }
}

module attributes {stable_mosaic.version = 11 : i64} {
  func.func @kernel(%arg0: i32, %arg1: memref<162x512xbf16, #tpu.memory_space<vmem>>, %arg2: memref<512x64xbf16, #tpu.memory_space<vmem>>, %arg3: memref<162x64xbf16, #tpu.memory_space<vmem>>) attributes {dimension_semantics = [#tpu.dimension_semantics<parallel>], iteration_bounds = array<i64: 1>, scalar_prefetch = 0 : i64, scratch_operands = 0 : i64, tpu.core_type = #tpu.core_type<tc>, window_params = [{transform_indices = @transform_0, window_bounds = array<i64: 162, 512>}, {pipeline_mode = #tpu.pipeline_mode<synchronous>, transform_indices = @transform_1, window_bounds = array<i64: 512, 64>}, {transform_indices = @transform_2, window_bounds = array<i64: 162, 64>}]} {
    %c0 = arith.constant 0 : index
    %c0_0 = arith.constant 0 : index
    %0 = vector.load %arg1[%c0, %c0_0] : memref<162x512xbf16, #tpu.memory_space<vmem>>, vector<162x512xbf16>
    %c0_1 = arith.constant 0 : index
    %c0_2 = arith.constant 0 : index
    %1 = vector.load %arg2[%c0_1, %c0_2] : memref<512x64xbf16, #tpu.memory_space<vmem>>, vector<512x64xbf16>
    %cst = arith.constant dense<0.000000e+00> : vector<162x64xf32>
    %2 = tpu.matmul %0, %1, %cst {dimension_numbers = #tpu.dot_dimension_numbers<[1], [0], [0], [1], [0, 0, 1, 1], [], []>} : vector<162x512xbf16>, vector<512x64xbf16>, vector<162x64xf32> -> vector<162x64xf32>
    %cst_3 = arith.constant 0.000000e+00 : f32
    %3 = vector.broadcast %cst_3 : f32 to vector<162x64xf32>
    %4 = arith.maximumf %2, %3 : vector<162x64xf32>
    %5 = arith.truncf %4 : vector<162x64xf32> to vector<162x64xbf16>
    %c0_4 = arith.constant 0 : index
    %c0_5 = arith.constant 0 : index
    %6 = vector.load %arg3[%c0_4, %c0_5] : memref<162x64xbf16, #tpu.memory_space<vmem>>, vector<162x64xbf16>
    tpu.vector_store %arg3[%c0_4, %c0_5], %5 {strides = array<i32>} : memref<162x64xbf16, #tpu.memory_space<vmem>>, vector<162x64xbf16>,
    return
  }
  func.func @transform_0(%arg0: i32) -> (i32, i32) {
    %c0_i32 = arith.constant 0 : i32
    %c0_i32_0 = arith.constant 0 : i32
    return %arg0, %c0_i32 : i32, i32
  }
  func.func @transform_1(%arg0: i32) -> (i32, i32) {
    %c0_i32 = arith.constant 0 : i32
    %c0_i32_0 = arith.constant 0 : i32
    %c0_i32_1 = arith.constant 0 : i32
    return %c0_i32, %c0_i32_0 : i32, i32
  }
  func.func @transform_2(%arg0: i32) -> (i32, i32) {
    %c0_i32 = arith.constant 0 : i32
    %c0_i32_0 = arith.constant 0 : i32
    return %arg0, %c0_i32 : i32, i32
  }
}

module attributes {stable_mosaic.version = 11 : i64} {
  func.func @kernel(%arg0: i32, %arg1: memref<98x576xbf16, #tpu.memory_space<vmem>>, %arg2: memref<576x64xbf16, #tpu.memory_space<vmem>>, %arg3: memref<98x64xbf16, #tpu.memory_space<vmem>>) attributes {dimension_semantics = [#tpu.dimension_semantics<parallel>], iteration_bounds = array<i64: 1>, scalar_prefetch = 0 : i64, scratch_operands = 0 : i64, tpu.core_type = #tpu.core_type<tc>, window_params = [{transform_indices = @transform_0, window_bounds = array<i64: 98, 576>}, {pipeline_mode = #tpu.pipeline_mode<synchronous>, transform_indices = @transform_1, window_bounds = array<i64: 576, 64>}, {transform_indices = @transform_2, window_bounds = array<i64: 98, 64>}]} {
    %c0 = arith.constant 0 : index
    %c0_0 = arith.constant 0 : index
    %0 = vector.load %arg1[%c0, %c0_0] : memref<98x576xbf16, #tpu.memory_space<vmem>>, vector<98x576xbf16>
    %c0_1 = arith.constant 0 : index
    %c0_2 = arith.constant 0 : index
    %1 = vector.load %arg2[%c0_1, %c0_2] : memref<576x64xbf16, #tpu.memory_space<vmem>>, vector<576x64xbf16>
    %cst = arith.constant dense<0.000000e+00> : vector<98x64xf32>
    %2 = tpu.matmul %0, %1, %cst {dimension_numbers = #tpu.dot_dimension_numbers<[1], [0], [0], [1], [0, 0, 1, 1], [], []>} : vector<98x576xbf16>, vector<576x64xbf16>, vector<98x64xf32> -> vector<98x64xf32>
    %cst_3 = arith.constant 0.000000e+00 : f32
    %3 = vector.broadcast %cst_3 : f32 to vector<98x64xf32>
    %4 = arith.maximumf %2, %3 : vector<98x64xf32>
    %5 = arith.truncf %4 : vector<98x64xf32> to vector<98x64xbf16>
    %c0_4 = arith.constant 0 : index
    %c0_5 = arith.constant 0 : index
    %6 = vector.load %arg3[%c0_4, %c0_5] : memref<98x64xbf16, #tpu.memory_space<vmem>>, vector<98x64xbf16>
    tpu.vector_store %arg3[%c0_4, %c0_5], %5 {strides = array<i32>} : memref<98x64xbf16, #tpu.memory_space<vmem>>, vector<98x64xbf16>,
    return
  }
  func.func @transform_0(%arg0: i32) -> (i32, i32) {
    %c0_i32 = arith.constant 0 : i32
    %c0_i32_0 = arith.constant 0 : i32
    return %arg0, %c0_i32 : i32, i32
  }
  func.func @transform_1(%arg0: i32) -> (i32, i32) {
    %c0_i32 = arith.constant 0 : i32
    %c0_i32_0 = arith.constant 0 : i32
    %c0_i32_1 = arith.constant 0 : i32
    return %c0_i32, %c0_i32_0 : i32, i32
  }
  func.func @transform_2(%arg0: i32) -> (i32, i32) {
    %c0_i32 = arith.constant 0 : i32
    %c0_i32_0 = arith.constant 0 : i32
    return %arg0, %c0_i32 : i32, i32
  }
}

module attributes {stable_mosaic.version = 11 : i64} {
  func.func @kernel(%arg0: i32, %arg1: memref<2x3136xbf16, #tpu.memory_space<vmem>>, %arg2: memref<3136x512xbf16, #tpu.memory_space<vmem>>, %arg3: memref<1x512xf32, #tpu.memory_space<vmem>>, %arg4: memref<512x4xbf16, #tpu.memory_space<vmem>>, %arg5: memref<1x4xf32, #tpu.memory_space<vmem>>, %arg6: memref<2x4xf32, #tpu.memory_space<vmem>>, %arg7: memref<2x512xf32, #tpu.memory_space<vmem>>) attributes {dimension_semantics = [#tpu.dimension_semantics<arbitrary>], iteration_bounds = array<i64: 1>, scalar_prefetch = 0 : i64, scratch_operands = 0 : i64, tpu.core_type = #tpu.core_type<tc>, window_params = [{pipeline_mode = #tpu.pipeline_mode<synchronous>, transform_indices = @transform_0, window_bounds = array<i64: 2, 3136>}, {pipeline_mode = #tpu.pipeline_mode<synchronous>, transform_indices = @transform_1, window_bounds = array<i64: 3136, 512>}, {pipeline_mode = #tpu.pipeline_mode<synchronous>, transform_indices = @transform_2, window_bounds = array<i64: 1, 512>}, {pipeline_mode = #tpu.pipeline_mode<synchronous>, transform_indices = @transform_3, window_bounds = array<i64: 512, 4>}, {pipeline_mode = #tpu.pipeline_mode<synchronous>, transform_indices = @transform_4, window_bounds = array<i64: 1, 4>}, {pipeline_mode = #tpu.pipeline_mode<synchronous>, transform_indices = @transform_5, window_bounds = array<i64: 2, 4>}, {pipeline_mode = #tpu.pipeline_mode<synchronous>, transform_indices = @transform_6, window_bounds = array<i64: 2, 512>}]} {
    %c0 = arith.constant 0 : index
    %c0_0 = arith.constant 0 : index
    %0 = vector.load %arg1[%c0, %c0_0] : memref<2x3136xbf16, #tpu.memory_space<vmem>>, vector<2x3136xbf16>
    %c0_1 = arith.constant 0 : index
    %c0_2 = arith.constant 0 : index
    %1 = vector.load %arg2[%c0_1, %c0_2] : memref<3136x512xbf16, #tpu.memory_space<vmem>>, vector<3136x512xbf16>
    %cst = arith.constant dense<0.000000e+00> : vector<2x512xf32>
    %2 = tpu.matmul %0, %1, %cst {dimension_numbers = #tpu.dot_dimension_numbers<[1], [0], [0], [1], [0, 0, 1, 1], [], []>} : vector<2x3136xbf16>, vector<3136x512xbf16>, vector<2x512xf32> -> vector<2x512xf32>
    %c0_3 = arith.constant 0 : index
    %c0_4 = arith.constant 0 : index
    %3 = vector.load %arg3[%c0_3, %c0_4] : memref<1x512xf32, #tpu.memory_space<vmem>>, vector<1x512xf32>
    %4 = vector.broadcast %3 : vector<1x512xf32> to vector<2x512xf32>
    %5 = arith.addf %2, %4 : vector<2x512xf32>
    %cst_5 = arith.constant 0.000000e+00 : f32
    %6 = vector.broadcast %cst_5 : f32 to vector<2x512xf32>
    %7 = arith.maximumf %5, %6 : vector<2x512xf32>
    %8 = arith.truncf %7 : vector<2x512xf32> to vector<2x512xbf16>
    %c0_6 = arith.constant 0 : index
    %c0_7 = arith.constant 0 : index
    %9 = vector.load %arg4[%c0_6, %c0_7] : memref<512x4xbf16, #tpu.memory_space<vmem>>, vector<512x4xbf16>
    %cst_8 = arith.constant dense<0.000000e+00> : vector<2x4xf32>
    %10 = tpu.matmul %8, %9, %cst_8 {dimension_numbers = #tpu.dot_dimension_numbers<[1], [0], [0], [1], [0, 0, 1, 1], [], []>} : vector<2x512xbf16>, vector<512x4xbf16>, vector<2x4xf32> -> vector<2x4xf32>
    %c0_9 = arith.constant 0 : index
    %c0_10 = arith.constant 0 : index
    %11 = vector.load %arg5[%c0_9, %c0_10] : memref<1x4xf32, #tpu.memory_space<vmem>>, vector<1x4xf32>
    %12 = vector.broadcast %11 : vector<1x4xf32> to vector<2x4xf32>
    %13 = arith.addf %10, %12 : vector<2x4xf32>
    %c0_11 = arith.constant 0 : index
    %c0_12 = arith.constant 0 : index
    %14 = vector.load %arg6[%c0_11, %c0_12] : memref<2x4xf32, #tpu.memory_space<vmem>>, vector<2x4xf32>
    tpu.vector_store %arg6[%c0_11, %c0_12], %13 {strides = array<i32>} : memref<2x4xf32, #tpu.memory_space<vmem>>, vector<2x4xf32>,
    %c0_13 = arith.constant 0 : index
    %c0_14 = arith.constant 0 : index
    %15 = vector.load %arg7[%c0_13, %c0_14] : memref<2x512xf32, #tpu.memory_space<vmem>>, vector<2x512xf32>
    tpu.vector_store %arg7[%c0_13, %c0_14], %7 {strides = array<i32>} : memref<2x512xf32, #tpu.memory_space<vmem>>, vector<2x512xf32>,
    return
  }
  func.func @transform_0(%arg0: i32) -> (i32, i32) {
    %c0_i32 = arith.constant 0 : i32
    %c0_i32_0 = arith.constant 0 : i32
    %c0_i32_1 = arith.constant 0 : i32
    return %c0_i32, %c0_i32_0 : i32, i32
  }
  func.func @transform_1(%arg0: i32) -> (i32, i32) {
    %c0_i32 = arith.constant 0 : i32
    %c0_i32_0 = arith.constant 0 : i32
    %c0_i32_1 = arith.constant 0 : i32
    return %c0_i32, %c0_i32_0 : i32, i32
  }
  func.func @transform_2(%arg0: i32) -> (i32, i32) {
    %c0_i32 = arith.constant 0 : i32
    %c0_i32_0 = arith.constant 0 : i32
    %c0_i32_1 = arith.constant 0 : i32
    return %c0_i32, %c0_i32_0 : i32, i32
  }
  func.func @transform_3(%arg0: i32) -> (i32, i32) {
    %c0_i32 = arith.constant 0 : i32
    %c0_i32_0 = arith.constant 0 : i32
    %c0_i32_1 = arith.constant 0 : i32
    return %c0_i32, %c0_i32_0 : i32, i32
  }
  func.func @transform_4(%arg0: i32) -> (i32, i32) {
    %c0_i32 = arith.constant 0 : i32
    %c0_i32_0 = arith.constant 0 : i32
    %c0_i32_1 = arith.constant 0 : i32
    return %c0_i32, %c0_i32_0 : i32, i32
  }
  func.func @transform_5(%arg0: i32) -> (i32, i32) {
    %c0_i32 = arith.constant 0 : i32
    %c0_i32_0 = arith.constant 0 : i32
    %c0_i32_1 = arith.constant 0 : i32
    return %c0_i32, %c0_i32_0 : i32, i32
  }
  func.func @transform_6(%arg0: i32) -> (i32, i32) {
    %c0_i32 = arith.constant 0 : i32
    %c0_i32_0 = arith.constant 0 : i32
    %c0_i32_1 = arith.constant 0 : i32
    return %c0_i32, %c0_i32_0 : i32, i32
  }
}

</mosaic_0001>

<llo_original>
// kernel: forward.4
$region0: #{forward.4}
  #allocation0 [shape = 'u32[]', space=smem, size = 0x4, offset = 0x4, fixed_abs, tag = 'smem constant byte address 0x4 - core index']
  #allocation1 [shape = 'u32[72,128]{1,0:T(1,128)}', space=vmem, size = 0x9000, scoped, tag = 'internal scratch']
  %s0 = inlined_call_operand.vmem [shape: bf16[800,256], index: 0, kind: input, shape index: {}]
  %s1 = inlined_call_operand.vmem [shape: bf16[256,32], index: 1, kind: input, shape index: {}]
  %s2 = inlined_call_operand.vmem [shape: bf16[800,32], index: 2, kind: output, shape index: {}]
  %s3 = sld [smem:[#allocation0]]
  $region18: #{forward.4} parent=0
    _
  %s5 = ssub.s32 1, %s3
  %s6 = scalar_select 0, %s5, %s3
  // Predicated region
  $region2: #{forward.4} parent=0 // pred_check
    _
  $region3: #{forward.4} parent=0 // pred_check_branch
    %8 = sbr.rel (0) target = $region5
  $region4: #{forward.4} parent=0 // pred_region
    _
  $region5: #{forward.4} parent=0 // pred_fallthru
    _
  // Predicated region
  $region6: #{forward.4} parent=0 // pred_check
    _
  $region7: #{forward.4} parent=0 // pred_check_branch
    %10 = sbr.rel (0) target = $region9
  $region8: #{forward.4} parent=0 // pred_region
    _
  $region9: #{forward.4} parent=0 // pred_fallthru
    _
  %v11 = vld [vmem:[%s0] sm:$0xff]
  %v12 = vld [vmem:[%s0 + $0x8] sm:$0xff]
  %v13 = vld [vmem:[%s0 + $0x10] sm:$0xff]
  %v14 = vld [vmem:[%s0 + $0x18] sm:$0xff]
  %v15 = vld [vmem:[%s0 + $0x20] sm:$0xff]
  %v16 = vld [vmem:[%s0 + $0x28] sm:$0xff]
  %v17 = vld [vmem:[%s0 + $0x30] sm:$0xff]
  %v18 = vld [vmem:[%s0 + $0x38] sm:$0xff]
  %v19 = vld [vmem:[%s0 + $0x40] sm:$0xff]
  %v20 = vld [vmem:[%s0 + $0x48] sm:$0xff]
  %v21 = vld [vmem:[%s0 + $0x50] sm:$0xff]
  %v22 = vld [vmem:[%s0 + $0x58] sm:$0xff]
  %v23 = vld [vmem:[%s0 + $0x60] sm:$0xff]
  %v24 = vld [vmem:[%s0 + $0x68] sm:$0xff]
  %v25 = vld [vmem:[%s0 + $0x70] sm:$0xff]
  %v26 = vld [vmem:[%s0 + $0x78] sm:$0xff]
  %v27 = vld [vmem:[%s0 + $0x80] sm:$0xff]
  %v28 = vld [vmem:[%s0 + $0x88] sm:$0xff]
  %v29 = vld [vmem:[%s0 + $0x90] sm:$0xff]
  %v30 = vld [vmem:[%s0 + $0x98] sm:$0xff]
  %v31 = vld [vmem:[%s0 + $0xa0] sm:$0xff]
  %v32 = vld [vmem:[%s0 + $0xa8] sm:$0xff]
  %v33 = vld [vmem:[%s0 + $0xb0] sm:$0xff]
  %v34 = vld [vmem:[%s0 + $0xb8] sm:$0xff]
  %v35 = vld [vmem:[%s0 + $0xc0] sm:$0xff]
  %v36 = vld [vmem:[%s0 + $0xc8] sm:$0xff]
  %v37 = vld [vmem:[%s0 + $0xd0] sm:$0xff]
  %v38 = vld [vmem:[%s0 + $0xd8] sm:$0xff]
  %v39 = vld [vmem:[%s0 + $0xe0] sm:$0xff]
  %v40 = vld [vmem:[%s0 + $0xe8] sm:$0xff]
  %v41 = vld [vmem:[%s0 + $0xf0] sm:$0xff]
  %v42 = vld [vmem:[%s0 + $0xf8] sm:$0xff]
  %v43 = vld [vmem:[%s0 + $0x100] sm:$0xff]
  %v44 = vld [vmem:[%s0 + $0x108] sm:$0xff]
  %v45 = vld [vmem:[%s0 + $0x110] sm:$0xff]
  %v46 = vld [vmem:[%s0 + $0x118] sm:$0xff]
  %v47 = vld [vmem:[%s0 + $0x120] sm:$0xff]
  %v48 = vld [vmem:[%s0 + $0x128] sm:$0xff]
  %v49 = vld [vmem:[%s0 + $0x130] sm:$0xff]
  %v50 = vld [vmem:[%s0 + $0x138] sm:$0xff]
  %v51 = vld [vmem:[%s0 + $0x140] sm:$0xff]
  %v52 = vld [vmem:[%s0 + $0x148] sm:$0xff]
  %v53 = vld [vmem:[%s0 + $0x150] sm:$0xff]
  %v54 = vld [vmem:[%s0 + $0x158] sm:$0xff]
  %v55 = vld [vmem:[%s0 + $0x160] sm:$0xff]
  %v56 = vld [vmem:[%s0 + $0x168] sm:$0xff]
  %v57 = vld [vmem:[%s0 + $0x170] sm:$0xff]
  %v58 = vld [vmem:[%s0 + $0x178] sm:$0xff]
  %v59 = vld [vmem:[%s0 + $0x180] sm:$0xff]
  %v60 = vld [vmem:[%s0 + $0x188] sm:$0xff]
  %v61 = vld [vmem:[%s0 + $0x190] sm:$0xff]
  %v62 = vld [vmem:[%s0 + $0x198] sm:$0xff]
  %v63 = vld [vmem:[%s0 + $0x1a0] sm:$0xff]
  %v64 = vld [vmem:[%s0 + $0x1a8] sm:$0xff]
  %v65 = vld [vmem:[%s0 + $0x1b0] sm:$0xff]
  %v66 = vld [vmem:[%s0 + $0x1b8] sm:$0xff]
  %v67 = vld [vmem:[%s0 + $0x1c0] sm:$0xff]
  %v68 = vld [vmem:[%s0 + $0x1c8] sm:$0xff]
  %v69 = vld [vmem:[%s0 + $0x1d0] sm:$0xff]
  %v70 = vld [vmem:[%s0 + $0x1d8] sm:$0xff]
  %v71 = vld [vmem:[%s0 + $0x1e0] sm:$0xff]
  %v72 = vld [vmem:[%s0 + $0x1e8] sm:$0xff]
  %v73 = vld [vmem:[%s0 + $0x1f0] sm:$0xff]
  %v74 = vld [vmem:[%s0 + $0x1f8] sm:$0xff]
  %v75 = vld [vmem:[%s0 + $0x200] sm:$0xff]
  %v76 = vld [vmem:[%s0 + $0x208] sm:$0xff]
  %v77 = vld [vmem:[%s0 + $0x210] sm:$0xff]
  %v78 = vld [vmem:[%s0 + $0x218] sm:$0xff]
  %v79 = vld [vmem:[%s0 + $0x220] sm:$0xff]
  %v80 = vld [vmem:[%s0 + $0x228] sm:$0xff]
  %v81 = vld [vmem:[%s0 + $0x230] sm:$0xff]
  %v82 = vld [vmem:[%s0 + $0x238] sm:$0xff]
  %v83 = vld [vmem:[%s0 + $0x240] sm:$0xff]
  %v84 = vld [vmem:[%s0 + $0x248] sm:$0xff]
  %v85 = vld [vmem:[%s0 + $0x250] sm:$0xff]
  %v86 = vld [vmem:[%s0 + $0x258] sm:$0xff]
  %v87 = vld [vmem:[%s0 + $0x260] sm:$0xff]
  %v88 = vld [vmem:[%s0 + $0x268] sm:$0xff]
  %v89 = vld [vmem:[%s0 + $0x270] sm:$0xff]
  %v90 = vld [vmem:[%s0 + $0x278] sm:$0xff]
  %v91 = vld [vmem:[%s0 + $0x280] sm:$0xff]
  %v92 = vld [vmem:[%s0 + $0x288] sm:$0xff]
  %v93 = vld [vmem:[%s0 + $0x290] sm:$0xff]
  %v94 = vld [vmem:[%s0 + $0x298] sm:$0xff]
  %v95 = vld [vmem:[%s0 + $0x2a0] sm:$0xff]
  %v96 = vld [vmem:[%s0 + $0x2a8] sm:$0xff]
  %v97 = vld [vmem:[%s0 + $0x2b0] sm:$0xff]
  %v98 = vld [vmem:[%s0 + $0x2b8] sm:$0xff]
  %v99 = vld [vmem:[%s0 + $0x2c0] sm:$0xff]
  %v100 = vld [vmem:[%s0 + $0x2c8] sm:$0xff]
  %v101 = vld [vmem:[%s0 + $0x2d0] sm:$0xff]
  %v102 = vld [vmem:[%s0 + $0x2d8] sm:$0xff]
  %v103 = vld [vmem:[%s0 + $0x2e0] sm:$0xff]
  %v104 = vld [vmem:[%s0 + $0x2e8] sm:$0xff]
  %v105 = vld [vmem:[%s0 + $0x2f0] sm:$0xff]
  %v106 = vld [vmem:[%s0 + $0x2f8] sm:$0xff]
  %v107 = vld [vmem:[%s0 + $0x300] sm:$0xff]
  %v108 = vld [vmem:[%s0 + $0x308] sm:$0xff]
  %v109 = vld [vmem:[%s0 + $0x310] sm:$0xff]
  %v110 = vld [vmem:[%s0 + $0x318] sm:$0xff]
  %v111 = vld [vmem:[%s1] sm:$0xf]
  %v112 = vld [vmem:[%s1 + $0x4] sm:$0xf]
  %v113 = vld [vmem:[%s1 + $0x8] sm:$0xf]
  %v114 = vld [vmem:[%s1 + $0xc] sm:$0xf]
  %v115 = vld [vmem:[%s1 + $0x10] sm:$0xf]
  %v116 = vld [vmem:[%s1 + $0x14] sm:$0xf]
  %v117 = vld [vmem:[%s1 + $0x18] sm:$0xf]
  %v118 = vld [vmem:[%s1 + $0x1c] sm:$0xf]
  %v119 = vld [vmem:[%s1 + $0x20] sm:$0xf]
  %v120 = vld [vmem:[%s1 + $0x24] sm:$0xf]
  %v121 = vld [vmem:[%s1 + $0x28] sm:$0xf]
  %v122 = vld [vmem:[%s1 + $0x2c] sm:$0xf]
  %v123 = vld [vmem:[%s1 + $0x30] sm:$0xf]
  %v124 = vld [vmem:[%s1 + $0x34] sm:$0xf]
  %v125 = vld [vmem:[%s1 + $0x38] sm:$0xf]
  %v126 = vld [vmem:[%s1 + $0x3c] sm:$0xf]
  %v127 = vld [vmem:[%s1 + $0x40] sm:$0xf]
  %v128 = vld [vmem:[%s1 + $0x44] sm:$0xf]
  %v129 = vld [vmem:[%s1 + $0x48] sm:$0xf]
  %v130 = vld [vmem:[%s1 + $0x4c] sm:$0xf]
  %v131 = vld [vmem:[%s1 + $0x50] sm:$0xf]
  %v132 = vld [vmem:[%s1 + $0x54] sm:$0xf]
  %v133 = vld [vmem:[%s1 + $0x58] sm:$0xf]
  %v134 = vld [vmem:[%s1 + $0x5c] sm:$0xf]
  %v135 = vld [vmem:[%s1 + $0x60] sm:$0xf]
  %v136 = vld [vmem:[%s1 + $0x64] sm:$0xf]
  %v137 = vld [vmem:[%s1 + $0x68] sm:$0xf]
  %v138 = vld [vmem:[%s1 + $0x6c] sm:$0xf]
  %v139 = vld [vmem:[%s1 + $0x70] sm:$0xf]
  %v140 = vld [vmem:[%s1 + $0x74] sm:$0xf]
  %v141 = vld [vmem:[%s1 + $0x78] sm:$0xf]
  %v142 = vld [vmem:[%s1 + $0x7c] sm:$0xf]
  %v243 = vunpack.c.l.b16 %v11
  %v244 = vunpack.c.h.b16 %v11
  %v245 = vunpack.c.l.b16 %v12
  %v246 = vunpack.c.h.b16 %v12
  %v247 = vunpack.c.l.b16 %v13
  %v248 = vunpack.c.h.b16 %v13
  %v249 = vunpack.c.l.b16 %v14
  %v250 = vunpack.c.h.b16 %v14
  %v251 = vunpack.c.l.b16 %v15
  %v252 = vunpack.c.h.b16 %v15
  %v253 = vunpack.c.l.b16 %v16
  %v254 = vunpack.c.h.b16 %v16
  %v255 = vunpack.c.l.b16 %v17
  %v256 = vunpack.c.h.b16 %v17
  %v257 = vunpack.c.l.b16 %v18
  %v258 = vunpack.c.h.b16 %v18
  %v259 = vunpack.c.l.b16 %v19
  %v260 = vunpack.c.h.b16 %v19
  %v261 = vunpack.c.l.b16 %v20
  %v262 = vunpack.c.h.b16 %v20
  %v263 = vunpack.c.l.b16 %v21
  %v264 = vunpack.c.h.b16 %v21
  %v265 = vunpack.c.l.b16 %v22
  %v266 = vunpack.c.h.b16 %v22
  %v267 = vunpack.c.l.b16 %v23
  %v268 = vunpack.c.h.b16 %v23
  %v269 = vunpack.c.l.b16 %v24
  %v270 = vunpack.c.h.b16 %v24
  %v271 = vunpack.c.l.b16 %v25
  %v272 = vunpack.c.h.b16 %v25
  %v273 = vunpack.c.l.b16 %v26
  %v274 = vunpack.c.h.b16 %v26
  %v275 = vunpack.c.l.b16 %v27
  %v276 = vunpack.c.h.b16 %v27
  %v277 = vunpack.c.l.b16 %v28
  %v278 = vunpack.c.h.b16 %v28
  %v279 = vunpack.c.l.b16 %v29
  %v280 = vunpack.c.h.b16 %v29
  %v281 = vunpack.c.l.b16 %v30
  %v282 = vunpack.c.h.b16 %v30
  %v283 = vunpack.c.l.b16 %v31
  %v284 = vunpack.c.h.b16 %v31
  %v285 = vunpack.c.l.b16 %v32
  %v286 = vunpack.c.h.b16 %v32
  %v287 = vunpack.c.l.b16 %v33
  %v288 = vunpack.c.h.b16 %v33
  %v289 = vunpack.c.l.b16 %v34
  %v290 = vunpack.c.h.b16 %v34
  %v291 = vunpack.c.l.b16 %v35
  %v292 = vunpack.c.h.b16 %v35
  %v293 = vunpack.c.l.b16 %v36
  %v294 = vunpack.c.h.b16 %v36
  %v295 = vunpack.c.l.b16 %v37
  %v296 = vunpack.c.h.b16 %v37
  %v297 = vunpack.c.l.b16 %v38
  %v298 = vunpack.c.h.b16 %v38
  %v299 = vunpack.c.l.b16 %v39
  %v300 = vunpack.c.h.b16 %v39
  %v301 = vunpack.c.l.b16 %v40
  %v302 = vunpack.c.h.b16 %v40
  %v303 = vunpack.c.l.b16 %v41
  %v304 = vunpack.c.h.b16 %v41
  %v305 = vunpack.c.l.b16 %v42
  %v306 = vunpack.c.h.b16 %v42
  %v307 = vunpack.c.l.b16 %v43
  %v308 = vunpack.c.h.b16 %v43
  %v309 = vunpack.c.l.b16 %v44
  %v310 = vunpack.c.h.b16 %v44
  %v311 = vunpack.c.l.b16 %v45
  %v312 = vunpack.c.h.b16 %v45
  %v313 = vunpack.c.l.b16 %v46
  %v314 = vunpack.c.h.b16 %v46
  %v315 = vunpack.c.l.b16 %v47
  %v316 = vunpack.c.h.b16 %v47
  %v317 = vunpack.c.l.b16 %v48
  %v318 = vunpack.c.h.b16 %v48
  %v319 = vunpack.c.l.b16 %v49
  %v320 = vunpack.c.h.b16 %v49
  %v321 = vunpack.c.l.b16 %v50
  %v322 = vunpack.c.h.b16 %v50
  %v323 = vunpack.c.l.b16 %v51
  %v324 = vunpack.c.h.b16 %v51
  %v325 = vunpack.c.l.b16 %v52
  %v326 = vunpack.c.h.b16 %v52
  %v327 = vunpack.c.l.b16 %v53
  %v328 = vunpack.c.h.b16 %v53
  %v329 = vunpack.c.l.b16 %v54
  %v330 = vunpack.c.h.b16 %v54
  %v331 = vunpack.c.l.b16 %v55
  %v332 = vunpack.c.h.b16 %v55
  %v333 = vunpack.c.l.b16 %v56
  %v334 = vunpack.c.h.b16 %v56
  %v335 = vunpack.c.l.b16 %v57
  %v336 = vunpack.c.h.b16 %v57
  %v337 = vunpack.c.l.b16 %v58
  %v338 = vunpack.c.h.b16 %v58
  %v339 = vunpack.c.l.b16 %v59
  %v340 = vunpack.c.h.b16 %v59
  %v341 = vunpack.c.l.b16 %v60
  %v342 = vunpack.c.h.b16 %v60
  %v343 = vunpack.c.l.b16 %v61
  %v344 = vunpack.c.h.b16 %v61
  %v345 = vunpack.c.l.b16 %v62
  %v346 = vunpack.c.h.b16 %v62
  %v347 = vunpack.c.l.b16 %v63
  %v348 = vunpack.c.h.b16 %v63
  %v349 = vunpack.c.l.b16 %v64
  %v350 = vunpack.c.h.b16 %v64
  %v351 = vunpack.c.l.b16 %v65
  %v352 = vunpack.c.h.b16 %v65
  %v353 = vunpack.c.l.b16 %v66
  %v354 = vunpack.c.h.b16 %v66
  %v355 = vunpack.c.l.b16 %v67
  %v356 = vunpack.c.h.b16 %v67
  %v357 = vunpack.c.l.b16 %v68
  %v358 = vunpack.c.h.b16 %v68
  %v359 = vunpack.c.l.b16 %v69
  %v360 = vunpack.c.h.b16 %v69
  %v361 = vunpack.c.l.b16 %v70
  %v362 = vunpack.c.h.b16 %v70
  %v363 = vunpack.c.l.b16 %v71
  %v364 = vunpack.c.h.b16 %v71
  %v365 = vunpack.c.l.b16 %v72
  %v366 = vunpack.c.h.b16 %v72
  %v367 = vunpack.c.l.b16 %v73
  %v368 = vunpack.c.h.b16 %v73
  %v369 = vunpack.c.l.b16 %v74
  %v370 = vunpack.c.h.b16 %v74
  %v371 = vunpack.c.l.b16 %v75
  %v372 = vunpack.c.h.b16 %v75
  %v373 = vunpack.c.l.b16 %v76
  %v374 = vunpack.c.h.b16 %v76
  %v375 = vunpack.c.l.b16 %v77
  %v376 = vunpack.c.h.b16 %v77
  %v377 = vunpack.c.l.b16 %v78
  %v378 = vunpack.c.h.b16 %v78
  %v379 = vunpack.c.l.b16 %v79
  %v380 = vunpack.c.h.b16 %v79
  %v381 = vunpack.c.l.b16 %v80
  %v382 = vunpack.c.h.b16 %v80
  %v383 = vunpack.c.l.b16 %v81
  %v384 = vunpack.c.h.b16 %v81
  %v385 = vunpack.c.l.b16 %v82
  %v386 = vunpack.c.h.b16 %v82
  %v387 = vunpack.c.l.b16 %v83
  %v388 = vunpack.c.h.b16 %v83
  %v389 = vunpack.c.l.b16 %v84
  %v390 = vunpack.c.h.b16 %v84
  %v391 = vunpack.c.l.b16 %v85
  %v392 = vunpack.c.h.b16 %v85
  %v393 = vunpack.c.l.b16 %v86
  %v394 = vunpack.c.h.b16 %v86
  %v395 = vunpack.c.l.b16 %v87
  %v396 = vunpack.c.h.b16 %v87
  %v397 = vunpack.c.l.b16 %v88
  %v398 = vunpack.c.h.b16 %v88
  %v399 = vunpack.c.l.b16 %v89
  %v400 = vunpack.c.h.b16 %v89
  %v401 = vunpack.c.l.b16 %v90
  %v402 = vunpack.c.h.b16 %v90
  %v403 = vunpack.c.l.b16 %v91
  %v404 = vunpack.c.h.b16 %v91
  %v405 = vunpack.c.l.b16 %v92
  %v406 = vunpack.c.h.b16 %v92
  %v407 = vunpack.c.l.b16 %v93
  %v408 = vunpack.c.h.b16 %v93
  %v409 = vunpack.c.l.b16 %v94
  %v410 = vunpack.c.h.b16 %v94
  %v411 = vunpack.c.l.b16 %v95
  %v412 = vunpack.c.h.b16 %v95
  %v413 = vunpack.c.l.b16 %v96
  %v414 = vunpack.c.h.b16 %v96
  %v415 = vunpack.c.l.b16 %v97
  %v416 = vunpack.c.h.b16 %v97
  %v417 = vunpack.c.l.b16 %v98
  %v418 = vunpack.c.h.b16 %v98
  %v419 = vunpack.c.l.b16 %v99
  %v420 = vunpack.c.h.b16 %v99
  %v421 = vunpack.c.l.b16 %v100
  %v422 = vunpack.c.h.b16 %v100
  %v423 = vunpack.c.l.b16 %v101
  %v424 = vunpack.c.h.b16 %v101
  %v425 = vunpack.c.l.b16 %v102
  %v426 = vunpack.c.h.b16 %v102
  %v427 = vunpack.c.l.b16 %v103
  %v428 = vunpack.c.h.b16 %v103
  %v429 = vunpack.c.l.b16 %v104
  %v430 = vunpack.c.h.b16 %v104
  %v431 = vunpack.c.l.b16 %v105
  %v432 = vunpack.c.h.b16 %v105
  %v433 = vunpack.c.l.b16 %v106
  %v434 = vunpack.c.h.b16 %v106
  %v435 = vunpack.c.l.b16 %v107
  %v436 = vunpack.c.h.b16 %v107
  %v437 = vunpack.c.l.b16 %v108
  %v438 = vunpack.c.h.b16 %v108
  %v439 = vunpack.c.l.b16 %v109
  %v440 = vunpack.c.h.b16 %v109
  %v441 = vunpack.c.l.b16 %v110
  %v442 = vunpack.c.h.b16 %v110
  %v443 = vpack.c.b16 %v245, %v243
  %v444 = vpack.c.b16 %v246, %v244
  %v445 = vpack.c.b16 %v249, %v247
  %v446 = vpack.c.b16 %v250, %v248
  %v447 = vpack.c.b16 %v253, %v251
  %v448 = vpack.c.b16 %v254, %v252
  %v449 = vpack.c.b16 %v257, %v255
  %v450 = vpack.c.b16 %v258, %v256
  %v451 = vpack.c.b16 %v261, %v259
  %v452 = vpack.c.b16 %v262, %v260
  %v453 = vpack.c.b16 %v265, %v263
  %v454 = vpack.c.b16 %v266, %v264
  %v455 = vpack.c.b16 %v269, %v267
  %v456 = vpack.c.b16 %v270, %v268
  %v457 = vpack.c.b16 %v273, %v271
  %v458 = vpack.c.b16 %v274, %v272
  %v459 = vpack.c.b16 %v277, %v275
  %v460 = vpack.c.b16 %v278, %v276
  %v461 = vpack.c.b16 %v281, %v279
  %v462 = vpack.c.b16 %v282, %v280
  %v463 = vpack.c.b16 %v285, %v283
  %v464 = vpack.c.b16 %v286, %v284
  %v465 = vpack.c.b16 %v289, %v287
  %v466 = vpack.c.b16 %v290, %v288
  %v467 = vpack.c.b16 %v293, %v291
  %v468 = vpack.c.b16 %v294, %v292
  %v469 = vpack.c.b16 %v297, %v295
  %v470 = vpack.c.b16 %v298, %v296
  %v471 = vpack.c.b16 %v301, %v299
  %v472 = vpack.c.b16 %v302, %v300
  %v473 = vpack.c.b16 %v305, %v303
  %v474 = vpack.c.b16 %v306, %v304
  %v475 = vpack.c.b16 %v309, %v307
  %v476 = vpack.c.b16 %v310, %v308
  %v477 = vpack.c.b16 %v313, %v311
  %v478 = vpack.c.b16 %v314, %v312
  %v479 = vpack.c.b16 %v317, %v315
  %v480 = vpack.c.b16 %v318, %v316
  %v481 = vpack.c.b16 %v321, %v319
  %v482 = vpack.c.b16 %v322, %v320
  %v483 = vpack.c.b16 %v325, %v323
  %v484 = vpack.c.b16 %v326, %v324
  %v485 = vpack.c.b16 %v329, %v327
  %v486 = vpack.c.b16 %v330, %v328
  %v487 = vpack.c.b16 %v333, %v331
  %v488 = vpack.c.b16 %v334, %v332
  %v489 = vpack.c.b16 %v337, %v335
  %v490 = vpack.c.b16 %v338, %v336
  %v491 = vpack.c.b16 %v341, %v339
  %v492 = vpack.c.b16 %v342, %v340
  %v493 = vpack.c.b16 %v345, %v343
  %v494 = vpack.c.b16 %v346, %v344
  %v495 = vpack.c.b16 %v349, %v347
  %v496 = vpack.c.b16 %v350, %v348
  %v497 = vpack.c.b16 %v353, %v351
  %v498 = vpack.c.b16 %v354, %v352
  %v499 = vpack.c.b16 %v357, %v355
  %v500 = vpack.c.b16 %v358, %v356
  %v501 = vpack.c.b16 %v361, %v359
  %v502 = vpack.c.b16 %v362, %v360
  %v503 = vpack.c.b16 %v365, %v363
  %v504 = vpack.c.b16 %v366, %v364
  %v505 = vpack.c.b16 %v369, %v367
  %v506 = vpack.c.b16 %v370, %v368
  %v507 = vpack.c.b16 %v373, %v371
  %v508 = vpack.c.b16 %v374, %v372
  %v509 = vpack.c.b16 %v377, %v375
  %v510 = vpack.c.b16 %v378, %v376
  %v511 = vpack.c.b16 %v381, %v379
  %v512 = vpack.c.b16 %v382, %v380
  %v513 = vpack.c.b16 %v385, %v383
  %v514 = vpack.c.b16 %v386, %v384
  %v515 = vpack.c.b16 %v389, %v387
  %v516 = vpack.c.b16 %v390, %v388
  %v517 = vpack.c.b16 %v393, %v391
  %v518 = vpack.c.b16 %v394, %v392
  %v519 = vpack.c.b16 %v397, %v395
  %v520 = vpack.c.b16 %v398, %v396
  %v521 = vpack.c.b16 %v401, %v399
  %v522 = vpack.c.b16 %v402, %v400
  %v523 = vpack.c.b16 %v405, %v403
  %v524 = vpack.c.b16 %v406, %v404
  %v525 = vpack.c.b16 %v409, %v407
  %v526 = vpack.c.b16 %v410, %v408
  %v527 = vpack.c.b16 %v413, %v411
  %v528 = vpack.c.b16 %v414, %v412
  %v529 = vpack.c.b16 %v417, %v415
  %v530 = vpack.c.b16 %v418, %v416
  %v531 = vpack.c.b16 %v421, %v419
  %v532 = vpack.c.b16 %v422, %v420
  %v533 = vpack.c.b16 %v425, %v423
  %v534 = vpack.c.b16 %v426, %v424
  %v535 = vpack.c.b16 %v429, %v427
  %v536 = vpack.c.b16 %v430, %v428
  %v537 = vpack.c.b16 %v433, %v431
  %v538 = vpack.c.b16 %v434, %v432
  %v539 = vpack.c.b16 %v437, %v435
  %v540 = vpack.c.b16 %v438, %v436
  %v541 = vpack.c.b16 %v441, %v439
  %v542 = vpack.c.b16 %v442, %v440
  %v675 = vunpack.c.l.b16 %v111
  %v676 = vunpack.c.l.b16 %v112
  %v677 = vunpack.c.l.b16 %v113
  %v678 = vunpack.c.l.b16 %v114
  %v679 = vunpack.c.l.b16 %v115
  %v680 = vunpack.c.l.b16 %v116
  %v681 = vunpack.c.l.b16 %v117
  %v682 = vunpack.c.l.b16 %v118
  %v683 = vunpack.c.l.b16 %v119
  %v684 = vunpack.c.l.b16 %v120
  %v685 = vunpack.c.l.b16 %v121
  %v686 = vunpack.c.l.b16 %v122
  %v687 = vunpack.c.l.b16 %v123
  %v688 = vunpack.c.l.b16 %v124
  %v689 = vunpack.c.l.b16 %v125
  %v690 = vunpack.c.l.b16 %v126
  %v691 = vunpack.c.l.b16 %v127
  %v692 = vunpack.c.l.b16 %v128
  %v693 = vunpack.c.l.b16 %v129
  %v694 = vunpack.c.l.b16 %v130
  %v695 = vunpack.c.l.b16 %v131
  %v696 = vunpack.c.l.b16 %v132
  %v697 = vunpack.c.l.b16 %v133
  %v698 = vunpack.c.l.b16 %v134
  %v699 = vunpack.c.l.b16 %v135
  %v700 = vunpack.c.l.b16 %v136
  %v701 = vunpack.c.l.b16 %v137
  %v702 = vunpack.c.l.b16 %v138
  %v703 = vunpack.c.l.b16 %v139
  %v704 = vunpack.c.l.b16 %v140
  %v705 = vunpack.c.l.b16 %v141
  %v706 = vunpack.c.l.b16 %v142
  %v707 = vpack.c.b16 %v676, %v675
  %v708 = vpack.c.b16 %v678, %v677
  %v709 = vpack.c.b16 %v680, %v679
  %v710 = vpack.c.b16 %v682, %v681
  %v711 = vpack.c.b16 %v684, %v683
  %v712 = vpack.c.b16 %v686, %v685
  %v713 = vpack.c.b16 %v688, %v687
  %v714 = vpack.c.b16 %v690, %v689
  %v715 = vpack.c.b16 %v692, %v691
  %v716 = vpack.c.b16 %v694, %v693
  %v717 = vpack.c.b16 %v696, %v695
  %v718 = vpack.c.b16 %v698, %v697
  %v719 = vpack.c.b16 %v700, %v699
  %v720 = vpack.c.b16 %v702, %v701
  %v721 = vpack.c.b16 %v704, %v703
  %v722 = vpack.c.b16 %v706, %v705
  %739 = vmatpush.bf16.msra.mxu0 %v714
  %740 = vmatpush.bf16.msra.mxu0 %v713
  %741 = vmatpush.bf16.msra.mxu0 %v712
  %742 = vmatpush.bf16.msra.mxu0 %v711
  %743 = vmatpush.bf16.msra.mxu0 %v710
  %744 = vmatpush.bf16.msra.mxu0 %v709
  %745 = vmatpush.bf16.msra.mxu0 %v708
  %746 = vmatpush.bf16.msra.mxu0 %v707
  %747 = vmatmul.bf16.gmra.mxu0 %v443
  %v748 = vpop.f32.mrf.mxu0
  %v749 = vadd.f32 0.0, %v748
  %v750 = vpop.f32.mrf.mxu0
  %v751 = vadd.f32 0.0, %v750
  %752 = vmatmul.bf16.gmra.mxu0 %v445
  %v753 = vpop.f32.mrf.mxu0
  %v754 = vadd.f32 0.0, %v753
  %v755 = vpop.f32.mrf.mxu0
  %v756 = vadd.f32 0.0, %v755
  %757 = vmatmul.bf16.gmra.mxu0 %v447
  %v758 = vpop.f32.mrf.mxu0
  %v759 = vadd.f32 0.0, %v758
  %v760 = vpop.f32.mrf.mxu0
  %v761 = vadd.f32 0.0, %v760
  %762 = vmatmul.bf16.gmra.mxu0 %v449
  %v763 = vpop.f32.mrf.mxu0
  %v764 = vadd.f32 0.0, %v763
  %v765 = vpop.f32.mrf.mxu0
  %v766 = vadd.f32 0.0, %v765
  %767 = vmatmul.bf16.gmra.mxu0 %v451
  %v768 = vpop.f32.mrf.mxu0
  %v769 = vadd.f32 0.0, %v768
  %v770 = vpop.f32.mrf.mxu0
  %v771 = vadd.f32 0.0, %v770
  %772 = vmatmul.bf16.gmra.mxu0 %v453
  %v773 = vpop.f32.mrf.mxu0
  %v774 = vadd.f32 0.0, %v773
  %v775 = vpop.f32.mrf.mxu0
  %v776 = vadd.f32 0.0, %v775
  %777 = vmatmul.bf16.gmra.mxu0 %v455
  %v778 = vpop.f32.mrf.mxu0
  %v779 = vadd.f32 0.0, %v778
  %v780 = vpop.f32.mrf.mxu0
  %v781 = vadd.f32 0.0, %v780
  %782 = vmatmul.bf16.gmra.mxu0 %v457
  %v783 = vpop.f32.mrf.mxu0
  %v784 = vadd.f32 0.0, %v783
  %v785 = vpop.f32.mrf.mxu0
  %v786 = vadd.f32 0.0, %v785
  %787 = vmatmul.bf16.gmra.mxu0 %v459
  %v788 = vpop.f32.mrf.mxu0
  %v789 = vadd.f32 0.0, %v788
  %v790 = vpop.f32.mrf.mxu0
  %v791 = vadd.f32 0.0, %v790
  %792 = vmatmul.bf16.gmra.mxu0 %v461
  %v793 = vpop.f32.mrf.mxu0
  %v794 = vadd.f32 0.0, %v793
  %v795 = vpop.f32.mrf.mxu0
  %v796 = vadd.f32 0.0, %v795
  %797 = vmatmul.bf16.gmra.mxu0 %v463
  %v798 = vpop.f32.mrf.mxu0
  %v799 = vadd.f32 0.0, %v798
  %v800 = vpop.f32.mrf.mxu0
  %v801 = vadd.f32 0.0, %v800
  %802 = vmatmul.bf16.gmra.mxu0 %v465
  %v803 = vpop.f32.mrf.mxu0
  %v804 = vadd.f32 0.0, %v803
  %v805 = vpop.f32.mrf.mxu0
  %v806 = vadd.f32 0.0, %v805
  %807 = vmatmul.bf16.gmra.mxu0 %v467
  %v808 = vpop.f32.mrf.mxu0
  %v809 = vadd.f32 0.0, %v808
  %v810 = vpop.f32.mrf.mxu0
  %v811 = vadd.f32 0.0, %v810
  %812 = vmatmul.bf16.gmra.mxu0 %v469
  %v813 = vpop.f32.mrf.mxu0
  %v814 = vadd.f32 0.0, %v813
  %v815 = vpop.f32.mrf.mxu0
  %v816 = vadd.f32 0.0, %v815
  %817 = vmatmul.bf16.gmra.mxu0 %v471
  %v818 = vpop.f32.mrf.mxu0
  %v819 = vadd.f32 0.0, %v818
  %v820 = vpop.f32.mrf.mxu0
  %v821 = vadd.f32 0.0, %v820
  %822 = vmatmul.bf16.gmra.mxu0 %v473
  %v823 = vpop.f32.mrf.mxu0
  %v824 = vadd.f32 0.0, %v823
  %v825 = vpop.f32.mrf.mxu0
  %v826 = vadd.f32 0.0, %v825
  %827 = vmatmul.bf16.gmra.mxu0 %v475
  %v828 = vpop.f32.mrf.mxu0
  %v829 = vadd.f32 0.0, %v828
  %v830 = vpop.f32.mrf.mxu0
  %v831 = vadd.f32 0.0, %v830
  %832 = vmatmul.bf16.gmra.mxu0 %v477
  %v833 = vpop.f32.mrf.mxu0
  %v834 = vadd.f32 0.0, %v833
  %v835 = vpop.f32.mrf.mxu0
  %v836 = vadd.f32 0.0, %v835
  %837 = vmatmul.bf16.gmra.mxu0 %v479
  %v838 = vpop.f32.mrf.mxu0
  %v839 = vadd.f32 0.0, %v838
  %v840 = vpop.f32.mrf.mxu0
  %v841 = vadd.f32 0.0, %v840
  %842 = vmatmul.bf16.gmra.mxu0 %v481
  %v843 = vpop.f32.mrf.mxu0
  %v844 = vadd.f32 0.0, %v843
  %v845 = vpop.f32.mrf.mxu0
  %v846 = vadd.f32 0.0, %v845
  %847 = vmatmul.bf16.gmra.mxu0 %v483
  %v848 = vpop.f32.mrf.mxu0
  %v849 = vadd.f32 0.0, %v848
  %v850 = vpop.f32.mrf.mxu0
  %v851 = vadd.f32 0.0, %v850
  %852 = vmatmul.bf16.gmra.mxu0 %v485
  %v853 = vpop.f32.mrf.mxu0
  %v854 = vadd.f32 0.0, %v853
  %v855 = vpop.f32.mrf.mxu0
  %v856 = vadd.f32 0.0, %v855
  %857 = vmatmul.bf16.gmra.mxu0 %v487
  %v858 = vpop.f32.mrf.mxu0
  %v859 = vadd.f32 0.0, %v858
  %v860 = vpop.f32.mrf.mxu0
  %v861 = vadd.f32 0.0, %v860
  %862 = vmatmul.bf16.gmra.mxu0 %v489
  %v863 = vpop.f32.mrf.mxu0
  %v864 = vadd.f32 0.0, %v863
  %v865 = vpop.f32.mrf.mxu0
  %v866 = vadd.f32 0.0, %v865
  %867 = vmatmul.bf16.gmra.mxu0 %v491
  %v868 = vpop.f32.mrf.mxu0
  %v869 = vadd.f32 0.0, %v868
  %v870 = vpop.f32.mrf.mxu0
  %v871 = vadd.f32 0.0, %v870
  %872 = vmatmul.bf16.gmra.mxu0 %v493
  %v873 = vpop.f32.mrf.mxu0
  %v874 = vadd.f32 0.0, %v873
  %v875 = vpop.f32.mrf.mxu0
  %v876 = vadd.f32 0.0, %v875
  %877 = vmatmul.bf16.gmra.mxu0 %v495
  %v878 = vpop.f32.mrf.mxu0
  %v879 = vadd.f32 0.0, %v878
  %v880 = vpop.f32.mrf.mxu0
  %v881 = vadd.f32 0.0, %v880
  %882 = vmatmul.bf16.gmra.mxu0 %v497
  %v883 = vpop.f32.mrf.mxu0
  %v884 = vadd.f32 0.0, %v883
  %v885 = vpop.f32.mrf.mxu0
  %v886 = vadd.f32 0.0, %v885
  %887 = vmatmul.bf16.gmra.mxu0 %v499
  %v888 = vpop.f32.mrf.mxu0
  %v889 = vadd.f32 0.0, %v888
  %v890 = vpop.f32.mrf.mxu0
  %v891 = vadd.f32 0.0, %v890
  %892 = vmatmul.bf16.gmra.mxu0 %v501
  %v893 = vpop.f32.mrf.mxu0
  %v894 = vadd.f32 0.0, %v893
  %v895 = vpop.f32.mrf.mxu0
  %v896 = vadd.f32 0.0, %v895
  %897 = vmatmul.bf16.gmra.mxu0 %v503
  %v898 = vpop.f32.mrf.mxu0
  %v899 = vadd.f32 0.0, %v898
  %v900 = vpop.f32.mrf.mxu0
  %v901 = vadd.f32 0.0, %v900
  %902 = vmatmul.bf16.gmra.mxu0 %v505
  %v903 = vpop.f32.mrf.mxu0
  %v904 = vadd.f32 0.0, %v903
  %v905 = vpop.f32.mrf.mxu0
  %v906 = vadd.f32 0.0, %v905
  %907 = vmatmul.bf16.gmra.mxu0 %v507
  %v908 = vpop.f32.mrf.mxu0
  %v909 = vadd.f32 0.0, %v908
  %v910 = vpop.f32.mrf.mxu0
  %v911 = vadd.f32 0.0, %v910
  %912 = vmatmul.bf16.gmra.mxu0 %v509
  %v913 = vpop.f32.mrf.mxu0
  %v914 = vadd.f32 0.0, %v913
  %v915 = vpop.f32.mrf.mxu0
  %v916 = vadd.f32 0.0, %v915
  %917 = vmatmul.bf16.gmra.mxu0 %v511
  %v918 = vpop.f32.mrf.mxu0
  %v919 = vadd.f32 0.0, %v918
  %v920 = vpop.f32.mrf.mxu0
  %v921 = vadd.f32 0.0, %v920
  %922 = vmatmul.bf16.gmra.mxu0 %v513
  %v923 = vpop.f32.mrf.mxu0
  %v924 = vadd.f32 0.0, %v923
  %v925 = vpop.f32.mrf.mxu0
  %v926 = vadd.f32 0.0, %v925
  %927 = vmatmul.bf16.gmra.mxu0 %v515
  %v928 = vpop.f32.mrf.mxu0
  %v929 = vadd.f32 0.0, %v928
  %v930 = vpop.f32.mrf.mxu0
  %v931 = vadd.f32 0.0, %v930
  %932 = vmatmul.bf16.gmra.mxu0 %v517
  %v933 = vpop.f32.mrf.mxu0
  %v934 = vadd.f32 0.0, %v933
  %v935 = vpop.f32.mrf.mxu0
  %v936 = vadd.f32 0.0, %v935
  %937 = vmatmul.bf16.gmra.mxu0 %v519
  %v938 = vpop.f32.mrf.mxu0
  %v939 = vadd.f32 0.0, %v938
  %v940 = vpop.f32.mrf.mxu0
  %v941 = vadd.f32 0.0, %v940
  %942 = vmatmul.bf16.gmra.mxu0 %v521
  %v943 = vpop.f32.mrf.mxu0
  %v944 = vadd.f32 0.0, %v943
  %v945 = vpop.f32.mrf.mxu0
  %v946 = vadd.f32 0.0, %v945
  %947 = vmatmul.bf16.gmra.mxu0 %v523
  %v948 = vpop.f32.mrf.mxu0
  %v949 = vadd.f32 0.0, %v948
  %v950 = vpop.f32.mrf.mxu0
  %v951 = vadd.f32 0.0, %v950
  %952 = vmatmul.bf16.gmra.mxu0 %v525
  %v953 = vpop.f32.mrf.mxu0
  %v954 = vadd.f32 0.0, %v953
  %v955 = vpop.f32.mrf.mxu0
  %v956 = vadd.f32 0.0, %v955
  %957 = vmatmul.bf16.gmra.mxu0 %v527
  %v958 = vpop.f32.mrf.mxu0
  %v959 = vadd.f32 0.0, %v958
  %v960 = vpop.f32.mrf.mxu0
  %v961 = vadd.f32 0.0, %v960
  %962 = vmatmul.bf16.gmra.mxu0 %v529
  %v963 = vpop.f32.mrf.mxu0
  %v964 = vadd.f32 0.0, %v963
  %v965 = vpop.f32.mrf.mxu0
  %v966 = vadd.f32 0.0, %v965
  %967 = vmatmul.bf16.gmra.mxu0 %v531
  %v968 = vpop.f32.mrf.mxu0
  %v969 = vadd.f32 0.0, %v968
  %v970 = vpop.f32.mrf.mxu0
  %v971 = vadd.f32 0.0, %v970
  %972 = vmatmul.bf16.gmra.mxu0 %v533
  %v973 = vpop.f32.mrf.mxu0
  %v974 = vadd.f32 0.0, %v973
  %v975 = vpop.f32.mrf.mxu0
  %v976 = vadd.f32 0.0, %v975
  %977 = vmatmul.bf16.gmra.mxu0 %v535
  %v978 = vpop.f32.mrf.mxu0
  %v979 = vadd.f32 0.0, %v978
  %v980 = vpop.f32.mrf.mxu0
  %v981 = vadd.f32 0.0, %v980
  %982 = vmatmul.bf16.gmra.mxu0 %v537
  %v983 = vpop.f32.mrf.mxu0
  %v984 = vadd.f32 0.0, %v983
  %v985 = vpop.f32.mrf.mxu0
  %v986 = vadd.f32 0.0, %v985
  %987 = vmatmul.bf16.gmra.mxu0 %v539
  %v988 = vpop.f32.mrf.mxu0
  %v989 = vadd.f32 0.0, %v988
  %v990 = vpop.f32.mrf.mxu0
  %v991 = vadd.f32 0.0, %v990
  %992 = vmatmul.bf16.gmra.mxu0 %v541
  %v993 = vpop.f32.mrf.mxu0
  %v994 = vadd.f32 0.0, %v993
  %v995 = vpop.f32.mrf.mxu0
  %v996 = vadd.f32 0.0, %v995
  %997 = vdwg.mxu0
  %998 = vmatpush.bf16.msra.mxu0 %v722
  %999 = vmatpush.bf16.msra.mxu0 %v721
  %1000 = vmatpush.bf16.msra.mxu0 %v720
  %1001 = vmatpush.bf16.msra.mxu0 %v719
  %1002 = vmatpush.bf16.msra.mxu0 %v718
  %1003 = vmatpush.bf16.msra.mxu0 %v717
  %1004 = vmatpush.bf16.msra.mxu0 %v716
  %1005 = vmatpush.bf16.msra.mxu0 %v715
  %1006 = vmatmul.bf16.gmra.mxu0 %v444
  %v1007 = vpop.f32.mrf.mxu0
  %v1008 = vadd.f32 %v749, %v1007
  %v1009 = vpop.f32.mrf.mxu0
  %v1010 = vadd.f32 %v751, %v1009
  %1011 = vmatmul.bf16.gmra.mxu0 %v446
  %v1012 = vpop.f32.mrf.mxu0
  %v1013 = vadd.f32 %v754, %v1012
  %v1014 = vpop.f32.mrf.mxu0
  %v1015 = vadd.f32 %v756, %v1014
  %1016 = vmatmul.bf16.gmra.mxu0 %v448
  %v1017 = vpop.f32.mrf.mxu0
  %v1018 = vadd.f32 %v759, %v1017
  %v1019 = vpop.f32.mrf.mxu0
  %v1020 = vadd.f32 %v761, %v1019
  %1021 = vmatmul.bf16.gmra.mxu0 %v450
  %v1022 = vpop.f32.mrf.mxu0
  %v1023 = vadd.f32 %v764, %v1022
  %v1024 = vpop.f32.mrf.mxu0
  %v1025 = vadd.f32 %v766, %v1024
  %1026 = vmatmul.bf16.gmra.mxu0 %v452
  %v1027 = vpop.f32.mrf.mxu0
  %v1028 = vadd.f32 %v769, %v1027
  %v1029 = vpop.f32.mrf.mxu0
  %v1030 = vadd.f32 %v771, %v1029
  %1031 = vmatmul.bf16.gmra.mxu0 %v454
  %v1032 = vpop.f32.mrf.mxu0
  %v1033 = vadd.f32 %v774, %v1032
  %v1034 = vpop.f32.mrf.mxu0
  %v1035 = vadd.f32 %v776, %v1034
  %1036 = vmatmul.bf16.gmra.mxu0 %v456
  %v1037 = vpop.f32.mrf.mxu0
  %v1038 = vadd.f32 %v779, %v1037
  %v1039 = vpop.f32.mrf.mxu0
  %v1040 = vadd.f32 %v781, %v1039
  %1041 = vmatmul.bf16.gmra.mxu0 %v458
  %v1042 = vpop.f32.mrf.mxu0
  %v1043 = vadd.f32 %v784, %v1042
  %v1044 = vpop.f32.mrf.mxu0
  %v1045 = vadd.f32 %v786, %v1044
  %1046 = vmatmul.bf16.gmra.mxu0 %v460
  %v1047 = vpop.f32.mrf.mxu0
  %v1048 = vadd.f32 %v789, %v1047
  %v1049 = vpop.f32.mrf.mxu0
  %v1050 = vadd.f32 %v791, %v1049
  %1051 = vmatmul.bf16.gmra.mxu0 %v462
  %v1052 = vpop.f32.mrf.mxu0
  %v1053 = vadd.f32 %v794, %v1052
  %v1054 = vpop.f32.mrf.mxu0
  %v1055 = vadd.f32 %v796, %v1054
  %1056 = vmatmul.bf16.gmra.mxu0 %v464
  %v1057 = vpop.f32.mrf.mxu0
  %v1058 = vadd.f32 %v799, %v1057
  %v1059 = vpop.f32.mrf.mxu0
  %v1060 = vadd.f32 %v801, %v1059
  %1061 = vmatmul.bf16.gmra.mxu0 %v466
  %v1062 = vpop.f32.mrf.mxu0
  %v1063 = vadd.f32 %v804, %v1062
  %v1064 = vpop.f32.mrf.mxu0
  %v1065 = vadd.f32 %v806, %v1064
  %1066 = vmatmul.bf16.gmra.mxu0 %v468
  %v1067 = vpop.f32.mrf.mxu0
  %v1068 = vadd.f32 %v809, %v1067
  %v1069 = vpop.f32.mrf.mxu0
  %v1070 = vadd.f32 %v811, %v1069
  %1071 = vmatmul.bf16.gmra.mxu0 %v470
  %v1072 = vpop.f32.mrf.mxu0
  %v1073 = vadd.f32 %v814, %v1072
  %v1074 = vpop.f32.mrf.mxu0
  %v1075 = vadd.f32 %v816, %v1074
  %1076 = vmatmul.bf16.gmra.mxu0 %v472
  %v1077 = vpop.f32.mrf.mxu0
  %v1078 = vadd.f32 %v819, %v1077
  %v1079 = vpop.f32.mrf.mxu0
  %v1080 = vadd.f32 %v821, %v1079
  %1081 = vmatmul.bf16.gmra.mxu0 %v474
  %v1082 = vpop.f32.mrf.mxu0
  %v1083 = vadd.f32 %v824, %v1082
  %v1084 = vpop.f32.mrf.mxu0
  %v1085 = vadd.f32 %v826, %v1084
  %1086 = vmatmul.bf16.gmra.mxu0 %v476
  %v1087 = vpop.f32.mrf.mxu0
  %v1088 = vadd.f32 %v829, %v1087
  %v1089 = vpop.f32.mrf.mxu0
  %v1090 = vadd.f32 %v831, %v1089
  %1091 = vmatmul.bf16.gmra.mxu0 %v478
  %v1092 = vpop.f32.mrf.mxu0
  %v1093 = vadd.f32 %v834, %v1092
  %v1094 = vpop.f32.mrf.mxu0
  %v1095 = vadd.f32 %v836, %v1094
  %1096 = vmatmul.bf16.gmra.mxu0 %v480
  %v1097 = vpop.f32.mrf.mxu0
  %v1098 = vadd.f32 %v839, %v1097
  %v1099 = vpop.f32.mrf.mxu0
  %v1100 = vadd.f32 %v841, %v1099
  %1101 = vmatmul.bf16.gmra.mxu0 %v482
  %v1102 = vpop.f32.mrf.mxu0
  %v1103 = vadd.f32 %v844, %v1102
  %v1104 = vpop.f32.mrf.mxu0
  %v1105 = vadd.f32 %v846, %v1104
  %1106 = vmatmul.bf16.gmra.mxu0 %v484
  %v1107 = vpop.f32.mrf.mxu0
  %v1108 = vadd.f32 %v849, %v1107
  %v1109 = vpop.f32.mrf.mxu0
  %v1110 = vadd.f32 %v851, %v1109
  %1111 = vmatmul.bf16.gmra.mxu0 %v486
  %v1112 = vpop.f32.mrf.mxu0
  %v1113 = vadd.f32 %v854, %v1112
  %v1114 = vpop.f32.mrf.mxu0
  %v1115 = vadd.f32 %v856, %v1114
  %1116 = vmatmul.bf16.gmra.mxu0 %v488
  %v1117 = vpop.f32.mrf.mxu0
  %v1118 = vadd.f32 %v859, %v1117
  %v1119 = vpop.f32.mrf.mxu0
  %v1120 = vadd.f32 %v861, %v1119
  %1121 = vmatmul.bf16.gmra.mxu0 %v490
  %v1122 = vpop.f32.mrf.mxu0
  %v1123 = vadd.f32 %v864, %v1122
  %v1124 = vpop.f32.mrf.mxu0
  %v1125 = vadd.f32 %v866, %v1124
  %1126 = vmatmul.bf16.gmra.mxu0 %v492
  %v1127 = vpop.f32.mrf.mxu0
  %v1128 = vadd.f32 %v869, %v1127
  %v1129 = vpop.f32.mrf.mxu0
  %v1130 = vadd.f32 %v871, %v1129
  %1131 = vmatmul.bf16.gmra.mxu0 %v494
  %v1132 = vpop.f32.mrf.mxu0
  %v1133 = vadd.f32 %v874, %v1132
  %v1134 = vpop.f32.mrf.mxu0
  %v1135 = vadd.f32 %v876, %v1134
  %1136 = vmatmul.bf16.gmra.mxu0 %v496
  %v1137 = vpop.f32.mrf.mxu0
  %v1138 = vadd.f32 %v879, %v1137
  %v1139 = vpop.f32.mrf.mxu0
  %v1140 = vadd.f32 %v881, %v1139
  %1141 = vmatmul.bf16.gmra.mxu0 %v498
  %v1142 = vpop.f32.mrf.mxu0
  %v1143 = vadd.f32 %v884, %v1142
  %v1144 = vpop.f32.mrf.mxu0
  %v1145 = vadd.f32 %v886, %v1144
  %1146 = vmatmul.bf16.gmra.mxu0 %v500
  %v1147 = vpop.f32.mrf.mxu0
  %v1148 = vadd.f32 %v889, %v1147
  %v1149 = vpop.f32.mrf.mxu0
  %v1150 = vadd.f32 %v891, %v1149
  %1151 = vmatmul.bf16.gmra.mxu0 %v502
  %v1152 = vpop.f32.mrf.mxu0
  %v1153 = vadd.f32 %v894, %v1152
  %v1154 = vpop.f32.mrf.mxu0
  %v1155 = vadd.f32 %v896, %v1154
  %1156 = vmatmul.bf16.gmra.mxu0 %v504
  %v1157 = vpop.f32.mrf.mxu0
  %v1158 = vadd.f32 %v899, %v1157
  %v1159 = vpop.f32.mrf.mxu0
  %v1160 = vadd.f32 %v901, %v1159
  %1161 = vmatmul.bf16.gmra.mxu0 %v506
  %v1162 = vpop.f32.mrf.mxu0
  %v1163 = vadd.f32 %v904, %v1162
  %v1164 = vpop.f32.mrf.mxu0
  %v1165 = vadd.f32 %v906, %v1164
  %1166 = vmatmul.bf16.gmra.mxu0 %v508
  %v1167 = vpop.f32.mrf.mxu0
  %v1168 = vadd.f32 %v909, %v1167
  %v1169 = vpop.f32.mrf.mxu0
  %v1170 = vadd.f32 %v911, %v1169
  %1171 = vmatmul.bf16.gmra.mxu0 %v510
  %v1172 = vpop.f32.mrf.mxu0
  %v1173 = vadd.f32 %v914, %v1172
  %v1174 = vpop.f32.mrf.mxu0
  %v1175 = vadd.f32 %v916, %v1174
  %1176 = vmatmul.bf16.gmra.mxu0 %v512
  %v1177 = vpop.f32.mrf.mxu0
  %v1178 = vadd.f32 %v919, %v1177
  %v1179 = vpop.f32.mrf.mxu0
  %v1180 = vadd.f32 %v921, %v1179
  %1181 = vmatmul.bf16.gmra.mxu0 %v514
  %v1182 = vpop.f32.mrf.mxu0
  %v1183 = vadd.f32 %v924, %v1182
  %v1184 = vpop.f32.mrf.mxu0
  %v1185 = vadd.f32 %v926, %v1184
  %1186 = vmatmul.bf16.gmra.mxu0 %v516
  %v1187 = vpop.f32.mrf.mxu0
  %v1188 = vadd.f32 %v929, %v1187
  %v1189 = vpop.f32.mrf.mxu0
  %v1190 = vadd.f32 %v931, %v1189
  %1191 = vmatmul.bf16.gmra.mxu0 %v518
  %v1192 = vpop.f32.mrf.mxu0
  %v1193 = vadd.f32 %v934, %v1192
  %v1194 = vpop.f32.mrf.mxu0
  %v1195 = vadd.f32 %v936, %v1194
  %1196 = vmatmul.bf16.gmra.mxu0 %v520
  %v1197 = vpop.f32.mrf.mxu0
  %v1198 = vadd.f32 %v939, %v1197
  %v1199 = vpop.f32.mrf.mxu0
  %v1200 = vadd.f32 %v941, %v1199
  %1201 = vmatmul.bf16.gmra.mxu0 %v522
  %v1202 = vpop.f32.mrf.mxu0
  %v1203 = vadd.f32 %v944, %v1202
  %v1204 = vpop.f32.mrf.mxu0
  %v1205 = vadd.f32 %v946, %v1204
  %1206 = vmatmul.bf16.gmra.mxu0 %v524
  %v1207 = vpop.f32.mrf.mxu0
  %v1208 = vadd.f32 %v949, %v1207
  %v1209 = vpop.f32.mrf.mxu0
  %v1210 = vadd.f32 %v951, %v1209
  %1211 = vmatmul.bf16.gmra.mxu0 %v526
  %v1212 = vpop.f32.mrf.mxu0
  %v1213 = vadd.f32 %v954, %v1212
  %v1214 = vpop.f32.mrf.mxu0
  %v1215 = vadd.f32 %v956, %v1214
  %1216 = vmatmul.bf16.gmra.mxu0 %v528
  %v1217 = vpop.f32.mrf.mxu0
  %v1218 = vadd.f32 %v959, %v1217
  %v1219 = vpop.f32.mrf.mxu0
  %v1220 = vadd.f32 %v961, %v1219
  %1221 = vmatmul.bf16.gmra.mxu0 %v530
  %v1222 = vpop.f32.mrf.mxu0
  %v1223 = vadd.f32 %v964, %v1222
  %v1224 = vpop.f32.mrf.mxu0
  %v1225 = vadd.f32 %v966, %v1224
  %1226 = vmatmul.bf16.gmra.mxu0 %v532
  %v1227 = vpop.f32.mrf.mxu0
  %v1228 = vadd.f32 %v969, %v1227
  %v1229 = vpop.f32.mrf.mxu0
  %v1230 = vadd.f32 %v971, %v1229
  %1231 = vmatmul.bf16.gmra.mxu0 %v534
  %v1232 = vpop.f32.mrf.mxu0
  %v1233 = vadd.f32 %v974, %v1232
  %v1234 = vpop.f32.mrf.mxu0
  %v1235 = vadd.f32 %v976, %v1234
  %1236 = vmatmul.bf16.gmra.mxu0 %v536
  %v1237 = vpop.f32.mrf.mxu0
  %v1238 = vadd.f32 %v979, %v1237
  %v1239 = vpop.f32.mrf.mxu0
  %v1240 = vadd.f32 %v981, %v1239
  %1241 = vmatmul.bf16.gmra.mxu0 %v538
  %v1242 = vpop.f32.mrf.mxu0
  %v1243 = vadd.f32 %v984, %v1242
  %v1244 = vpop.f32.mrf.mxu0
  %v1245 = vadd.f32 %v986, %v1244
  %1246 = vmatmul.bf16.gmra.mxu0 %v540
  %v1247 = vpop.f32.mrf.mxu0
  %v1248 = vadd.f32 %v989, %v1247
  %v1249 = vpop.f32.mrf.mxu0
  %v1250 = vadd.f32 %v991, %v1249
  %1251 = vmatmul.bf16.gmra.mxu0 %v542
  %v1252 = vpop.f32.mrf.mxu0
  %v1253 = vadd.f32 %v994, %v1252
  %v1254 = vpop.f32.mrf.mxu0
  %v1255 = vadd.f32 %v996, %v1254
  %1256 = vdwg.mxu0
  %v1257 = vmax.f32 %v1008, 0.0
  %v1258 = vmax.f32 %v1010, 0.0
  %v1259 = vmax.f32 %v1013, 0.0
  %v1260 = vmax.f32 %v1015, 0.0
  %v1261 = vmax.f32 %v1018, 0.0
  %v1262 = vmax.f32 %v1020, 0.0
  %v1263 = vmax.f32 %v1023, 0.0
  %v1264 = vmax.f32 %v1025, 0.0
  %v1265 = vmax.f32 %v1028, 0.0
  %v1266 = vmax.f32 %v1030, 0.0
  %v1267 = vmax.f32 %v1033, 0.0
  %v1268 = vmax.f32 %v1035, 0.0
  %v1269 = vmax.f32 %v1038, 0.0
  %v1270 = vmax.f32 %v1040, 0.0
  %v1271 = vmax.f32 %v1043, 0.0
  %v1272 = vmax.f32 %v1045, 0.0
  %v1273 = vmax.f32 %v1048, 0.0
  %v1274 = vmax.f32 %v1050, 0.0
  %v1275 = vmax.f32 %v1053, 0.0
  %v1276 = vmax.f32 %v1055, 0.0
  %v1277 = vmax.f32 %v1058, 0.0
  %v1278 = vmax.f32 %v1060, 0.0
  %v1279 = vmax.f32 %v1063, 0.0
  %v1280 = vmax.f32 %v1065, 0.0
  %v1281 = vmax.f32 %v1068, 0.0
  %v1282 = vmax.f32 %v1070, 0.0
  %v1283 = vmax.f32 %v1073, 0.0
  %v1284 = vmax.f32 %v1075, 0.0
  %v1285 = vmax.f32 %v1078, 0.0
  %v1286 = vmax.f32 %v1080, 0.0
  %v1287 = vmax.f32 %v1083, 0.0
  %v1288 = vmax.f32 %v1085, 0.0
  %v1289 = vmax.f32 %v1088, 0.0
  %v1290 = vmax.f32 %v1090, 0.0
  %v1291 = vmax.f32 %v1093, 0.0
  %v1292 = vmax.f32 %v1095, 0.0
  %v1293 = vmax.f32 %v1098, 0.0
  %v1294 = vmax.f32 %v1100, 0.0
  %v1295 = vmax.f32 %v1103, 0.0
  %v1296 = vmax.f32 %v1105, 0.0
  %v1297 = vmax.f32 %v1108, 0.0
  %v1298 = vmax.f32 %v1110, 0.0
  %v1299 = vmax.f32 %v1113, 0.0
  %v1300 = vmax.f32 %v1115, 0.0
  %v1301 = vmax.f32 %v1118, 0.0
  %v1302 = vmax.f32 %v1120, 0.0
  %v1303 = vmax.f32 %v1123, 0.0
  %v1304 = vmax.f32 %v1125, 0.0
  %v1305 = vmax.f32 %v1128, 0.0
  %v1306 = vmax.f32 %v1130, 0.0
  %v1307 = vmax.f32 %v1133, 0.0
  %v1308 = vmax.f32 %v1135, 0.0
  %v1309 = vmax.f32 %v1138, 0.0
  %v1310 = vmax.f32 %v1140, 0.0
  %v1311 = vmax.f32 %v1143, 0.0
  %v1312 = vmax.f32 %v1145, 0.0
  %v1313 = vmax.f32 %v1148, 0.0
  %v1314 = vmax.f32 %v1150, 0.0
  %v1315 = vmax.f32 %v1153, 0.0
  %v1316 = vmax.f32 %v1155, 0.0
  %v1317 = vmax.f32 %v1158, 0.0
  %v1318 = vmax.f32 %v1160, 0.0
  %v1319 = vmax.f32 %v1163, 0.0
  %v1320 = vmax.f32 %v1165, 0.0
  %v1321 = vmax.f32 %v1168, 0.0
  %v1322 = vmax.f32 %v1170, 0.0
  %v1323 = vmax.f32 %v1173, 0.0
  %v1324 = vmax.f32 %v1175, 0.0
  %v1325 = vmax.f32 %v1178, 0.0
  %v1326 = vmax.f32 %v1180, 0.0
  %v1327 = vmax.f32 %v1183, 0.0
  %v1328 = vmax.f32 %v1185, 0.0
  %v1329 = vmax.f32 %v1188, 0.0
  %v1330 = vmax.f32 %v1190, 0.0
  %v1331 = vmax.f32 %v1193, 0.0
  %v1332 = vmax.f32 %v1195, 0.0
  %v1333 = vmax.f32 %v1198, 0.0
  %v1334 = vmax.f32 %v1200, 0.0
  %v1335 = vmax.f32 %v1203, 0.0
  %v1336 = vmax.f32 %v1205, 0.0
  %v1337 = vmax.f32 %v1208, 0.0
  %v1338 = vmax.f32 %v1210, 0.0
  %v1339 = vmax.f32 %v1213, 0.0
  %v1340 = vmax.f32 %v1215, 0.0
  %v1341 = vmax.f32 %v1218, 0.0
  %v1342 = vmax.f32 %v1220, 0.0
  %v1343 = vmax.f32 %v1223, 0.0
  %v1344 = vmax.f32 %v1225, 0.0
  %v1345 = vmax.f32 %v1228, 0.0
  %v1346 = vmax.f32 %v1230, 0.0
  %v1347 = vmax.f32 %v1233, 0.0
  %v1348 = vmax.f32 %v1235, 0.0
  %v1349 = vmax.f32 %v1238, 0.0
  %v1350 = vmax.f32 %v1240, 0.0
  %v1351 = vmax.f32 %v1243, 0.0
  %v1352 = vmax.f32 %v1245, 0.0
  %v1353 = vmax.f32 %v1248, 0.0
  %v1354 = vmax.f32 %v1250, 0.0
  %v1355 = vmax.f32 %v1253, 0.0
  %v1356 = vmax.f32 %v1255, 0.0
  %v1357 = vpack.c.bf16 %v1257, %v1257
  %v1358 = vpack.c.bf16 %v1258, %v1258
  %v1359 = vpack.c.bf16 %v1259, %v1259
  %v1360 = vpack.c.bf16 %v1260, %v1260
  %v1361 = vpack.c.bf16 %v1261, %v1261
  %v1362 = vpack.c.bf16 %v1262, %v1262
  %v1363 = vpack.c.bf16 %v1263, %v1263
  %v1364 = vpack.c.bf16 %v1264, %v1264
  %v1365 = vpack.c.bf16 %v1265, %v1265
  %v1366 = vpack.c.bf16 %v1266, %v1266
  %v1367 = vpack.c.bf16 %v1267, %v1267
  %v1368 = vpack.c.bf16 %v1268, %v1268
  %v1369 = vpack.c.bf16 %v1269, %v1269
  %v1370 = vpack.c.bf16 %v1270, %v1270
  %v1371 = vpack.c.bf16 %v1271, %v1271
  %v1372 = vpack.c.bf16 %v1272, %v1272
  %v1373 = vpack.c.bf16 %v1273, %v1273
  %v1374 = vpack.c.bf16 %v1274, %v1274
  %v1375 = vpack.c.bf16 %v1275, %v1275
  %v1376 = vpack.c.bf16 %v1276, %v1276
  %v1377 = vpack.c.bf16 %v1277, %v1277
  %v1378 = vpack.c.bf16 %v1278, %v1278
  %v1379 = vpack.c.bf16 %v1279, %v1279
  %v1380 = vpack.c.bf16 %v1280, %v1280
  %v1381 = vpack.c.bf16 %v1281, %v1281
  %v1382 = vpack.c.bf16 %v1282, %v1282
  %v1383 = vpack.c.bf16 %v1283, %v1283
  %v1384 = vpack.c.bf16 %v1284, %v1284
  %v1385 = vpack.c.bf16 %v1285, %v1285
  %v1386 = vpack.c.bf16 %v1286, %v1286
  %v1387 = vpack.c.bf16 %v1287, %v1287
  %v1388 = vpack.c.bf16 %v1288, %v1288
  %v1389 = vpack.c.bf16 %v1289, %v1289
  %v1390 = vpack.c.bf16 %v1290, %v1290
  %v1391 = vpack.c.bf16 %v1291, %v1291
  %v1392 = vpack.c.bf16 %v1292, %v1292
  %v1393 = vpack.c.bf16 %v1293, %v1293
  %v1394 = vpack.c.bf16 %v1294, %v1294
  %v1395 = vpack.c.bf16 %v1295, %v1295
  %v1396 = vpack.c.bf16 %v1296, %v1296
  %v1397 = vpack.c.bf16 %v1297, %v1297
  %v1398 = vpack.c.bf16 %v1298, %v1298
  %v1399 = vpack.c.bf16 %v1299, %v1299
  %v1400 = vpack.c.bf16 %v1300, %v1300
  %v1401 = vpack.c.bf16 %v1301, %v1301
  %v1402 = vpack.c.bf16 %v1302, %v1302
  %v1403 = vpack.c.bf16 %v1303, %v1303
  %v1404 = vpack.c.bf16 %v1304, %v1304
  %v1405 = vpack.c.bf16 %v1305, %v1305
  %v1406 = vpack.c.bf16 %v1306, %v1306
  %v1407 = vpack.c.bf16 %v1307, %v1307
  %v1408 = vpack.c.bf16 %v1308, %v1308
  %v1409 = vpack.c.bf16 %v1309, %v1309
  %v1410 = vpack.c.bf16 %v1310, %v1310
  %v1411 = vpack.c.bf16 %v1311, %v1311
  %v1412 = vpack.c.bf16 %v1312, %v1312
  %v1413 = vpack.c.bf16 %v1313, %v1313
  %v1414 = vpack.c.bf16 %v1314, %v1314
  %v1415 = vpack.c.bf16 %v1315, %v1315
  %v1416 = vpack.c.bf16 %v1316, %v1316
  %v1417 = vpack.c.bf16 %v1317, %v1317
  %v1418 = vpack.c.bf16 %v1318, %v1318
  %v1419 = vpack.c.bf16 %v1319, %v1319
  %v1420 = vpack.c.bf16 %v1320, %v1320
  %v1421 = vpack.c.bf16 %v1321, %v1321
  %v1422 = vpack.c.bf16 %v1322, %v1322
  %v1423 = vpack.c.bf16 %v1323, %v1323
  %v1424 = vpack.c.bf16 %v1324, %v1324
  %v1425 = vpack.c.bf16 %v1325, %v1325
  %v1426 = vpack.c.bf16 %v1326, %v1326
  %v1427 = vpack.c.bf16 %v1327, %v1327
  %v1428 = vpack.c.bf16 %v1328, %v1328
  %v1429 = vpack.c.bf16 %v1329, %v1329
  %v1430 = vpack.c.bf16 %v1330, %v1330
  %v1431 = vpack.c.bf16 %v1331, %v1331
  %v1432 = vpack.c.bf16 %v1332, %v1332
  %v1433 = vpack.c.bf16 %v1333, %v1333
  %v1434 = vpack.c.bf16 %v1334, %v1334
  %v1435 = vpack.c.bf16 %v1335, %v1335
  %v1436 = vpack.c.bf16 %v1336, %v1336
  %v1437 = vpack.c.bf16 %v1337, %v1337
  %v1438 = vpack.c.bf16 %v1338, %v1338
  %v1439 = vpack.c.bf16 %v1339, %v1339
  %v1440 = vpack.c.bf16 %v1340, %v1340
  %v1441 = vpack.c.bf16 %v1341, %v1341
  %v1442 = vpack.c.bf16 %v1342, %v1342
  %v1443 = vpack.c.bf16 %v1343, %v1343
  %v1444 = vpack.c.bf16 %v1344, %v1344
  %v1445 = vpack.c.bf16 %v1345, %v1345
  %v1446 = vpack.c.bf16 %v1346, %v1346
  %v1447 = vpack.c.bf16 %v1347, %v1347
  %v1448 = vpack.c.bf16 %v1348, %v1348
  %v1449 = vpack.c.bf16 %v1349, %v1349
  %v1450 = vpack.c.bf16 %v1350, %v1350
  %v1451 = vpack.c.bf16 %v1351, %v1351
  %v1452 = vpack.c.bf16 %v1352, %v1352
  %v1453 = vpack.c.bf16 %v1353, %v1353
  %v1454 = vpack.c.bf16 %v1354, %v1354
  %v1455 = vpack.c.bf16 %v1355, %v1355
  %v1456 = vpack.c.bf16 %v1356, %v1356
  %vm1457 = vcmask 257024
  %1458 = vst.msk [vmem:[%s2] sm:$0xf] %vm1457, %v1357
  %1459 = vst.msk [vmem:[%s2 + $0x4] sm:$0xf] %vm1457, %v1358
  %1460 = vst.msk [vmem:[%s2 + $0x8] sm:$0xf] %vm1457, %v1359
  %1461 = vst.msk [vmem:[%s2 + $0xc] sm:$0xf] %vm1457, %v1360
  %1462 = vst.msk [vmem:[%s2 + $0x10] sm:$0xf] %vm1457, %v1361
  %1463 = vst.msk [vmem:[%s2 + $0x14] sm:$0xf] %vm1457, %v1362
  %1464 = vst.msk [vmem:[%s2 + $0x18] sm:$0xf] %vm1457, %v1363
  %1465 = vst.msk [vmem:[%s2 + $0x1c] sm:$0xf] %vm1457, %v1364
  %1466 = vst.msk [vmem:[%s2 + $0x20] sm:$0xf] %vm1457, %v1365
  %1467 = vst.msk [vmem:[%s2 + $0x24] sm:$0xf] %vm1457, %v1366
  %1468 = vst.msk [vmem:[%s2 + $0x28] sm:$0xf] %vm1457, %v1367
  %1469 = vst.msk [vmem:[%s2 + $0x2c] sm:$0xf] %vm1457, %v1368
  %1470 = vst.msk [vmem:[%s2 + $0x30] sm:$0xf] %vm1457, %v1369
  %1471 = vst.msk [vmem:[%s2 + $0x34] sm:$0xf] %vm1457, %v1370
  %1472 = vst.msk [vmem:[%s2 + $0x38] sm:$0xf] %vm1457, %v1371
  %1473 = vst.msk [vmem:[%s2 + $0x3c] sm:$0xf] %vm1457, %v1372
  %1474 = vst.msk [vmem:[%s2 + $0x40] sm:$0xf] %vm1457, %v1373
  %1475 = vst.msk [vmem:[%s2 + $0x44] sm:$0xf] %vm1457, %v1374
  %1476 = vst.msk [vmem:[%s2 + $0x48] sm:$0xf] %vm1457, %v1375
  %1477 = vst.msk [vmem:[%s2 + $0x4c] sm:$0xf] %vm1457, %v1376
  %1478 = vst.msk [vmem:[%s2 + $0x50] sm:$0xf] %vm1457, %v1377
  %1479 = vst.msk [vmem:[%s2 + $0x54] sm:$0xf] %vm1457, %v1378
  %1480 = vst.msk [vmem:[%s2 + $0x58] sm:$0xf] %vm1457, %v1379
  %1481 = vst.msk [vmem:[%s2 + $0x5c] sm:$0xf] %vm1457, %v1380
  %1482 = vst.msk [vmem:[%s2 + $0x60] sm:$0xf] %vm1457, %v1381
  %1483 = vst.msk [vmem:[%s2 + $0x64] sm:$0xf] %vm1457, %v1382
  %1484 = vst.msk [vmem:[%s2 + $0x68] sm:$0xf] %vm1457, %v1383
  %1485 = vst.msk [vmem:[%s2 + $0x6c] sm:$0xf] %vm1457, %v1384
  %1486 = vst.msk [vmem:[%s2 + $0x70] sm:$0xf] %vm1457, %v1385
  %1487 = vst.msk [vmem:[%s2 + $0x74] sm:$0xf] %vm1457, %v1386
  %1488 = vst.msk [vmem:[%s2 + $0x78] sm:$0xf] %vm1457, %v1387
  %1489 = vst.msk [vmem:[%s2 + $0x7c] sm:$0xf] %vm1457, %v1388
  %1490 = vst.msk [vmem:[%s2 + $0x80] sm:$0xf] %vm1457, %v1389
  %1491 = vst.msk [vmem:[%s2 + $0x84] sm:$0xf] %vm1457, %v1390
  %1492 = vst.msk [vmem:[%s2 + $0x88] sm:$0xf] %vm1457, %v1391
  %1493 = vst.msk [vmem:[%s2 + $0x8c] sm:$0xf] %vm1457, %v1392
  %1494 = vst.msk [vmem:[%s2 + $0x90] sm:$0xf] %vm1457, %v1393
  %1495 = vst.msk [vmem:[%s2 + $0x94] sm:$0xf] %vm1457, %v1394
  %1496 = vst.msk [vmem:[%s2 + $0x98] sm:$0xf] %vm1457, %v1395
  %1497 = vst.msk [vmem:[%s2 + $0x9c] sm:$0xf] %vm1457, %v1396
  %1498 = vst.msk [vmem:[%s2 + $0xa0] sm:$0xf] %vm1457, %v1397
  %1499 = vst.msk [vmem:[%s2 + $0xa4] sm:$0xf] %vm1457, %v1398
  %1500 = vst.msk [vmem:[%s2 + $0xa8] sm:$0xf] %vm1457, %v1399
  %1501 = vst.msk [vmem:[%s2 + $0xac] sm:$0xf] %vm1457, %v1400
  %1502 = vst.msk [vmem:[%s2 + $0xb0] sm:$0xf] %vm1457, %v1401
  %1503 = vst.msk [vmem:[%s2 + $0xb4] sm:$0xf] %vm1457, %v1402
  %1504 = vst.msk [vmem:[%s2 + $0xb8] sm:$0xf] %vm1457, %v1403
  %1505 = vst.msk [vmem:[%s2 + $0xbc] sm:$0xf] %vm1457, %v1404
  %1506 = vst.msk [vmem:[%s2 + $0xc0] sm:$0xf] %vm1457, %v1405
  %1507 = vst.msk [vmem:[%s2 + $0xc4] sm:$0xf] %vm1457, %v1406
  %1508 = vst.msk [vmem:[%s2 + $0xc8] sm:$0xf] %vm1457, %v1407
  %1509 = vst.msk [vmem:[%s2 + $0xcc] sm:$0xf] %vm1457, %v1408
  %1510 = vst.msk [vmem:[%s2 + $0xd0] sm:$0xf] %vm1457, %v1409
  %1511 = vst.msk [vmem:[%s2 + $0xd4] sm:$0xf] %vm1457, %v1410
  %1512 = vst.msk [vmem:[%s2 + $0xd8] sm:$0xf] %vm1457, %v1411
  %1513 = vst.msk [vmem:[%s2 + $0xdc] sm:$0xf] %vm1457, %v1412
  %1514 = vst.msk [vmem:[%s2 + $0xe0] sm:$0xf] %vm1457, %v1413
  %1515 = vst.msk [vmem:[%s2 + $0xe4] sm:$0xf] %vm1457, %v1414
  %1516 = vst.msk [vmem:[%s2 + $0xe8] sm:$0xf] %vm1457, %v1415
  %1517 = vst.msk [vmem:[%s2 + $0xec] sm:$0xf] %vm1457, %v1416
  %1518 = vst.msk [vmem:[%s2 + $0xf0] sm:$0xf] %vm1457, %v1417
  %1519 = vst.msk [vmem:[%s2 + $0xf4] sm:$0xf] %vm1457, %v1418
  %1520 = vst.msk [vmem:[%s2 + $0xf8] sm:$0xf] %vm1457, %v1419
  %1521 = vst.msk [vmem:[%s2 + $0xfc] sm:$0xf] %vm1457, %v1420
  %1522 = vst.msk [vmem:[%s2 + $0x100] sm:$0xf] %vm1457, %v1421
  %1523 = vst.msk [vmem:[%s2 + $0x104] sm:$0xf] %vm1457, %v1422
  %1524 = vst.msk [vmem:[%s2 + $0x108] sm:$0xf] %vm1457, %v1423
  %1525 = vst.msk [vmem:[%s2 + $0x10c] sm:$0xf] %vm1457, %v1424
  %1526 = vst.msk [vmem:[%s2 + $0x110] sm:$0xf] %vm1457, %v1425
  %1527 = vst.msk [vmem:[%s2 + $0x114] sm:$0xf] %vm1457, %v1426
  %1528 = vst.msk [vmem:[%s2 + $0x118] sm:$0xf] %vm1457, %v1427
  %1529 = vst.msk [vmem:[%s2 + $0x11c] sm:$0xf] %vm1457, %v1428
  %1530 = vst.msk [vmem:[%s2 + $0x120] sm:$0xf] %vm1457, %v1429
  %1531 = vst.msk [vmem:[%s2 + $0x124] sm:$0xf] %vm1457, %v1430
  %1532 = vst.msk [vmem:[%s2 + $0x128] sm:$0xf] %vm1457, %v1431
  %1533 = vst.msk [vmem:[%s2 + $0x12c] sm:$0xf] %vm1457, %v1432
  %1534 = vst.msk [vmem:[%s2 + $0x130] sm:$0xf] %vm1457, %v1433
  %1535 = vst.msk [vmem:[%s2 + $0x134] sm:$0xf] %vm1457, %v1434
  %1536 = vst.msk [vmem:[%s2 + $0x138] sm:$0xf] %vm1457, %v1435
  %1537 = vst.msk [vmem:[%s2 + $0x13c] sm:$0xf] %vm1457, %v1436
  %1538 = vst.msk [vmem:[%s2 + $0x140] sm:$0xf] %vm1457, %v1437
  %1539 = vst.msk [vmem:[%s2 + $0x144] sm:$0xf] %vm1457, %v1438
  %1540 = vst.msk [vmem:[%s2 + $0x148] sm:$0xf] %vm1457, %v1439
  %1541 = vst.msk [vmem:[%s2 + $0x14c] sm:$0xf] %vm1457, %v1440
  %1542 = vst.msk [vmem:[%s2 + $0x150] sm:$0xf] %vm1457, %v1441
  %1543 = vst.msk [vmem:[%s2 + $0x154] sm:$0xf] %vm1457, %v1442
  %1544 = vst.msk [vmem:[%s2 + $0x158] sm:$0xf] %vm1457, %v1443
  %1545 = vst.msk [vmem:[%s2 + $0x15c] sm:$0xf] %vm1457, %v1444
  %1546 = vst.msk [vmem:[%s2 + $0x160] sm:$0xf] %vm1457, %v1445
  %1547 = vst.msk [vmem:[%s2 + $0x164] sm:$0xf] %vm1457, %v1446
  %1548 = vst.msk [vmem:[%s2 + $0x168] sm:$0xf] %vm1457, %v1447
  %1549 = vst.msk [vmem:[%s2 + $0x16c] sm:$0xf] %vm1457, %v1448
  %1550 = vst.msk [vmem:[%s2 + $0x170] sm:$0xf] %vm1457, %v1449
  %1551 = vst.msk [vmem:[%s2 + $0x174] sm:$0xf] %vm1457, %v1450
  %1552 = vst.msk [vmem:[%s2 + $0x178] sm:$0xf] %vm1457, %v1451
  %1553 = vst.msk [vmem:[%s2 + $0x17c] sm:$0xf] %vm1457, %v1452
  %1554 = vst.msk [vmem:[%s2 + $0x180] sm:$0xf] %vm1457, %v1453
  %1555 = vst.msk [vmem:[%s2 + $0x184] sm:$0xf] %vm1457, %v1454
  %1556 = vst.msk [vmem:[%s2 + $0x188] sm:$0xf] %vm1457, %v1455
  %1557 = vst.msk [vmem:[%s2 + $0x18c] sm:$0xf] %vm1457, %v1456
  // Predicated region
  $region10: #{forward.4} parent=0 // pred_check
    _
  $region11: #{forward.4} parent=0 // pred_check_branch
    %1559 = sbr.rel (0) target = $region13
  $region12: #{forward.4} parent=0 // pred_region
    _
  $region13: #{forward.4} parent=0 // pred_fallthru
    _
  // Predicated region
  $region14: #{forward.4} parent=0 // pred_check
    _
  $region15: #{forward.4} parent=0 // pred_check_branch
    %1561 = sbr.rel (0) target = $region17
  $region16: #{forward.4} parent=0 // pred_region
    _
  $region17: #{forward.4} parent=0 // pred_fallthru
    _

// kernel: forward.5
$region0: #{forward.5}
  #allocation0 [shape = 'u32[]', space=smem, size = 0x4, offset = 0x4, fixed_abs, tag = 'smem constant byte address 0x4 - core index']
  #allocation1 [shape = 'u32[72,128]{1,0:T(1,128)}', space=vmem, size = 0x9000, scoped, tag = 'internal scratch']
  %s0 = inlined_call_operand.vmem [shape: bf16[162,512], index: 0, kind: input, shape index: {}]
  %s1 = inlined_call_operand.vmem [shape: bf16[512,64], index: 1, kind: input, shape index: {}]
  %s2 = inlined_call_operand.vmem [shape: bf16[162,64], index: 2, kind: output, shape index: {}]
  %s3 = sld [smem:[#allocation0]]
  $region18: #{forward.5} parent=0
    _
  %s5 = ssub.s32 1, %s3
  %s6 = scalar_select 0, %s5, %s3
  // Predicated region
  $region2: #{forward.5} parent=0 // pred_check
    _
  $region3: #{forward.5} parent=0 // pred_check_branch
    %8 = sbr.rel (0) target = $region5
  $region4: #{forward.5} parent=0 // pred_region
    _
  $region5: #{forward.5} parent=0 // pred_fallthru
    _
  // Predicated region
  $region6: #{forward.5} parent=0 // pred_check
    _
  $region7: #{forward.5} parent=0 // pred_check_branch
    %10 = sbr.rel (0) target = $region9
  $region8: #{forward.5} parent=0 // pred_region
    _
  $region9: #{forward.5} parent=0 // pred_fallthru
    _
  %v11 = vld [vmem:[%s0] sm:$0xff]
  %v12 = vld [vmem:[%s0 + $0x8] sm:$0xff]
  %v13 = vld [vmem:[%s0 + $0x10] sm:$0xff]
  %v14 = vld [vmem:[%s0 + $0x18] sm:$0xff]
  %v15 = vld [vmem:[%s0 + $0x20] sm:$0xff]
  %v16 = vld [vmem:[%s0 + $0x28] sm:$0xff]
  %v17 = vld [vmem:[%s0 + $0x30] sm:$0xff]
  %v18 = vld [vmem:[%s0 + $0x38] sm:$0xff]
  %v19 = vld [vmem:[%s0 + $0x40] sm:$0xff]
  %v20 = vld [vmem:[%s0 + $0x48] sm:$0xff]
  %v21 = vld [vmem:[%s0 + $0x50] sm:$0xff]
  %v22 = vld [vmem:[%s0 + $0x58] sm:$0xff]
  %v23 = vld [vmem:[%s0 + $0x60] sm:$0xff]
  %v24 = vld [vmem:[%s0 + $0x68] sm:$0xff]
  %v25 = vld [vmem:[%s0 + $0x70] sm:$0xff]
  %v26 = vld [vmem:[%s0 + $0x78] sm:$0xff]
  %v27 = vld [vmem:[%s0 + $0x80] sm:$0xff]
  %v28 = vld [vmem:[%s0 + $0x88] sm:$0xff]
  %v29 = vld [vmem:[%s0 + $0x90] sm:$0xff]
  %v30 = vld [vmem:[%s0 + $0x98] sm:$0xff]
  %v31 = vld [vmem:[%s0 + $0xa0] sm:$0xff]
  %v32 = vld [vmem:[%s0 + $0xa8] sm:$0xff]
  %v33 = vld [vmem:[%s0 + $0xb0] sm:$0xff]
  %v34 = vld [vmem:[%s0 + $0xb8] sm:$0xff]
  %v35 = vld [vmem:[%s0 + $0xc0] sm:$0xff]
  %v36 = vld [vmem:[%s0 + $0xc8] sm:$0xff]
  %v37 = vld [vmem:[%s0 + $0xd0] sm:$0xff]
  %v38 = vld [vmem:[%s0 + $0xd8] sm:$0xff]
  %v39 = vld [vmem:[%s0 + $0xe0] sm:$0xff]
  %v40 = vld [vmem:[%s0 + $0xe8] sm:$0xff]
  %v41 = vld [vmem:[%s0 + $0xf0] sm:$0xff]
  %v42 = vld [vmem:[%s0 + $0xf8] sm:$0xff]
  %v43 = vld [vmem:[%s0 + $0x100] sm:$0xff]
  %v44 = vld [vmem:[%s0 + $0x108] sm:$0xff]
  %v45 = vld [vmem:[%s0 + $0x110] sm:$0xff]
  %v46 = vld [vmem:[%s0 + $0x118] sm:$0xff]
  %v47 = vld [vmem:[%s0 + $0x120] sm:$0xff]
  %v48 = vld [vmem:[%s0 + $0x128] sm:$0xff]
  %v49 = vld [vmem:[%s0 + $0x130] sm:$0xff]
  %v50 = vld [vmem:[%s0 + $0x138] sm:$0xff]
  %v51 = vld [vmem:[%s0 + $0x140] sm:$0x11]
  %v52 = vld [vmem:[%s0 + $0x148] sm:$0x11]
  %v53 = vld [vmem:[%s1] sm:$0xf]
  %v54 = vld [vmem:[%s1 + $0x4] sm:$0xf]
  %v55 = vld [vmem:[%s1 + $0x8] sm:$0xf]
  %v56 = vld [vmem:[%s1 + $0xc] sm:$0xf]
  %v57 = vld [vmem:[%s1 + $0x10] sm:$0xf]
  %v58 = vld [vmem:[%s1 + $0x14] sm:$0xf]
  %v59 = vld [vmem:[%s1 + $0x18] sm:$0xf]
  %v60 = vld [vmem:[%s1 + $0x1c] sm:$0xf]
  %v61 = vld [vmem:[%s1 + $0x20] sm:$0xf]
  %v62 = vld [vmem:[%s1 + $0x24] sm:$0xf]
  %v63 = vld [vmem:[%s1 + $0x28] sm:$0xf]
  %v64 = vld [vmem:[%s1 + $0x2c] sm:$0xf]
  %v65 = vld [vmem:[%s1 + $0x30] sm:$0xf]
  %v66 = vld [vmem:[%s1 + $0x34] sm:$0xf]
  %v67 = vld [vmem:[%s1 + $0x38] sm:$0xf]
  %v68 = vld [vmem:[%s1 + $0x3c] sm:$0xf]
  %v69 = vld [vmem:[%s1 + $0x40] sm:$0xf]
  %v70 = vld [vmem:[%s1 + $0x44] sm:$0xf]
  %v71 = vld [vmem:[%s1 + $0x48] sm:$0xf]
  %v72 = vld [vmem:[%s1 + $0x4c] sm:$0xf]
  %v73 = vld [vmem:[%s1 + $0x50] sm:$0xf]
  %v74 = vld [vmem:[%s1 + $0x54] sm:$0xf]
  %v75 = vld [vmem:[%s1 + $0x58] sm:$0xf]
  %v76 = vld [vmem:[%s1 + $0x5c] sm:$0xf]
  %v77 = vld [vmem:[%s1 + $0x60] sm:$0xf]
  %v78 = vld [vmem:[%s1 + $0x64] sm:$0xf]
  %v79 = vld [vmem:[%s1 + $0x68] sm:$0xf]
  %v80 = vld [vmem:[%s1 + $0x6c] sm:$0xf]
  %v81 = vld [vmem:[%s1 + $0x70] sm:$0xf]
  %v82 = vld [vmem:[%s1 + $0x74] sm:$0xf]
  %v83 = vld [vmem:[%s1 + $0x78] sm:$0xf]
  %v84 = vld [vmem:[%s1 + $0x7c] sm:$0xf]
  %v85 = vld [vmem:[%s1 + $0x80] sm:$0xf]
  %v86 = vld [vmem:[%s1 + $0x84] sm:$0xf]
  %v87 = vld [vmem:[%s1 + $0x88] sm:$0xf]
  %v88 = vld [vmem:[%s1 + $0x8c] sm:$0xf]
  %v89 = vld [vmem:[%s1 + $0x90] sm:$0xf]
  %v90 = vld [vmem:[%s1 + $0x94] sm:$0xf]
  %v91 = vld [vmem:[%s1 + $0x98] sm:$0xf]
  %v92 = vld [vmem:[%s1 + $0x9c] sm:$0xf]
  %v93 = vld [vmem:[%s1 + $0xa0] sm:$0xf]
  %v94 = vld [vmem:[%s1 + $0xa4] sm:$0xf]
  %v95 = vld [vmem:[%s1 + $0xa8] sm:$0xf]
  %v96 = vld [vmem:[%s1 + $0xac] sm:$0xf]
  %v97 = vld [vmem:[%s1 + $0xb0] sm:$0xf]
  %v98 = vld [vmem:[%s1 + $0xb4] sm:$0xf]
  %v99 = vld [vmem:[%s1 + $0xb8] sm:$0xf]
  %v100 = vld [vmem:[%s1 + $0xbc] sm:$0xf]
  %v101 = vld [vmem:[%s1 + $0xc0] sm:$0xf]
  %v102 = vld [vmem:[%s1 + $0xc4] sm:$0xf]
  %v103 = vld [vmem:[%s1 + $0xc8] sm:$0xf]
  %v104 = vld [vmem:[%s1 + $0xcc] sm:$0xf]
  %v105 = vld [vmem:[%s1 + $0xd0] sm:$0xf]
  %v106 = vld [vmem:[%s1 + $0xd4] sm:$0xf]
  %v107 = vld [vmem:[%s1 + $0xd8] sm:$0xf]
  %v108 = vld [vmem:[%s1 + $0xdc] sm:$0xf]
  %v109 = vld [vmem:[%s1 + $0xe0] sm:$0xf]
  %v110 = vld [vmem:[%s1 + $0xe4] sm:$0xf]
  %v111 = vld [vmem:[%s1 + $0xe8] sm:$0xf]
  %v112 = vld [vmem:[%s1 + $0xec] sm:$0xf]
  %v113 = vld [vmem:[%s1 + $0xf0] sm:$0xf]
  %v114 = vld [vmem:[%s1 + $0xf4] sm:$0xf]
  %v115 = vld [vmem:[%s1 + $0xf8] sm:$0xf]
  %v116 = vld [vmem:[%s1 + $0xfc] sm:$0xf]
  %v159 = vunpack.c.l.b16 %v11
  %v160 = vunpack.c.h.b16 %v11
  %v161 = vunpack.c.l.b16 %v12
  %v162 = vunpack.c.h.b16 %v12
  %v163 = vunpack.c.l.b16 %v13
  %v164 = vunpack.c.h.b16 %v13
  %v165 = vunpack.c.l.b16 %v14
  %v166 = vunpack.c.h.b16 %v14
  %v167 = vunpack.c.l.b16 %v15
  %v168 = vunpack.c.h.b16 %v15
  %v169 = vunpack.c.l.b16 %v16
  %v170 = vunpack.c.h.b16 %v16
  %v171 = vunpack.c.l.b16 %v17
  %v172 = vunpack.c.h.b16 %v17
  %v173 = vunpack.c.l.b16 %v18
  %v174 = vunpack.c.h.b16 %v18
  %v175 = vunpack.c.l.b16 %v19
  %v176 = vunpack.c.h.b16 %v19
  %v177 = vunpack.c.l.b16 %v20
  %v178 = vunpack.c.h.b16 %v20
  %v179 = vunpack.c.l.b16 %v21
  %v180 = vunpack.c.h.b16 %v21
  %v181 = vunpack.c.l.b16 %v22
  %v182 = vunpack.c.h.b16 %v22
  %v183 = vunpack.c.l.b16 %v23
  %v184 = vunpack.c.h.b16 %v23
  %v185 = vunpack.c.l.b16 %v24
  %v186 = vunpack.c.h.b16 %v24
  %v187 = vunpack.c.l.b16 %v25
  %v188 = vunpack.c.h.b16 %v25
  %v189 = vunpack.c.l.b16 %v26
  %v190 = vunpack.c.h.b16 %v26
  %v191 = vunpack.c.l.b16 %v27
  %v192 = vunpack.c.h.b16 %v27
  %v193 = vunpack.c.l.b16 %v28
  %v194 = vunpack.c.h.b16 %v28
  %v195 = vunpack.c.l.b16 %v29
  %v196 = vunpack.c.h.b16 %v29
  %v197 = vunpack.c.l.b16 %v30
  %v198 = vunpack.c.h.b16 %v30
  %v199 = vunpack.c.l.b16 %v31
  %v200 = vunpack.c.h.b16 %v31
  %v201 = vunpack.c.l.b16 %v32
  %v202 = vunpack.c.h.b16 %v32
  %v203 = vunpack.c.l.b16 %v33
  %v204 = vunpack.c.h.b16 %v33
  %v205 = vunpack.c.l.b16 %v34
  %v206 = vunpack.c.h.b16 %v34
  %v207 = vunpack.c.l.b16 %v35
  %v208 = vunpack.c.h.b16 %v35
  %v209 = vunpack.c.l.b16 %v36
  %v210 = vunpack.c.h.b16 %v36
  %v211 = vunpack.c.l.b16 %v37
  %v212 = vunpack.c.h.b16 %v37
  %v213 = vunpack.c.l.b16 %v38
  %v214 = vunpack.c.h.b16 %v38
  %v215 = vunpack.c.l.b16 %v39
  %v216 = vunpack.c.h.b16 %v39
  %v217 = vunpack.c.l.b16 %v40
  %v218 = vunpack.c.h.b16 %v40
  %v219 = vunpack.c.l.b16 %v41
  %v220 = vunpack.c.h.b16 %v41
  %v221 = vunpack.c.l.b16 %v42
  %v222 = vunpack.c.h.b16 %v42
  %v223 = vunpack.c.l.b16 %v43
  %v224 = vunpack.c.h.b16 %v43
  %v225 = vunpack.c.l.b16 %v44
  %v226 = vunpack.c.h.b16 %v44
  %v227 = vunpack.c.l.b16 %v45
  %v228 = vunpack.c.h.b16 %v45
  %v229 = vunpack.c.l.b16 %v46
  %v230 = vunpack.c.h.b16 %v46
  %v231 = vunpack.c.l.b16 %v47
  %v232 = vunpack.c.h.b16 %v47
  %v233 = vunpack.c.l.b16 %v48
  %v234 = vunpack.c.h.b16 %v48
  %v235 = vunpack.c.l.b16 %v49
  %v236 = vunpack.c.h.b16 %v49
  %v237 = vunpack.c.l.b16 %v50
  %v238 = vunpack.c.h.b16 %v50
  %v239 = vunpack.c.l.b16 %v51
  %v240 = vunpack.c.h.b16 %v51
  %v241 = vunpack.c.l.b16 %v52
  %v242 = vunpack.c.h.b16 %v52
  %v243 = vpack.c.b16 %v163, %v159
  %v244 = vpack.c.b16 %v164, %v160
  %v245 = vpack.c.b16 %v165, %v161
  %v246 = vpack.c.b16 %v166, %v162
  %v247 = vpack.c.b16 %v171, %v167
  %v248 = vpack.c.b16 %v172, %v168
  %v249 = vpack.c.b16 %v173, %v169
  %v250 = vpack.c.b16 %v174, %v170
  %v251 = vpack.c.b16 %v179, %v175
  %v252 = vpack.c.b16 %v180, %v176
  %v253 = vpack.c.b16 %v181, %v177
  %v254 = vpack.c.b16 %v182, %v178
  %v255 = vpack.c.b16 %v187, %v183
  %v256 = vpack.c.b16 %v188, %v184
  %v257 = vpack.c.b16 %v189, %v185
  %v258 = vpack.c.b16 %v190, %v186
  %v259 = vpack.c.b16 %v195, %v191
  %v260 = vpack.c.b16 %v196, %v192
  %v261 = vpack.c.b16 %v197, %v193
  %v262 = vpack.c.b16 %v198, %v194
  %v263 = vpack.c.b16 %v203, %v199
  %v264 = vpack.c.b16 %v204, %v200
  %v265 = vpack.c.b16 %v205, %v201
  %v266 = vpack.c.b16 %v206, %v202
  %v267 = vpack.c.b16 %v211, %v207
  %v268 = vpack.c.b16 %v212, %v208
  %v269 = vpack.c.b16 %v213, %v209
  %v270 = vpack.c.b16 %v214, %v210
  %v271 = vpack.c.b16 %v219, %v215
  %v272 = vpack.c.b16 %v220, %v216
  %v273 = vpack.c.b16 %v221, %v217
  %v274 = vpack.c.b16 %v222, %v218
  %v275 = vpack.c.b16 %v227, %v223
  %v276 = vpack.c.b16 %v228, %v224
  %v277 = vpack.c.b16 %v229, %v225
  %v278 = vpack.c.b16 %v230, %v226
  %v279 = vpack.c.b16 %v235, %v231
  %v280 = vpack.c.b16 %v236, %v232
  %v281 = vpack.c.b16 %v237, %v233
  %v282 = vpack.c.b16 %v238, %v234
  %v283 = vpack.c.b16 %v239, %v239
  %v284 = vpack.c.b16 %v240, %v240
  %v285 = vpack.c.b16 %v241, %v241
  %v286 = vpack.c.b16 %v242, %v242
  %v395 = vunpack.c.l.b16 %v53
  %v396 = vunpack.c.l.b16 %v54
  %v397 = vunpack.c.l.b16 %v55
  %v398 = vunpack.c.l.b16 %v56
  %v399 = vunpack.c.l.b16 %v57
  %v400 = vunpack.c.l.b16 %v58
  %v401 = vunpack.c.l.b16 %v59
  %v402 = vunpack.c.l.b16 %v60
  %v403 = vunpack.c.l.b16 %v61
  %v404 = vunpack.c.l.b16 %v62
  %v405 = vunpack.c.l.b16 %v63
  %v406 = vunpack.c.l.b16 %v64
  %v407 = vunpack.c.l.b16 %v65
  %v408 = vunpack.c.l.b16 %v66
  %v409 = vunpack.c.l.b16 %v67
  %v410 = vunpack.c.l.b16 %v68
  %v411 = vunpack.c.l.b16 %v69
  %v412 = vunpack.c.l.b16 %v70
  %v413 = vunpack.c.l.b16 %v71
  %v414 = vunpack.c.l.b16 %v72
  %v415 = vunpack.c.l.b16 %v73
  %v416 = vunpack.c.l.b16 %v74
  %v417 = vunpack.c.l.b16 %v75
  %v418 = vunpack.c.l.b16 %v76
  %v419 = vunpack.c.l.b16 %v77
  %v420 = vunpack.c.l.b16 %v78
  %v421 = vunpack.c.l.b16 %v79
  %v422 = vunpack.c.l.b16 %v80
  %v423 = vunpack.c.l.b16 %v81
  %v424 = vunpack.c.l.b16 %v82
  %v425 = vunpack.c.l.b16 %v83
  %v426 = vunpack.c.l.b16 %v84
  %v427 = vunpack.c.l.b16 %v85
  %v428 = vunpack.c.l.b16 %v86
  %v429 = vunpack.c.l.b16 %v87
  %v430 = vunpack.c.l.b16 %v88
  %v431 = vunpack.c.l.b16 %v89
  %v432 = vunpack.c.l.b16 %v90
  %v433 = vunpack.c.l.b16 %v91
  %v434 = vunpack.c.l.b16 %v92
  %v435 = vunpack.c.l.b16 %v93
  %v436 = vunpack.c.l.b16 %v94
  %v437 = vunpack.c.l.b16 %v95
  %v438 = vunpack.c.l.b16 %v96
  %v439 = vunpack.c.l.b16 %v97
  %v440 = vunpack.c.l.b16 %v98
  %v441 = vunpack.c.l.b16 %v99
  %v442 = vunpack.c.l.b16 %v100
  %v443 = vunpack.c.l.b16 %v101
  %v444 = vunpack.c.l.b16 %v102
  %v445 = vunpack.c.l.b16 %v103
  %v446 = vunpack.c.l.b16 %v104
  %v447 = vunpack.c.l.b16 %v105
  %v448 = vunpack.c.l.b16 %v106
  %v449 = vunpack.c.l.b16 %v107
  %v450 = vunpack.c.l.b16 %v108
  %v451 = vunpack.c.l.b16 %v109
  %v452 = vunpack.c.l.b16 %v110
  %v453 = vunpack.c.l.b16 %v111
  %v454 = vunpack.c.l.b16 %v112
  %v455 = vunpack.c.l.b16 %v113
  %v456 = vunpack.c.l.b16 %v114
  %v457 = vunpack.c.l.b16 %v115
  %v458 = vunpack.c.l.b16 %v116
  %v459 = vpack.c.b16 %v396, %v395
  %v460 = vpack.c.b16 %v398, %v397
  %v461 = vpack.c.b16 %v400, %v399
  %v462 = vpack.c.b16 %v402, %v401
  %v463 = vpack.c.b16 %v404, %v403
  %v464 = vpack.c.b16 %v406, %v405
  %v465 = vpack.c.b16 %v408, %v407
  %v466 = vpack.c.b16 %v410, %v409
  %v467 = vpack.c.b16 %v412, %v411
  %v468 = vpack.c.b16 %v414, %v413
  %v469 = vpack.c.b16 %v416, %v415
  %v470 = vpack.c.b16 %v418, %v417
  %v471 = vpack.c.b16 %v420, %v419
  %v472 = vpack.c.b16 %v422, %v421
  %v473 = vpack.c.b16 %v424, %v423
  %v474 = vpack.c.b16 %v426, %v425
  %v475 = vpack.c.b16 %v428, %v427
  %v476 = vpack.c.b16 %v430, %v429
  %v477 = vpack.c.b16 %v432, %v431
  %v478 = vpack.c.b16 %v434, %v433
  %v479 = vpack.c.b16 %v436, %v435
  %v480 = vpack.c.b16 %v438, %v437
  %v481 = vpack.c.b16 %v440, %v439
  %v482 = vpack.c.b16 %v442, %v441
  %v483 = vpack.c.b16 %v444, %v443
  %v484 = vpack.c.b16 %v446, %v445
  %v485 = vpack.c.b16 %v448, %v447
  %v486 = vpack.c.b16 %v450, %v449
  %v487 = vpack.c.b16 %v452, %v451
  %v488 = vpack.c.b16 %v454, %v453
  %v489 = vpack.c.b16 %v456, %v455
  %v490 = vpack.c.b16 %v458, %v457
  %523 = vmatpush.bf16.msra.mxu0 %v466
  %524 = vmatpush.bf16.msra.mxu0 %v465
  %525 = vmatpush.bf16.msra.mxu0 %v464
  %526 = vmatpush.bf16.msra.mxu0 %v463
  %527 = vmatpush.bf16.msra.mxu0 %v462
  %528 = vmatpush.bf16.msra.mxu0 %v461
  %529 = vmatpush.bf16.msra.mxu0 %v460
  %530 = vmatpush.bf16.msra.mxu0 %v459
  %531 = vmatmul.bf16.gmra.mxu0 %v243
  %v532 = vpop.f32.mrf.mxu0
  %v533 = vadd.f32 0.0, %v532
  %v534 = vpop.f32.mrf.mxu0
  %v535 = vadd.f32 0.0, %v534
  %536 = vmatmul.bf16.gmra.mxu0 %v247
  %v537 = vpop.f32.mrf.mxu0
  %v538 = vadd.f32 0.0, %v537
  %v539 = vpop.f32.mrf.mxu0
  %v540 = vadd.f32 0.0, %v539
  %541 = vmatmul.bf16.gmra.mxu0 %v251
  %v542 = vpop.f32.mrf.mxu0
  %v543 = vadd.f32 0.0, %v542
  %v544 = vpop.f32.mrf.mxu0
  %v545 = vadd.f32 0.0, %v544
  %546 = vmatmul.bf16.gmra.mxu0 %v255
  %v547 = vpop.f32.mrf.mxu0
  %v548 = vadd.f32 0.0, %v547
  %v549 = vpop.f32.mrf.mxu0
  %v550 = vadd.f32 0.0, %v549
  %551 = vmatmul.bf16.gmra.mxu0 %v259
  %v552 = vpop.f32.mrf.mxu0
  %v553 = vadd.f32 0.0, %v552
  %v554 = vpop.f32.mrf.mxu0
  %v555 = vadd.f32 0.0, %v554
  %556 = vmatmul.bf16.gmra.mxu0 %v263
  %v557 = vpop.f32.mrf.mxu0
  %v558 = vadd.f32 0.0, %v557
  %v559 = vpop.f32.mrf.mxu0
  %v560 = vadd.f32 0.0, %v559
  %561 = vmatmul.bf16.gmra.mxu0 %v267
  %v562 = vpop.f32.mrf.mxu0
  %v563 = vadd.f32 0.0, %v562
  %v564 = vpop.f32.mrf.mxu0
  %v565 = vadd.f32 0.0, %v564
  %566 = vmatmul.bf16.gmra.mxu0 %v271
  %v567 = vpop.f32.mrf.mxu0
  %v568 = vadd.f32 0.0, %v567
  %v569 = vpop.f32.mrf.mxu0
  %v570 = vadd.f32 0.0, %v569
  %571 = vmatmul.bf16.gmra.mxu0 %v275
  %v572 = vpop.f32.mrf.mxu0
  %v573 = vadd.f32 0.0, %v572
  %v574 = vpop.f32.mrf.mxu0
  %v575 = vadd.f32 0.0, %v574
  %576 = vmatmul.bf16.gmra.mxu0 %v279
  %v577 = vpop.f32.mrf.mxu0
  %v578 = vadd.f32 0.0, %v577
  %v579 = vpop.f32.mrf.mxu0
  %v580 = vadd.f32 0.0, %v579
  %581 = vmatmul.bf16.gmra.mxu0 %v283
  %v582 = vpop.f32.mrf.mxu0
  %v583 = vadd.f32 0.0, %v582
  %v584 = vpop.f32.mrf.mxu0
  %585 = vdwg.mxu0
  %586 = vmatpush.bf16.msra.mxu0 %v474
  %587 = vmatpush.bf16.msra.mxu0 %v473
  %588 = vmatpush.bf16.msra.mxu0 %v472
  %589 = vmatpush.bf16.msra.mxu0 %v471
  %590 = vmatpush.bf16.msra.mxu0 %v470
  %591 = vmatpush.bf16.msra.mxu0 %v469
  %592 = vmatpush.bf16.msra.mxu0 %v468
  %593 = vmatpush.bf16.msra.mxu0 %v467
  %594 = vmatmul.bf16.gmra.mxu0 %v244
  %v595 = vpop.f32.mrf.mxu0
  %v596 = vadd.f32 %v533, %v595
  %v597 = vpop.f32.mrf.mxu0
  %v598 = vadd.f32 %v535, %v597
  %599 = vmatmul.bf16.gmra.mxu0 %v248
  %v600 = vpop.f32.mrf.mxu0
  %v601 = vadd.f32 %v538, %v600
  %v602 = vpop.f32.mrf.mxu0
  %v603 = vadd.f32 %v540, %v602
  %604 = vmatmul.bf16.gmra.mxu0 %v252
  %v605 = vpop.f32.mrf.mxu0
  %v606 = vadd.f32 %v543, %v605
  %v607 = vpop.f32.mrf.mxu0
  %v608 = vadd.f32 %v545, %v607
  %609 = vmatmul.bf16.gmra.mxu0 %v256
  %v610 = vpop.f32.mrf.mxu0
  %v611 = vadd.f32 %v548, %v610
  %v612 = vpop.f32.mrf.mxu0
  %v613 = vadd.f32 %v550, %v612
  %614 = vmatmul.bf16.gmra.mxu0 %v260
  %v615 = vpop.f32.mrf.mxu0
  %v616 = vadd.f32 %v553, %v615
  %v617 = vpop.f32.mrf.mxu0
  %v618 = vadd.f32 %v555, %v617
  %619 = vmatmul.bf16.gmra.mxu0 %v264
  %v620 = vpop.f32.mrf.mxu0
  %v621 = vadd.f32 %v558, %v620
  %v622 = vpop.f32.mrf.mxu0
  %v623 = vadd.f32 %v560, %v622
  %624 = vmatmul.bf16.gmra.mxu0 %v268
  %v625 = vpop.f32.mrf.mxu0
  %v626 = vadd.f32 %v563, %v625
  %v627 = vpop.f32.mrf.mxu0
  %v628 = vadd.f32 %v565, %v627
  %629 = vmatmul.bf16.gmra.mxu0 %v272
  %v630 = vpop.f32.mrf.mxu0
  %v631 = vadd.f32 %v568, %v630
  %v632 = vpop.f32.mrf.mxu0
  %v633 = vadd.f32 %v570, %v632
  %634 = vmatmul.bf16.gmra.mxu0 %v276
  %v635 = vpop.f32.mrf.mxu0
  %v636 = vadd.f32 %v573, %v635
  %v637 = vpop.f32.mrf.mxu0
  %v638 = vadd.f32 %v575, %v637
  %639 = vmatmul.bf16.gmra.mxu0 %v280
  %v640 = vpop.f32.mrf.mxu0
  %v641 = vadd.f32 %v578, %v640
  %v642 = vpop.f32.mrf.mxu0
  %v643 = vadd.f32 %v580, %v642
  %644 = vmatmul.bf16.gmra.mxu0 %v284
  %v645 = vpop.f32.mrf.mxu0
  %v646 = vadd.f32 %v583, %v645
  %v647 = vpop.f32.mrf.mxu0
  %648 = vdwg.mxu0
  %649 = vmatpush.bf16.msra.mxu0 %v482
  %650 = vmatpush.bf16.msra.mxu0 %v481
  %651 = vmatpush.bf16.msra.mxu0 %v480
  %652 = vmatpush.bf16.msra.mxu0 %v479
  %653 = vmatpush.bf16.msra.mxu0 %v478
  %654 = vmatpush.bf16.msra.mxu0 %v477
  %655 = vmatpush.bf16.msra.mxu0 %v476
  %656 = vmatpush.bf16.msra.mxu0 %v475
  %657 = vmatmul.bf16.gmra.mxu0 %v245
  %v658 = vpop.f32.mrf.mxu0
  %v659 = vadd.f32 %v596, %v658
  %v660 = vpop.f32.mrf.mxu0
  %v661 = vadd.f32 %v598, %v660
  %662 = vmatmul.bf16.gmra.mxu0 %v249
  %v663 = vpop.f32.mrf.mxu0
  %v664 = vadd.f32 %v601, %v663
  %v665 = vpop.f32.mrf.mxu0
  %v666 = vadd.f32 %v603, %v665
  %667 = vmatmul.bf16.gmra.mxu0 %v253
  %v668 = vpop.f32.mrf.mxu0
  %v669 = vadd.f32 %v606, %v668
  %v670 = vpop.f32.mrf.mxu0
  %v671 = vadd.f32 %v608, %v670
  %672 = vmatmul.bf16.gmra.mxu0 %v257
  %v673 = vpop.f32.mrf.mxu0
  %v674 = vadd.f32 %v611, %v673
  %v675 = vpop.f32.mrf.mxu0
  %v676 = vadd.f32 %v613, %v675
  %677 = vmatmul.bf16.gmra.mxu0 %v261
  %v678 = vpop.f32.mrf.mxu0
  %v679 = vadd.f32 %v616, %v678
  %v680 = vpop.f32.mrf.mxu0
  %v681 = vadd.f32 %v618, %v680
  %682 = vmatmul.bf16.gmra.mxu0 %v265
  %v683 = vpop.f32.mrf.mxu0
  %v684 = vadd.f32 %v621, %v683
  %v685 = vpop.f32.mrf.mxu0
  %v686 = vadd.f32 %v623, %v685
  %687 = vmatmul.bf16.gmra.mxu0 %v269
  %v688 = vpop.f32.mrf.mxu0
  %v689 = vadd.f32 %v626, %v688
  %v690 = vpop.f32.mrf.mxu0
  %v691 = vadd.f32 %v628, %v690
  %692 = vmatmul.bf16.gmra.mxu0 %v273
  %v693 = vpop.f32.mrf.mxu0
  %v694 = vadd.f32 %v631, %v693
  %v695 = vpop.f32.mrf.mxu0
  %v696 = vadd.f32 %v633, %v695
  %697 = vmatmul.bf16.gmra.mxu0 %v277
  %v698 = vpop.f32.mrf.mxu0
  %v699 = vadd.f32 %v636, %v698
  %v700 = vpop.f32.mrf.mxu0
  %v701 = vadd.f32 %v638, %v700
  %702 = vmatmul.bf16.gmra.mxu0 %v281
  %v703 = vpop.f32.mrf.mxu0
  %v704 = vadd.f32 %v641, %v703
  %v705 = vpop.f32.mrf.mxu0
  %v706 = vadd.f32 %v643, %v705
  %707 = vmatmul.bf16.gmra.mxu0 %v285
  %v708 = vpop.f32.mrf.mxu0
  %v709 = vadd.f32 %v646, %v708
  %v710 = vpop.f32.mrf.mxu0
  %711 = vdwg.mxu0
  %712 = vmatpush.bf16.msra.mxu0 %v490
  %713 = vmatpush.bf16.msra.mxu0 %v489
  %714 = vmatpush.bf16.msra.mxu0 %v488
  %715 = vmatpush.bf16.msra.mxu0 %v487
  %716 = vmatpush.bf16.msra.mxu0 %v486
  %717 = vmatpush.bf16.msra.mxu0 %v485
  %718 = vmatpush.bf16.msra.mxu0 %v484
  %719 = vmatpush.bf16.msra.mxu0 %v483
  %720 = vmatmul.bf16.gmra.mxu0 %v246
  %v721 = vpop.f32.mrf.mxu0
  %v722 = vadd.f32 %v659, %v721
  %v723 = vpop.f32.mrf.mxu0
  %v724 = vadd.f32 %v661, %v723
  %725 = vmatmul.bf16.gmra.mxu0 %v250
  %v726 = vpop.f32.mrf.mxu0
  %v727 = vadd.f32 %v664, %v726
  %v728 = vpop.f32.mrf.mxu0
  %v729 = vadd.f32 %v666, %v728
  %730 = vmatmul.bf16.gmra.mxu0 %v254
  %v731 = vpop.f32.mrf.mxu0
  %v732 = vadd.f32 %v669, %v731
  %v733 = vpop.f32.mrf.mxu0
  %v734 = vadd.f32 %v671, %v733
  %735 = vmatmul.bf16.gmra.mxu0 %v258
  %v736 = vpop.f32.mrf.mxu0
  %v737 = vadd.f32 %v674, %v736
  %v738 = vpop.f32.mrf.mxu0
  %v739 = vadd.f32 %v676, %v738
  %740 = vmatmul.bf16.gmra.mxu0 %v262
  %v741 = vpop.f32.mrf.mxu0
  %v742 = vadd.f32 %v679, %v741
  %v743 = vpop.f32.mrf.mxu0
  %v744 = vadd.f32 %v681, %v743
  %745 = vmatmul.bf16.gmra.mxu0 %v266
  %v746 = vpop.f32.mrf.mxu0
  %v747 = vadd.f32 %v684, %v746
  %v748 = vpop.f32.mrf.mxu0
  %v749 = vadd.f32 %v686, %v748
  %750 = vmatmul.bf16.gmra.mxu0 %v270
  %v751 = vpop.f32.mrf.mxu0
  %v752 = vadd.f32 %v689, %v751
  %v753 = vpop.f32.mrf.mxu0
  %v754 = vadd.f32 %v691, %v753
  %755 = vmatmul.bf16.gmra.mxu0 %v274
  %v756 = vpop.f32.mrf.mxu0
  %v757 = vadd.f32 %v694, %v756
  %v758 = vpop.f32.mrf.mxu0
  %v759 = vadd.f32 %v696, %v758
  %760 = vmatmul.bf16.gmra.mxu0 %v278
  %v761 = vpop.f32.mrf.mxu0
  %v762 = vadd.f32 %v699, %v761
  %v763 = vpop.f32.mrf.mxu0
  %v764 = vadd.f32 %v701, %v763
  %765 = vmatmul.bf16.gmra.mxu0 %v282
  %v766 = vpop.f32.mrf.mxu0
  %v767 = vadd.f32 %v704, %v766
  %v768 = vpop.f32.mrf.mxu0
  %v769 = vadd.f32 %v706, %v768
  %770 = vmatmul.bf16.gmra.mxu0 %v286
  %v771 = vpop.f32.mrf.mxu0
  %v772 = vadd.f32 %v709, %v771
  %v773 = vpop.f32.mrf.mxu0
  %774 = vdwg.mxu0
  %v775 = vmax.f32 %v722, 0.0
  %v776 = vmax.f32 %v724, 0.0
  %v777 = vmax.f32 %v727, 0.0
  %v778 = vmax.f32 %v729, 0.0
  %v779 = vmax.f32 %v732, 0.0
  %v780 = vmax.f32 %v734, 0.0
  %v781 = vmax.f32 %v737, 0.0
  %v782 = vmax.f32 %v739, 0.0
  %v783 = vmax.f32 %v742, 0.0
  %v784 = vmax.f32 %v744, 0.0
  %v785 = vmax.f32 %v747, 0.0
  %v786 = vmax.f32 %v749, 0.0
  %v787 = vmax.f32 %v752, 0.0
  %v788 = vmax.f32 %v754, 0.0
  %v789 = vmax.f32 %v757, 0.0
  %v790 = vmax.f32 %v759, 0.0
  %v791 = vmax.f32 %v762, 0.0
  %v792 = vmax.f32 %v764, 0.0
  %v793 = vmax.f32 %v767, 0.0
  %v794 = vmax.f32 %v769, 0.0
  %v795 = vmax.f32 %v772, 0.0
  %v796 = vpack.c.bf16 %v775, %v775
  %v797 = vpack.c.bf16 %v776, %v776
  %v798 = vpack.c.bf16 %v777, %v777
  %v799 = vpack.c.bf16 %v778, %v778
  %v800 = vpack.c.bf16 %v779, %v779
  %v801 = vpack.c.bf16 %v780, %v780
  %v802 = vpack.c.bf16 %v781, %v781
  %v803 = vpack.c.bf16 %v782, %v782
  %v804 = vpack.c.bf16 %v783, %v783
  %v805 = vpack.c.bf16 %v784, %v784
  %v806 = vpack.c.bf16 %v785, %v785
  %v807 = vpack.c.bf16 %v786, %v786
  %v808 = vpack.c.bf16 %v787, %v787
  %v809 = vpack.c.bf16 %v788, %v788
  %v810 = vpack.c.bf16 %v789, %v789
  %v811 = vpack.c.bf16 %v790, %v790
  %v812 = vpack.c.bf16 %v791, %v791
  %v813 = vpack.c.bf16 %v792, %v792
  %v814 = vpack.c.bf16 %v793, %v793
  %v815 = vpack.c.bf16 %v794, %v794
  %v816 = vpack.c.bf16 %v795, %v795
  %vm817 = vcmask 519168
  %818 = vst.msk [vmem:[%s2] sm:$0xf] %vm817, %v796
  %819 = vst.msk [vmem:[%s2 + $0x4] sm:$0xf] %vm817, %v797
  %820 = vst.msk [vmem:[%s2 + $0x8] sm:$0xf] %vm817, %v798
  %821 = vst.msk [vmem:[%s2 + $0xc] sm:$0xf] %vm817, %v799
  %822 = vst.msk [vmem:[%s2 + $0x10] sm:$0xf] %vm817, %v800
  %823 = vst.msk [vmem:[%s2 + $0x14] sm:$0xf] %vm817, %v801
  %824 = vst.msk [vmem:[%s2 + $0x18] sm:$0xf] %vm817, %v802
  %825 = vst.msk [vmem:[%s2 + $0x1c] sm:$0xf] %vm817, %v803
  %826 = vst.msk [vmem:[%s2 + $0x20] sm:$0xf] %vm817, %v804
  %827 = vst.msk [vmem:[%s2 + $0x24] sm:$0xf] %vm817, %v805
  %828 = vst.msk [vmem:[%s2 + $0x28] sm:$0xf] %vm817, %v806
  %829 = vst.msk [vmem:[%s2 + $0x2c] sm:$0xf] %vm817, %v807
  %830 = vst.msk [vmem:[%s2 + $0x30] sm:$0xf] %vm817, %v808
  %831 = vst.msk [vmem:[%s2 + $0x34] sm:$0xf] %vm817, %v809
  %832 = vst.msk [vmem:[%s2 + $0x38] sm:$0xf] %vm817, %v810
  %833 = vst.msk [vmem:[%s2 + $0x3c] sm:$0xf] %vm817, %v811
  %834 = vst.msk [vmem:[%s2 + $0x40] sm:$0xf] %vm817, %v812
  %835 = vst.msk [vmem:[%s2 + $0x44] sm:$0xf] %vm817, %v813
  %836 = vst.msk [vmem:[%s2 + $0x48] sm:$0xf] %vm817, %v814
  %837 = vst.msk [vmem:[%s2 + $0x4c] sm:$0xf] %vm817, %v815
  %vm838 = vcmask 516096
  %839 = vst.msk [vmem:[%s2 + $0x50] sm:$0x1] %vm838, %v816
  // Predicated region
  $region10: #{forward.5} parent=0 // pred_check
    _
  $region11: #{forward.5} parent=0 // pred_check_branch
    %841 = sbr.rel (0) target = $region13
  $region12: #{forward.5} parent=0 // pred_region
    _
  $region13: #{forward.5} parent=0 // pred_fallthru
    _
  // Predicated region
  $region14: #{forward.5} parent=0 // pred_check
    _
  $region15: #{forward.5} parent=0 // pred_check_branch
    %843 = sbr.rel (0) target = $region17
  $region16: #{forward.5} parent=0 // pred_region
    _
  $region17: #{forward.5} parent=0 // pred_fallthru
    _

// kernel: forward.6
$region0: #{forward.6}
  #allocation0 [shape = 'u32[]', space=smem, size = 0x4, offset = 0x4, fixed_abs, tag = 'smem constant byte address 0x4 - core index']
  #allocation1 [shape = 'u32[72,128]{1,0:T(1,128)}', space=vmem, size = 0x9000, scoped, tag = 'internal scratch']
  %s0 = inlined_call_operand.vmem [shape: bf16[98,576], index: 0, kind: input, shape index: {}]
  %s1 = inlined_call_operand.vmem [shape: bf16[576,64], index: 1, kind: input, shape index: {}]
  %s2 = inlined_call_operand.vmem [shape: bf16[98,64], index: 2, kind: output, shape index: {}]
  %s3 = sld [smem:[#allocation0]]
  $region18: #{forward.6} parent=0
    _
  %s5 = ssub.s32 1, %s3
  %s6 = scalar_select 0, %s5, %s3
  // Predicated region
  $region2: #{forward.6} parent=0 // pred_check
    _
  $region3: #{forward.6} parent=0 // pred_check_branch
    %8 = sbr.rel (0) target = $region5
  $region4: #{forward.6} parent=0 // pred_region
    _
  $region5: #{forward.6} parent=0 // pred_fallthru
    _
  // Predicated region
  $region6: #{forward.6} parent=0 // pred_check
    _
  $region7: #{forward.6} parent=0 // pred_check_branch
    %10 = sbr.rel (0) target = $region9
  $region8: #{forward.6} parent=0 // pred_region
    _
  $region9: #{forward.6} parent=0 // pred_fallthru
    _
  %v12 = vld [vmem:[%s0] sm:$0xff]
  %v13 = vld [vmem:[%s0 + $0x8] sm:$0xff]
  %v14 = vld [vmem:[%s0 + $0x10] sm:$0xf]
  %v15 = vld [vmem:[%s0 + $0x14] sm:$0xff]
  %v16 = vld [vmem:[%s0 + $0x1c] sm:$0xff]
  %v17 = vld [vmem:[%s0 + $0x24] sm:$0xf]
  %v18 = vld [vmem:[%s0 + $0x28] sm:$0xff]
  %v19 = vld [vmem:[%s0 + $0x30] sm:$0xff]
  %v20 = vld [vmem:[%s0 + $0x38] sm:$0xf]
  %v21 = vld [vmem:[%s0 + $0x3c] sm:$0xff]
  %v22 = vld [vmem:[%s0 + $0x44] sm:$0xff]
  %v23 = vld [vmem:[%s0 + $0x4c] sm:$0xf]
  %v24 = vld [vmem:[%s0 + $0x50] sm:$0xff]
  %v25 = vld [vmem:[%s0 + $0x58] sm:$0xff]
  %v26 = vld [vmem:[%s0 + $0x60] sm:$0xf]
  %v27 = vld [vmem:[%s0 + $0x64] sm:$0xff]
  %v28 = vld [vmem:[%s0 + $0x6c] sm:$0xff]
  %v29 = vld [vmem:[%s0 + $0x74] sm:$0xf]
  %v30 = vld [vmem:[%s0 + $0x78] sm:$0xff]
  %v31 = vld [vmem:[%s0 + $0x80] sm:$0xff]
  %v32 = vld [vmem:[%s0 + $0x88] sm:$0xf]
  %v33 = vld [vmem:[%s0 + $0x8c] sm:$0xff]
  %v34 = vld [vmem:[%s0 + $0x94] sm:$0xff]
  %v35 = vld [vmem:[%s0 + $0x9c] sm:$0xf]
  %v36 = vld [vmem:[%s0 + $0xa0] sm:$0xff]
  %v37 = vld [vmem:[%s0 + $0xa8] sm:$0xff]
  %v38 = vld [vmem:[%s0 + $0xb0] sm:$0xf]
  %v39 = vld [vmem:[%s0 + $0xb4] sm:$0xff]
  %v40 = vld [vmem:[%s0 + $0xbc] sm:$0xff]
  %v41 = vld [vmem:[%s0 + $0xc4] sm:$0xf]
  %v42 = vld [vmem:[%s0 + $0xc8] sm:$0xff]
  %v43 = vld [vmem:[%s0 + $0xd0] sm:$0xff]
  %v44 = vld [vmem:[%s0 + $0xd8] sm:$0xf]
  %v45 = vld [vmem:[%s0 + $0xdc] sm:$0xff]
  %v46 = vld [vmem:[%s0 + $0xe4] sm:$0xff]
  %v47 = vld [vmem:[%s0 + $0xec] sm:$0xf]
  %v48 = vld [vmem:[%s0 + $0xf0] sm:$0x11]
  %v49 = vld [vmem:[%s0 + $0xf8] sm:$0x11]
  %v50 = vld [vmem:[%s0 + $0x100] sm:$0x1]
  %v51 = vld [vmem:[%s1] sm:$0xf]
  %v52 = vld [vmem:[%s1 + $0x4] sm:$0xf]
  %v53 = vld [vmem:[%s1 + $0x8] sm:$0xf]
  %v54 = vld [vmem:[%s1 + $0xc] sm:$0xf]
  %v55 = vld [vmem:[%s1 + $0x10] sm:$0xf]
  %v56 = vld [vmem:[%s1 + $0x14] sm:$0xf]
  %v57 = vld [vmem:[%s1 + $0x18] sm:$0xf]
  %v58 = vld [vmem:[%s1 + $0x1c] sm:$0xf]
  %v59 = vld [vmem:[%s1 + $0x20] sm:$0xf]
  %v60 = vld [vmem:[%s1 + $0x24] sm:$0xf]
  %v61 = vld [vmem:[%s1 + $0x28] sm:$0xf]
  %v62 = vld [vmem:[%s1 + $0x2c] sm:$0xf]
  %v63 = vld [vmem:[%s1 + $0x30] sm:$0xf]
  %v64 = vld [vmem:[%s1 + $0x34] sm:$0xf]
  %v65 = vld [vmem:[%s1 + $0x38] sm:$0xf]
  %v66 = vld [vmem:[%s1 + $0x3c] sm:$0xf]
  %v67 = vld [vmem:[%s1 + $0x40] sm:$0xf]
  %v68 = vld [vmem:[%s1 + $0x44] sm:$0xf]
  %v69 = vld [vmem:[%s1 + $0x48] sm:$0xf]
  %v70 = vld [vmem:[%s1 + $0x4c] sm:$0xf]
  %v71 = vld [vmem:[%s1 + $0x50] sm:$0xf]
  %v72 = vld [vmem:[%s1 + $0x54] sm:$0xf]
  %v73 = vld [vmem:[%s1 + $0x58] sm:$0xf]
  %v74 = vld [vmem:[%s1 + $0x5c] sm:$0xf]
  %v75 = vld [vmem:[%s1 + $0x60] sm:$0xf]
  %v76 = vld [vmem:[%s1 + $0x64] sm:$0xf]
  %v77 = vld [vmem:[%s1 + $0x68] sm:$0xf]
  %v78 = vld [vmem:[%s1 + $0x6c] sm:$0xf]
  %v79 = vld [vmem:[%s1 + $0x70] sm:$0xf]
  %v80 = vld [vmem:[%s1 + $0x74] sm:$0xf]
  %v81 = vld [vmem:[%s1 + $0x78] sm:$0xf]
  %v82 = vld [vmem:[%s1 + $0x7c] sm:$0xf]
  %v83 = vld [vmem:[%s1 + $0x80] sm:$0xf]
  %v84 = vld [vmem:[%s1 + $0x84] sm:$0xf]
  %v85 = vld [vmem:[%s1 + $0x88] sm:$0xf]
  %v86 = vld [vmem:[%s1 + $0x8c] sm:$0xf]
  %v87 = vld [vmem:[%s1 + $0x90] sm:$0xf]
  %v88 = vld [vmem:[%s1 + $0x94] sm:$0xf]
  %v89 = vld [vmem:[%s1 + $0x98] sm:$0xf]
  %v90 = vld [vmem:[%s1 + $0x9c] sm:$0xf]
  %v91 = vld [vmem:[%s1 + $0xa0] sm:$0xf]
  %v92 = vld [vmem:[%s1 + $0xa4] sm:$0xf]
  %v93 = vld [vmem:[%s1 + $0xa8] sm:$0xf]
  %v94 = vld [vmem:[%s1 + $0xac] sm:$0xf]
  %v95 = vld [vmem:[%s1 + $0xb0] sm:$0xf]
  %v96 = vld [vmem:[%s1 + $0xb4] sm:$0xf]
  %v97 = vld [vmem:[%s1 + $0xb8] sm:$0xf]
  %v98 = vld [vmem:[%s1 + $0xbc] sm:$0xf]
  %v99 = vld [vmem:[%s1 + $0xc0] sm:$0xf]
  %v100 = vld [vmem:[%s1 + $0xc4] sm:$0xf]
  %v101 = vld [vmem:[%s1 + $0xc8] sm:$0xf]
  %v102 = vld [vmem:[%s1 + $0xcc] sm:$0xf]
  %v103 = vld [vmem:[%s1 + $0xd0] sm:$0xf]
  %v104 = vld [vmem:[%s1 + $0xd4] sm:$0xf]
  %v105 = vld [vmem:[%s1 + $0xd8] sm:$0xf]
  %v106 = vld [vmem:[%s1 + $0xdc] sm:$0xf]
  %v107 = vld [vmem:[%s1 + $0xe0] sm:$0xf]
  %v108 = vld [vmem:[%s1 + $0xe4] sm:$0xf]
  %v109 = vld [vmem:[%s1 + $0xe8] sm:$0xf]
  %v110 = vld [vmem:[%s1 + $0xec] sm:$0xf]
  %v111 = vld [vmem:[%s1 + $0xf0] sm:$0xf]
  %v112 = vld [vmem:[%s1 + $0xf4] sm:$0xf]
  %v113 = vld [vmem:[%s1 + $0xf8] sm:$0xf]
  %v114 = vld [vmem:[%s1 + $0xfc] sm:$0xf]
  %v115 = vld [vmem:[%s1 + $0x100] sm:$0xf]
  %v116 = vld [vmem:[%s1 + $0x104] sm:$0xf]
  %v117 = vld [vmem:[%s1 + $0x108] sm:$0xf]
  %v118 = vld [vmem:[%s1 + $0x10c] sm:$0xf]
  %v119 = vld [vmem:[%s1 + $0x110] sm:$0xf]
  %v120 = vld [vmem:[%s1 + $0x114] sm:$0xf]
  %v121 = vld [vmem:[%s1 + $0x118] sm:$0xf]
  %v122 = vld [vmem:[%s1 + $0x11c] sm:$0xf]
  %v162 = vunpack.c.l.b16 %v12
  %v163 = vunpack.c.h.b16 %v12
  %v164 = vunpack.c.l.b16 %v13
  %v165 = vunpack.c.h.b16 %v13
  %v166 = vunpack.c.l.b16 %v14
  %v167 = vunpack.c.l.b16 %v15
  %v168 = vunpack.c.h.b16 %v15
  %v169 = vunpack.c.l.b16 %v16
  %v170 = vunpack.c.h.b16 %v16
  %v171 = vunpack.c.l.b16 %v17
  %v172 = vunpack.c.l.b16 %v18
  %v173 = vunpack.c.h.b16 %v18
  %v174 = vunpack.c.l.b16 %v19
  %v175 = vunpack.c.h.b16 %v19
  %v176 = vunpack.c.l.b16 %v20
  %v177 = vunpack.c.l.b16 %v21
  %v178 = vunpack.c.h.b16 %v21
  %v179 = vunpack.c.l.b16 %v22
  %v180 = vunpack.c.h.b16 %v22
  %v181 = vunpack.c.l.b16 %v23
  %v182 = vunpack.c.l.b16 %v24
  %v183 = vunpack.c.h.b16 %v24
  %v184 = vunpack.c.l.b16 %v25
  %v185 = vunpack.c.h.b16 %v25
  %v186 = vunpack.c.l.b16 %v26
  %v187 = vunpack.c.l.b16 %v27
  %v188 = vunpack.c.h.b16 %v27
  %v189 = vunpack.c.l.b16 %v28
  %v190 = vunpack.c.h.b16 %v28
  %v191 = vunpack.c.l.b16 %v29
  %v192 = vunpack.c.l.b16 %v30
  %v193 = vunpack.c.h.b16 %v30
  %v194 = vunpack.c.l.b16 %v31
  %v195 = vunpack.c.h.b16 %v31
  %v196 = vunpack.c.l.b16 %v32
  %v197 = vunpack.c.l.b16 %v33
  %v198 = vunpack.c.h.b16 %v33
  %v199 = vunpack.c.l.b16 %v34
  %v200 = vunpack.c.h.b16 %v34
  %v201 = vunpack.c.l.b16 %v35
  %v202 = vunpack.c.l.b16 %v36
  %v203 = vunpack.c.h.b16 %v36
  %v204 = vunpack.c.l.b16 %v37
  %v205 = vunpack.c.h.b16 %v37
  %v206 = vunpack.c.l.b16 %v38
  %v207 = vunpack.c.l.b16 %v39
  %v208 = vunpack.c.h.b16 %v39
  %v209 = vunpack.c.l.b16 %v40
  %v210 = vunpack.c.h.b16 %v40
  %v211 = vunpack.c.l.b16 %v41
  %v212 = vunpack.c.l.b16 %v42
  %v213 = vunpack.c.h.b16 %v42
  %v214 = vunpack.c.l.b16 %v43
  %v215 = vunpack.c.h.b16 %v43
  %v216 = vunpack.c.l.b16 %v44
  %v217 = vunpack.c.l.b16 %v45
  %v218 = vunpack.c.h.b16 %v45
  %v219 = vunpack.c.l.b16 %v46
  %v220 = vunpack.c.h.b16 %v46
  %v221 = vunpack.c.l.b16 %v47
  %v222 = vunpack.c.l.b16 %v48
  %v223 = vunpack.c.h.b16 %v48
  %v224 = vunpack.c.l.b16 %v49
  %v225 = vunpack.c.h.b16 %v49
  %v226 = vunpack.c.l.b16 %v50
  %v227 = vpack.c.b16 %v167, %v162
  %v228 = vpack.c.b16 %v168, %v163
  %v229 = vpack.c.b16 %v169, %v164
  %v230 = vpack.c.b16 %v170, %v165
  %v231 = vpack.c.b16 %v171, %v166
  %v232 = vpack.c.b16 %v177, %v172
  %v233 = vpack.c.b16 %v178, %v173
  %v234 = vpack.c.b16 %v179, %v174
  %v235 = vpack.c.b16 %v180, %v175
  %v236 = vpack.c.b16 %v181, %v176
  %v237 = vpack.c.b16 %v187, %v182
  %v238 = vpack.c.b16 %v188, %v183
  %v239 = vpack.c.b16 %v189, %v184
  %v240 = vpack.c.b16 %v190, %v185
  %v241 = vpack.c.b16 %v191, %v186
  %v242 = vpack.c.b16 %v197, %v192
  %v243 = vpack.c.b16 %v198, %v193
  %v244 = vpack.c.b16 %v199, %v194
  %v245 = vpack.c.b16 %v200, %v195
  %v246 = vpack.c.b16 %v201, %v196
  %v247 = vpack.c.b16 %v207, %v202
  %v248 = vpack.c.b16 %v208, %v203
  %v249 = vpack.c.b16 %v209, %v204
  %v250 = vpack.c.b16 %v210, %v205
  %v251 = vpack.c.b16 %v211, %v206
  %v252 = vpack.c.b16 %v217, %v212
  %v253 = vpack.c.b16 %v218, %v213
  %v254 = vpack.c.b16 %v219, %v214
  %v255 = vpack.c.b16 %v220, %v215
  %v256 = vpack.c.b16 %v221, %v216
  %v257 = vpack.c.b16 %v222, %v222
  %v258 = vpack.c.b16 %v223, %v223
  %v259 = vpack.c.b16 %v224, %v224
  %v260 = vpack.c.b16 %v225, %v225
  %v261 = vpack.c.b16 %v226, %v226
  %v362 = vunpack.c.l.b16 %v51
  %v363 = vunpack.c.l.b16 %v52
  %v364 = vunpack.c.l.b16 %v53
  %v365 = vunpack.c.l.b16 %v54
  %v366 = vunpack.c.l.b16 %v55
  %v367 = vunpack.c.l.b16 %v56
  %v368 = vunpack.c.l.b16 %v57
  %v369 = vunpack.c.l.b16 %v58
  %v370 = vunpack.c.l.b16 %v59
  %v371 = vunpack.c.l.b16 %v60
  %v372 = vunpack.c.l.b16 %v61
  %v373 = vunpack.c.l.b16 %v62
  %v374 = vunpack.c.l.b16 %v63
  %v375 = vunpack.c.l.b16 %v64
  %v376 = vunpack.c.l.b16 %v65
  %v377 = vunpack.c.l.b16 %v66
  %v378 = vunpack.c.l.b16 %v67
  %v379 = vunpack.c.l.b16 %v68
  %v380 = vunpack.c.l.b16 %v69
  %v381 = vunpack.c.l.b16 %v70
  %v382 = vunpack.c.l.b16 %v71
  %v383 = vunpack.c.l.b16 %v72
  %v384 = vunpack.c.l.b16 %v73
  %v385 = vunpack.c.l.b16 %v74
  %v386 = vunpack.c.l.b16 %v75
  %v387 = vunpack.c.l.b16 %v76
  %v388 = vunpack.c.l.b16 %v77
  %v389 = vunpack.c.l.b16 %v78
  %v390 = vunpack.c.l.b16 %v79
  %v391 = vunpack.c.l.b16 %v80
  %v392 = vunpack.c.l.b16 %v81
  %v393 = vunpack.c.l.b16 %v82
  %v394 = vunpack.c.l.b16 %v83
  %v395 = vunpack.c.l.b16 %v84
  %v396 = vunpack.c.l.b16 %v85
  %v397 = vunpack.c.l.b16 %v86
  %v398 = vunpack.c.l.b16 %v87
  %v399 = vunpack.c.l.b16 %v88
  %v400 = vunpack.c.l.b16 %v89
  %v401 = vunpack.c.l.b16 %v90
  %v402 = vunpack.c.l.b16 %v91
  %v403 = vunpack.c.l.b16 %v92
  %v404 = vunpack.c.l.b16 %v93
  %v405 = vunpack.c.l.b16 %v94
  %v406 = vunpack.c.l.b16 %v95
  %v407 = vunpack.c.l.b16 %v96
  %v408 = vunpack.c.l.b16 %v97
  %v409 = vunpack.c.l.b16 %v98
  %v410 = vunpack.c.l.b16 %v99
  %v411 = vunpack.c.l.b16 %v100
  %v412 = vunpack.c.l.b16 %v101
  %v413 = vunpack.c.l.b16 %v102
  %v414 = vunpack.c.l.b16 %v103
  %v415 = vunpack.c.l.b16 %v104
  %v416 = vunpack.c.l.b16 %v105
  %v417 = vunpack.c.l.b16 %v106
  %v418 = vunpack.c.l.b16 %v107
  %v419 = vunpack.c.l.b16 %v108
  %v420 = vunpack.c.l.b16 %v109
  %v421 = vunpack.c.l.b16 %v110
  %v422 = vunpack.c.l.b16 %v111
  %v423 = vunpack.c.l.b16 %v112
  %v424 = vunpack.c.l.b16 %v113
  %v425 = vunpack.c.l.b16 %v114
  %v426 = vunpack.c.l.b16 %v115
  %v427 = vunpack.c.l.b16 %v116
  %v428 = vunpack.c.l.b16 %v117
  %v429 = vunpack.c.l.b16 %v118
  %v430 = vunpack.c.l.b16 %v119
  %v431 = vunpack.c.l.b16 %v120
  %v432 = vunpack.c.l.b16 %v121
  %v433 = vunpack.c.l.b16 %v122
  %v434 = vpack.c.b16 %v363, %v362
  %v435 = vpack.c.b16 %v365, %v364
  %v436 = vpack.c.b16 %v367, %v366
  %v437 = vpack.c.b16 %v369, %v368
  %v438 = vpack.c.b16 %v371, %v370
  %v439 = vpack.c.b16 %v373, %v372
  %v440 = vpack.c.b16 %v375, %v374
  %v441 = vpack.c.b16 %v377, %v376
  %v442 = vpack.c.b16 %v379, %v378
  %v443 = vpack.c.b16 %v381, %v380
  %v444 = vpack.c.b16 %v383, %v382
  %v445 = vpack.c.b16 %v385, %v384
  %v446 = vpack.c.b16 %v387, %v386
  %v447 = vpack.c.b16 %v389, %v388
  %v448 = vpack.c.b16 %v391, %v390
  %v449 = vpack.c.b16 %v393, %v392
  %v450 = vpack.c.b16 %v395, %v394
  %v451 = vpack.c.b16 %v397, %v396
  %v452 = vpack.c.b16 %v399, %v398
  %v453 = vpack.c.b16 %v401, %v400
  %v454 = vpack.c.b16 %v403, %v402
  %v455 = vpack.c.b16 %v405, %v404
  %v456 = vpack.c.b16 %v407, %v406
  %v457 = vpack.c.b16 %v409, %v408
  %v458 = vpack.c.b16 %v411, %v410
  %v459 = vpack.c.b16 %v413, %v412
  %v460 = vpack.c.b16 %v415, %v414
  %v461 = vpack.c.b16 %v417, %v416
  %v462 = vpack.c.b16 %v419, %v418
  %v463 = vpack.c.b16 %v421, %v420
  %v464 = vpack.c.b16 %v423, %v422
  %v465 = vpack.c.b16 %v425, %v424
  %v466 = vpack.c.b16 %v427, %v426
  %v467 = vpack.c.b16 %v429, %v428
  %v468 = vpack.c.b16 %v431, %v430
  %v469 = vpack.c.b16 %v433, %v432
  %vm506 = vcmask 523264
  %v508 = vsel %vm506, %v231, 0
  %v511 = vsel %vm506, %v236, 0
  %v514 = vsel %vm506, %v241, 0
  %v517 = vsel %vm506, %v246, 0
  %v520 = vsel %vm506, %v251, 0
  %v523 = vsel %vm506, %v256, 0
  %v526 = vsel %vm506, %v261, 0
  %528 = vmatpush.bf16.msra.mxu0 %v441
  %529 = vmatpush.bf16.msra.mxu0 %v440
  %530 = vmatpush.bf16.msra.mxu0 %v439
  %531 = vmatpush.bf16.msra.mxu0 %v438
  %532 = vmatpush.bf16.msra.mxu0 %v437
  %533 = vmatpush.bf16.msra.mxu0 %v436
  %534 = vmatpush.bf16.msra.mxu0 %v435
  %535 = vmatpush.bf16.msra.mxu0 %v434
  %536 = vmatmul.bf16.gmra.mxu0 %v227
  %v537 = vpop.f32.mrf.mxu0
  %v538 = vadd.f32 0.0, %v537
  %v539 = vpop.f32.mrf.mxu0
  %v540 = vadd.f32 0.0, %v539
  %541 = vmatmul.bf16.gmra.mxu0 %v232
  %v542 = vpop.f32.mrf.mxu0
  %v543 = vadd.f32 0.0, %v542
  %v544 = vpop.f32.mrf.mxu0
  %v545 = vadd.f32 0.0, %v544
  %546 = vmatmul.bf16.gmra.mxu0 %v237
  %v547 = vpop.f32.mrf.mxu0
  %v548 = vadd.f32 0.0, %v547
  %v549 = vpop.f32.mrf.mxu0
  %v550 = vadd.f32 0.0, %v549
  %551 = vmatmul.bf16.gmra.mxu0 %v242
  %v552 = vpop.f32.mrf.mxu0
  %v553 = vadd.f32 0.0, %v552
  %v554 = vpop.f32.mrf.mxu0
  %v555 = vadd.f32 0.0, %v554
  %556 = vmatmul.bf16.gmra.mxu0 %v247
  %v557 = vpop.f32.mrf.mxu0
  %v558 = vadd.f32 0.0, %v557
  %v559 = vpop.f32.mrf.mxu0
  %v560 = vadd.f32 0.0, %v559
  %561 = vmatmul.bf16.gmra.mxu0 %v252
  %v562 = vpop.f32.mrf.mxu0
  %v563 = vadd.f32 0.0, %v562
  %v564 = vpop.f32.mrf.mxu0
  %v565 = vadd.f32 0.0, %v564
  %566 = vmatmul.bf16.gmra.mxu0 %v257
  %v567 = vpop.f32.mrf.mxu0
  %v568 = vadd.f32 0.0, %v567
  %v569 = vpop.f32.mrf.mxu0
  %570 = vdwg.mxu0
  %571 = vmatpush.bf16.msra.mxu0 %v449
  %572 = vmatpush.bf16.msra.mxu0 %v448
  %573 = vmatpush.bf16.msra.mxu0 %v447
  %574 = vmatpush.bf16.msra.mxu0 %v446
  %575 = vmatpush.bf16.msra.mxu0 %v445
  %576 = vmatpush.bf16.msra.mxu0 %v444
  %577 = vmatpush.bf16.msra.mxu0 %v443
  %578 = vmatpush.bf16.msra.mxu0 %v442
  %579 = vmatmul.bf16.gmra.mxu0 %v228
  %v580 = vpop.f32.mrf.mxu0
  %v581 = vadd.f32 %v538, %v580
  %v582 = vpop.f32.mrf.mxu0
  %v583 = vadd.f32 %v540, %v582
  %584 = vmatmul.bf16.gmra.mxu0 %v233
  %v585 = vpop.f32.mrf.mxu0
  %v586 = vadd.f32 %v543, %v585
  %v587 = vpop.f32.mrf.mxu0
  %v588 = vadd.f32 %v545, %v587
  %589 = vmatmul.bf16.gmra.mxu0 %v238
  %v590 = vpop.f32.mrf.mxu0
  %v591 = vadd.f32 %v548, %v590
  %v592 = vpop.f32.mrf.mxu0
  %v593 = vadd.f32 %v550, %v592
  %594 = vmatmul.bf16.gmra.mxu0 %v243
  %v595 = vpop.f32.mrf.mxu0
  %v596 = vadd.f32 %v553, %v595
  %v597 = vpop.f32.mrf.mxu0
  %v598 = vadd.f32 %v555, %v597
  %599 = vmatmul.bf16.gmra.mxu0 %v248
  %v600 = vpop.f32.mrf.mxu0
  %v601 = vadd.f32 %v558, %v600
  %v602 = vpop.f32.mrf.mxu0
  %v603 = vadd.f32 %v560, %v602
  %604 = vmatmul.bf16.gmra.mxu0 %v253
  %v605 = vpop.f32.mrf.mxu0
  %v606 = vadd.f32 %v563, %v605
  %v607 = vpop.f32.mrf.mxu0
  %v608 = vadd.f32 %v565, %v607
  %609 = vmatmul.bf16.gmra.mxu0 %v258
  %v610 = vpop.f32.mrf.mxu0
  %v611 = vadd.f32 %v568, %v610
  %v612 = vpop.f32.mrf.mxu0
  %613 = vdwg.mxu0
  %614 = vmatpush.bf16.msra.mxu0 %v457
  %615 = vmatpush.bf16.msra.mxu0 %v456
  %616 = vmatpush.bf16.msra.mxu0 %v455
  %617 = vmatpush.bf16.msra.mxu0 %v454
  %618 = vmatpush.bf16.msra.mxu0 %v453
  %619 = vmatpush.bf16.msra.mxu0 %v452
  %620 = vmatpush.bf16.msra.mxu0 %v451
  %621 = vmatpush.bf16.msra.mxu0 %v450
  %622 = vmatmul.bf16.gmra.mxu0 %v229
  %v623 = vpop.f32.mrf.mxu0
  %v624 = vadd.f32 %v581, %v623
  %v625 = vpop.f32.mrf.mxu0
  %v626 = vadd.f32 %v583, %v625
  %627 = vmatmul.bf16.gmra.mxu0 %v234
  %v628 = vpop.f32.mrf.mxu0
  %v629 = vadd.f32 %v586, %v628
  %v630 = vpop.f32.mrf.mxu0
  %v631 = vadd.f32 %v588, %v630
  %632 = vmatmul.bf16.gmra.mxu0 %v239
  %v633 = vpop.f32.mrf.mxu0
  %v634 = vadd.f32 %v591, %v633
  %v635 = vpop.f32.mrf.mxu0
  %v636 = vadd.f32 %v593, %v635
  %637 = vmatmul.bf16.gmra.mxu0 %v244
  %v638 = vpop.f32.mrf.mxu0
  %v639 = vadd.f32 %v596, %v638
  %v640 = vpop.f32.mrf.mxu0
  %v641 = vadd.f32 %v598, %v640
  %642 = vmatmul.bf16.gmra.mxu0 %v249
  %v643 = vpop.f32.mrf.mxu0
  %v644 = vadd.f32 %v601, %v643
  %v645 = vpop.f32.mrf.mxu0
  %v646 = vadd.f32 %v603, %v645
  %647 = vmatmul.bf16.gmra.mxu0 %v254
  %v648 = vpop.f32.mrf.mxu0
  %v649 = vadd.f32 %v606, %v648
  %v650 = vpop.f32.mrf.mxu0
  %v651 = vadd.f32 %v608, %v650
  %652 = vmatmul.bf16.gmra.mxu0 %v259
  %v653 = vpop.f32.mrf.mxu0
  %v654 = vadd.f32 %v611, %v653
  %v655 = vpop.f32.mrf.mxu0
  %656 = vdwg.mxu0
  %657 = vmatpush.bf16.msra.mxu0 %v465
  %658 = vmatpush.bf16.msra.mxu0 %v464
  %659 = vmatpush.bf16.msra.mxu0 %v463
  %660 = vmatpush.bf16.msra.mxu0 %v462
  %661 = vmatpush.bf16.msra.mxu0 %v461
  %662 = vmatpush.bf16.msra.mxu0 %v460
  %663 = vmatpush.bf16.msra.mxu0 %v459
  %664 = vmatpush.bf16.msra.mxu0 %v458
  %665 = vmatmul.bf16.gmra.mxu0 %v230
  %v666 = vpop.f32.mrf.mxu0
  %v667 = vadd.f32 %v624, %v666
  %v668 = vpop.f32.mrf.mxu0
  %v669 = vadd.f32 %v626, %v668
  %670 = vmatmul.bf16.gmra.mxu0 %v235
  %v671 = vpop.f32.mrf.mxu0
  %v672 = vadd.f32 %v629, %v671
  %v673 = vpop.f32.mrf.mxu0
  %v674 = vadd.f32 %v631, %v673
  %675 = vmatmul.bf16.gmra.mxu0 %v240
  %v676 = vpop.f32.mrf.mxu0
  %v677 = vadd.f32 %v634, %v676
  %v678 = vpop.f32.mrf.mxu0
  %v679 = vadd.f32 %v636, %v678
  %680 = vmatmul.bf16.gmra.mxu0 %v245
  %v681 = vpop.f32.mrf.mxu0
  %v682 = vadd.f32 %v639, %v681
  %v683 = vpop.f32.mrf.mxu0
  %v684 = vadd.f32 %v641, %v683
  %685 = vmatmul.bf16.gmra.mxu0 %v250
  %v686 = vpop.f32.mrf.mxu0
  %v687 = vadd.f32 %v644, %v686
  %v688 = vpop.f32.mrf.mxu0
  %v689 = vadd.f32 %v646, %v688
  %690 = vmatmul.bf16.gmra.mxu0 %v255
  %v691 = vpop.f32.mrf.mxu0
  %v692 = vadd.f32 %v649, %v691
  %v693 = vpop.f32.mrf.mxu0
  %v694 = vadd.f32 %v651, %v693
  %695 = vmatmul.bf16.gmra.mxu0 %v260
  %v696 = vpop.f32.mrf.mxu0
  %v697 = vadd.f32 %v654, %v696
  %v698 = vpop.f32.mrf.mxu0
  %699 = vdwg.mxu0
  %700 = vmatpush.bf16.msra.mxu0 0
  %701 = vmatpush.bf16.msra.mxu0 0
  %702 = vmatpush.bf16.msra.mxu0 0
  %703 = vmatpush.bf16.msra.mxu0 0
  %704 = vmatpush.bf16.msra.mxu0 %v469
  %705 = vmatpush.bf16.msra.mxu0 %v468
  %706 = vmatpush.bf16.msra.mxu0 %v467
  %707 = vmatpush.bf16.msra.mxu0 %v466
  %708 = vmatmul.bf16.gmra.mxu0 %v508
  %v709 = vpop.f32.mrf.mxu0
  %v710 = vadd.f32 %v667, %v709
  %v711 = vpop.f32.mrf.mxu0
  %v712 = vadd.f32 %v669, %v711
  %713 = vmatmul.bf16.gmra.mxu0 %v511
  %v714 = vpop.f32.mrf.mxu0
  %v715 = vadd.f32 %v672, %v714
  %v716 = vpop.f32.mrf.mxu0
  %v717 = vadd.f32 %v674, %v716
  %718 = vmatmul.bf16.gmra.mxu0 %v514
  %v719 = vpop.f32.mrf.mxu0
  %v720 = vadd.f32 %v677, %v719
  %v721 = vpop.f32.mrf.mxu0
  %v722 = vadd.f32 %v679, %v721
  %723 = vmatmul.bf16.gmra.mxu0 %v517
  %v724 = vpop.f32.mrf.mxu0
  %v725 = vadd.f32 %v682, %v724
  %v726 = vpop.f32.mrf.mxu0
  %v727 = vadd.f32 %v684, %v726
  %728 = vmatmul.bf16.gmra.mxu0 %v520
  %v729 = vpop.f32.mrf.mxu0
  %v730 = vadd.f32 %v687, %v729
  %v731 = vpop.f32.mrf.mxu0
  %v732 = vadd.f32 %v689, %v731
  %733 = vmatmul.bf16.gmra.mxu0 %v523
  %v734 = vpop.f32.mrf.mxu0
  %v735 = vadd.f32 %v692, %v734
  %v736 = vpop.f32.mrf.mxu0
  %v737 = vadd.f32 %v694, %v736
  %738 = vmatmul.bf16.gmra.mxu0 %v526
  %v739 = vpop.f32.mrf.mxu0
  %v740 = vadd.f32 %v697, %v739
  %v741 = vpop.f32.mrf.mxu0
  %742 = vdwg.mxu0
  %v743 = vmax.f32 %v710, 0.0
  %v744 = vmax.f32 %v712, 0.0
  %v745 = vmax.f32 %v715, 0.0
  %v746 = vmax.f32 %v717, 0.0
  %v747 = vmax.f32 %v720, 0.0
  %v748 = vmax.f32 %v722, 0.0
  %v749 = vmax.f32 %v725, 0.0
  %v750 = vmax.f32 %v727, 0.0
  %v751 = vmax.f32 %v730, 0.0
  %v752 = vmax.f32 %v732, 0.0
  %v753 = vmax.f32 %v735, 0.0
  %v754 = vmax.f32 %v737, 0.0
  %v755 = vmax.f32 %v740, 0.0
  %v756 = vpack.c.bf16 %v743, %v743
  %v757 = vpack.c.bf16 %v744, %v744
  %v758 = vpack.c.bf16 %v745, %v745
  %v759 = vpack.c.bf16 %v746, %v746
  %v760 = vpack.c.bf16 %v747, %v747
  %v761 = vpack.c.bf16 %v748, %v748
  %v762 = vpack.c.bf16 %v749, %v749
  %v763 = vpack.c.bf16 %v750, %v750
  %v764 = vpack.c.bf16 %v751, %v751
  %v765 = vpack.c.bf16 %v752, %v752
  %v766 = vpack.c.bf16 %v753, %v753
  %v767 = vpack.c.bf16 %v754, %v754
  %v768 = vpack.c.bf16 %v755, %v755
  %vm769 = vcmask 519168
  %770 = vst.msk [vmem:[%s2] sm:$0xf] %vm769, %v756
  %771 = vst.msk [vmem:[%s2 + $0x4] sm:$0xf] %vm769, %v757
  %772 = vst.msk [vmem:[%s2 + $0x8] sm:$0xf] %vm769, %v758
  %773 = vst.msk [vmem:[%s2 + $0xc] sm:$0xf] %vm769, %v759
  %774 = vst.msk [vmem:[%s2 + $0x10] sm:$0xf] %vm769, %v760
  %775 = vst.msk [vmem:[%s2 + $0x14] sm:$0xf] %vm769, %v761
  %776 = vst.msk [vmem:[%s2 + $0x18] sm:$0xf] %vm769, %v762
  %777 = vst.msk [vmem:[%s2 + $0x1c] sm:$0xf] %vm769, %v763
  %778 = vst.msk [vmem:[%s2 + $0x20] sm:$0xf] %vm769, %v764
  %779 = vst.msk [vmem:[%s2 + $0x24] sm:$0xf] %vm769, %v765
  %780 = vst.msk [vmem:[%s2 + $0x28] sm:$0xf] %vm769, %v766
  %781 = vst.msk [vmem:[%s2 + $0x2c] sm:$0xf] %vm769, %v767
  %vm782 = vcmask 516096
  %783 = vst.msk [vmem:[%s2 + $0x30] sm:$0x1] %vm782, %v768
  // Predicated region
  $region10: #{forward.6} parent=0 // pred_check
    _
  $region11: #{forward.6} parent=0 // pred_check_branch
    %785 = sbr.rel (0) target = $region13
  $region12: #{forward.6} parent=0 // pred_region
    _
  $region13: #{forward.6} parent=0 // pred_fallthru
    _
  // Predicated region
  $region14: #{forward.6} parent=0 // pred_check
    _
  $region15: #{forward.6} parent=0 // pred_check_branch
    %787 = sbr.rel (0) target = $region17
  $region16: #{forward.6} parent=0 // pred_region
    _
  $region17: #{forward.6} parent=0 // pred_fallthru
    _

// kernel: forward.7
$region0: #{forward.7}
  #allocation0 [shape = 'u32[]', space=smem, size = 0x4, offset = 0x4, fixed_abs, tag = 'smem constant byte address 0x4 - core index']
  #allocation1 [shape = 'u32[72,128]{1,0:T(1,128)}', space=vmem, size = 0x9000, scoped, tag = 'internal scratch']
  %s0 = inlined_call_operand.vmem [shape: bf16[2,3136], index: 0, kind: input, shape index: {}]
  %s1 = inlined_call_operand.vmem [shape: bf16[3136,512], index: 1, kind: input, shape index: {}]
  %s2 = inlined_call_operand.vmem [shape: f32[1,512], index: 2, kind: input, shape index: {}]
  %s3 = inlined_call_operand.vmem [shape: bf16[512,4], index: 3, kind: input, shape index: {}]
  %s4 = inlined_call_operand.vmem [shape: f32[1,4], index: 4, kind: input, shape index: {}]
  %s5 = inlined_call_operand.hbm [shape: f32[2,4], index: 5, kind: output, shape index: {0}]
  %s6 = inlined_call_operand.hbm [shape: f32[2,512], index: 6, kind: output, shape index: {1}]
  %7 = xla_tuple %s5, %s6
  %s8 = sld [smem:[#allocation0]]
  $region38: #{forward.7} parent=0
    _
  %s10 = ssub.s32 1, %s8
  %s11 = scalar_select 0, %s10, %s8
  $region1: #{forward.7} parent=0
    #allocation2 [shape = 'u8[1024]{0}', space=vmem, size = 0x400, scoped, tag = 'output window, operand 0, single buffered']
    #allocation3 [shape = 's32[1]{0}', space=sflag, size = 0x4, scoped, tag = 'scoped memory for forward.7']
    #allocation4 [shape = 'u8[4096]{0}', space=vmem, size = 0x1000, scoped, tag = 'output window, operand 1, single buffered']
    #allocation5 [shape = 's32[1]{0}', space=sflag, size = 0x4, scoped, tag = 'scoped memory for forward.7']
    %12 = vsyncpa [#allocation3], 0
    %13 = vsyncpa [#allocation5], 0
    // Predicated region
    $region2: #{forward.7} parent=1 // pred_check
      _
    $region3: #{forward.7} parent=1 // pred_check_branch
      %15 = sbr.rel (0) target = $region5
    $region4: #{forward.7} parent=1 // pred_region
      _
    $region5: #{forward.7} parent=1 // pred_fallthru
      _
    // Predicated region
    $region6: #{forward.7} parent=1 // pred_check
      _
    $region7: #{forward.7} parent=1 // pred_check_branch
      %17 = sbr.rel (0) target = $region9
    $region8: #{forward.7} parent=1 // pred_region
      _
    $region9: #{forward.7} parent=1 // pred_fallthru
      _
    // Predicated region
    $region10: #{forward.7} parent=1 // pred_check
      _
    $region11: #{forward.7} parent=1 // pred_check_branch
      %19 = sbr.rel (0) target = $region13
    $region12: #{forward.7} parent=1 // pred_region
      _
    $region13: #{forward.7} parent=1 // pred_fallthru
      _
    // Predicated region
    $region14: #{forward.7} parent=1 // pred_check
      _
    $region15: #{forward.7} parent=1 // pred_check_branch
      %21 = sbr.rel (0) target = $region17
    $region16: #{forward.7} parent=1 // pred_region
      _
    $region17: #{forward.7} parent=1 // pred_fallthru
      _
    // Predicated region
    $region18: #{forward.7} parent=1 // pred_check
      _
    $region19: #{forward.7} parent=1 // pred_check_branch
      %23 = sbr.rel (0) target = $region21
    $region20: #{forward.7} parent=1 // pred_region
      _
    $region21: #{forward.7} parent=1 // pred_fallthru
      _
    %v25 = vld [vmem:[%s0] sm:$0xff]
    %v26 = vld [vmem:[%s0 + $0x8] sm:$0xff]
    %v27 = vld [vmem:[%s0 + $0x10] sm:$0xff]
    %v28 = vld [vmem:[%s0 + $0x18] sm:$0x1]
    %v29 = vld [vmem:[%s1] sm:$0xff]
    %v30 = vld [vmem:[%s1 + $0x8] sm:$0xff]
    %v31 = vld [vmem:[%s1 + $0x10] sm:$0xff]
    %v32 = vld [vmem:[%s1 + $0x18] sm:$0xff]
    %v33 = vld [vmem:[%s1 + $0x20] sm:$0xff]
    %v34 = vld [vmem:[%s1 + $0x28] sm:$0xff]
    %v35 = vld [vmem:[%s1 + $0x30] sm:$0xff]
    %v36 = vld [vmem:[%s1 + $0x38] sm:$0xff]
    %v37 = vld [vmem:[%s1 + $0x40] sm:$0xff]
    %v38 = vld [vmem:[%s1 + $0x48] sm:$0xff]
    %v39 = vld [vmem:[%s1 + $0x50] sm:$0xff]
    %v40 = vld [vmem:[%s1 + $0x58] sm:$0xff]
    %v41 = vld [vmem:[%s1 + $0x60] sm:$0xff]
    %v42 = vld [vmem:[%s1 + $0x68] sm:$0xff]
    %v43 = vld [vmem:[%s1 + $0x70] sm:$0xff]
    %v44 = vld [vmem:[%s1 + $0x78] sm:$0xff]
    %v45 = vld [vmem:[%s1 + $0x80] sm:$0xff]
    %v46 = vld [vmem:[%s1 + $0x88] sm:$0xff]
    %v47 = vld [vmem:[%s1 + $0x90] sm:$0xff]
    %v48 = vld [vmem:[%s1 + $0x98] sm:$0xff]
    %v49 = vld [vmem:[%s1 + $0xa0] sm:$0xff]
    %v50 = vld [vmem:[%s1 + $0xa8] sm:$0xff]
    %v51 = vld [vmem:[%s1 + $0xb0] sm:$0xff]
    %v52 = vld [vmem:[%s1 + $0xb8] sm:$0xff]
    %v53 = vld [vmem:[%s1 + $0xc0] sm:$0xff]
    %v54 = vld [vmem:[%s1 + $0xc8] sm:$0xff]
    %v55 = vld [vmem:[%s1 + $0xd0] sm:$0xff]
    %v56 = vld [vmem:[%s1 + $0xd8] sm:$0xff]
    %v57 = vld [vmem:[%s1 + $0xe0] sm:$0xff]
    %v58 = vld [vmem:[%s1 + $0xe8] sm:$0xff]
    %v59 = vld [vmem:[%s1 + $0xf0] sm:$0xff]
    %v60 = vld [vmem:[%s1 + $0xf8] sm:$0xff]
    %v61 = vld [vmem:[%s1 + $0x100] sm:$0xff]
    %v62 = vld [vmem:[%s1 + $0x108] sm:$0xff]
    %v63 = vld [vmem:[%s1 + $0x110] sm:$0xff]
    %v64 = vld [vmem:[%s1 + $0x118] sm:$0xff]
    %v65 = vld [vmem:[%s1 + $0x120] sm:$0xff]
    %v66 = vld [vmem:[%s1 + $0x128] sm:$0xff]
    %v67 = vld [vmem:[%s1 + $0x130] sm:$0xff]
    %v68 = vld [vmem:[%s1 + $0x138] sm:$0xff]
    %v69 = vld [vmem:[%s1 + $0x140] sm:$0xff]
    %v70 = vld [vmem:[%s1 + $0x148] sm:$0xff]
    %v71 = vld [vmem:[%s1 + $0x150] sm:$0xff]
    %v72 = vld [vmem:[%s1 + $0x158] sm:$0xff]
    %v73 = vld [vmem:[%s1 + $0x160] sm:$0xff]
    %v74 = vld [vmem:[%s1 + $0x168] sm:$0xff]
    %v75 = vld [vmem:[%s1 + $0x170] sm:$0xff]
    %v76 = vld [vmem:[%s1 + $0x178] sm:$0xff]
    %v77 = vld [vmem:[%s1 + $0x180] sm:$0xff]
    %v78 = vld [vmem:[%s1 + $0x188] sm:$0xff]
    %v79 = vld [vmem:[%s1 + $0x190] sm:$0xff]
    %v80 = vld [vmem:[%s1 + $0x198] sm:$0xff]
    %v81 = vld [vmem:[%s1 + $0x1a0] sm:$0xff]
    %v82 = vld [vmem:[%s1 + $0x1a8] sm:$0xff]
    %v83 = vld [vmem:[%s1 + $0x1b0] sm:$0xff]
    %v84 = vld [vmem:[%s1 + $0x1b8] sm:$0xff]
    %v85 = vld [vmem:[%s1 + $0x1c0] sm:$0xff]
    %v86 = vld [vmem:[%s1 + $0x1c8] sm:$0xff]
    %v87 = vld [vmem:[%s1 + $0x1d0] sm:$0xff]
    %v88 = vld [vmem:[%s1 + $0x1d8] sm:$0xff]
    %v89 = vld [vmem:[%s1 + $0x1e0] sm:$0xff]
    %v90 = vld [vmem:[%s1 + $0x1e8] sm:$0xff]
    %v91 = vld [vmem:[%s1 + $0x1f0] sm:$0xff]
    %v92 = vld [vmem:[%s1 + $0x1f8] sm:$0xff]
    %v93 = vld [vmem:[%s1 + $0x200] sm:$0xff]
    %v94 = vld [vmem:[%s1 + $0x208] sm:$0xff]
    %v95 = vld [vmem:[%s1 + $0x210] sm:$0xff]
    %v96 = vld [vmem:[%s1 + $0x218] sm:$0xff]
    %v97 = vld [vmem:[%s1 + $0x220] sm:$0xff]
    %v98 = vld [vmem:[%s1 + $0x228] sm:$0xff]
    %v99 = vld [vmem:[%s1 + $0x230] sm:$0xff]
    %v100 = vld [vmem:[%s1 + $0x238] sm:$0xff]
    %v101 = vld [vmem:[%s1 + $0x240] sm:$0xff]
    %v102 = vld [vmem:[%s1 + $0x248] sm:$0xff]
    %v103 = vld [vmem:[%s1 + $0x250] sm:$0xff]
    %v104 = vld [vmem:[%s1 + $0x258] sm:$0xff]
    %v105 = vld [vmem:[%s1 + $0x260] sm:$0xff]
    %v106 = vld [vmem:[%s1 + $0x268] sm:$0xff]
    %v107 = vld [vmem:[%s1 + $0x270] sm:$0xff]
    %v108 = vld [vmem:[%s1 + $0x278] sm:$0xff]
    %v109 = vld [vmem:[%s1 + $0x280] sm:$0xff]
    %v110 = vld [vmem:[%s1 + $0x288] sm:$0xff]
    %v111 = vld [vmem:[%s1 + $0x290] sm:$0xff]
    %v112 = vld [vmem:[%s1 + $0x298] sm:$0xff]
    %v113 = vld [vmem:[%s1 + $0x2a0] sm:$0xff]
    %v114 = vld [vmem:[%s1 + $0x2a8] sm:$0xff]
    %v115 = vld [vmem:[%s1 + $0x2b0] sm:$0xff]
    %v116 = vld [vmem:[%s1 + $0x2b8] sm:$0xff]
    %v117 = vld [vmem:[%s1 + $0x2c0] sm:$0xff]
    %v118 = vld [vmem:[%s1 + $0x2c8] sm:$0xff]
    %v119 = vld [vmem:[%s1 + $0x2d0] sm:$0xff]
    %v120 = vld [vmem:[%s1 + $0x2d8] sm:$0xff]
    %v121 = vld [vmem:[%s1 + $0x2e0] sm:$0xff]
    %v122 = vld [vmem:[%s1 + $0x2e8] sm:$0xff]
    %v123 = vld [vmem:[%s1 + $0x2f0] sm:$0xff]
    %v124 = vld [vmem:[%s1 + $0x2f8] sm:$0xff]
    %v125 = vld [vmem:[%s1 + $0x300] sm:$0xff]
    %v126 = vld [vmem:[%s1 + $0x308] sm:$0xff]
    %v127 = vld [vmem:[%s1 + $0x310] sm:$0xff]
    %v128 = vld [vmem:[%s1 + $0x318] sm:$0xff]
    %v129 = vld [vmem:[%s1 + $0x320] sm:$0xff]
    %v130 = vld [vmem:[%s1 + $0x328] sm:$0xff]
    %v131 = vld [vmem:[%s1 + $0x330] sm:$0xff]
    %v132 = vld [vmem:[%s1 + $0x338] sm:$0xff]
    %v133 = vld [vmem:[%s1 + $0x340] sm:$0xff]
    %v134 = vld [vmem:[%s1 + $0x348] sm:$0xff]
    %v135 = vld [vmem:[%s1 + $0x350] sm:$0xff]
    %v136 = vld [vmem:[%s1 + $0x358] sm:$0xff]
    %v137 = vld [vmem:[%s1 + $0x360] sm:$0xff]
    %v138 = vld [vmem:[%s1 + $0x368] sm:$0xff]
    %v139 = vld [vmem:[%s1 + $0x370] sm:$0xff]
    %v140 = vld [vmem:[%s1 + $0x378] sm:$0xff]
    %v141 = vld [vmem:[%s1 + $0x380] sm:$0xff]
    %v142 = vld [vmem:[%s1 + $0x388] sm:$0xff]
    %v143 = vld [vmem:[%s1 + $0x390] sm:$0xff]
    %v144 = vld [vmem:[%s1 + $0x398] sm:$0xff]
    %v145 = vld [vmem:[%s1 + $0x3a0] sm:$0xff]
    %v146 = vld [vmem:[%s1 + $0x3a8] sm:$0xff]
    %v147 = vld [vmem:[%s1 + $0x3b0] sm:$0xff]
    %v148 = vld [vmem:[%s1 + $0x3b8] sm:$0xff]
    %v149 = vld [vmem:[%s1 + $0x3c0] sm:$0xff]
    %v150 = vld [vmem:[%s1 + $0x3c8] sm:$0xff]
    %v151 = vld [vmem:[%s1 + $0x3d0] sm:$0xff]
    %v152 = vld [vmem:[%s1 + $0x3d8] sm:$0xff]
    %v153 = vld [vmem:[%s1 + $0x3e0] sm:$0xff]
    %v154 = vld [vmem:[%s1 + $0x3e8] sm:$0xff]
    %v155 = vld [vmem:[%s1 + $0x3f0] sm:$0xff]
    %v156 = vld [vmem:[%s1 + $0x3f8] sm:$0xff]
    %v157 = vld [vmem:[%s1 + $0x400] sm:$0xff]
    %v158 = vld [vmem:[%s1 + $0x408] sm:$0xff]
    %v159 = vld [vmem:[%s1 + $0x410] sm:$0xff]
    %v160 = vld [vmem:[%s1 + $0x418] sm:$0xff]
    %v161 = vld [vmem:[%s1 + $0x420] sm:$0xff]
    %v162 = vld [vmem:[%s1 + $0x428] sm:$0xff]
    %v163 = vld [vmem:[%s1 + $0x430] sm:$0xff]
    %v164 = vld [vmem:[%s1 + $0x438] sm:$0xff]
    %v165 = vld [vmem:[%s1 + $0x440] sm:$0xff]
    %v166 = vld [vmem:[%s1 + $0x448] sm:$0xff]
    %v167 = vld [vmem:[%s1 + $0x450] sm:$0xff]
    %v168 = vld [vmem:[%s1 + $0x458] sm:$0xff]
    %v169 = vld [vmem:[%s1 + $0x460] sm:$0xff]
    %v170 = vld [vmem:[%s1 + $0x468] sm:$0xff]
    %v171 = vld [vmem:[%s1 + $0x470] sm:$0xff]
    %v172 = vld [vmem:[%s1 + $0x478] sm:$0xff]
    %v173 = vld [vmem:[%s1 + $0x480] sm:$0xff]
    %v174 = vld [vmem:[%s1 + $0x488] sm:$0xff]
    %v175 = vld [vmem:[%s1 + $0x490] sm:$0xff]
    %v176 = vld [vmem:[%s1 + $0x498] sm:$0xff]
    %v177 = vld [vmem:[%s1 + $0x4a0] sm:$0xff]
    %v178 = vld [vmem:[%s1 + $0x4a8] sm:$0xff]
    %v179 = vld [vmem:[%s1 + $0x4b0] sm:$0xff]
    %v180 = vld [vmem:[%s1 + $0x4b8] sm:$0xff]
    %v181 = vld [vmem:[%s1 + $0x4c0] sm:$0xff]
    %v182 = vld [vmem:[%s1 + $0x4c8] sm:$0xff]
    %v183 = vld [vmem:[%s1 + $0x4d0] sm:$0xff]
    %v184 = vld [vmem:[%s1 + $0x4d8] sm:$0xff]
    %v185 = vld [vmem:[%s1 + $0x4e0] sm:$0xff]
    %v186 = vld [vmem:[%s1 + $0x4e8] sm:$0xff]
    %v187 = vld [vmem:[%s1 + $0x4f0] sm:$0xff]
    %v188 = vld [vmem:[%s1 + $0x4f8] sm:$0xff]
    %v189 = vld [vmem:[%s1 + $0x500] sm:$0xff]
    %v190 = vld [vmem:[%s1 + $0x508] sm:$0xff]
    %v191 = vld [vmem:[%s1 + $0x510] sm:$0xff]
    %v192 = vld [vmem:[%s1 + $0x518] sm:$0xff]
    %v193 = vld [vmem:[%s1 + $0x520] sm:$0xff]
    %v194 = vld [vmem:[%s1 + $0x528] sm:$0xff]
    %v195 = vld [vmem:[%s1 + $0x530] sm:$0xff]
    %v196 = vld [vmem:[%s1 + $0x538] sm:$0xff]
    %v197 = vld [vmem:[%s1 + $0x540] sm:$0xff]
    %v198 = vld [vmem:[%s1 + $0x548] sm:$0xff]
    %v199 = vld [vmem:[%s1 + $0x550] sm:$0xff]
    %v200 = vld [vmem:[%s1 + $0x558] sm:$0xff]
    %v201 = vld [vmem:[%s1 + $0x560] sm:$0xff]
    %v202 = vld [vmem:[%s1 + $0x568] sm:$0xff]
    %v203 = vld [vmem:[%s1 + $0x570] sm:$0xff]
    %v204 = vld [vmem:[%s1 + $0x578] sm:$0xff]
    %v205 = vld [vmem:[%s1 + $0x580] sm:$0xff]
    %v206 = vld [vmem:[%s1 + $0x588] sm:$0xff]
    %v207 = vld [vmem:[%s1 + $0x590] sm:$0xff]
    %v208 = vld [vmem:[%s1 + $0x598] sm:$0xff]
    %v209 = vld [vmem:[%s1 + $0x5a0] sm:$0xff]
    %v210 = vld [vmem:[%s1 + $0x5a8] sm:$0xff]
    %v211 = vld [vmem:[%s1 + $0x5b0] sm:$0xff]
    %v212 = vld [vmem:[%s1 + $0x5b8] sm:$0xff]
    %v213 = vld [vmem:[%s1 + $0x5c0] sm:$0xff]
    %v214 = vld [vmem:[%s1 + $0x5c8] sm:$0xff]
    %v215 = vld [vmem:[%s1 + $0x5d0] sm:$0xff]
    %v216 = vld [vmem:[%s1 + $0x5d8] sm:$0xff]
    %v217 = vld [vmem:[%s1 + $0x5e0] sm:$0xff]
    %v218 = vld [vmem:[%s1 + $0x5e8] sm:$0xff]
    %v219 = vld [vmem:[%s1 + $0x5f0] sm:$0xff]
    %v220 = vld [vmem:[%s1 + $0x5f8] sm:$0xff]
    %v221 = vld [vmem:[%s1 + $0x600] sm:$0xff]
    %v222 = vld [vmem:[%s1 + $0x608] sm:$0xff]
    %v223 = vld [vmem:[%s1 + $0x610] sm:$0xff]
    %v224 = vld [vmem:[%s1 + $0x618] sm:$0xff]
    %v225 = vld [vmem:[%s1 + $0x620] sm:$0xff]
    %v226 = vld [vmem:[%s1 + $0x628] sm:$0xff]
    %v227 = vld [vmem:[%s1 + $0x630] sm:$0xff]
    %v228 = vld [vmem:[%s1 + $0x638] sm:$0xff]
    %v229 = vld [vmem:[%s1 + $0x640] sm:$0xff]
    %v230 = vld [vmem:[%s1 + $0x648] sm:$0xff]
    %v231 = vld [vmem:[%s1 + $0x650] sm:$0xff]
    %v232 = vld [vmem:[%s1 + $0x658] sm:$0xff]
    %v233 = vld [vmem:[%s1 + $0x660] sm:$0xff]
    %v234 = vld [vmem:[%s1 + $0x668] sm:$0xff]
    %v235 = vld [vmem:[%s1 + $0x670] sm:$0xff]
    %v236 = vld [vmem:[%s1 + $0x678] sm:$0xff]
    %v237 = vld [vmem:[%s1 + $0x680] sm:$0xff]
    %v238 = vld [vmem:[%s1 + $0x688] sm:$0xff]
    %v239 = vld [vmem:[%s1 + $0x690] sm:$0xff]
    %v240 = vld [vmem:[%s1 + $0x698] sm:$0xff]
    %v241 = vld [vmem:[%s1 + $0x6a0] sm:$0xff]
    %v242 = vld [vmem:[%s1 + $0x6a8] sm:$0xff]
    %v243 = vld [vmem:[%s1 + $0x6b0] sm:$0xff]
    %v244 = vld [vmem:[%s1 + $0x6b8] sm:$0xff]
    %v245 = vld [vmem:[%s1 + $0x6c0] sm:$0xff]
    %v246 = vld [vmem:[%s1 + $0x6c8] sm:$0xff]
    %v247 = vld [vmem:[%s1 + $0x6d0] sm:$0xff]
    %v248 = vld [vmem:[%s1 + $0x6d8] sm:$0xff]
    %v249 = vld [vmem:[%s1 + $0x6e0] sm:$0xff]
    %v250 = vld [vmem:[%s1 + $0x6e8] sm:$0xff]
    %v251 = vld [vmem:[%s1 + $0x6f0] sm:$0xff]
    %v252 = vld [vmem:[%s1 + $0x6f8] sm:$0xff]
    %v253 = vld [vmem:[%s1 + $0x700] sm:$0xff]
    %v254 = vld [vmem:[%s1 + $0x708] sm:$0xff]
    %v255 = vld [vmem:[%s1 + $0x710] sm:$0xff]
    %v256 = vld [vmem:[%s1 + $0x718] sm:$0xff]
    %v257 = vld [vmem:[%s1 + $0x720] sm:$0xff]
    %v258 = vld [vmem:[%s1 + $0x728] sm:$0xff]
    %v259 = vld [vmem:[%s1 + $0x730] sm:$0xff]
    %v260 = vld [vmem:[%s1 + $0x738] sm:$0xff]
    %v261 = vld [vmem:[%s1 + $0x740] sm:$0xff]
    %v262 = vld [vmem:[%s1 + $0x748] sm:$0xff]
    %v263 = vld [vmem:[%s1 + $0x750] sm:$0xff]
    %v264 = vld [vmem:[%s1 + $0x758] sm:$0xff]
    %v265 = vld [vmem:[%s1 + $0x760] sm:$0xff]
    %v266 = vld [vmem:[%s1 + $0x768] sm:$0xff]
    %v267 = vld [vmem:[%s1 + $0x770] sm:$0xff]
    %v268 = vld [vmem:[%s1 + $0x778] sm:$0xff]
    %v269 = vld [vmem:[%s1 + $0x780] sm:$0xff]
    %v270 = vld [vmem:[%s1 + $0x788] sm:$0xff]
    %v271 = vld [vmem:[%s1 + $0x790] sm:$0xff]
    %v272 = vld [vmem:[%s1 + $0x798] sm:$0xff]
    %v273 = vld [vmem:[%s1 + $0x7a0] sm:$0xff]
    %v274 = vld [vmem:[%s1 + $0x7a8] sm:$0xff]
    %v275 = vld [vmem:[%s1 + $0x7b0] sm:$0xff]
    %v276 = vld [vmem:[%s1 + $0x7b8] sm:$0xff]
    %v277 = vld [vmem:[%s1 + $0x7c0] sm:$0xff]
    %v278 = vld [vmem:[%s1 + $0x7c8] sm:$0xff]
    %v279 = vld [vmem:[%s1 + $0x7d0] sm:$0xff]
    %v280 = vld [vmem:[%s1 + $0x7d8] sm:$0xff]
    %v281 = vld [vmem:[%s1 + $0x7e0] sm:$0xff]
    %v282 = vld [vmem:[%s1 + $0x7e8] sm:$0xff]
    %v283 = vld [vmem:[%s1 + $0x7f0] sm:$0xff]
    %v284 = vld [vmem:[%s1 + $0x7f8] sm:$0xff]
    %v285 = vld [vmem:[%s1 + $0x800] sm:$0xff]
    %v286 = vld [vmem:[%s1 + $0x808] sm:$0xff]
    %v287 = vld [vmem:[%s1 + $0x810] sm:$0xff]
    %v288 = vld [vmem:[%s1 + $0x818] sm:$0xff]
    %v289 = vld [vmem:[%s1 + $0x820] sm:$0xff]
    %v290 = vld [vmem:[%s1 + $0x828] sm:$0xff]
    %v291 = vld [vmem:[%s1 + $0x830] sm:$0xff]
    %v292 = vld [vmem:[%s1 + $0x838] sm:$0xff]
    %v293 = vld [vmem:[%s1 + $0x840] sm:$0xff]
    %v294 = vld [vmem:[%s1 + $0x848] sm:$0xff]
    %v295 = vld [vmem:[%s1 + $0x850] sm:$0xff]
    %v296 = vld [vmem:[%s1 + $0x858] sm:$0xff]
    %v297 = vld [vmem:[%s1 + $0x860] sm:$0xff]
    %v298 = vld [vmem:[%s1 + $0x868] sm:$0xff]
    %v299 = vld [vmem:[%s1 + $0x870] sm:$0xff]
    %v300 = vld [vmem:[%s1 + $0x878] sm:$0xff]
    %v301 = vld [vmem:[%s1 + $0x880] sm:$0xff]
    %v302 = vld [vmem:[%s1 + $0x888] sm:$0xff]
    %v303 = vld [vmem:[%s1 + $0x890] sm:$0xff]
    %v304 = vld [vmem:[%s1 + $0x898] sm:$0xff]
    %v305 = vld [vmem:[%s1 + $0x8a0] sm:$0xff]
    %v306 = vld [vmem:[%s1 + $0x8a8] sm:$0xff]
    %v307 = vld [vmem:[%s1 + $0x8b0] sm:$0xff]
    %v308 = vld [vmem:[%s1 + $0x8b8] sm:$0xff]
    %v309 = vld [vmem:[%s1 + $0x8c0] sm:$0xff]
    %v310 = vld [vmem:[%s1 + $0x8c8] sm:$0xff]
    %v311 = vld [vmem:[%s1 + $0x8d0] sm:$0xff]
    %v312 = vld [vmem:[%s1 + $0x8d8] sm:$0xff]
    %v313 = vld [vmem:[%s1 + $0x8e0] sm:$0xff]
    %v314 = vld [vmem:[%s1 + $0x8e8] sm:$0xff]
    %v315 = vld [vmem:[%s1 + $0x8f0] sm:$0xff]
    %v316 = vld [vmem:[%s1 + $0x8f8] sm:$0xff]
    %v317 = vld [vmem:[%s1 + $0x900] sm:$0xff]
    %v318 = vld [vmem:[%s1 + $0x908] sm:$0xff]
    %v319 = vld [vmem:[%s1 + $0x910] sm:$0xff]
    %v320 = vld [vmem:[%s1 + $0x918] sm:$0xff]
    %v321 = vld [vmem:[%s1 + $0x920] sm:$0xff]
    %v322 = vld [vmem:[%s1 + $0x928] sm:$0xff]
    %v323 = vld [vmem:[%s1 + $0x930] sm:$0xff]
    %v324 = vld [vmem:[%s1 + $0x938] sm:$0xff]
    %v325 = vld [vmem:[%s1 + $0x940] sm:$0xff]
    %v326 = vld [vmem:[%s1 + $0x948] sm:$0xff]
    %v327 = vld [vmem:[%s1 + $0x950] sm:$0xff]
    %v328 = vld [vmem:[%s1 + $0x958] sm:$0xff]
    %v329 = vld [vmem:[%s1 + $0x960] sm:$0xff]
    %v330 = vld [vmem:[%s1 + $0x968] sm:$0xff]
    %v331 = vld [vmem:[%s1 + $0x970] sm:$0xff]
    %v332 = vld [vmem:[%s1 + $0x978] sm:$0xff]
    %v333 = vld [vmem:[%s1 + $0x980] sm:$0xff]
    %v334 = vld [vmem:[%s1 + $0x988] sm:$0xff]
    %v335 = vld [vmem:[%s1 + $0x990] sm:$0xff]
    %v336 = vld [vmem:[%s1 + $0x998] sm:$0xff]
    %v337 = vld [vmem:[%s1 + $0x9a0] sm:$0xff]
    %v338 = vld [vmem:[%s1 + $0x9a8] sm:$0xff]
    %v339 = vld [vmem:[%s1 + $0x9b0] sm:$0xff]
    %v340 = vld [vmem:[%s1 + $0x9b8] sm:$0xff]
    %v341 = vld [vmem:[%s1 + $0x9c0] sm:$0xff]
    %v342 = vld [vmem:[%s1 + $0x9c8] sm:$0xff]
    %v343 = vld [vmem:[%s1 + $0x9d0] sm:$0xff]
    %v344 = vld [vmem:[%s1 + $0x9d8] sm:$0xff]
    %v345 = vld [vmem:[%s1 + $0x9e0] sm:$0xff]
    %v346 = vld [vmem:[%s1 + $0x9e8] sm:$0xff]
    %v347 = vld [vmem:[%s1 + $0x9f0] sm:$0xff]
    %v348 = vld [vmem:[%s1 + $0x9f8] sm:$0xff]
    %v349 = vld [vmem:[%s1 + $0xa00] sm:$0xff]
    %v350 = vld [vmem:[%s1 + $0xa08] sm:$0xff]
    %v351 = vld [vmem:[%s1 + $0xa10] sm:$0xff]
    %v352 = vld [vmem:[%s1 + $0xa18] sm:$0xff]
    %v353 = vld [vmem:[%s1 + $0xa20] sm:$0xff]
    %v354 = vld [vmem:[%s1 + $0xa28] sm:$0xff]
    %v355 = vld [vmem:[%s1 + $0xa30] sm:$0xff]
    %v356 = vld [vmem:[%s1 + $0xa38] sm:$0xff]
    %v357 = vld [vmem:[%s1 + $0xa40] sm:$0xff]
    %v358 = vld [vmem:[%s1 + $0xa48] sm:$0xff]
    %v359 = vld [vmem:[%s1 + $0xa50] sm:$0xff]
    %v360 = vld [vmem:[%s1 + $0xa58] sm:$0xff]
    %v361 = vld [vmem:[%s1 + $0xa60] sm:$0xff]
    %v362 = vld [vmem:[%s1 + $0xa68] sm:$0xff]
    %v363 = vld [vmem:[%s1 + $0xa70] sm:$0xff]
    %v364 = vld [vmem:[%s1 + $0xa78] sm:$0xff]
    %v365 = vld [vmem:[%s1 + $0xa80] sm:$0xff]
    %v366 = vld [vmem:[%s1 + $0xa88] sm:$0xff]
    %v367 = vld [vmem:[%s1 + $0xa90] sm:$0xff]
    %v368 = vld [vmem:[%s1 + $0xa98] sm:$0xff]
    %v369 = vld [vmem:[%s1 + $0xaa0] sm:$0xff]
    %v370 = vld [vmem:[%s1 + $0xaa8] sm:$0xff]
    %v371 = vld [vmem:[%s1 + $0xab0] sm:$0xff]
    %v372 = vld [vmem:[%s1 + $0xab8] sm:$0xff]
    %v373 = vld [vmem:[%s1 + $0xac0] sm:$0xff]
    %v374 = vld [vmem:[%s1 + $0xac8] sm:$0xff]
    %v375 = vld [vmem:[%s1 + $0xad0] sm:$0xff]
    %v376 = vld [vmem:[%s1 + $0xad8] sm:$0xff]
    %v377 = vld [vmem:[%s1 + $0xae0] sm:$0xff]
    %v378 = vld [vmem:[%s1 + $0xae8] sm:$0xff]
    %v379 = vld [vmem:[%s1 + $0xaf0] sm:$0xff]
    %v380 = vld [vmem:[%s1 + $0xaf8] sm:$0xff]
    %v381 = vld [vmem:[%s1 + $0xb00] sm:$0xff]
    %v382 = vld [vmem:[%s1 + $0xb08] sm:$0xff]
    %v383 = vld [vmem:[%s1 + $0xb10] sm:$0xff]
    %v384 = vld [vmem:[%s1 + $0xb18] sm:$0xff]
    %v385 = vld [vmem:[%s1 + $0xb20] sm:$0xff]
    %v386 = vld [vmem:[%s1 + $0xb28] sm:$0xff]
    %v387 = vld [vmem:[%s1 + $0xb30] sm:$0xff]
    %v388 = vld [vmem:[%s1 + $0xb38] sm:$0xff]
    %v389 = vld [vmem:[%s1 + $0xb40] sm:$0xff]
    %v390 = vld [vmem:[%s1 + $0xb48] sm:$0xff]
    %v391 = vld [vmem:[%s1 + $0xb50] sm:$0xff]
    %v392 = vld [vmem:[%s1 + $0xb58] sm:$0xff]
    %v393 = vld [vmem:[%s1 + $0xb60] sm:$0xff]
    %v394 = vld [vmem:[%s1 + $0xb68] sm:$0xff]
    %v395 = vld [vmem:[%s1 + $0xb70] sm:$0xff]
    %v396 = vld [vmem:[%s1 + $0xb78] sm:$0xff]
    %v397 = vld [vmem:[%s1 + $0xb80] sm:$0xff]
    %v398 = vld [vmem:[%s1 + $0xb88] sm:$0xff]
    %v399 = vld [vmem:[%s1 + $0xb90] sm:$0xff]
    %v400 = vld [vmem:[%s1 + $0xb98] sm:$0xff]
    %v401 = vld [vmem:[%s1 + $0xba0] sm:$0xff]
    %v402 = vld [vmem:[%s1 + $0xba8] sm:$0xff]
    %v403 = vld [vmem:[%s1 + $0xbb0] sm:$0xff]
    %v404 = vld [vmem:[%s1 + $0xbb8] sm:$0xff]
    %v405 = vld [vmem:[%s1 + $0xbc0] sm:$0xff]
    %v406 = vld [vmem:[%s1 + $0xbc8] sm:$0xff]
    %v407 = vld [vmem:[%s1 + $0xbd0] sm:$0xff]
    %v408 = vld [vmem:[%s1 + $0xbd8] sm:$0xff]
    %v409 = vld [vmem:[%s1 + $0xbe0] sm:$0xff]
    %v410 = vld [vmem:[%s1 + $0xbe8] sm:$0xff]
    %v411 = vld [vmem:[%s1 + $0xbf0] sm:$0xff]
    %v412 = vld [vmem:[%s1 + $0xbf8] sm:$0xff]
    %v413 = vld [vmem:[%s1 + $0xc00] sm:$0xff]
    %v414 = vld [vmem:[%s1 + $0xc08] sm:$0xff]
    %v415 = vld [vmem:[%s1 + $0xc10] sm:$0xff]
    %v416 = vld [vmem:[%s1 + $0xc18] sm:$0xff]
    %v417 = vld [vmem:[%s1 + $0xc20] sm:$0xff]
    %v418 = vld [vmem:[%s1 + $0xc28] sm:$0xff]
    %v419 = vld [vmem:[%s1 + $0xc30] sm:$0xff]
    %v420 = vld [vmem:[%s1 + $0xc38] sm:$0xff]
    %v421 = vld [vmem:[%s1 + $0xc40] sm:$0xff]
    %v422 = vld [vmem:[%s1 + $0xc48] sm:$0xff]
    %v423 = vld [vmem:[%s1 + $0xc50] sm:$0xff]
    %v424 = vld [vmem:[%s1 + $0xc58] sm:$0xff]
    %v425 = vld [vmem:[%s1 + $0xc60] sm:$0xff]
    %v426 = vld [vmem:[%s1 + $0xc68] sm:$0xff]
    %v427 = vld [vmem:[%s1 + $0xc70] sm:$0xff]
    %v428 = vld [vmem:[%s1 + $0xc78] sm:$0xff]
    %v429 = vld [vmem:[%s1 + $0xc80] sm:$0xff]
    %v430 = vld [vmem:[%s1 + $0xc88] sm:$0xff]
    %v431 = vld [vmem:[%s1 + $0xc90] sm:$0xff]
    %v432 = vld [vmem:[%s1 + $0xc98] sm:$0xff]
    %v433 = vld [vmem:[%s1 + $0xca0] sm:$0xff]
    %v434 = vld [vmem:[%s1 + $0xca8] sm:$0xff]
    %v435 = vld [vmem:[%s1 + $0xcb0] sm:$0xff]
    %v436 = vld [vmem:[%s1 + $0xcb8] sm:$0xff]
    %v437 = vld [vmem:[%s1 + $0xcc0] sm:$0xff]
    %v438 = vld [vmem:[%s1 + $0xcc8] sm:$0xff]
    %v439 = vld [vmem:[%s1 + $0xcd0] sm:$0xff]
    %v440 = vld [vmem:[%s1 + $0xcd8] sm:$0xff]
    %v441 = vld [vmem:[%s1 + $0xce0] sm:$0xff]
    %v442 = vld [vmem:[%s1 + $0xce8] sm:$0xff]
    %v443 = vld [vmem:[%s1 + $0xcf0] sm:$0xff]
    %v444 = vld [vmem:[%s1 + $0xcf8] sm:$0xff]
    %v445 = vld [vmem:[%s1 + $0xd00] sm:$0xff]
    %v446 = vld [vmem:[%s1 + $0xd08] sm:$0xff]
    %v447 = vld [vmem:[%s1 + $0xd10] sm:$0xff]
    %v448 = vld [vmem:[%s1 + $0xd18] sm:$0xff]
    %v449 = vld [vmem:[%s1 + $0xd20] sm:$0xff]
    %v450 = vld [vmem:[%s1 + $0xd28] sm:$0xff]
    %v451 = vld [vmem:[%s1 + $0xd30] sm:$0xff]
    %v452 = vld [vmem:[%s1 + $0xd38] sm:$0xff]
    %v453 = vld [vmem:[%s1 + $0xd40] sm:$0xff]
    %v454 = vld [vmem:[%s1 + $0xd48] sm:$0xff]
    %v455 = vld [vmem:[%s1 + $0xd50] sm:$0xff]
    %v456 = vld [vmem:[%s1 + $0xd58] sm:$0xff]
    %v457 = vld [vmem:[%s1 + $0xd60] sm:$0xff]
    %v458 = vld [vmem:[%s1 + $0xd68] sm:$0xff]
    %v459 = vld [vmem:[%s1 + $0xd70] sm:$0xff]
    %v460 = vld [vmem:[%s1 + $0xd78] sm:$0xff]
    %v461 = vld [vmem:[%s1 + $0xd80] sm:$0xff]
    %v462 = vld [vmem:[%s1 + $0xd88] sm:$0xff]
    %v463 = vld [vmem:[%s1 + $0xd90] sm:$0xff]
    %v464 = vld [vmem:[%s1 + $0xd98] sm:$0xff]
    %v465 = vld [vmem:[%s1 + $0xda0] sm:$0xff]
    %v466 = vld [vmem:[%s1 + $0xda8] sm:$0xff]
    %v467 = vld [vmem:[%s1 + $0xdb0] sm:$0xff]
    %v468 = vld [vmem:[%s1 + $0xdb8] sm:$0xff]
    %v469 = vld [vmem:[%s1 + $0xdc0] sm:$0xff]
    %v470 = vld [vmem:[%s1 + $0xdc8] sm:$0xff]
    %v471 = vld [vmem:[%s1 + $0xdd0] sm:$0xff]
    %v472 = vld [vmem:[%s1 + $0xdd8] sm:$0xff]
    %v473 = vld [vmem:[%s1 + $0xde0] sm:$0xff]
    %v474 = vld [vmem:[%s1 + $0xde8] sm:$0xff]
    %v475 = vld [vmem:[%s1 + $0xdf0] sm:$0xff]
    %v476 = vld [vmem:[%s1 + $0xdf8] sm:$0xff]
    %v477 = vld [vmem:[%s1 + $0xe00] sm:$0xff]
    %v478 = vld [vmem:[%s1 + $0xe08] sm:$0xff]
    %v479 = vld [vmem:[%s1 + $0xe10] sm:$0xff]
    %v480 = vld [vmem:[%s1 + $0xe18] sm:$0xff]
    %v481 = vld [vmem:[%s1 + $0xe20] sm:$0xff]
    %v482 = vld [vmem:[%s1 + $0xe28] sm:$0xff]
    %v483 = vld [vmem:[%s1 + $0xe30] sm:$0xff]
    %v484 = vld [vmem:[%s1 + $0xe38] sm:$0xff]
    %v485 = vld [vmem:[%s1 + $0xe40] sm:$0xff]
    %v486 = vld [vmem:[%s1 + $0xe48] sm:$0xff]
    %v487 = vld [vmem:[%s1 + $0xe50] sm:$0xff]
    %v488 = vld [vmem:[%s1 + $0xe58] sm:$0xff]
    %v489 = vld [vmem:[%s1 + $0xe60] sm:$0xff]
    %v490 = vld [vmem:[%s1 + $0xe68] sm:$0xff]
    %v491 = vld [vmem:[%s1 + $0xe70] sm:$0xff]
    %v492 = vld [vmem:[%s1 + $0xe78] sm:$0xff]
    %v493 = vld [vmem:[%s1 + $0xe80] sm:$0xff]
    %v494 = vld [vmem:[%s1 + $0xe88] sm:$0xff]
    %v495 = vld [vmem:[%s1 + $0xe90] sm:$0xff]
    %v496 = vld [vmem:[%s1 + $0xe98] sm:$0xff]
    %v497 = vld [vmem:[%s1 + $0xea0] sm:$0xff]
    %v498 = vld [vmem:[%s1 + $0xea8] sm:$0xff]
    %v499 = vld [vmem:[%s1 + $0xeb0] sm:$0xff]
    %v500 = vld [vmem:[%s1 + $0xeb8] sm:$0xff]
    %v501 = vld [vmem:[%s1 + $0xec0] sm:$0xff]
    %v502 = vld [vmem:[%s1 + $0xec8] sm:$0xff]
    %v503 = vld [vmem:[%s1 + $0xed0] sm:$0xff]
    %v504 = vld [vmem:[%s1 + $0xed8] sm:$0xff]
    %v505 = vld [vmem:[%s1 + $0xee0] sm:$0xff]
    %v506 = vld [vmem:[%s1 + $0xee8] sm:$0xff]
    %v507 = vld [vmem:[%s1 + $0xef0] sm:$0xff]
    %v508 = vld [vmem:[%s1 + $0xef8] sm:$0xff]
    %v509 = vld [vmem:[%s1 + $0xf00] sm:$0xff]
    %v510 = vld [vmem:[%s1 + $0xf08] sm:$0xff]
    %v511 = vld [vmem:[%s1 + $0xf10] sm:$0xff]
    %v512 = vld [vmem:[%s1 + $0xf18] sm:$0xff]
    %v513 = vld [vmem:[%s1 + $0xf20] sm:$0xff]
    %v514 = vld [vmem:[%s1 + $0xf28] sm:$0xff]
    %v515 = vld [vmem:[%s1 + $0xf30] sm:$0xff]
    %v516 = vld [vmem:[%s1 + $0xf38] sm:$0xff]
    %v517 = vld [vmem:[%s1 + $0xf40] sm:$0xff]
    %v518 = vld [vmem:[%s1 + $0xf48] sm:$0xff]
    %v519 = vld [vmem:[%s1 + $0xf50] sm:$0xff]
    %v520 = vld [vmem:[%s1 + $0xf58] sm:$0xff]
    %v521 = vld [vmem:[%s1 + $0xf60] sm:$0xff]
    %v522 = vld [vmem:[%s1 + $0xf68] sm:$0xff]
    %v523 = vld [vmem:[%s1 + $0xf70] sm:$0xff]
    %v524 = vld [vmem:[%s1 + $0xf78] sm:$0xff]
    %v525 = vld [vmem:[%s1 + $0xf80] sm:$0xff]
    %v526 = vld [vmem:[%s1 + $0xf88] sm:$0xff]
    %v527 = vld [vmem:[%s1 + $0xf90] sm:$0xff]
    %v528 = vld [vmem:[%s1 + $0xf98] sm:$0xff]
    %v529 = vld [vmem:[%s1 + $0xfa0] sm:$0xff]
    %v530 = vld [vmem:[%s1 + $0xfa8] sm:$0xff]
    %v531 = vld [vmem:[%s1 + $0xfb0] sm:$0xff]
    %v532 = vld [vmem:[%s1 + $0xfb8] sm:$0xff]
    %v533 = vld [vmem:[%s1 + $0xfc0] sm:$0xff]
    %v534 = vld [vmem:[%s1 + $0xfc8] sm:$0xff]
    %v535 = vld [vmem:[%s1 + $0xfd0] sm:$0xff]
    %v536 = vld [vmem:[%s1 + $0xfd8] sm:$0xff]
    %v537 = vld [vmem:[%s1 + $0xfe0] sm:$0xff]
    %v538 = vld [vmem:[%s1 + $0xfe8] sm:$0xff]
    %v539 = vld [vmem:[%s1 + $0xff0] sm:$0xff]
    %v540 = vld [vmem:[%s1 + $0xff8] sm:$0xff]
    %v541 = vld [vmem:[%s1 + $0x1000] sm:$0xff]
    %v542 = vld [vmem:[%s1 + $0x1008] sm:$0xff]
    %v543 = vld [vmem:[%s1 + $0x1010] sm:$0xff]
    %v544 = vld [vmem:[%s1 + $0x1018] sm:$0xff]
    %v545 = vld [vmem:[%s1 + $0x1020] sm:$0xff]
    %v546 = vld [vmem:[%s1 + $0x1028] sm:$0xff]
    %v547 = vld [vmem:[%s1 + $0x1030] sm:$0xff]
    %v548 = vld [vmem:[%s1 + $0x1038] sm:$0xff]
    %v549 = vld [vmem:[%s1 + $0x1040] sm:$0xff]
    %v550 = vld [vmem:[%s1 + $0x1048] sm:$0xff]
    %v551 = vld [vmem:[%s1 + $0x1050] sm:$0xff]
    %v552 = vld [vmem:[%s1 + $0x1058] sm:$0xff]
    %v553 = vld [vmem:[%s1 + $0x1060] sm:$0xff]
    %v554 = vld [vmem:[%s1 + $0x1068] sm:$0xff]
    %v555 = vld [vmem:[%s1 + $0x1070] sm:$0xff]
    %v556 = vld [vmem:[%s1 + $0x1078] sm:$0xff]
    %v557 = vld [vmem:[%s1 + $0x1080] sm:$0xff]
    %v558 = vld [vmem:[%s1 + $0x1088] sm:$0xff]
    %v559 = vld [vmem:[%s1 + $0x1090] sm:$0xff]
    %v560 = vld [vmem:[%s1 + $0x1098] sm:$0xff]
    %v561 = vld [vmem:[%s1 + $0x10a0] sm:$0xff]
    %v562 = vld [vmem:[%s1 + $0x10a8] sm:$0xff]
    %v563 = vld [vmem:[%s1 + $0x10b0] sm:$0xff]
    %v564 = vld [vmem:[%s1 + $0x10b8] sm:$0xff]
    %v565 = vld [vmem:[%s1 + $0x10c0] sm:$0xff]
    %v566 = vld [vmem:[%s1 + $0x10c8] sm:$0xff]
    %v567 = vld [vmem:[%s1 + $0x10d0] sm:$0xff]
    %v568 = vld [vmem:[%s1 + $0x10d8] sm:$0xff]
    %v569 = vld [vmem:[%s1 + $0x10e0] sm:$0xff]
    %v570 = vld [vmem:[%s1 + $0x10e8] sm:$0xff]
    %v571 = vld [vmem:[%s1 + $0x10f0] sm:$0xff]
    %v572 = vld [vmem:[%s1 + $0x10f8] sm:$0xff]
    %v573 = vld [vmem:[%s1 + $0x1100] sm:$0xff]
    %v574 = vld [vmem:[%s1 + $0x1108] sm:$0xff]
    %v575 = vld [vmem:[%s1 + $0x1110] sm:$0xff]
    %v576 = vld [vmem:[%s1 + $0x1118] sm:$0xff]
    %v577 = vld [vmem:[%s1 + $0x1120] sm:$0xff]
    %v578 = vld [vmem:[%s1 + $0x1128] sm:$0xff]
    %v579 = vld [vmem:[%s1 + $0x1130] sm:$0xff]
    %v580 = vld [vmem:[%s1 + $0x1138] sm:$0xff]
    %v581 = vld [vmem:[%s1 + $0x1140] sm:$0xff]
    %v582 = vld [vmem:[%s1 + $0x1148] sm:$0xff]
    %v583 = vld [vmem:[%s1 + $0x1150] sm:$0xff]
    %v584 = vld [vmem:[%s1 + $0x1158] sm:$0xff]
    %v585 = vld [vmem:[%s1 + $0x1160] sm:$0xff]
    %v586 = vld [vmem:[%s1 + $0x1168] sm:$0xff]
    %v587 = vld [vmem:[%s1 + $0x1170] sm:$0xff]
    %v588 = vld [vmem:[%s1 + $0x1178] sm:$0xff]
    %v589 = vld [vmem:[%s1 + $0x1180] sm:$0xff]
    %v590 = vld [vmem:[%s1 + $0x1188] sm:$0xff]
    %v591 = vld [vmem:[%s1 + $0x1190] sm:$0xff]
    %v592 = vld [vmem:[%s1 + $0x1198] sm:$0xff]
    %v593 = vld [vmem:[%s1 + $0x11a0] sm:$0xff]
    %v594 = vld [vmem:[%s1 + $0x11a8] sm:$0xff]
    %v595 = vld [vmem:[%s1 + $0x11b0] sm:$0xff]
    %v596 = vld [vmem:[%s1 + $0x11b8] sm:$0xff]
    %v597 = vld [vmem:[%s1 + $0x11c0] sm:$0xff]
    %v598 = vld [vmem:[%s1 + $0x11c8] sm:$0xff]
    %v599 = vld [vmem:[%s1 + $0x11d0] sm:$0xff]
    %v600 = vld [vmem:[%s1 + $0x11d8] sm:$0xff]
    %v601 = vld [vmem:[%s1 + $0x11e0] sm:$0xff]
    %v602 = vld [vmem:[%s1 + $0x11e8] sm:$0xff]
    %v603 = vld [vmem:[%s1 + $0x11f0] sm:$0xff]
    %v604 = vld [vmem:[%s1 + $0x11f8] sm:$0xff]
    %v605 = vld [vmem:[%s1 + $0x1200] sm:$0xff]
    %v606 = vld [vmem:[%s1 + $0x1208] sm:$0xff]
    %v607 = vld [vmem:[%s1 + $0x1210] sm:$0xff]
    %v608 = vld [vmem:[%s1 + $0x1218] sm:$0xff]
    %v609 = vld [vmem:[%s1 + $0x1220] sm:$0xff]
    %v610 = vld [vmem:[%s1 + $0x1228] sm:$0xff]
    %v611 = vld [vmem:[%s1 + $0x1230] sm:$0xff]
    %v612 = vld [vmem:[%s1 + $0x1238] sm:$0xff]
    %v613 = vld [vmem:[%s1 + $0x1240] sm:$0xff]
    %v614 = vld [vmem:[%s1 + $0x1248] sm:$0xff]
    %v615 = vld [vmem:[%s1 + $0x1250] sm:$0xff]
    %v616 = vld [vmem:[%s1 + $0x1258] sm:$0xff]
    %v617 = vld [vmem:[%s1 + $0x1260] sm:$0xff]
    %v618 = vld [vmem:[%s1 + $0x1268] sm:$0xff]
    %v619 = vld [vmem:[%s1 + $0x1270] sm:$0xff]
    %v620 = vld [vmem:[%s1 + $0x1278] sm:$0xff]
    %v621 = vld [vmem:[%s1 + $0x1280] sm:$0xff]
    %v622 = vld [vmem:[%s1 + $0x1288] sm:$0xff]
    %v623 = vld [vmem:[%s1 + $0x1290] sm:$0xff]
    %v624 = vld [vmem:[%s1 + $0x1298] sm:$0xff]
    %v625 = vld [vmem:[%s1 + $0x12a0] sm:$0xff]
    %v626 = vld [vmem:[%s1 + $0x12a8] sm:$0xff]
    %v627 = vld [vmem:[%s1 + $0x12b0] sm:$0xff]
    %v628 = vld [vmem:[%s1 + $0x12b8] sm:$0xff]
    %v629 = vld [vmem:[%s1 + $0x12c0] sm:$0xff]
    %v630 = vld [vmem:[%s1 + $0x12c8] sm:$0xff]
    %v631 = vld [vmem:[%s1 + $0x12d0] sm:$0xff]
    %v632 = vld [vmem:[%s1 + $0x12d8] sm:$0xff]
    %v633 = vld [vmem:[%s1 + $0x12e0] sm:$0xff]
    %v634 = vld [vmem:[%s1 + $0x12e8] sm:$0xff]
    %v635 = vld [vmem:[%s1 + $0x12f0] sm:$0xff]
    %v636 = vld [vmem:[%s1 + $0x12f8] sm:$0xff]
    %v637 = vld [vmem:[%s1 + $0x1300] sm:$0xff]
    %v638 = vld [vmem:[%s1 + $0x1308] sm:$0xff]
    %v639 = vld [vmem:[%s1 + $0x1310] sm:$0xff]
    %v640 = vld [vmem:[%s1 + $0x1318] sm:$0xff]
    %v641 = vld [vmem:[%s1 + $0x1320] sm:$0xff]
    %v642 = vld [vmem:[%s1 + $0x1328] sm:$0xff]
    %v643 = vld [vmem:[%s1 + $0x1330] sm:$0xff]
    %v644 = vld [vmem:[%s1 + $0x1338] sm:$0xff]
    %v645 = vld [vmem:[%s1 + $0x1340] sm:$0xff]
    %v646 = vld [vmem:[%s1 + $0x1348] sm:$0xff]
    %v647 = vld [vmem:[%s1 + $0x1350] sm:$0xff]
    %v648 = vld [vmem:[%s1 + $0x1358] sm:$0xff]
    %v649 = vld [vmem:[%s1 + $0x1360] sm:$0xff]
    %v650 = vld [vmem:[%s1 + $0x1368] sm:$0xff]
    %v651 = vld [vmem:[%s1 + $0x1370] sm:$0xff]
    %v652 = vld [vmem:[%s1 + $0x1378] sm:$0xff]
    %v653 = vld [vmem:[%s1 + $0x1380] sm:$0xff]
    %v654 = vld [vmem:[%s1 + $0x1388] sm:$0xff]
    %v655 = vld [vmem:[%s1 + $0x1390] sm:$0xff]
    %v656 = vld [vmem:[%s1 + $0x1398] sm:$0xff]
    %v657 = vld [vmem:[%s1 + $0x13a0] sm:$0xff]
    %v658 = vld [vmem:[%s1 + $0x13a8] sm:$0xff]
    %v659 = vld [vmem:[%s1 + $0x13b0] sm:$0xff]
    %v660 = vld [vmem:[%s1 + $0x13b8] sm:$0xff]
    %v661 = vld [vmem:[%s1 + $0x13c0] sm:$0xff]
    %v662 = vld [vmem:[%s1 + $0x13c8] sm:$0xff]
    %v663 = vld [vmem:[%s1 + $0x13d0] sm:$0xff]
    %v664 = vld [vmem:[%s1 + $0x13d8] sm:$0xff]
    %v665 = vld [vmem:[%s1 + $0x13e0] sm:$0xff]
    %v666 = vld [vmem:[%s1 + $0x13e8] sm:$0xff]
    %v667 = vld [vmem:[%s1 + $0x13f0] sm:$0xff]
    %v668 = vld [vmem:[%s1 + $0x13f8] sm:$0xff]
    %v669 = vld [vmem:[%s1 + $0x1400] sm:$0xff]
    %v670 = vld [vmem:[%s1 + $0x1408] sm:$0xff]
    %v671 = vld [vmem:[%s1 + $0x1410] sm:$0xff]
    %v672 = vld [vmem:[%s1 + $0x1418] sm:$0xff]
    %v673 = vld [vmem:[%s1 + $0x1420] sm:$0xff]
    %v674 = vld [vmem:[%s1 + $0x1428] sm:$0xff]
    %v675 = vld [vmem:[%s1 + $0x1430] sm:$0xff]
    %v676 = vld [vmem:[%s1 + $0x1438] sm:$0xff]
    %v677 = vld [vmem:[%s1 + $0x1440] sm:$0xff]
    %v678 = vld [vmem:[%s1 + $0x1448] sm:$0xff]
    %v679 = vld [vmem:[%s1 + $0x1450] sm:$0xff]
    %v680 = vld [vmem:[%s1 + $0x1458] sm:$0xff]
    %v681 = vld [vmem:[%s1 + $0x1460] sm:$0xff]
    %v682 = vld [vmem:[%s1 + $0x1468] sm:$0xff]
    %v683 = vld [vmem:[%s1 + $0x1470] sm:$0xff]
    %v684 = vld [vmem:[%s1 + $0x1478] sm:$0xff]
    %v685 = vld [vmem:[%s1 + $0x1480] sm:$0xff]
    %v686 = vld [vmem:[%s1 + $0x1488] sm:$0xff]
    %v687 = vld [vmem:[%s1 + $0x1490] sm:$0xff]
    %v688 = vld [vmem:[%s1 + $0x1498] sm:$0xff]
    %v689 = vld [vmem:[%s1 + $0x14a0] sm:$0xff]
    %v690 = vld [vmem:[%s1 + $0x14a8] sm:$0xff]
    %v691 = vld [vmem:[%s1 + $0x14b0] sm:$0xff]
    %v692 = vld [vmem:[%s1 + $0x14b8] sm:$0xff]
    %v693 = vld [vmem:[%s1 + $0x14c0] sm:$0xff]
    %v694 = vld [vmem:[%s1 + $0x14c8] sm:$0xff]
    %v695 = vld [vmem:[%s1 + $0x14d0] sm:$0xff]
    %v696 = vld [vmem:[%s1 + $0x14d8] sm:$0xff]
    %v697 = vld [vmem:[%s1 + $0x14e0] sm:$0xff]
    %v698 = vld [vmem:[%s1 + $0x14e8] sm:$0xff]
    %v699 = vld [vmem:[%s1 + $0x14f0] sm:$0xff]
    %v700 = vld [vmem:[%s1 + $0x14f8] sm:$0xff]
    %v701 = vld [vmem:[%s1 + $0x1500] sm:$0xff]
    %v702 = vld [vmem:[%s1 + $0x1508] sm:$0xff]
    %v703 = vld [vmem:[%s1 + $0x1510] sm:$0xff]
    %v704 = vld [vmem:[%s1 + $0x1518] sm:$0xff]
    %v705 = vld [vmem:[%s1 + $0x1520] sm:$0xff]
    %v706 = vld [vmem:[%s1 + $0x1528] sm:$0xff]
    %v707 = vld [vmem:[%s1 + $0x1530] sm:$0xff]
    %v708 = vld [vmem:[%s1 + $0x1538] sm:$0xff]
    %v709 = vld [vmem:[%s1 + $0x1540] sm:$0xff]
    %v710 = vld [vmem:[%s1 + $0x1548] sm:$0xff]
    %v711 = vld [vmem:[%s1 + $0x1550] sm:$0xff]
    %v712 = vld [vmem:[%s1 + $0x1558] sm:$0xff]
    %v713 = vld [vmem:[%s1 + $0x1560] sm:$0xff]
    %v714 = vld [vmem:[%s1 + $0x1568] sm:$0xff]
    %v715 = vld [vmem:[%s1 + $0x1570] sm:$0xff]
    %v716 = vld [vmem:[%s1 + $0x1578] sm:$0xff]
    %v717 = vld [vmem:[%s1 + $0x1580] sm:$0xff]
    %v718 = vld [vmem:[%s1 + $0x1588] sm:$0xff]
    %v719 = vld [vmem:[%s1 + $0x1590] sm:$0xff]
    %v720 = vld [vmem:[%s1 + $0x1598] sm:$0xff]
    %v721 = vld [vmem:[%s1 + $0x15a0] sm:$0xff]
    %v722 = vld [vmem:[%s1 + $0x15a8] sm:$0xff]
    %v723 = vld [vmem:[%s1 + $0x15b0] sm:$0xff]
    %v724 = vld [vmem:[%s1 + $0x15b8] sm:$0xff]
    %v725 = vld [vmem:[%s1 + $0x15c0] sm:$0xff]
    %v726 = vld [vmem:[%s1 + $0x15c8] sm:$0xff]
    %v727 = vld [vmem:[%s1 + $0x15d0] sm:$0xff]
    %v728 = vld [vmem:[%s1 + $0x15d8] sm:$0xff]
    %v729 = vld [vmem:[%s1 + $0x15e0] sm:$0xff]
    %v730 = vld [vmem:[%s1 + $0x15e8] sm:$0xff]
    %v731 = vld [vmem:[%s1 + $0x15f0] sm:$0xff]
    %v732 = vld [vmem:[%s1 + $0x15f8] sm:$0xff]
    %v733 = vld [vmem:[%s1 + $0x1600] sm:$0xff]
    %v734 = vld [vmem:[%s1 + $0x1608] sm:$0xff]
    %v735 = vld [vmem:[%s1 + $0x1610] sm:$0xff]
    %v736 = vld [vmem:[%s1 + $0x1618] sm:$0xff]
    %v737 = vld [vmem:[%s1 + $0x1620] sm:$0xff]
    %v738 = vld [vmem:[%s1 + $0x1628] sm:$0xff]
    %v739 = vld [vmem:[%s1 + $0x1630] sm:$0xff]
    %v740 = vld [vmem:[%s1 + $0x1638] sm:$0xff]
    %v741 = vld [vmem:[%s1 + $0x1640] sm:$0xff]
    %v742 = vld [vmem:[%s1 + $0x1648] sm:$0xff]
    %v743 = vld [vmem:[%s1 + $0x1650] sm:$0xff]
    %v744 = vld [vmem:[%s1 + $0x1658] sm:$0xff]
    %v745 = vld [vmem:[%s1 + $0x1660] sm:$0xff]
    %v746 = vld [vmem:[%s1 + $0x1668] sm:$0xff]
    %v747 = vld [vmem:[%s1 + $0x1670] sm:$0xff]
    %v748 = vld [vmem:[%s1 + $0x1678] sm:$0xff]
    %v749 = vld [vmem:[%s1 + $0x1680] sm:$0xff]
    %v750 = vld [vmem:[%s1 + $0x1688] sm:$0xff]
    %v751 = vld [vmem:[%s1 + $0x1690] sm:$0xff]
    %v752 = vld [vmem:[%s1 + $0x1698] sm:$0xff]
    %v753 = vld [vmem:[%s1 + $0x16a0] sm:$0xff]
    %v754 = vld [vmem:[%s1 + $0x16a8] sm:$0xff]
    %v755 = vld [vmem:[%s1 + $0x16b0] sm:$0xff]
    %v756 = vld [vmem:[%s1 + $0x16b8] sm:$0xff]
    %v757 = vld [vmem:[%s1 + $0x16c0] sm:$0xff]
    %v758 = vld [vmem:[%s1 + $0x16c8] sm:$0xff]
    %v759 = vld [vmem:[%s1 + $0x16d0] sm:$0xff]
    %v760 = vld [vmem:[%s1 + $0x16d8] sm:$0xff]
    %v761 = vld [vmem:[%s1 + $0x16e0] sm:$0xff]
    %v762 = vld [vmem:[%s1 + $0x16e8] sm:$0xff]
    %v763 = vld [vmem:[%s1 + $0x16f0] sm:$0xff]
    %v764 = vld [vmem:[%s1 + $0x16f8] sm:$0xff]
    %v765 = vld [vmem:[%s1 + $0x1700] sm:$0xff]
    %v766 = vld [vmem:[%s1 + $0x1708] sm:$0xff]
    %v767 = vld [vmem:[%s1 + $0x1710] sm:$0xff]
    %v768 = vld [vmem:[%s1 + $0x1718] sm:$0xff]
    %v769 = vld [vmem:[%s1 + $0x1720] sm:$0xff]
    %v770 = vld [vmem:[%s1 + $0x1728] sm:$0xff]
    %v771 = vld [vmem:[%s1 + $0x1730] sm:$0xff]
    %v772 = vld [vmem:[%s1 + $0x1738] sm:$0xff]
    %v773 = vld [vmem:[%s1 + $0x1740] sm:$0xff]
    %v774 = vld [vmem:[%s1 + $0x1748] sm:$0xff]
    %v775 = vld [vmem:[%s1 + $0x1750] sm:$0xff]
    %v776 = vld [vmem:[%s1 + $0x1758] sm:$0xff]
    %v777 = vld [vmem:[%s1 + $0x1760] sm:$0xff]
    %v778 = vld [vmem:[%s1 + $0x1768] sm:$0xff]
    %v779 = vld [vmem:[%s1 + $0x1770] sm:$0xff]
    %v780 = vld [vmem:[%s1 + $0x1778] sm:$0xff]
    %v781 = vld [vmem:[%s1 + $0x1780] sm:$0xff]
    %v782 = vld [vmem:[%s1 + $0x1788] sm:$0xff]
    %v783 = vld [vmem:[%s1 + $0x1790] sm:$0xff]
    %v784 = vld [vmem:[%s1 + $0x1798] sm:$0xff]
    %v785 = vld [vmem:[%s1 + $0x17a0] sm:$0xff]
    %v786 = vld [vmem:[%s1 + $0x17a8] sm:$0xff]
    %v787 = vld [vmem:[%s1 + $0x17b0] sm:$0xff]
    %v788 = vld [vmem:[%s1 + $0x17b8] sm:$0xff]
    %v789 = vld [vmem:[%s1 + $0x17c0] sm:$0xff]
    %v790 = vld [vmem:[%s1 + $0x17c8] sm:$0xff]
    %v791 = vld [vmem:[%s1 + $0x17d0] sm:$0xff]
    %v792 = vld [vmem:[%s1 + $0x17d8] sm:$0xff]
    %v793 = vld [vmem:[%s1 + $0x17e0] sm:$0xff]
    %v794 = vld [vmem:[%s1 + $0x17e8] sm:$0xff]
    %v795 = vld [vmem:[%s1 + $0x17f0] sm:$0xff]
    %v796 = vld [vmem:[%s1 + $0x17f8] sm:$0xff]
    %v797 = vld [vmem:[%s1 + $0x1800] sm:$0xff]
    %v798 = vld [vmem:[%s1 + $0x1808] sm:$0xff]
    %v799 = vld [vmem:[%s1 + $0x1810] sm:$0xff]
    %v800 = vld [vmem:[%s1 + $0x1818] sm:$0xff]
    %v801 = vld [vmem:[%s1 + $0x1820] sm:$0xff]
    %v802 = vld [vmem:[%s1 + $0x1828] sm:$0xff]
    %v803 = vld [vmem:[%s1 + $0x1830] sm:$0xff]
    %v804 = vld [vmem:[%s1 + $0x1838] sm:$0xff]
    %v805 = vld [vmem:[%s1 + $0x1840] sm:$0xff]
    %v806 = vld [vmem:[%s1 + $0x1848] sm:$0xff]
    %v807 = vld [vmem:[%s1 + $0x1850] sm:$0xff]
    %v808 = vld [vmem:[%s1 + $0x1858] sm:$0xff]
    %v809 = vld [vmem:[%s1 + $0x1860] sm:$0xff]
    %v810 = vld [vmem:[%s1 + $0x1868] sm:$0xff]
    %v811 = vld [vmem:[%s1 + $0x1870] sm:$0xff]
    %v812 = vld [vmem:[%s1 + $0x1878] sm:$0xff]
    %v813 = vld [vmem:[%s2] sm:$0xf]
    %v815 = vperm.slane %v813, 0
    %v816 = vperm.slane %v813, 1
    %v817 = vperm.slane %v813, 2
    %v818 = vperm.slane %v813, 3
    %824 = vst [vmem:[#allocation1] ss:$9 sm:$0xff] %v25
    %v825 = vld [vmem:[#allocation1] sm:$0xff]
    %v826 = vld [vmem:[#allocation1 + $0x9] sm:$0xff]
    %v827 = vld [vmem:[#allocation1 + $0x12] sm:$0xff]
    %v828 = vld [vmem:[#allocation1 + $0x1b] sm:$0xff]
    %v829 = vld [vmem:[#allocation1 + $0x24] sm:$0xff]
    %v830 = vld [vmem:[#allocation1 + $0x2d] sm:$0xff]
    %v831 = vld [vmem:[#allocation1 + $0x36] sm:$0xff]
    %v832 = vld [vmem:[#allocation1 + $0x3f] sm:$0xff]
    %834 = vst [vmem:[#allocation1] ss:$9 sm:$0xff] %v26
    %v835 = vld [vmem:[#allocation1] sm:$0xff]
    %v836 = vld [vmem:[#allocation1 + $0x9] sm:$0xff]
    %v837 = vld [vmem:[#allocation1 + $0x12] sm:$0xff]
    %v838 = vld [vmem:[#allocation1 + $0x1b] sm:$0xff]
    %v839 = vld [vmem:[#allocation1 + $0x24] sm:$0xff]
    %v840 = vld [vmem:[#allocation1 + $0x2d] sm:$0xff]
    %v841 = vld [vmem:[#allocation1 + $0x36] sm:$0xff]
    %v842 = vld [vmem:[#allocation1 + $0x3f] sm:$0xff]
    %844 = vst [vmem:[#allocation1] ss:$9 sm:$0xff] %v27
    %v845 = vld [vmem:[#allocation1] sm:$0xff]
    %v846 = vld [vmem:[#allocation1 + $0x9] sm:$0xff]
    %v847 = vld [vmem:[#allocation1 + $0x12] sm:$0xff]
    %v848 = vld [vmem:[#allocation1 + $0x1b] sm:$0xff]
    %v849 = vld [vmem:[#allocation1 + $0x24] sm:$0xff]
    %v850 = vld [vmem:[#allocation1 + $0x2d] sm:$0xff]
    %v851 = vld [vmem:[#allocation1 + $0x36] sm:$0xff]
    %v852 = vld [vmem:[#allocation1 + $0x3f] sm:$0xff]
    %854 = vst [vmem:[#allocation1] ss:$9 sm:$0xff] %v28
    %v855 = vld [vmem:[#allocation1] sm:$0xff]
    %v1664 = vunpack.c.l.b16 %v29
    %v1665 = vunpack.c.h.b16 %v29
    %v1666 = vunpack.c.l.b16 %v30
    %v1667 = vunpack.c.h.b16 %v30
    %v1668 = vunpack.c.l.b16 %v31
    %v1669 = vunpack.c.h.b16 %v31
    %v1670 = vunpack.c.l.b16 %v32
    %v1671 = vunpack.c.h.b16 %v32
    %v1672 = vunpack.c.l.b16 %v33
    %v1673 = vunpack.c.h.b16 %v33
    %v1674 = vunpack.c.l.b16 %v34
    %v1675 = vunpack.c.h.b16 %v34
    %v1676 = vunpack.c.l.b16 %v35
    %v1677 = vunpack.c.h.b16 %v35
    %v1678 = vunpack.c.l.b16 %v36
    %v1679 = vunpack.c.h.b16 %v36
    %v1680 = vunpack.c.l.b16 %v37
    %v1681 = vunpack.c.h.b16 %v37
    %v1682 = vunpack.c.l.b16 %v38
    %v1683 = vunpack.c.h.b16 %v38
    %v1684 = vunpack.c.l.b16 %v39
    %v1685 = vunpack.c.h.b16 %v39
    %v1686 = vunpack.c.l.b16 %v40
    %v1687 = vunpack.c.h.b16 %v40
    %v1688 = vunpack.c.l.b16 %v41
    %v1689 = vunpack.c.h.b16 %v41
    %v1690 = vunpack.c.l.b16 %v42
    %v1691 = vunpack.c.h.b16 %v42
    %v1692 = vunpack.c.l.b16 %v43
    %v1693 = vunpack.c.h.b16 %v43
    %v1694 = vunpack.c.l.b16 %v44
    %v1695 = vunpack.c.h.b16 %v44
    %v1696 = vunpack.c.l.b16 %v45
    %v1697 = vunpack.c.h.b16 %v45
    %v1698 = vunpack.c.l.b16 %v46
    %v1699 = vunpack.c.h.b16 %v46
    %v1700 = vunpack.c.l.b16 %v47
    %v1701 = vunpack.c.h.b16 %v47
    %v1702 = vunpack.c.l.b16 %v48
    %v1703 = vunpack.c.h.b16 %v48
    %v1704 = vunpack.c.l.b16 %v49
    %v1705 = vunpack.c.h.b16 %v49
    %v1706 = vunpack.c.l.b16 %v50
    %v1707 = vunpack.c.h.b16 %v50
    %v1708 = vunpack.c.l.b16 %v51
    %v1709 = vunpack.c.h.b16 %v51
    %v1710 = vunpack.c.l.b16 %v52
    %v1711 = vunpack.c.h.b16 %v52
    %v1712 = vunpack.c.l.b16 %v53
    %v1713 = vunpack.c.h.b16 %v53
    %v1714 = vunpack.c.l.b16 %v54
    %v1715 = vunpack.c.h.b16 %v54
    %v1716 = vunpack.c.l.b16 %v55
    %v1717 = vunpack.c.h.b16 %v55
    %v1718 = vunpack.c.l.b16 %v56
    %v1719 = vunpack.c.h.b16 %v56
    %v1720 = vunpack.c.l.b16 %v57
    %v1721 = vunpack.c.h.b16 %v57
    %v1722 = vunpack.c.l.b16 %v58
    %v1723 = vunpack.c.h.b16 %v58
    %v1724 = vunpack.c.l.b16 %v59
    %v1725 = vunpack.c.h.b16 %v59
    %v1726 = vunpack.c.l.b16 %v60
    %v1727 = vunpack.c.h.b16 %v60
    %v1728 = vunpack.c.l.b16 %v61
    %v1729 = vunpack.c.h.b16 %v61
    %v1730 = vunpack.c.l.b16 %v62
    %v1731 = vunpack.c.h.b16 %v62
    %v1732 = vunpack.c.l.b16 %v63
    %v1733 = vunpack.c.h.b16 %v63
    %v1734 = vunpack.c.l.b16 %v64
    %v1735 = vunpack.c.h.b16 %v64
    %v1736 = vunpack.c.l.b16 %v65
    %v1737 = vunpack.c.h.b16 %v65
    %v1738 = vunpack.c.l.b16 %v66
    %v1739 = vunpack.c.h.b16 %v66
    %v1740 = vunpack.c.l.b16 %v67
    %v1741 = vunpack.c.h.b16 %v67
    %v1742 = vunpack.c.l.b16 %v68
    %v1743 = vunpack.c.h.b16 %v68
    %v1744 = vunpack.c.l.b16 %v69
    %v1745 = vunpack.c.h.b16 %v69
    %v1746 = vunpack.c.l.b16 %v70
    %v1747 = vunpack.c.h.b16 %v70
    %v1748 = vunpack.c.l.b16 %v71
    %v1749 = vunpack.c.h.b16 %v71
    %v1750 = vunpack.c.l.b16 %v72
    %v1751 = vunpack.c.h.b16 %v72
    %v1752 = vunpack.c.l.b16 %v73
    %v1753 = vunpack.c.h.b16 %v73
    %v1754 = vunpack.c.l.b16 %v74
    %v1755 = vunpack.c.h.b16 %v74
    %v1756 = vunpack.c.l.b16 %v75
    %v1757 = vunpack.c.h.b16 %v75
    %v1758 = vunpack.c.l.b16 %v76
    %v1759 = vunpack.c.h.b16 %v76
    %v1760 = vunpack.c.l.b16 %v77
    %v1761 = vunpack.c.h.b16 %v77
    %v1762 = vunpack.c.l.b16 %v78
    %v1763 = vunpack.c.h.b16 %v78
    %v1764 = vunpack.c.l.b16 %v79
    %v1765 = vunpack.c.h.b16 %v79
    %v1766 = vunpack.c.l.b16 %v80
    %v1767 = vunpack.c.h.b16 %v80
    %v1768 = vunpack.c.l.b16 %v81
    %v1769 = vunpack.c.h.b16 %v81
    %v1770 = vunpack.c.l.b16 %v82
    %v1771 = vunpack.c.h.b16 %v82
    %v1772 = vunpack.c.l.b16 %v83
    %v1773 = vunpack.c.h.b16 %v83
    %v1774 = vunpack.c.l.b16 %v84
    %v1775 = vunpack.c.h.b16 %v84
    %v1776 = vunpack.c.l.b16 %v85
    %v1777 = vunpack.c.h.b16 %v85
    %v1778 = vunpack.c.l.b16 %v86
    %v1779 = vunpack.c.h.b16 %v86
    %v1780 = vunpack.c.l.b16 %v87
    %v1781 = vunpack.c.h.b16 %v87
    %v1782 = vunpack.c.l.b16 %v88
    %v1783 = vunpack.c.h.b16 %v88
    %v1784 = vunpack.c.l.b16 %v89
    %v1785 = vunpack.c.h.b16 %v89
    %v1786 = vunpack.c.l.b16 %v90
    %v1787 = vunpack.c.h.b16 %v90
    %v1788 = vunpack.c.l.b16 %v91
    %v1789 = vunpack.c.h.b16 %v91
    %v1790 = vunpack.c.l.b16 %v92
    %v1791 = vunpack.c.h.b16 %v92
    %v1792 = vunpack.c.l.b16 %v93
    %v1793 = vunpack.c.h.b16 %v93
    %v1794 = vunpack.c.l.b16 %v94
    %v1795 = vunpack.c.h.b16 %v94
    %v1796 = vunpack.c.l.b16 %v95
    %v1797 = vunpack.c.h.b16 %v95
    %v1798 = vunpack.c.l.b16 %v96
    %v1799 = vunpack.c.h.b16 %v96
    %v1800 = vunpack.c.l.b16 %v97
    %v1801 = vunpack.c.h.b16 %v97
    %v1802 = vunpack.c.l.b16 %v98
    %v1803 = vunpack.c.h.b16 %v98
    %v1804 = vunpack.c.l.b16 %v99
    %v1805 = vunpack.c.h.b16 %v99
    %v1806 = vunpack.c.l.b16 %v100
    %v1807 = vunpack.c.h.b16 %v100
    %v1808 = vunpack.c.l.b16 %v101
    %v1809 = vunpack.c.h.b16 %v101
    %v1810 = vunpack.c.l.b16 %v102
    %v1811 = vunpack.c.h.b16 %v102
    %v1812 = vunpack.c.l.b16 %v103
    %v1813 = vunpack.c.h.b16 %v103
    %v1814 = vunpack.c.l.b16 %v104
    %v1815 = vunpack.c.h.b16 %v104
    %v1816 = vunpack.c.l.b16 %v105
    %v1817 = vunpack.c.h.b16 %v105
    %v1818 = vunpack.c.l.b16 %v106
    %v1819 = vunpack.c.h.b16 %v106
    %v1820 = vunpack.c.l.b16 %v107
    %v1821 = vunpack.c.h.b16 %v107
    %v1822 = vunpack.c.l.b16 %v108
    %v1823 = vunpack.c.h.b16 %v108
    %v1824 = vunpack.c.l.b16 %v109
    %v1825 = vunpack.c.h.b16 %v109
    %v1826 = vunpack.c.l.b16 %v110
    %v1827 = vunpack.c.h.b16 %v110
    %v1828 = vunpack.c.l.b16 %v111
    %v1829 = vunpack.c.h.b16 %v111
    %v1830 = vunpack.c.l.b16 %v112
    %v1831 = vunpack.c.h.b16 %v112
    %v1832 = vunpack.c.l.b16 %v113
    %v1833 = vunpack.c.h.b16 %v113
    %v1834 = vunpack.c.l.b16 %v114
    %v1835 = vunpack.c.h.b16 %v114
    %v1836 = vunpack.c.l.b16 %v115
    %v1837 = vunpack.c.h.b16 %v115
    %v1838 = vunpack.c.l.b16 %v116
    %v1839 = vunpack.c.h.b16 %v116
    %v1840 = vunpack.c.l.b16 %v117
    %v1841 = vunpack.c.h.b16 %v117
    %v1842 = vunpack.c.l.b16 %v118
    %v1843 = vunpack.c.h.b16 %v118
    %v1844 = vunpack.c.l.b16 %v119
    %v1845 = vunpack.c.h.b16 %v119
    %v1846 = vunpack.c.l.b16 %v120
    %v1847 = vunpack.c.h.b16 %v120
    %v1848 = vunpack.c.l.b16 %v121
    %v1849 = vunpack.c.h.b16 %v121
    %v1850 = vunpack.c.l.b16 %v122
    %v1851 = vunpack.c.h.b16 %v122
    %v1852 = vunpack.c.l.b16 %v123
    %v1853 = vunpack.c.h.b16 %v123
    %v1854 = vunpack.c.l.b16 %v124
    %v1855 = vunpack.c.h.b16 %v124
    %v1856 = vunpack.c.l.b16 %v125
    %v1857 = vunpack.c.h.b16 %v125
    %v1858 = vunpack.c.l.b16 %v126
    %v1859 = vunpack.c.h.b16 %v126
    %v1860 = vunpack.c.l.b16 %v127
    %v1861 = vunpack.c.h.b16 %v127
    %v1862 = vunpack.c.l.b16 %v128
    %v1863 = vunpack.c.h.b16 %v128
    %v1864 = vunpack.c.l.b16 %v129
    %v1865 = vunpack.c.h.b16 %v129
    %v1866 = vunpack.c.l.b16 %v130
    %v1867 = vunpack.c.h.b16 %v130
    %v1868 = vunpack.c.l.b16 %v131
    %v1869 = vunpack.c.h.b16 %v131
    %v1870 = vunpack.c.l.b16 %v132
    %v1871 = vunpack.c.h.b16 %v132
    %v1872 = vunpack.c.l.b16 %v133
    %v1873 = vunpack.c.h.b16 %v133
    %v1874 = vunpack.c.l.b16 %v134
    %v1875 = vunpack.c.h.b16 %v134
    %v1876 = vunpack.c.l.b16 %v135
    %v1877 = vunpack.c.h.b16 %v135
    %v1878 = vunpack.c.l.b16 %v136
    %v1879 = vunpack.c.h.b16 %v136
    %v1880 = vunpack.c.l.b16 %v137
    %v1881 = vunpack.c.h.b16 %v137
    %v1882 = vunpack.c.l.b16 %v138
    %v1883 = vunpack.c.h.b16 %v138
    %v1884 = vunpack.c.l.b16 %v139
    %v1885 = vunpack.c.h.b16 %v139
    %v1886 = vunpack.c.l.b16 %v140
    %v1887 = vunpack.c.h.b16 %v140
    %v1888 = vunpack.c.l.b16 %v141
    %v1889 = vunpack.c.h.b16 %v141
    %v1890 = vunpack.c.l.b16 %v142
    %v1891 = vunpack.c.h.b16 %v142
    %v1892 = vunpack.c.l.b16 %v143
    %v1893 = vunpack.c.h.b16 %v143
    %v1894 = vunpack.c.l.b16 %v144
    %v1895 = vunpack.c.h.b16 %v144
    %v1896 = vunpack.c.l.b16 %v145
    %v1897 = vunpack.c.h.b16 %v145
    %v1898 = vunpack.c.l.b16 %v146
    %v1899 = vunpack.c.h.b16 %v146
    %v1900 = vunpack.c.l.b16 %v147
    %v1901 = vunpack.c.h.b16 %v147
    %v1902 = vunpack.c.l.b16 %v148
    %v1903 = vunpack.c.h.b16 %v148
    %v1904 = vunpack.c.l.b16 %v149
    %v1905 = vunpack.c.h.b16 %v149
    %v1906 = vunpack.c.l.b16 %v150
    %v1907 = vunpack.c.h.b16 %v150
    %v1908 = vunpack.c.l.b16 %v151
    %v1909 = vunpack.c.h.b16 %v151
    %v1910 = vunpack.c.l.b16 %v152
    %v1911 = vunpack.c.h.b16 %v152
    %v1912 = vunpack.c.l.b16 %v153
    %v1913 = vunpack.c.h.b16 %v153
    %v1914 = vunpack.c.l.b16 %v154
    %v1915 = vunpack.c.h.b16 %v154
    %v1916 = vunpack.c.l.b16 %v155
    %v1917 = vunpack.c.h.b16 %v155
    %v1918 = vunpack.c.l.b16 %v156
    %v1919 = vunpack.c.h.b16 %v156
    %v1920 = vunpack.c.l.b16 %v157
    %v1921 = vunpack.c.h.b16 %v157
    %v1922 = vunpack.c.l.b16 %v158
    %v1923 = vunpack.c.h.b16 %v158
    %v1924 = vunpack.c.l.b16 %v159
    %v1925 = vunpack.c.h.b16 %v159
    %v1926 = vunpack.c.l.b16 %v160
    %v1927 = vunpack.c.h.b16 %v160
    %v1928 = vunpack.c.l.b16 %v161
    %v1929 = vunpack.c.h.b16 %v161
    %v1930 = vunpack.c.l.b16 %v162
    %v1931 = vunpack.c.h.b16 %v162
    %v1932 = vunpack.c.l.b16 %v163
    %v1933 = vunpack.c.h.b16 %v163
    %v1934 = vunpack.c.l.b16 %v164
    %v1935 = vunpack.c.h.b16 %v164
    %v1936 = vunpack.c.l.b16 %v165
    %v1937 = vunpack.c.h.b16 %v165
    %v1938 = vunpack.c.l.b16 %v166
    %v1939 = vunpack.c.h.b16 %v166
    %v1940 = vunpack.c.l.b16 %v167
    %v1941 = vunpack.c.h.b16 %v167
    %v1942 = vunpack.c.l.b16 %v168
    %v1943 = vunpack.c.h.b16 %v168
    %v1944 = vunpack.c.l.b16 %v169
    %v1945 = vunpack.c.h.b16 %v169
    %v1946 = vunpack.c.l.b16 %v170
    %v1947 = vunpack.c.h.b16 %v170
    %v1948 = vunpack.c.l.b16 %v171
    %v1949 = vunpack.c.h.b16 %v171
    %v1950 = vunpack.c.l.b16 %v172
    %v1951 = vunpack.c.h.b16 %v172
    %v1952 = vunpack.c.l.b16 %v173
    %v1953 = vunpack.c.h.b16 %v173
    %v1954 = vunpack.c.l.b16 %v174
    %v1955 = vunpack.c.h.b16 %v174
    %v1956 = vunpack.c.l.b16 %v175
    %v1957 = vunpack.c.h.b16 %v175
    %v1958 = vunpack.c.l.b16 %v176
    %v1959 = vunpack.c.h.b16 %v176
    %v1960 = vunpack.c.l.b16 %v177
    %v1961 = vunpack.c.h.b16 %v177
    %v1962 = vunpack.c.l.b16 %v178
    %v1963 = vunpack.c.h.b16 %v178
    %v1964 = vunpack.c.l.b16 %v179
    %v1965 = vunpack.c.h.b16 %v179
    %v1966 = vunpack.c.l.b16 %v180
    %v1967 = vunpack.c.h.b16 %v180
    %v1968 = vunpack.c.l.b16 %v181
    %v1969 = vunpack.c.h.b16 %v181
    %v1970 = vunpack.c.l.b16 %v182
    %v1971 = vunpack.c.h.b16 %v182
    %v1972 = vunpack.c.l.b16 %v183
    %v1973 = vunpack.c.h.b16 %v183
    %v1974 = vunpack.c.l.b16 %v184
    %v1975 = vunpack.c.h.b16 %v184
    %v1976 = vunpack.c.l.b16 %v185
    %v1977 = vunpack.c.h.b16 %v185
    %v1978 = vunpack.c.l.b16 %v186
    %v1979 = vunpack.c.h.b16 %v186
    %v1980 = vunpack.c.l.b16 %v187
    %v1981 = vunpack.c.h.b16 %v187
    %v1982 = vunpack.c.l.b16 %v188
    %v1983 = vunpack.c.h.b16 %v188
    %v1984 = vunpack.c.l.b16 %v189
    %v1985 = vunpack.c.h.b16 %v189
    %v1986 = vunpack.c.l.b16 %v190
    %v1987 = vunpack.c.h.b16 %v190
    %v1988 = vunpack.c.l.b16 %v191
    %v1989 = vunpack.c.h.b16 %v191
    %v1990 = vunpack.c.l.b16 %v192
    %v1991 = vunpack.c.h.b16 %v192
    %v1992 = vunpack.c.l.b16 %v193
    %v1993 = vunpack.c.h.b16 %v193
    %v1994 = vunpack.c.l.b16 %v194
    %v1995 = vunpack.c.h.b16 %v194
    %v1996 = vunpack.c.l.b16 %v195
    %v1997 = vunpack.c.h.b16 %v195
    %v1998 = vunpack.c.l.b16 %v196
    %v1999 = vunpack.c.h.b16 %v196
    %v2000 = vunpack.c.l.b16 %v197
    %v2001 = vunpack.c.h.b16 %v197
    %v2002 = vunpack.c.l.b16 %v198
    %v2003 = vunpack.c.h.b16 %v198
    %v2004 = vunpack.c.l.b16 %v199
    %v2005 = vunpack.c.h.b16 %v199
    %v2006 = vunpack.c.l.b16 %v200
    %v2007 = vunpack.c.h.b16 %v200
    %v2008 = vunpack.c.l.b16 %v201
    %v2009 = vunpack.c.h.b16 %v201
    %v2010 = vunpack.c.l.b16 %v202
    %v2011 = vunpack.c.h.b16 %v202
    %v2012 = vunpack.c.l.b16 %v203
    %v2013 = vunpack.c.h.b16 %v203
    %v2014 = vunpack.c.l.b16 %v204
    %v2015 = vunpack.c.h.b16 %v204
    %v2016 = vunpack.c.l.b16 %v205
    %v2017 = vunpack.c.h.b16 %v205
    %v2018 = vunpack.c.l.b16 %v206
    %v2019 = vunpack.c.h.b16 %v206
    %v2020 = vunpack.c.l.b16 %v207
    %v2021 = vunpack.c.h.b16 %v207
    %v2022 = vunpack.c.l.b16 %v208
    %v2023 = vunpack.c.h.b16 %v208
    %v2024 = vunpack.c.l.b16 %v209
    %v2025 = vunpack.c.h.b16 %v209
    %v2026 = vunpack.c.l.b16 %v210
    %v2027 = vunpack.c.h.b16 %v210
    %v2028 = vunpack.c.l.b16 %v211
    %v2029 = vunpack.c.h.b16 %v211
    %v2030 = vunpack.c.l.b16 %v212
    %v2031 = vunpack.c.h.b16 %v212
    %v2032 = vunpack.c.l.b16 %v213
    %v2033 = vunpack.c.h.b16 %v213
    %v2034 = vunpack.c.l.b16 %v214
    %v2035 = vunpack.c.h.b16 %v214
    %v2036 = vunpack.c.l.b16 %v215
    %v2037 = vunpack.c.h.b16 %v215
    %v2038 = vunpack.c.l.b16 %v216
    %v2039 = vunpack.c.h.b16 %v216
    %v2040 = vunpack.c.l.b16 %v217
    %v2041 = vunpack.c.h.b16 %v217
    %v2042 = vunpack.c.l.b16 %v218
    %v2043 = vunpack.c.h.b16 %v218
    %v2044 = vunpack.c.l.b16 %v219
    %v2045 = vunpack.c.h.b16 %v219
    %v2046 = vunpack.c.l.b16 %v220
    %v2047 = vunpack.c.h.b16 %v220
    %v2048 = vunpack.c.l.b16 %v221
    %v2049 = vunpack.c.h.b16 %v221
    %v2050 = vunpack.c.l.b16 %v222
    %v2051 = vunpack.c.h.b16 %v222
    %v2052 = vunpack.c.l.b16 %v223
    %v2053 = vunpack.c.h.b16 %v223
    %v2054 = vunpack.c.l.b16 %v224
    %v2055 = vunpack.c.h.b16 %v224
    %v2056 = vunpack.c.l.b16 %v225
    %v2057 = vunpack.c.h.b16 %v225
    %v2058 = vunpack.c.l.b16 %v226
    %v2059 = vunpack.c.h.b16 %v226
    %v2060 = vunpack.c.l.b16 %v227
    %v2061 = vunpack.c.h.b16 %v227
    %v2062 = vunpack.c.l.b16 %v228
    %v2063 = vunpack.c.h.b16 %v228
    %v2064 = vunpack.c.l.b16 %v229
    %v2065 = vunpack.c.h.b16 %v229
    %v2066 = vunpack.c.l.b16 %v230
    %v2067 = vunpack.c.h.b16 %v230
    %v2068 = vunpack.c.l.b16 %v231
    %v2069 = vunpack.c.h.b16 %v231
    %v2070 = vunpack.c.l.b16 %v232
    %v2071 = vunpack.c.h.b16 %v232
    %v2072 = vunpack.c.l.b16 %v233
    %v2073 = vunpack.c.h.b16 %v233
    %v2074 = vunpack.c.l.b16 %v234
    %v2075 = vunpack.c.h.b16 %v234
    %v2076 = vunpack.c.l.b16 %v235
    %v2077 = vunpack.c.h.b16 %v235
    %v2078 = vunpack.c.l.b16 %v236
    %v2079 = vunpack.c.h.b16 %v236
    %v2080 = vunpack.c.l.b16 %v237
    %v2081 = vunpack.c.h.b16 %v237
    %v2082 = vunpack.c.l.b16 %v238
    %v2083 = vunpack.c.h.b16 %v238
    %v2084 = vunpack.c.l.b16 %v239
    %v2085 = vunpack.c.h.b16 %v239
    %v2086 = vunpack.c.l.b16 %v240
    %v2087 = vunpack.c.h.b16 %v240
    %v2088 = vunpack.c.l.b16 %v241
    %v2089 = vunpack.c.h.b16 %v241
    %v2090 = vunpack.c.l.b16 %v242
    %v2091 = vunpack.c.h.b16 %v242
    %v2092 = vunpack.c.l.b16 %v243
    %v2093 = vunpack.c.h.b16 %v243
    %v2094 = vunpack.c.l.b16 %v244
    %v2095 = vunpack.c.h.b16 %v244
    %v2096 = vunpack.c.l.b16 %v245
    %v2097 = vunpack.c.h.b16 %v245
    %v2098 = vunpack.c.l.b16 %v246
    %v2099 = vunpack.c.h.b16 %v246
    %v2100 = vunpack.c.l.b16 %v247
    %v2101 = vunpack.c.h.b16 %v247
    %v2102 = vunpack.c.l.b16 %v248
    %v2103 = vunpack.c.h.b16 %v248
    %v2104 = vunpack.c.l.b16 %v249
    %v2105 = vunpack.c.h.b16 %v249
    %v2106 = vunpack.c.l.b16 %v250
    %v2107 = vunpack.c.h.b16 %v250
    %v2108 = vunpack.c.l.b16 %v251
    %v2109 = vunpack.c.h.b16 %v251
    %v2110 = vunpack.c.l.b16 %v252
    %v2111 = vunpack.c.h.b16 %v252
    %v2112 = vunpack.c.l.b16 %v253
    %v2113 = vunpack.c.h.b16 %v253
    %v2114 = vunpack.c.l.b16 %v254
    %v2115 = vunpack.c.h.b16 %v254
    %v2116 = vunpack.c.l.b16 %v255
    %v2117 = vunpack.c.h.b16 %v255
    %v2118 = vunpack.c.l.b16 %v256
    %v2119 = vunpack.c.h.b16 %v256
    %v2120 = vunpack.c.l.b16 %v257
    %v2121 = vunpack.c.h.b16 %v257
    %v2122 = vunpack.c.l.b16 %v258
    %v2123 = vunpack.c.h.b16 %v258
    %v2124 = vunpack.c.l.b16 %v259
    %v2125 = vunpack.c.h.b16 %v259
    %v2126 = vunpack.c.l.b16 %v260
    %v2127 = vunpack.c.h.b16 %v260
    %v2128 = vunpack.c.l.b16 %v261
    %v2129 = vunpack.c.h.b16 %v261
    %v2130 = vunpack.c.l.b16 %v262
    %v2131 = vunpack.c.h.b16 %v262
    %v2132 = vunpack.c.l.b16 %v263
    %v2133 = vunpack.c.h.b16 %v263
    %v2134 = vunpack.c.l.b16 %v264
    %v2135 = vunpack.c.h.b16 %v264
    %v2136 = vunpack.c.l.b16 %v265
    %v2137 = vunpack.c.h.b16 %v265
    %v2138 = vunpack.c.l.b16 %v266
    %v2139 = vunpack.c.h.b16 %v266
    %v2140 = vunpack.c.l.b16 %v267
    %v2141 = vunpack.c.h.b16 %v267
    %v2142 = vunpack.c.l.b16 %v268
    %v2143 = vunpack.c.h.b16 %v268
    %v2144 = vunpack.c.l.b16 %v269
    %v2145 = vunpack.c.h.b16 %v269
    %v2146 = vunpack.c.l.b16 %v270
    %v2147 = vunpack.c.h.b16 %v270
    %v2148 = vunpack.c.l.b16 %v271
    %v2149 = vunpack.c.h.b16 %v271
    %v2150 = vunpack.c.l.b16 %v272
    %v2151 = vunpack.c.h.b16 %v272
    %v2152 = vunpack.c.l.b16 %v273
    %v2153 = vunpack.c.h.b16 %v273
    %v2154 = vunpack.c.l.b16 %v274
    %v2155 = vunpack.c.h.b16 %v274
    %v2156 = vunpack.c.l.b16 %v275
    %v2157 = vunpack.c.h.b16 %v275
    %v2158 = vunpack.c.l.b16 %v276
    %v2159 = vunpack.c.h.b16 %v276
    %v2160 = vunpack.c.l.b16 %v277
    %v2161 = vunpack.c.h.b16 %v277
    %v2162 = vunpack.c.l.b16 %v278
    %v2163 = vunpack.c.h.b16 %v278
    %v2164 = vunpack.c.l.b16 %v279
    %v2165 = vunpack.c.h.b16 %v279
    %v2166 = vunpack.c.l.b16 %v280
    %v2167 = vunpack.c.h.b16 %v280
    %v2168 = vunpack.c.l.b16 %v281
    %v2169 = vunpack.c.h.b16 %v281
    %v2170 = vunpack.c.l.b16 %v282
    %v2171 = vunpack.c.h.b16 %v282
    %v2172 = vunpack.c.l.b16 %v283
    %v2173 = vunpack.c.h.b16 %v283
    %v2174 = vunpack.c.l.b16 %v284
    %v2175 = vunpack.c.h.b16 %v284
    %v2176 = vunpack.c.l.b16 %v285
    %v2177 = vunpack.c.h.b16 %v285
    %v2178 = vunpack.c.l.b16 %v286
    %v2179 = vunpack.c.h.b16 %v286
    %v2180 = vunpack.c.l.b16 %v287
    %v2181 = vunpack.c.h.b16 %v287
    %v2182 = vunpack.c.l.b16 %v288
    %v2183 = vunpack.c.h.b16 %v288
    %v2184 = vunpack.c.l.b16 %v289
    %v2185 = vunpack.c.h.b16 %v289
    %v2186 = vunpack.c.l.b16 %v290
    %v2187 = vunpack.c.h.b16 %v290
    %v2188 = vunpack.c.l.b16 %v291
    %v2189 = vunpack.c.h.b16 %v291
    %v2190 = vunpack.c.l.b16 %v292
    %v2191 = vunpack.c.h.b16 %v292
    %v2192 = vunpack.c.l.b16 %v293
    %v2193 = vunpack.c.h.b16 %v293
    %v2194 = vunpack.c.l.b16 %v294
    %v2195 = vunpack.c.h.b16 %v294
    %v2196 = vunpack.c.l.b16 %v295
    %v2197 = vunpack.c.h.b16 %v295
    %v2198 = vunpack.c.l.b16 %v296
    %v2199 = vunpack.c.h.b16 %v296
    %v2200 = vunpack.c.l.b16 %v297
    %v2201 = vunpack.c.h.b16 %v297
    %v2202 = vunpack.c.l.b16 %v298
    %v2203 = vunpack.c.h.b16 %v298
    %v2204 = vunpack.c.l.b16 %v299
    %v2205 = vunpack.c.h.b16 %v299
    %v2206 = vunpack.c.l.b16 %v300
    %v2207 = vunpack.c.h.b16 %v300
    %v2208 = vunpack.c.l.b16 %v301
    %v2209 = vunpack.c.h.b16 %v301
    %v2210 = vunpack.c.l.b16 %v302
    %v2211 = vunpack.c.h.b16 %v302
    %v2212 = vunpack.c.l.b16 %v303
    %v2213 = vunpack.c.h.b16 %v303
    %v2214 = vunpack.c.l.b16 %v304
    %v2215 = vunpack.c.h.b16 %v304
    %v2216 = vunpack.c.l.b16 %v305
    %v2217 = vunpack.c.h.b16 %v305
    %v2218 = vunpack.c.l.b16 %v306
    %v2219 = vunpack.c.h.b16 %v306
    %v2220 = vunpack.c.l.b16 %v307
    %v2221 = vunpack.c.h.b16 %v307
    %v2222 = vunpack.c.l.b16 %v308
    %v2223 = vunpack.c.h.b16 %v308
    %v2224 = vunpack.c.l.b16 %v309
    %v2225 = vunpack.c.h.b16 %v309
    %v2226 = vunpack.c.l.b16 %v310
    %v2227 = vunpack.c.h.b16 %v310
    %v2228 = vunpack.c.l.b16 %v311
    %v2229 = vunpack.c.h.b16 %v311
    %v2230 = vunpack.c.l.b16 %v312
    %v2231 = vunpack.c.h.b16 %v312
    %v2232 = vunpack.c.l.b16 %v313
    %v2233 = vunpack.c.h.b16 %v313
    %v2234 = vunpack.c.l.b16 %v314
    %v2235 = vunpack.c.h.b16 %v314
    %v2236 = vunpack.c.l.b16 %v315
    %v2237 = vunpack.c.h.b16 %v315
    %v2238 = vunpack.c.l.b16 %v316
    %v2239 = vunpack.c.h.b16 %v316
    %v2240 = vunpack.c.l.b16 %v317
    %v2241 = vunpack.c.h.b16 %v317
    %v2242 = vunpack.c.l.b16 %v318
    %v2243 = vunpack.c.h.b16 %v318
    %v2244 = vunpack.c.l.b16 %v319
    %v2245 = vunpack.c.h.b16 %v319
    %v2246 = vunpack.c.l.b16 %v320
    %v2247 = vunpack.c.h.b16 %v320
    %v2248 = vunpack.c.l.b16 %v321
    %v2249 = vunpack.c.h.b16 %v321
    %v2250 = vunpack.c.l.b16 %v322
    %v2251 = vunpack.c.h.b16 %v322
    %v2252 = vunpack.c.l.b16 %v323
    %v2253 = vunpack.c.h.b16 %v323
    %v2254 = vunpack.c.l.b16 %v324
    %v2255 = vunpack.c.h.b16 %v324
    %v2256 = vunpack.c.l.b16 %v325
    %v2257 = vunpack.c.h.b16 %v325
    %v2258 = vunpack.c.l.b16 %v326
    %v2259 = vunpack.c.h.b16 %v326
    %v2260 = vunpack.c.l.b16 %v327
    %v2261 = vunpack.c.h.b16 %v327
    %v2262 = vunpack.c.l.b16 %v328
    %v2263 = vunpack.c.h.b16 %v328
    %v2264 = vunpack.c.l.b16 %v329
    %v2265 = vunpack.c.h.b16 %v329
    %v2266 = vunpack.c.l.b16 %v330
    %v2267 = vunpack.c.h.b16 %v330
    %v2268 = vunpack.c.l.b16 %v331
    %v2269 = vunpack.c.h.b16 %v331
    %v2270 = vunpack.c.l.b16 %v332
    %v2271 = vunpack.c.h.b16 %v332
    %v2272 = vunpack.c.l.b16 %v333
    %v2273 = vunpack.c.h.b16 %v333
    %v2274 = vunpack.c.l.b16 %v334
    %v2275 = vunpack.c.h.b16 %v334
    %v2276 = vunpack.c.l.b16 %v335
    %v2277 = vunpack.c.h.b16 %v335
    %v2278 = vunpack.c.l.b16 %v336
    %v2279 = vunpack.c.h.b16 %v336
    %v2280 = vunpack.c.l.b16 %v337
    %v2281 = vunpack.c.h.b16 %v337
    %v2282 = vunpack.c.l.b16 %v338
    %v2283 = vunpack.c.h.b16 %v338
    %v2284 = vunpack.c.l.b16 %v339
    %v2285 = vunpack.c.h.b16 %v339
    %v2286 = vunpack.c.l.b16 %v340
    %v2287 = vunpack.c.h.b16 %v340
    %v2288 = vunpack.c.l.b16 %v341
    %v2289 = vunpack.c.h.b16 %v341
    %v2290 = vunpack.c.l.b16 %v342
    %v2291 = vunpack.c.h.b16 %v342
    %v2292 = vunpack.c.l.b16 %v343
    %v2293 = vunpack.c.h.b16 %v343
    %v2294 = vunpack.c.l.b16 %v344
    %v2295 = vunpack.c.h.b16 %v344
    %v2296 = vunpack.c.l.b16 %v345
    %v2297 = vunpack.c.h.b16 %v345
    %v2298 = vunpack.c.l.b16 %v346
    %v2299 = vunpack.c.h.b16 %v346
    %v2300 = vunpack.c.l.b16 %v347
    %v2301 = vunpack.c.h.b16 %v347
    %v2302 = vunpack.c.l.b16 %v348
    %v2303 = vunpack.c.h.b16 %v348
    %v2304 = vunpack.c.l.b16 %v349
    %v2305 = vunpack.c.h.b16 %v349
    %v2306 = vunpack.c.l.b16 %v350
    %v2307 = vunpack.c.h.b16 %v350
    %v2308 = vunpack.c.l.b16 %v351
    %v2309 = vunpack.c.h.b16 %v351
    %v2310 = vunpack.c.l.b16 %v352
    %v2311 = vunpack.c.h.b16 %v352
    %v2312 = vunpack.c.l.b16 %v353
    %v2313 = vunpack.c.h.b16 %v353
    %v2314 = vunpack.c.l.b16 %v354
    %v2315 = vunpack.c.h.b16 %v354
    %v2316 = vunpack.c.l.b16 %v355
    %v2317 = vunpack.c.h.b16 %v355
    %v2318 = vunpack.c.l.b16 %v356
    %v2319 = vunpack.c.h.b16 %v356
    %v2320 = vunpack.c.l.b16 %v357
    %v2321 = vunpack.c.h.b16 %v357
    %v2322 = vunpack.c.l.b16 %v358
    %v2323 = vunpack.c.h.b16 %v358
    %v2324 = vunpack.c.l.b16 %v359
    %v2325 = vunpack.c.h.b16 %v359
    %v2326 = vunpack.c.l.b16 %v360
    %v2327 = vunpack.c.h.b16 %v360
    %v2328 = vunpack.c.l.b16 %v361
    %v2329 = vunpack.c.h.b16 %v361
    %v2330 = vunpack.c.l.b16 %v362
    %v2331 = vunpack.c.h.b16 %v362
    %v2332 = vunpack.c.l.b16 %v363
    %v2333 = vunpack.c.h.b16 %v363
    %v2334 = vunpack.c.l.b16 %v364
    %v2335 = vunpack.c.h.b16 %v364
    %v2336 = vunpack.c.l.b16 %v365
    %v2337 = vunpack.c.h.b16 %v365
    %v2338 = vunpack.c.l.b16 %v366
    %v2339 = vunpack.c.h.b16 %v366
    %v2340 = vunpack.c.l.b16 %v367
    %v2341 = vunpack.c.h.b16 %v367
    %v2342 = vunpack.c.l.b16 %v368
    %v2343 = vunpack.c.h.b16 %v368
    %v2344 = vunpack.c.l.b16 %v369
    %v2345 = vunpack.c.h.b16 %v369
    %v2346 = vunpack.c.l.b16 %v370
    %v2347 = vunpack.c.h.b16 %v370
    %v2348 = vunpack.c.l.b16 %v371
    %v2349 = vunpack.c.h.b16 %v371
    %v2350 = vunpack.c.l.b16 %v372
    %v2351 = vunpack.c.h.b16 %v372
    %v2352 = vunpack.c.l.b16 %v373
    %v2353 = vunpack.c.h.b16 %v373
    %v2354 = vunpack.c.l.b16 %v374
    %v2355 = vunpack.c.h.b16 %v374
    %v2356 = vunpack.c.l.b16 %v375
    %v2357 = vunpack.c.h.b16 %v375
    %v2358 = vunpack.c.l.b16 %v376
    %v2359 = vunpack.c.h.b16 %v376
    %v2360 = vunpack.c.l.b16 %v377
    %v2361 = vunpack.c.h.b16 %v377
    %v2362 = vunpack.c.l.b16 %v378
    %v2363 = vunpack.c.h.b16 %v378
    %v2364 = vunpack.c.l.b16 %v379
    %v2365 = vunpack.c.h.b16 %v379
    %v2366 = vunpack.c.l.b16 %v380
    %v2367 = vunpack.c.h.b16 %v380
    %v2368 = vunpack.c.l.b16 %v381
    %v2369 = vunpack.c.h.b16 %v381
    %v2370 = vunpack.c.l.b16 %v382
    %v2371 = vunpack.c.h.b16 %v382
    %v2372 = vunpack.c.l.b16 %v383
    %v2373 = vunpack.c.h.b16 %v383
    %v2374 = vunpack.c.l.b16 %v384
    %v2375 = vunpack.c.h.b16 %v384
    %v2376 = vunpack.c.l.b16 %v385
    %v2377 = vunpack.c.h.b16 %v385
    %v2378 = vunpack.c.l.b16 %v386
    %v2379 = vunpack.c.h.b16 %v386
    %v2380 = vunpack.c.l.b16 %v387
    %v2381 = vunpack.c.h.b16 %v387
    %v2382 = vunpack.c.l.b16 %v388
    %v2383 = vunpack.c.h.b16 %v388
    %v2384 = vunpack.c.l.b16 %v389
    %v2385 = vunpack.c.h.b16 %v389
    %v2386 = vunpack.c.l.b16 %v390
    %v2387 = vunpack.c.h.b16 %v390
    %v2388 = vunpack.c.l.b16 %v391
    %v2389 = vunpack.c.h.b16 %v391
    %v2390 = vunpack.c.l.b16 %v392
    %v2391 = vunpack.c.h.b16 %v392
    %v2392 = vunpack.c.l.b16 %v393
    %v2393 = vunpack.c.h.b16 %v393
    %v2394 = vunpack.c.l.b16 %v394
    %v2395 = vunpack.c.h.b16 %v394
    %v2396 = vunpack.c.l.b16 %v395
    %v2397 = vunpack.c.h.b16 %v395
    %v2398 = vunpack.c.l.b16 %v396
    %v2399 = vunpack.c.h.b16 %v396
    %v2400 = vunpack.c.l.b16 %v397
    %v2401 = vunpack.c.h.b16 %v397
    %v2402 = vunpack.c.l.b16 %v398
    %v2403 = vunpack.c.h.b16 %v398
    %v2404 = vunpack.c.l.b16 %v399
    %v2405 = vunpack.c.h.b16 %v399
    %v2406 = vunpack.c.l.b16 %v400
    %v2407 = vunpack.c.h.b16 %v400
    %v2408 = vunpack.c.l.b16 %v401
    %v2409 = vunpack.c.h.b16 %v401
    %v2410 = vunpack.c.l.b16 %v402
    %v2411 = vunpack.c.h.b16 %v402
    %v2412 = vunpack.c.l.b16 %v403
    %v2413 = vunpack.c.h.b16 %v403
    %v2414 = vunpack.c.l.b16 %v404
    %v2415 = vunpack.c.h.b16 %v404
    %v2416 = vunpack.c.l.b16 %v405
    %v2417 = vunpack.c.h.b16 %v405
    %v2418 = vunpack.c.l.b16 %v406
    %v2419 = vunpack.c.h.b16 %v406
    %v2420 = vunpack.c.l.b16 %v407
    %v2421 = vunpack.c.h.b16 %v407
    %v2422 = vunpack.c.l.b16 %v408
    %v2423 = vunpack.c.h.b16 %v408
    %v2424 = vunpack.c.l.b16 %v409
    %v2425 = vunpack.c.h.b16 %v409
    %v2426 = vunpack.c.l.b16 %v410
    %v2427 = vunpack.c.h.b16 %v410
    %v2428 = vunpack.c.l.b16 %v411
    %v2429 = vunpack.c.h.b16 %v411
    %v2430 = vunpack.c.l.b16 %v412
    %v2431 = vunpack.c.h.b16 %v412
    %v2432 = vunpack.c.l.b16 %v413
    %v2433 = vunpack.c.h.b16 %v413
    %v2434 = vunpack.c.l.b16 %v414
    %v2435 = vunpack.c.h.b16 %v414
    %v2436 = vunpack.c.l.b16 %v415
    %v2437 = vunpack.c.h.b16 %v415
    %v2438 = vunpack.c.l.b16 %v416
    %v2439 = vunpack.c.h.b16 %v416
    %v2440 = vunpack.c.l.b16 %v417
    %v2441 = vunpack.c.h.b16 %v417
    %v2442 = vunpack.c.l.b16 %v418
    %v2443 = vunpack.c.h.b16 %v418
    %v2444 = vunpack.c.l.b16 %v419
    %v2445 = vunpack.c.h.b16 %v419
    %v2446 = vunpack.c.l.b16 %v420
    %v2447 = vunpack.c.h.b16 %v420
    %v2448 = vunpack.c.l.b16 %v421
    %v2449 = vunpack.c.h.b16 %v421
    %v2450 = vunpack.c.l.b16 %v422
    %v2451 = vunpack.c.h.b16 %v422
    %v2452 = vunpack.c.l.b16 %v423
    %v2453 = vunpack.c.h.b16 %v423
    %v2454 = vunpack.c.l.b16 %v424
    %v2455 = vunpack.c.h.b16 %v424
    %v2456 = vunpack.c.l.b16 %v425
    %v2457 = vunpack.c.h.b16 %v425
    %v2458 = vunpack.c.l.b16 %v426
    %v2459 = vunpack.c.h.b16 %v426
    %v2460 = vunpack.c.l.b16 %v427
    %v2461 = vunpack.c.h.b16 %v427
    %v2462 = vunpack.c.l.b16 %v428
    %v2463 = vunpack.c.h.b16 %v428
    %v2464 = vunpack.c.l.b16 %v429
    %v2465 = vunpack.c.h.b16 %v429
    %v2466 = vunpack.c.l.b16 %v430
    %v2467 = vunpack.c.h.b16 %v430
    %v2468 = vunpack.c.l.b16 %v431
    %v2469 = vunpack.c.h.b16 %v431
    %v2470 = vunpack.c.l.b16 %v432
    %v2471 = vunpack.c.h.b16 %v432
    %v2472 = vunpack.c.l.b16 %v433
    %v2473 = vunpack.c.h.b16 %v433
    %v2474 = vunpack.c.l.b16 %v434
    %v2475 = vunpack.c.h.b16 %v434
    %v2476 = vunpack.c.l.b16 %v435
    %v2477 = vunpack.c.h.b16 %v435
    %v2478 = vunpack.c.l.b16 %v436
    %v2479 = vunpack.c.h.b16 %v436
    %v2480 = vunpack.c.l.b16 %v437
    %v2481 = vunpack.c.h.b16 %v437
    %v2482 = vunpack.c.l.b16 %v438
    %v2483 = vunpack.c.h.b16 %v438
    %v2484 = vunpack.c.l.b16 %v439
    %v2485 = vunpack.c.h.b16 %v439
    %v2486 = vunpack.c.l.b16 %v440
    %v2487 = vunpack.c.h.b16 %v440
    %v2488 = vunpack.c.l.b16 %v441
    %v2489 = vunpack.c.h.b16 %v441
    %v2490 = vunpack.c.l.b16 %v442
    %v2491 = vunpack.c.h.b16 %v442
    %v2492 = vunpack.c.l.b16 %v443
    %v2493 = vunpack.c.h.b16 %v443
    %v2494 = vunpack.c.l.b16 %v444
    %v2495 = vunpack.c.h.b16 %v444
    %v2496 = vunpack.c.l.b16 %v445
    %v2497 = vunpack.c.h.b16 %v445
    %v2498 = vunpack.c.l.b16 %v446
    %v2499 = vunpack.c.h.b16 %v446
    %v2500 = vunpack.c.l.b16 %v447
    %v2501 = vunpack.c.h.b16 %v447
    %v2502 = vunpack.c.l.b16 %v448
    %v2503 = vunpack.c.h.b16 %v448
    %v2504 = vunpack.c.l.b16 %v449
    %v2505 = vunpack.c.h.b16 %v449
    %v2506 = vunpack.c.l.b16 %v450
    %v2507 = vunpack.c.h.b16 %v450
    %v2508 = vunpack.c.l.b16 %v451
    %v2509 = vunpack.c.h.b16 %v451
    %v2510 = vunpack.c.l.b16 %v452
    %v2511 = vunpack.c.h.b16 %v452
    %v2512 = vunpack.c.l.b16 %v453
    %v2513 = vunpack.c.h.b16 %v453
    %v2514 = vunpack.c.l.b16 %v454
    %v2515 = vunpack.c.h.b16 %v454
    %v2516 = vunpack.c.l.b16 %v455
    %v2517 = vunpack.c.h.b16 %v455
    %v2518 = vunpack.c.l.b16 %v456
    %v2519 = vunpack.c.h.b16 %v456
    %v2520 = vunpack.c.l.b16 %v457
    %v2521 = vunpack.c.h.b16 %v457
    %v2522 = vunpack.c.l.b16 %v458
    %v2523 = vunpack.c.h.b16 %v458
    %v2524 = vunpack.c.l.b16 %v459
    %v2525 = vunpack.c.h.b16 %v459
    %v2526 = vunpack.c.l.b16 %v460
    %v2527 = vunpack.c.h.b16 %v460
    %v2528 = vunpack.c.l.b16 %v461
    %v2529 = vunpack.c.h.b16 %v461
    %v2530 = vunpack.c.l.b16 %v462
    %v2531 = vunpack.c.h.b16 %v462
    %v2532 = vunpack.c.l.b16 %v463
    %v2533 = vunpack.c.h.b16 %v463
    %v2534 = vunpack.c.l.b16 %v464
    %v2535 = vunpack.c.h.b16 %v464
    %v2536 = vunpack.c.l.b16 %v465
    %v2537 = vunpack.c.h.b16 %v465
    %v2538 = vunpack.c.l.b16 %v466
    %v2539 = vunpack.c.h.b16 %v466
    %v2540 = vunpack.c.l.b16 %v467
    %v2541 = vunpack.c.h.b16 %v467
    %v2542 = vunpack.c.l.b16 %v468
    %v2543 = vunpack.c.h.b16 %v468
    %v2544 = vunpack.c.l.b16 %v469
    %v2545 = vunpack.c.h.b16 %v469
    %v2546 = vunpack.c.l.b16 %v470
    %v2547 = vunpack.c.h.b16 %v470
    %v2548 = vunpack.c.l.b16 %v471
    %v2549 = vunpack.c.h.b16 %v471
    %v2550 = vunpack.c.l.b16 %v472
    %v2551 = vunpack.c.h.b16 %v472
    %v2552 = vunpack.c.l.b16 %v473
    %v2553 = vunpack.c.h.b16 %v473
    %v2554 = vunpack.c.l.b16 %v474
    %v2555 = vunpack.c.h.b16 %v474
    %v2556 = vunpack.c.l.b16 %v475
    %v2557 = vunpack.c.h.b16 %v475
    %v2558 = vunpack.c.l.b16 %v476
    %v2559 = vunpack.c.h.b16 %v476
    %v2560 = vunpack.c.l.b16 %v477
    %v2561 = vunpack.c.h.b16 %v477
    %v2562 = vunpack.c.l.b16 %v478
    %v2563 = vunpack.c.h.b16 %v478
    %v2564 = vunpack.c.l.b16 %v479
    %v2565 = vunpack.c.h.b16 %v479
    %v2566 = vunpack.c.l.b16 %v480
    %v2567 = vunpack.c.h.b16 %v480
    %v2568 = vunpack.c.l.b16 %v481
    %v2569 = vunpack.c.h.b16 %v481
    %v2570 = vunpack.c.l.b16 %v482
    %v2571 = vunpack.c.h.b16 %v482
    %v2572 = vunpack.c.l.b16 %v483
    %v2573 = vunpack.c.h.b16 %v483
    %v2574 = vunpack.c.l.b16 %v484
    %v2575 = vunpack.c.h.b16 %v484
    %v2576 = vunpack.c.l.b16 %v485
    %v2577 = vunpack.c.h.b16 %v485
    %v2578 = vunpack.c.l.b16 %v486
    %v2579 = vunpack.c.h.b16 %v486
    %v2580 = vunpack.c.l.b16 %v487
    %v2581 = vunpack.c.h.b16 %v487
    %v2582 = vunpack.c.l.b16 %v488
    %v2583 = vunpack.c.h.b16 %v488
    %v2584 = vunpack.c.l.b16 %v489
    %v2585 = vunpack.c.h.b16 %v489
    %v2586 = vunpack.c.l.b16 %v490
    %v2587 = vunpack.c.h.b16 %v490
    %v2588 = vunpack.c.l.b16 %v491
    %v2589 = vunpack.c.h.b16 %v491
    %v2590 = vunpack.c.l.b16 %v492
    %v2591 = vunpack.c.h.b16 %v492
    %v2592 = vunpack.c.l.b16 %v493
    %v2593 = vunpack.c.h.b16 %v493
    %v2594 = vunpack.c.l.b16 %v494
    %v2595 = vunpack.c.h.b16 %v494
    %v2596 = vunpack.c.l.b16 %v495
    %v2597 = vunpack.c.h.b16 %v495
    %v2598 = vunpack.c.l.b16 %v496
    %v2599 = vunpack.c.h.b16 %v496
    %v2600 = vunpack.c.l.b16 %v497
    %v2601 = vunpack.c.h.b16 %v497
    %v2602 = vunpack.c.l.b16 %v498
    %v2603 = vunpack.c.h.b16 %v498
    %v2604 = vunpack.c.l.b16 %v499
    %v2605 = vunpack.c.h.b16 %v499
    %v2606 = vunpack.c.l.b16 %v500
    %v2607 = vunpack.c.h.b16 %v500
    %v2608 = vunpack.c.l.b16 %v501
    %v2609 = vunpack.c.h.b16 %v501
    %v2610 = vunpack.c.l.b16 %v502
    %v2611 = vunpack.c.h.b16 %v502
    %v2612 = vunpack.c.l.b16 %v503
    %v2613 = vunpack.c.h.b16 %v503
    %v2614 = vunpack.c.l.b16 %v504
    %v2615 = vunpack.c.h.b16 %v504
    %v2616 = vunpack.c.l.b16 %v505
    %v2617 = vunpack.c.h.b16 %v505
    %v2618 = vunpack.c.l.b16 %v506
    %v2619 = vunpack.c.h.b16 %v506
    %v2620 = vunpack.c.l.b16 %v507
    %v2621 = vunpack.c.h.b16 %v507
    %v2622 = vunpack.c.l.b16 %v508
    %v2623 = vunpack.c.h.b16 %v508
    %v2624 = vunpack.c.l.b16 %v509
    %v2625 = vunpack.c.h.b16 %v509
    %v2626 = vunpack.c.l.b16 %v510
    %v2627 = vunpack.c.h.b16 %v510
    %v2628 = vunpack.c.l.b16 %v511
    %v2629 = vunpack.c.h.b16 %v511
    %v2630 = vunpack.c.l.b16 %v512
    %v2631 = vunpack.c.h.b16 %v512
    %v2632 = vunpack.c.l.b16 %v513
    %v2633 = vunpack.c.h.b16 %v513
    %v2634 = vunpack.c.l.b16 %v514
    %v2635 = vunpack.c.h.b16 %v514
    %v2636 = vunpack.c.l.b16 %v515
    %v2637 = vunpack.c.h.b16 %v515
    %v2638 = vunpack.c.l.b16 %v516
    %v2639 = vunpack.c.h.b16 %v516
    %v2640 = vunpack.c.l.b16 %v517
    %v2641 = vunpack.c.h.b16 %v517
    %v2642 = vunpack.c.l.b16 %v518
    %v2643 = vunpack.c.h.b16 %v518
    %v2644 = vunpack.c.l.b16 %v519
    %v2645 = vunpack.c.h.b16 %v519
    %v2646 = vunpack.c.l.b16 %v520
    %v2647 = vunpack.c.h.b16 %v520
    %v2648 = vunpack.c.l.b16 %v521
    %v2649 = vunpack.c.h.b16 %v521
    %v2650 = vunpack.c.l.b16 %v522
    %v2651 = vunpack.c.h.b16 %v522
    %v2652 = vunpack.c.l.b16 %v523
    %v2653 = vunpack.c.h.b16 %v523
    %v2654 = vunpack.c.l.b16 %v524
    %v2655 = vunpack.c.h.b16 %v524
    %v2656 = vunpack.c.l.b16 %v525
    %v2657 = vunpack.c.h.b16 %v525
    %v2658 = vunpack.c.l.b16 %v526
    %v2659 = vunpack.c.h.b16 %v526
    %v2660 = vunpack.c.l.b16 %v527
    %v2661 = vunpack.c.h.b16 %v527
    %v2662 = vunpack.c.l.b16 %v528
    %v2663 = vunpack.c.h.b16 %v528
    %v2664 = vunpack.c.l.b16 %v529
    %v2665 = vunpack.c.h.b16 %v529
    %v2666 = vunpack.c.l.b16 %v530
    %v2667 = vunpack.c.h.b16 %v530
    %v2668 = vunpack.c.l.b16 %v531
    %v2669 = vunpack.c.h.b16 %v531
    %v2670 = vunpack.c.l.b16 %v532
    %v2671 = vunpack.c.h.b16 %v532
    %v2672 = vunpack.c.l.b16 %v533
    %v2673 = vunpack.c.h.b16 %v533
    %v2674 = vunpack.c.l.b16 %v534
    %v2675 = vunpack.c.h.b16 %v534
    %v2676 = vunpack.c.l.b16 %v535
    %v2677 = vunpack.c.h.b16 %v535
    %v2678 = vunpack.c.l.b16 %v536
    %v2679 = vunpack.c.h.b16 %v536
    %v2680 = vunpack.c.l.b16 %v537
    %v2681 = vunpack.c.h.b16 %v537
    %v2682 = vunpack.c.l.b16 %v538
    %v2683 = vunpack.c.h.b16 %v538
    %v2684 = vunpack.c.l.b16 %v539
    %v2685 = vunpack.c.h.b16 %v539
    %v2686 = vunpack.c.l.b16 %v540
    %v2687 = vunpack.c.h.b16 %v540
    %v2688 = vunpack.c.l.b16 %v541
    %v2689 = vunpack.c.h.b16 %v541
    %v2690 = vunpack.c.l.b16 %v542
    %v2691 = vunpack.c.h.b16 %v542
    %v2692 = vunpack.c.l.b16 %v543
    %v2693 = vunpack.c.h.b16 %v543
    %v2694 = vunpack.c.l.b16 %v544
    %v2695 = vunpack.c.h.b16 %v544
    %v2696 = vunpack.c.l.b16 %v545
    %v2697 = vunpack.c.h.b16 %v545
    %v2698 = vunpack.c.l.b16 %v546
    %v2699 = vunpack.c.h.b16 %v546
    %v2700 = vunpack.c.l.b16 %v547
    %v2701 = vunpack.c.h.b16 %v547
    %v2702 = vunpack.c.l.b16 %v548
    %v2703 = vunpack.c.h.b16 %v548
    %v2704 = vunpack.c.l.b16 %v549
    %v2705 = vunpack.c.h.b16 %v549
    %v2706 = vunpack.c.l.b16 %v550
    %v2707 = vunpack.c.h.b16 %v550
    %v2708 = vunpack.c.l.b16 %v551
    %v2709 = vunpack.c.h.b16 %v551
    %v2710 = vunpack.c.l.b16 %v552
    %v2711 = vunpack.c.h.b16 %v552
    %v2712 = vunpack.c.l.b16 %v553
    %v2713 = vunpack.c.h.b16 %v553
    %v2714 = vunpack.c.l.b16 %v554
    %v2715 = vunpack.c.h.b16 %v554
    %v2716 = vunpack.c.l.b16 %v555
    %v2717 = vunpack.c.h.b16 %v555
    %v2718 = vunpack.c.l.b16 %v556
    %v2719 = vunpack.c.h.b16 %v556
    %v2720 = vunpack.c.l.b16 %v557
    %v2721 = vunpack.c.h.b16 %v557
    %v2722 = vunpack.c.l.b16 %v558
    %v2723 = vunpack.c.h.b16 %v558
    %v2724 = vunpack.c.l.b16 %v559
    %v2725 = vunpack.c.h.b16 %v559
    %v2726 = vunpack.c.l.b16 %v560
    %v2727 = vunpack.c.h.b16 %v560
    %v2728 = vunpack.c.l.b16 %v561
    %v2729 = vunpack.c.h.b16 %v561
    %v2730 = vunpack.c.l.b16 %v562
    %v2731 = vunpack.c.h.b16 %v562
    %v2732 = vunpack.c.l.b16 %v563
    %v2733 = vunpack.c.h.b16 %v563
    %v2734 = vunpack.c.l.b16 %v564
    %v2735 = vunpack.c.h.b16 %v564
    %v2736 = vunpack.c.l.b16 %v565
    %v2737 = vunpack.c.h.b16 %v565
    %v2738 = vunpack.c.l.b16 %v566
    %v2739 = vunpack.c.h.b16 %v566
    %v2740 = vunpack.c.l.b16 %v567
    %v2741 = vunpack.c.h.b16 %v567
    %v2742 = vunpack.c.l.b16 %v568
    %v2743 = vunpack.c.h.b16 %v568
    %v2744 = vunpack.c.l.b16 %v569
    %v2745 = vunpack.c.h.b16 %v569
    %v2746 = vunpack.c.l.b16 %v570
    %v2747 = vunpack.c.h.b16 %v570
    %v2748 = vunpack.c.l.b16 %v571
    %v2749 = vunpack.c.h.b16 %v571
    %v2750 = vunpack.c.l.b16 %v572
    %v2751 = vunpack.c.h.b16 %v572
    %v2752 = vunpack.c.l.b16 %v573
    %v2753 = vunpack.c.h.b16 %v573
    %v2754 = vunpack.c.l.b16 %v574
    %v2755 = vunpack.c.h.b16 %v574
    %v2756 = vunpack.c.l.b16 %v575
    %v2757 = vunpack.c.h.b16 %v575
    %v2758 = vunpack.c.l.b16 %v576
    %v2759 = vunpack.c.h.b16 %v576
    %v2760 = vunpack.c.l.b16 %v577
    %v2761 = vunpack.c.h.b16 %v577
    %v2762 = vunpack.c.l.b16 %v578
    %v2763 = vunpack.c.h.b16 %v578
    %v2764 = vunpack.c.l.b16 %v579
    %v2765 = vunpack.c.h.b16 %v579
    %v2766 = vunpack.c.l.b16 %v580
    %v2767 = vunpack.c.h.b16 %v580
    %v2768 = vunpack.c.l.b16 %v581
    %v2769 = vunpack.c.h.b16 %v581
    %v2770 = vunpack.c.l.b16 %v582
    %v2771 = vunpack.c.h.b16 %v582
    %v2772 = vunpack.c.l.b16 %v583
    %v2773 = vunpack.c.h.b16 %v583
    %v2774 = vunpack.c.l.b16 %v584
    %v2775 = vunpack.c.h.b16 %v584
    %v2776 = vunpack.c.l.b16 %v585
    %v2777 = vunpack.c.h.b16 %v585
    %v2778 = vunpack.c.l.b16 %v586
    %v2779 = vunpack.c.h.b16 %v586
    %v2780 = vunpack.c.l.b16 %v587
    %v2781 = vunpack.c.h.b16 %v587
    %v2782 = vunpack.c.l.b16 %v588
    %v2783 = vunpack.c.h.b16 %v588
    %v2784 = vunpack.c.l.b16 %v589
    %v2785 = vunpack.c.h.b16 %v589
    %v2786 = vunpack.c.l.b16 %v590
    %v2787 = vunpack.c.h.b16 %v590
    %v2788 = vunpack.c.l.b16 %v591
    %v2789 = vunpack.c.h.b16 %v591
    %v2790 = vunpack.c.l.b16 %v592
    %v2791 = vunpack.c.h.b16 %v592
    %v2792 = vunpack.c.l.b16 %v593
    %v2793 = vunpack.c.h.b16 %v593
    %v2794 = vunpack.c.l.b16 %v594
    %v2795 = vunpack.c.h.b16 %v594
    %v2796 = vunpack.c.l.b16 %v595
    %v2797 = vunpack.c.h.b16 %v595
    %v2798 = vunpack.c.l.b16 %v596
    %v2799 = vunpack.c.h.b16 %v596
    %v2800 = vunpack.c.l.b16 %v597
    %v2801 = vunpack.c.h.b16 %v597
    %v2802 = vunpack.c.l.b16 %v598
    %v2803 = vunpack.c.h.b16 %v598
    %v2804 = vunpack.c.l.b16 %v599
    %v2805 = vunpack.c.h.b16 %v599
    %v2806 = vunpack.c.l.b16 %v600
    %v2807 = vunpack.c.h.b16 %v600
    %v2808 = vunpack.c.l.b16 %v601
    %v2809 = vunpack.c.h.b16 %v601
    %v2810 = vunpack.c.l.b16 %v602
    %v2811 = vunpack.c.h.b16 %v602
    %v2812 = vunpack.c.l.b16 %v603
    %v2813 = vunpack.c.h.b16 %v603
    %v2814 = vunpack.c.l.b16 %v604
    %v2815 = vunpack.c.h.b16 %v604
    %v2816 = vunpack.c.l.b16 %v605
    %v2817 = vunpack.c.h.b16 %v605
    %v2818 = vunpack.c.l.b16 %v606
    %v2819 = vunpack.c.h.b16 %v606
    %v2820 = vunpack.c.l.b16 %v607
    %v2821 = vunpack.c.h.b16 %v607
    %v2822 = vunpack.c.l.b16 %v608
    %v2823 = vunpack.c.h.b16 %v608
    %v2824 = vunpack.c.l.b16 %v609
    %v2825 = vunpack.c.h.b16 %v609
    %v2826 = vunpack.c.l.b16 %v610
    %v2827 = vunpack.c.h.b16 %v610
    %v2828 = vunpack.c.l.b16 %v611
    %v2829 = vunpack.c.h.b16 %v611
    %v2830 = vunpack.c.l.b16 %v612
    %v2831 = vunpack.c.h.b16 %v612
    %v2832 = vunpack.c.l.b16 %v613
    %v2833 = vunpack.c.h.b16 %v613
    %v2834 = vunpack.c.l.b16 %v614
    %v2835 = vunpack.c.h.b16 %v614
    %v2836 = vunpack.c.l.b16 %v615
    %v2837 = vunpack.c.h.b16 %v615
    %v2838 = vunpack.c.l.b16 %v616
    %v2839 = vunpack.c.h.b16 %v616
    %v2840 = vunpack.c.l.b16 %v617
    %v2841 = vunpack.c.h.b16 %v617
    %v2842 = vunpack.c.l.b16 %v618
    %v2843 = vunpack.c.h.b16 %v618
    %v2844 = vunpack.c.l.b16 %v619
    %v2845 = vunpack.c.h.b16 %v619
    %v2846 = vunpack.c.l.b16 %v620
    %v2847 = vunpack.c.h.b16 %v620
    %v2848 = vunpack.c.l.b16 %v621
    %v2849 = vunpack.c.h.b16 %v621
    %v2850 = vunpack.c.l.b16 %v622
    %v2851 = vunpack.c.h.b16 %v622
    %v2852 = vunpack.c.l.b16 %v623
    %v2853 = vunpack.c.h.b16 %v623
    %v2854 = vunpack.c.l.b16 %v624
    %v2855 = vunpack.c.h.b16 %v624
    %v2856 = vunpack.c.l.b16 %v625
    %v2857 = vunpack.c.h.b16 %v625
    %v2858 = vunpack.c.l.b16 %v626
    %v2859 = vunpack.c.h.b16 %v626
    %v2860 = vunpack.c.l.b16 %v627
    %v2861 = vunpack.c.h.b16 %v627
    %v2862 = vunpack.c.l.b16 %v628
    %v2863 = vunpack.c.h.b16 %v628
    %v2864 = vunpack.c.l.b16 %v629
    %v2865 = vunpack.c.h.b16 %v629
    %v2866 = vunpack.c.l.b16 %v630
    %v2867 = vunpack.c.h.b16 %v630
    %v2868 = vunpack.c.l.b16 %v631
    %v2869 = vunpack.c.h.b16 %v631
    %v2870 = vunpack.c.l.b16 %v632
    %v2871 = vunpack.c.h.b16 %v632
    %v2872 = vunpack.c.l.b16 %v633
    %v2873 = vunpack.c.h.b16 %v633
    %v2874 = vunpack.c.l.b16 %v634
    %v2875 = vunpack.c.h.b16 %v634
    %v2876 = vunpack.c.l.b16 %v635
    %v2877 = vunpack.c.h.b16 %v635
    %v2878 = vunpack.c.l.b16 %v636
    %v2879 = vunpack.c.h.b16 %v636
    %v2880 = vunpack.c.l.b16 %v637
    %v2881 = vunpack.c.h.b16 %v637
    %v2882 = vunpack.c.l.b16 %v638
    %v2883 = vunpack.c.h.b16 %v638
    %v2884 = vunpack.c.l.b16 %v639
    %v2885 = vunpack.c.h.b16 %v639
    %v2886 = vunpack.c.l.b16 %v640
    %v2887 = vunpack.c.h.b16 %v640
    %v2888 = vunpack.c.l.b16 %v641
    %v2889 = vunpack.c.h.b16 %v641
    %v2890 = vunpack.c.l.b16 %v642
    %v2891 = vunpack.c.h.b16 %v642
    %v2892 = vunpack.c.l.b16 %v643
    %v2893 = vunpack.c.h.b16 %v643
    %v2894 = vunpack.c.l.b16 %v644
    %v2895 = vunpack.c.h.b16 %v644
    %v2896 = vunpack.c.l.b16 %v645
    %v2897 = vunpack.c.h.b16 %v645
    %v2898 = vunpack.c.l.b16 %v646
    %v2899 = vunpack.c.h.b16 %v646
    %v2900 = vunpack.c.l.b16 %v647
    %v2901 = vunpack.c.h.b16 %v647
    %v2902 = vunpack.c.l.b16 %v648
    %v2903 = vunpack.c.h.b16 %v648
    %v2904 = vunpack.c.l.b16 %v649
    %v2905 = vunpack.c.h.b16 %v649
    %v2906 = vunpack.c.l.b16 %v650
    %v2907 = vunpack.c.h.b16 %v650
    %v2908 = vunpack.c.l.b16 %v651
    %v2909 = vunpack.c.h.b16 %v651
    %v2910 = vunpack.c.l.b16 %v652
    %v2911 = vunpack.c.h.b16 %v652
    %v2912 = vunpack.c.l.b16 %v653
    %v2913 = vunpack.c.h.b16 %v653
    %v2914 = vunpack.c.l.b16 %v654
    %v2915 = vunpack.c.h.b16 %v654
    %v2916 = vunpack.c.l.b16 %v655
    %v2917 = vunpack.c.h.b16 %v655
    %v2918 = vunpack.c.l.b16 %v656
    %v2919 = vunpack.c.h.b16 %v656
    %v2920 = vunpack.c.l.b16 %v657
    %v2921 = vunpack.c.h.b16 %v657
    %v2922 = vunpack.c.l.b16 %v658
    %v2923 = vunpack.c.h.b16 %v658
    %v2924 = vunpack.c.l.b16 %v659
    %v2925 = vunpack.c.h.b16 %v659
    %v2926 = vunpack.c.l.b16 %v660
    %v2927 = vunpack.c.h.b16 %v660
    %v2928 = vunpack.c.l.b16 %v661
    %v2929 = vunpack.c.h.b16 %v661
    %v2930 = vunpack.c.l.b16 %v662
    %v2931 = vunpack.c.h.b16 %v662
    %v2932 = vunpack.c.l.b16 %v663
    %v2933 = vunpack.c.h.b16 %v663
    %v2934 = vunpack.c.l.b16 %v664
    %v2935 = vunpack.c.h.b16 %v664
    %v2936 = vunpack.c.l.b16 %v665
    %v2937 = vunpack.c.h.b16 %v665
    %v2938 = vunpack.c.l.b16 %v666
    %v2939 = vunpack.c.h.b16 %v666
    %v2940 = vunpack.c.l.b16 %v667
    %v2941 = vunpack.c.h.b16 %v667
    %v2942 = vunpack.c.l.b16 %v668
    %v2943 = vunpack.c.h.b16 %v668
    %v2944 = vunpack.c.l.b16 %v669
    %v2945 = vunpack.c.h.b16 %v669
    %v2946 = vunpack.c.l.b16 %v670
    %v2947 = vunpack.c.h.b16 %v670
    %v2948 = vunpack.c.l.b16 %v671
    %v2949 = vunpack.c.h.b16 %v671
    %v2950 = vunpack.c.l.b16 %v672
    %v2951 = vunpack.c.h.b16 %v672
    %v2952 = vunpack.c.l.b16 %v673
    %v2953 = vunpack.c.h.b16 %v673
    %v2954 = vunpack.c.l.b16 %v674
    %v2955 = vunpack.c.h.b16 %v674
    %v2956 = vunpack.c.l.b16 %v675
    %v2957 = vunpack.c.h.b16 %v675
    %v2958 = vunpack.c.l.b16 %v676
    %v2959 = vunpack.c.h.b16 %v676
    %v2960 = vunpack.c.l.b16 %v677
    %v2961 = vunpack.c.h.b16 %v677
    %v2962 = vunpack.c.l.b16 %v678
    %v2963 = vunpack.c.h.b16 %v678
    %v2964 = vunpack.c.l.b16 %v679
    %v2965 = vunpack.c.h.b16 %v679
    %v2966 = vunpack.c.l.b16 %v680
    %v2967 = vunpack.c.h.b16 %v680
    %v2968 = vunpack.c.l.b16 %v681
    %v2969 = vunpack.c.h.b16 %v681
    %v2970 = vunpack.c.l.b16 %v682
    %v2971 = vunpack.c.h.b16 %v682
    %v2972 = vunpack.c.l.b16 %v683
    %v2973 = vunpack.c.h.b16 %v683
    %v2974 = vunpack.c.l.b16 %v684
    %v2975 = vunpack.c.h.b16 %v684
    %v2976 = vunpack.c.l.b16 %v685
    %v2977 = vunpack.c.h.b16 %v685
    %v2978 = vunpack.c.l.b16 %v686
    %v2979 = vunpack.c.h.b16 %v686
    %v2980 = vunpack.c.l.b16 %v687
    %v2981 = vunpack.c.h.b16 %v687
    %v2982 = vunpack.c.l.b16 %v688
    %v2983 = vunpack.c.h.b16 %v688
    %v2984 = vunpack.c.l.b16 %v689
    %v2985 = vunpack.c.h.b16 %v689
    %v2986 = vunpack.c.l.b16 %v690
    %v2987 = vunpack.c.h.b16 %v690
    %v2988 = vunpack.c.l.b16 %v691
    %v2989 = vunpack.c.h.b16 %v691
    %v2990 = vunpack.c.l.b16 %v692
    %v2991 = vunpack.c.h.b16 %v692
    %v2992 = vunpack.c.l.b16 %v693
    %v2993 = vunpack.c.h.b16 %v693
    %v2994 = vunpack.c.l.b16 %v694
    %v2995 = vunpack.c.h.b16 %v694
    %v2996 = vunpack.c.l.b16 %v695
    %v2997 = vunpack.c.h.b16 %v695
    %v2998 = vunpack.c.l.b16 %v696
    %v2999 = vunpack.c.h.b16 %v696
    %v3000 = vunpack.c.l.b16 %v697
    %v3001 = vunpack.c.h.b16 %v697
    %v3002 = vunpack.c.l.b16 %v698
    %v3003 = vunpack.c.h.b16 %v698
    %v3004 = vunpack.c.l.b16 %v699
    %v3005 = vunpack.c.h.b16 %v699
    %v3006 = vunpack.c.l.b16 %v700
    %v3007 = vunpack.c.h.b16 %v700
    %v3008 = vunpack.c.l.b16 %v701
    %v3009 = vunpack.c.h.b16 %v701
    %v3010 = vunpack.c.l.b16 %v702
    %v3011 = vunpack.c.h.b16 %v702
    %v3012 = vunpack.c.l.b16 %v703
    %v3013 = vunpack.c.h.b16 %v703
    %v3014 = vunpack.c.l.b16 %v704
    %v3015 = vunpack.c.h.b16 %v704
    %v3016 = vunpack.c.l.b16 %v705
    %v3017 = vunpack.c.h.b16 %v705
    %v3018 = vunpack.c.l.b16 %v706
    %v3019 = vunpack.c.h.b16 %v706
    %v3020 = vunpack.c.l.b16 %v707
    %v3021 = vunpack.c.h.b16 %v707
    %v3022 = vunpack.c.l.b16 %v708
    %v3023 = vunpack.c.h.b16 %v708
    %v3024 = vunpack.c.l.b16 %v709
    %v3025 = vunpack.c.h.b16 %v709
    %v3026 = vunpack.c.l.b16 %v710
    %v3027 = vunpack.c.h.b16 %v710
    %v3028 = vunpack.c.l.b16 %v711
    %v3029 = vunpack.c.h.b16 %v711
    %v3030 = vunpack.c.l.b16 %v712
    %v3031 = vunpack.c.h.b16 %v712
    %v3032 = vunpack.c.l.b16 %v713
    %v3033 = vunpack.c.h.b16 %v713
    %v3034 = vunpack.c.l.b16 %v714
    %v3035 = vunpack.c.h.b16 %v714
    %v3036 = vunpack.c.l.b16 %v715
    %v3037 = vunpack.c.h.b16 %v715
    %v3038 = vunpack.c.l.b16 %v716
    %v3039 = vunpack.c.h.b16 %v716
    %v3040 = vunpack.c.l.b16 %v717
    %v3041 = vunpack.c.h.b16 %v717
    %v3042 = vunpack.c.l.b16 %v718
    %v3043 = vunpack.c.h.b16 %v718
    %v3044 = vunpack.c.l.b16 %v719
    %v3045 = vunpack.c.h.b16 %v719
    %v3046 = vunpack.c.l.b16 %v720
    %v3047 = vunpack.c.h.b16 %v720
    %v3048 = vunpack.c.l.b16 %v721
    %v3049 = vunpack.c.h.b16 %v721
    %v3050 = vunpack.c.l.b16 %v722
    %v3051 = vunpack.c.h.b16 %v722
    %v3052 = vunpack.c.l.b16 %v723
    %v3053 = vunpack.c.h.b16 %v723
    %v3054 = vunpack.c.l.b16 %v724
    %v3055 = vunpack.c.h.b16 %v724
    %v3056 = vunpack.c.l.b16 %v725
    %v3057 = vunpack.c.h.b16 %v725
    %v3058 = vunpack.c.l.b16 %v726
    %v3059 = vunpack.c.h.b16 %v726
    %v3060 = vunpack.c.l.b16 %v727
    %v3061 = vunpack.c.h.b16 %v727
    %v3062 = vunpack.c.l.b16 %v728
    %v3063 = vunpack.c.h.b16 %v728
    %v3064 = vunpack.c.l.b16 %v729
    %v3065 = vunpack.c.h.b16 %v729
    %v3066 = vunpack.c.l.b16 %v730
    %v3067 = vunpack.c.h.b16 %v730
    %v3068 = vunpack.c.l.b16 %v731
    %v3069 = vunpack.c.h.b16 %v731
    %v3070 = vunpack.c.l.b16 %v732
    %v3071 = vunpack.c.h.b16 %v732
    %v3072 = vunpack.c.l.b16 %v733
    %v3073 = vunpack.c.h.b16 %v733
    %v3074 = vunpack.c.l.b16 %v734
    %v3075 = vunpack.c.h.b16 %v734
    %v3076 = vunpack.c.l.b16 %v735
    %v3077 = vunpack.c.h.b16 %v735
    %v3078 = vunpack.c.l.b16 %v736
    %v3079 = vunpack.c.h.b16 %v736
    %v3080 = vunpack.c.l.b16 %v737
    %v3081 = vunpack.c.h.b16 %v737
    %v3082 = vunpack.c.l.b16 %v738
    %v3083 = vunpack.c.h.b16 %v738
    %v3084 = vunpack.c.l.b16 %v739
    %v3085 = vunpack.c.h.b16 %v739
    %v3086 = vunpack.c.l.b16 %v740
    %v3087 = vunpack.c.h.b16 %v740
    %v3088 = vunpack.c.l.b16 %v741
    %v3089 = vunpack.c.h.b16 %v741
    %v3090 = vunpack.c.l.b16 %v742
    %v3091 = vunpack.c.h.b16 %v742
    %v3092 = vunpack.c.l.b16 %v743
    %v3093 = vunpack.c.h.b16 %v743
    %v3094 = vunpack.c.l.b16 %v744
    %v3095 = vunpack.c.h.b16 %v744
    %v3096 = vunpack.c.l.b16 %v745
    %v3097 = vunpack.c.h.b16 %v745
    %v3098 = vunpack.c.l.b16 %v746
    %v3099 = vunpack.c.h.b16 %v746
    %v3100 = vunpack.c.l.b16 %v747
    %v3101 = vunpack.c.h.b16 %v747
    %v3102 = vunpack.c.l.b16 %v748
    %v3103 = vunpack.c.h.b16 %v748
    %v3104 = vunpack.c.l.b16 %v749
    %v3105 = vunpack.c.h.b16 %v749
    %v3106 = vunpack.c.l.b16 %v750
    %v3107 = vunpack.c.h.b16 %v750
    %v3108 = vunpack.c.l.b16 %v751
    %v3109 = vunpack.c.h.b16 %v751
    %v3110 = vunpack.c.l.b16 %v752
    %v3111 = vunpack.c.h.b16 %v752
    %v3112 = vunpack.c.l.b16 %v753
    %v3113 = vunpack.c.h.b16 %v753
    %v3114 = vunpack.c.l.b16 %v754
    %v3115 = vunpack.c.h.b16 %v754
    %v3116 = vunpack.c.l.b16 %v755
    %v3117 = vunpack.c.h.b16 %v755
    %v3118 = vunpack.c.l.b16 %v756
    %v3119 = vunpack.c.h.b16 %v756
    %v3120 = vunpack.c.l.b16 %v757
    %v3121 = vunpack.c.h.b16 %v757
    %v3122 = vunpack.c.l.b16 %v758
    %v3123 = vunpack.c.h.b16 %v758
    %v3124 = vunpack.c.l.b16 %v759
    %v3125 = vunpack.c.h.b16 %v759
    %v3126 = vunpack.c.l.b16 %v760
    %v3127 = vunpack.c.h.b16 %v760
    %v3128 = vunpack.c.l.b16 %v761
    %v3129 = vunpack.c.h.b16 %v761
    %v3130 = vunpack.c.l.b16 %v762
    %v3131 = vunpack.c.h.b16 %v762
    %v3132 = vunpack.c.l.b16 %v763
    %v3133 = vunpack.c.h.b16 %v763
    %v3134 = vunpack.c.l.b16 %v764
    %v3135 = vunpack.c.h.b16 %v764
    %v3136 = vunpack.c.l.b16 %v765
    %v3137 = vunpack.c.h.b16 %v765
    %v3138 = vunpack.c.l.b16 %v766
    %v3139 = vunpack.c.h.b16 %v766
    %v3140 = vunpack.c.l.b16 %v767
    %v3141 = vunpack.c.h.b16 %v767
    %v3142 = vunpack.c.l.b16 %v768
    %v3143 = vunpack.c.h.b16 %v768
    %v3144 = vunpack.c.l.b16 %v769
    %v3145 = vunpack.c.h.b16 %v769
    %v3146 = vunpack.c.l.b16 %v770
    %v3147 = vunpack.c.h.b16 %v770
    %v3148 = vunpack.c.l.b16 %v771
    %v3149 = vunpack.c.h.b16 %v771
    %v3150 = vunpack.c.l.b16 %v772
    %v3151 = vunpack.c.h.b16 %v772
    %v3152 = vunpack.c.l.b16 %v773
    %v3153 = vunpack.c.h.b16 %v773
    %v3154 = vunpack.c.l.b16 %v774
    %v3155 = vunpack.c.h.b16 %v774
    %v3156 = vunpack.c.l.b16 %v775
    %v3157 = vunpack.c.h.b16 %v775
    %v3158 = vunpack.c.l.b16 %v776
    %v3159 = vunpack.c.h.b16 %v776
    %v3160 = vunpack.c.l.b16 %v777
    %v3161 = vunpack.c.h.b16 %v777
    %v3162 = vunpack.c.l.b16 %v778
    %v3163 = vunpack.c.h.b16 %v778
    %v3164 = vunpack.c.l.b16 %v779
    %v3165 = vunpack.c.h.b16 %v779
    %v3166 = vunpack.c.l.b16 %v780
    %v3167 = vunpack.c.h.b16 %v780
    %v3168 = vunpack.c.l.b16 %v781
    %v3169 = vunpack.c.h.b16 %v781
    %v3170 = vunpack.c.l.b16 %v782
    %v3171 = vunpack.c.h.b16 %v782
    %v3172 = vunpack.c.l.b16 %v783
    %v3173 = vunpack.c.h.b16 %v783
    %v3174 = vunpack.c.l.b16 %v784
    %v3175 = vunpack.c.h.b16 %v784
    %v3176 = vunpack.c.l.b16 %v785
    %v3177 = vunpack.c.h.b16 %v785
    %v3178 = vunpack.c.l.b16 %v786
    %v3179 = vunpack.c.h.b16 %v786
    %v3180 = vunpack.c.l.b16 %v787
    %v3181 = vunpack.c.h.b16 %v787
    %v3182 = vunpack.c.l.b16 %v788
    %v3183 = vunpack.c.h.b16 %v788
    %v3184 = vunpack.c.l.b16 %v789
    %v3185 = vunpack.c.h.b16 %v789
    %v3186 = vunpack.c.l.b16 %v790
    %v3187 = vunpack.c.h.b16 %v790
    %v3188 = vunpack.c.l.b16 %v791
    %v3189 = vunpack.c.h.b16 %v791
    %v3190 = vunpack.c.l.b16 %v792
    %v3191 = vunpack.c.h.b16 %v792
    %v3192 = vunpack.c.l.b16 %v793
    %v3193 = vunpack.c.h.b16 %v793
    %v3194 = vunpack.c.l.b16 %v794
    %v3195 = vunpack.c.h.b16 %v794
    %v3196 = vunpack.c.l.b16 %v795
    %v3197 = vunpack.c.h.b16 %v795
    %v3198 = vunpack.c.l.b16 %v796
    %v3199 = vunpack.c.h.b16 %v796
    %v3200 = vunpack.c.l.b16 %v797
    %v3201 = vunpack.c.h.b16 %v797
    %v3202 = vunpack.c.l.b16 %v798
    %v3203 = vunpack.c.h.b16 %v798
    %v3204 = vunpack.c.l.b16 %v799
    %v3205 = vunpack.c.h.b16 %v799
    %v3206 = vunpack.c.l.b16 %v800
    %v3207 = vunpack.c.h.b16 %v800
    %v3208 = vunpack.c.l.b16 %v801
    %v3209 = vunpack.c.h.b16 %v801
    %v3210 = vunpack.c.l.b16 %v802
    %v3211 = vunpack.c.h.b16 %v802
    %v3212 = vunpack.c.l.b16 %v803
    %v3213 = vunpack.c.h.b16 %v803
    %v3214 = vunpack.c.l.b16 %v804
    %v3215 = vunpack.c.h.b16 %v804
    %v3216 = vunpack.c.l.b16 %v805
    %v3217 = vunpack.c.h.b16 %v805
    %v3218 = vunpack.c.l.b16 %v806
    %v3219 = vunpack.c.h.b16 %v806
    %v3220 = vunpack.c.l.b16 %v807
    %v3221 = vunpack.c.h.b16 %v807
    %v3222 = vunpack.c.l.b16 %v808
    %v3223 = vunpack.c.h.b16 %v808
    %v3224 = vunpack.c.l.b16 %v809
    %v3225 = vunpack.c.h.b16 %v809
    %v3226 = vunpack.c.l.b16 %v810
    %v3227 = vunpack.c.h.b16 %v810
    %v3228 = vunpack.c.l.b16 %v811
    %v3229 = vunpack.c.h.b16 %v811
    %v3230 = vunpack.c.l.b16 %v812
    %v3231 = vunpack.c.h.b16 %v812
    %v3232 = vpack.c.b16 %v1668, %v1664
    %v3233 = vpack.c.b16 %v1669, %v1665
    %v3234 = vpack.c.b16 %v1670, %v1666
    %v3235 = vpack.c.b16 %v1671, %v1667
    %v3236 = vpack.c.b16 %v1676, %v1672
    %v3237 = vpack.c.b16 %v1677, %v1673
    %v3238 = vpack.c.b16 %v1678, %v1674
    %v3239 = vpack.c.b16 %v1679, %v1675
    %v3240 = vpack.c.b16 %v1684, %v1680
    %v3241 = vpack.c.b16 %v1685, %v1681
    %v3242 = vpack.c.b16 %v1686, %v1682
    %v3243 = vpack.c.b16 %v1687, %v1683
    %v3244 = vpack.c.b16 %v1692, %v1688
    %v3245 = vpack.c.b16 %v1693, %v1689
    %v3246 = vpack.c.b16 %v1694, %v1690
    %v3247 = vpack.c.b16 %v1695, %v1691
    %v3248 = vpack.c.b16 %v1700, %v1696
    %v3249 = vpack.c.b16 %v1701, %v1697
    %v3250 = vpack.c.b16 %v1702, %v1698
    %v3251 = vpack.c.b16 %v1703, %v1699
    %v3252 = vpack.c.b16 %v1708, %v1704
    %v3253 = vpack.c.b16 %v1709, %v1705
    %v3254 = vpack.c.b16 %v1710, %v1706
    %v3255 = vpack.c.b16 %v1711, %v1707
    %v3256 = vpack.c.b16 %v1716, %v1712
    %v3257 = vpack.c.b16 %v1717, %v1713
    %v3258 = vpack.c.b16 %v1718, %v1714
    %v3259 = vpack.c.b16 %v1719, %v1715
    %v3260 = vpack.c.b16 %v1724, %v1720
    %v3261 = vpack.c.b16 %v1725, %v1721
    %v3262 = vpack.c.b16 %v1726, %v1722
    %v3263 = vpack.c.b16 %v1727, %v1723
    %v3264 = vpack.c.b16 %v1732, %v1728
    %v3265 = vpack.c.b16 %v1733, %v1729
    %v3266 = vpack.c.b16 %v1734, %v1730
    %v3267 = vpack.c.b16 %v1735, %v1731
    %v3268 = vpack.c.b16 %v1740, %v1736
    %v3269 = vpack.c.b16 %v1741, %v1737
    %v3270 = vpack.c.b16 %v1742, %v1738
    %v3271 = vpack.c.b16 %v1743, %v1739
    %v3272 = vpack.c.b16 %v1748, %v1744
    %v3273 = vpack.c.b16 %v1749, %v1745
    %v3274 = vpack.c.b16 %v1750, %v1746
    %v3275 = vpack.c.b16 %v1751, %v1747
    %v3276 = vpack.c.b16 %v1756, %v1752
    %v3277 = vpack.c.b16 %v1757, %v1753
    %v3278 = vpack.c.b16 %v1758, %v1754
    %v3279 = vpack.c.b16 %v1759, %v1755
    %v3280 = vpack.c.b16 %v1764, %v1760
    %v3281 = vpack.c.b16 %v1765, %v1761
    %v3282 = vpack.c.b16 %v1766, %v1762
    %v3283 = vpack.c.b16 %v1767, %v1763
    %v3284 = vpack.c.b16 %v1772, %v1768
    %v3285 = vpack.c.b16 %v1773, %v1769
    %v3286 = vpack.c.b16 %v1774, %v1770
    %v3287 = vpack.c.b16 %v1775, %v1771
    %v3288 = vpack.c.b16 %v1780, %v1776
    %v3289 = vpack.c.b16 %v1781, %v1777
    %v3290 = vpack.c.b16 %v1782, %v1778
    %v3291 = vpack.c.b16 %v1783, %v1779
    %v3292 = vpack.c.b16 %v1788, %v1784
    %v3293 = vpack.c.b16 %v1789, %v1785
    %v3294 = vpack.c.b16 %v1790, %v1786
    %v3295 = vpack.c.b16 %v1791, %v1787
    %v3296 = vpack.c.b16 %v1796, %v1792
    %v3297 = vpack.c.b16 %v1797, %v1793
    %v3298 = vpack.c.b16 %v1798, %v1794
    %v3299 = vpack.c.b16 %v1799, %v1795
    %v3300 = vpack.c.b16 %v1804, %v1800
    %v3301 = vpack.c.b16 %v1805, %v1801
    %v3302 = vpack.c.b16 %v1806, %v1802
    %v3303 = vpack.c.b16 %v1807, %v1803
    %v3304 = vpack.c.b16 %v1812, %v1808
    %v3305 = vpack.c.b16 %v1813, %v1809
    %v3306 = vpack.c.b16 %v1814, %v1810
    %v3307 = vpack.c.b16 %v1815, %v1811
    %v3308 = vpack.c.b16 %v1820, %v1816
    %v3309 = vpack.c.b16 %v1821, %v1817
    %v3310 = vpack.c.b16 %v1822, %v1818
    %v3311 = vpack.c.b16 %v1823, %v1819
    %v3312 = vpack.c.b16 %v1828, %v1824
    %v3313 = vpack.c.b16 %v1829, %v1825
    %v3314 = vpack.c.b16 %v1830, %v1826
    %v3315 = vpack.c.b16 %v1831, %v1827
    %v3316 = vpack.c.b16 %v1836, %v1832
    %v3317 = vpack.c.b16 %v1837, %v1833
    %v3318 = vpack.c.b16 %v1838, %v1834
    %v3319 = vpack.c.b16 %v1839, %v1835
    %v3320 = vpack.c.b16 %v1844, %v1840
    %v3321 = vpack.c.b16 %v1845, %v1841
    %v3322 = vpack.c.b16 %v1846, %v1842
    %v3323 = vpack.c.b16 %v1847, %v1843
    %v3324 = vpack.c.b16 %v1852, %v1848
    %v3325 = vpack.c.b16 %v1853, %v1849
    %v3326 = vpack.c.b16 %v1854, %v1850
    %v3327 = vpack.c.b16 %v1855, %v1851
    %v3328 = vpack.c.b16 %v1860, %v1856
    %v3329 = vpack.c.b16 %v1861, %v1857
    %v3330 = vpack.c.b16 %v1862, %v1858
    %v3331 = vpack.c.b16 %v1863, %v1859
    %v3332 = vpack.c.b16 %v1868, %v1864
    %v3333 = vpack.c.b16 %v1869, %v1865
    %v3334 = vpack.c.b16 %v1870, %v1866
    %v3335 = vpack.c.b16 %v1871, %v1867
    %v3336 = vpack.c.b16 %v1876, %v1872
    %v3337 = vpack.c.b16 %v1877, %v1873
    %v3338 = vpack.c.b16 %v1878, %v1874
    %v3339 = vpack.c.b16 %v1879, %v1875
    %v3340 = vpack.c.b16 %v1884, %v1880
    %v3341 = vpack.c.b16 %v1885, %v1881
    %v3342 = vpack.c.b16 %v1886, %v1882
    %v3343 = vpack.c.b16 %v1887, %v1883
    %v3344 = vpack.c.b16 %v1892, %v1888
    %v3345 = vpack.c.b16 %v1893, %v1889
    %v3346 = vpack.c.b16 %v1894, %v1890
    %v3347 = vpack.c.b16 %v1895, %v1891
    %v3348 = vpack.c.b16 %v1900, %v1896
    %v3349 = vpack.c.b16 %v1901, %v1897
    %v3350 = vpack.c.b16 %v1902, %v1898
    %v3351 = vpack.c.b16 %v1903, %v1899
    %v3352 = vpack.c.b16 %v1908, %v1904
    %v3353 = vpack.c.b16 %v1909, %v1905
    %v3354 = vpack.c.b16 %v1910, %v1906
    %v3355 = vpack.c.b16 %v1911, %v1907
    %v3356 = vpack.c.b16 %v1916, %v1912
    %v3357 = vpack.c.b16 %v1917, %v1913
    %v3358 = vpack.c.b16 %v1918, %v1914
    %v3359 = vpack.c.b16 %v1919, %v1915
    %v3360 = vpack.c.b16 %v1924, %v1920
    %v3361 = vpack.c.b16 %v1925, %v1921
    %v3362 = vpack.c.b16 %v1926, %v1922
    %v3363 = vpack.c.b16 %v1927, %v1923
    %v3364 = vpack.c.b16 %v1932, %v1928
    %v3365 = vpack.c.b16 %v1933, %v1929
    %v3366 = vpack.c.b16 %v1934, %v1930
    %v3367 = vpack.c.b16 %v1935, %v1931
    %v3368 = vpack.c.b16 %v1940, %v1936
    %v3369 = vpack.c.b16 %v1941, %v1937
    %v3370 = vpack.c.b16 %v1942, %v1938
    %v3371 = vpack.c.b16 %v1943, %v1939
    %v3372 = vpack.c.b16 %v1948, %v1944
    %v3373 = vpack.c.b16 %v1949, %v1945
    %v3374 = vpack.c.b16 %v1950, %v1946
    %v3375 = vpack.c.b16 %v1951, %v1947
    %v3376 = vpack.c.b16 %v1956, %v1952
    %v3377 = vpack.c.b16 %v1957, %v1953
    %v3378 = vpack.c.b16 %v1958, %v1954
    %v3379 = vpack.c.b16 %v1959, %v1955
    %v3380 = vpack.c.b16 %v1964, %v1960
    %v3381 = vpack.c.b16 %v1965, %v1961
    %v3382 = vpack.c.b16 %v1966, %v1962
    %v3383 = vpack.c.b16 %v1967, %v1963
    %v3384 = vpack.c.b16 %v1972, %v1968
    %v3385 = vpack.c.b16 %v1973, %v1969
    %v3386 = vpack.c.b16 %v1974, %v1970
    %v3387 = vpack.c.b16 %v1975, %v1971
    %v3388 = vpack.c.b16 %v1980, %v1976
    %v3389 = vpack.c.b16 %v1981, %v1977
    %v3390 = vpack.c.b16 %v1982, %v1978
    %v3391 = vpack.c.b16 %v1983, %v1979
    %v3392 = vpack.c.b16 %v1988, %v1984
    %v3393 = vpack.c.b16 %v1989, %v1985
    %v3394 = vpack.c.b16 %v1990, %v1986
    %v3395 = vpack.c.b16 %v1991, %v1987
    %v3396 = vpack.c.b16 %v1996, %v1992
    %v3397 = vpack.c.b16 %v1997, %v1993
    %v3398 = vpack.c.b16 %v1998, %v1994
    %v3399 = vpack.c.b16 %v1999, %v1995
    %v3400 = vpack.c.b16 %v2004, %v2000
    %v3401 = vpack.c.b16 %v2005, %v2001
    %v3402 = vpack.c.b16 %v2006, %v2002
    %v3403 = vpack.c.b16 %v2007, %v2003
    %v3404 = vpack.c.b16 %v2012, %v2008
    %v3405 = vpack.c.b16 %v2013, %v2009
    %v3406 = vpack.c.b16 %v2014, %v2010
    %v3407 = vpack.c.b16 %v2015, %v2011
    %v3408 = vpack.c.b16 %v2020, %v2016
    %v3409 = vpack.c.b16 %v2021, %v2017
    %v3410 = vpack.c.b16 %v2022, %v2018
    %v3411 = vpack.c.b16 %v2023, %v2019
    %v3412 = vpack.c.b16 %v2028, %v2024
    %v3413 = vpack.c.b16 %v2029, %v2025
    %v3414 = vpack.c.b16 %v2030, %v2026
    %v3415 = vpack.c.b16 %v2031, %v2027
    %v3416 = vpack.c.b16 %v2036, %v2032
    %v3417 = vpack.c.b16 %v2037, %v2033
    %v3418 = vpack.c.b16 %v2038, %v2034
    %v3419 = vpack.c.b16 %v2039, %v2035
    %v3420 = vpack.c.b16 %v2044, %v2040
    %v3421 = vpack.c.b16 %v2045, %v2041
    %v3422 = vpack.c.b16 %v2046, %v2042
    %v3423 = vpack.c.b16 %v2047, %v2043
    %v3424 = vpack.c.b16 %v2052, %v2048
    %v3425 = vpack.c.b16 %v2053, %v2049
    %v3426 = vpack.c.b16 %v2054, %v2050
    %v3427 = vpack.c.b16 %v2055, %v2051
    %v3428 = vpack.c.b16 %v2060, %v2056
    %v3429 = vpack.c.b16 %v2061, %v2057
    %v3430 = vpack.c.b16 %v2062, %v2058
    %v3431 = vpack.c.b16 %v2063, %v2059
    %v3432 = vpack.c.b16 %v2068, %v2064
    %v3433 = vpack.c.b16 %v2069, %v2065
    %v3434 = vpack.c.b16 %v2070, %v2066
    %v3435 = vpack.c.b16 %v2071, %v2067
    %v3436 = vpack.c.b16 %v2076, %v2072
    %v3437 = vpack.c.b16 %v2077, %v2073
    %v3438 = vpack.c.b16 %v2078, %v2074
    %v3439 = vpack.c.b16 %v2079, %v2075
    %v3440 = vpack.c.b16 %v2084, %v2080
    %v3441 = vpack.c.b16 %v2085, %v2081
    %v3442 = vpack.c.b16 %v2086, %v2082
    %v3443 = vpack.c.b16 %v2087, %v2083
    %v3444 = vpack.c.b16 %v2092, %v2088
    %v3445 = vpack.c.b16 %v2093, %v2089
    %v3446 = vpack.c.b16 %v2094, %v2090
    %v3447 = vpack.c.b16 %v2095, %v2091
    %v3448 = vpack.c.b16 %v2100, %v2096
    %v3449 = vpack.c.b16 %v2101, %v2097
    %v3450 = vpack.c.b16 %v2102, %v2098
    %v3451 = vpack.c.b16 %v2103, %v2099
    %v3452 = vpack.c.b16 %v2108, %v2104
    %v3453 = vpack.c.b16 %v2109, %v2105
    %v3454 = vpack.c.b16 %v2110, %v2106
    %v3455 = vpack.c.b16 %v2111, %v2107
    %v3456 = vpack.c.b16 %v2116, %v2112
    %v3457 = vpack.c.b16 %v2117, %v2113
    %v3458 = vpack.c.b16 %v2118, %v2114
    %v3459 = vpack.c.b16 %v2119, %v2115
    %v3460 = vpack.c.b16 %v2124, %v2120
    %v3461 = vpack.c.b16 %v2125, %v2121
    %v3462 = vpack.c.b16 %v2126, %v2122
    %v3463 = vpack.c.b16 %v2127, %v2123
    %v3464 = vpack.c.b16 %v2132, %v2128
    %v3465 = vpack.c.b16 %v2133, %v2129
    %v3466 = vpack.c.b16 %v2134, %v2130
    %v3467 = vpack.c.b16 %v2135, %v2131
    %v3468 = vpack.c.b16 %v2140, %v2136
    %v3469 = vpack.c.b16 %v2141, %v2137
    %v3470 = vpack.c.b16 %v2142, %v2138
    %v3471 = vpack.c.b16 %v2143, %v2139
    %v3472 = vpack.c.b16 %v2148, %v2144
    %v3473 = vpack.c.b16 %v2149, %v2145
    %v3474 = vpack.c.b16 %v2150, %v2146
    %v3475 = vpack.c.b16 %v2151, %v2147
    %v3476 = vpack.c.b16 %v2156, %v2152
    %v3477 = vpack.c.b16 %v2157, %v2153
    %v3478 = vpack.c.b16 %v2158, %v2154
    %v3479 = vpack.c.b16 %v2159, %v2155
    %v3480 = vpack.c.b16 %v2164, %v2160
    %v3481 = vpack.c.b16 %v2165, %v2161
    %v3482 = vpack.c.b16 %v2166, %v2162
    %v3483 = vpack.c.b16 %v2167, %v2163
    %v3484 = vpack.c.b16 %v2172, %v2168
    %v3485 = vpack.c.b16 %v2173, %v2169
    %v3486 = vpack.c.b16 %v2174, %v2170
    %v3487 = vpack.c.b16 %v2175, %v2171
    %v3488 = vpack.c.b16 %v2180, %v2176
    %v3489 = vpack.c.b16 %v2181, %v2177
    %v3490 = vpack.c.b16 %v2182, %v2178
    %v3491 = vpack.c.b16 %v2183, %v2179
    %v3492 = vpack.c.b16 %v2188, %v2184
    %v3493 = vpack.c.b16 %v2189, %v2185
    %v3494 = vpack.c.b16 %v2190, %v2186
    %v3495 = vpack.c.b16 %v2191, %v2187
    %v3496 = vpack.c.b16 %v2196, %v2192
    %v3497 = vpack.c.b16 %v2197, %v2193
    %v3498 = vpack.c.b16 %v2198, %v2194
    %v3499 = vpack.c.b16 %v2199, %v2195
    %v3500 = vpack.c.b16 %v2204, %v2200
    %v3501 = vpack.c.b16 %v2205, %v2201
    %v3502 = vpack.c.b16 %v2206, %v2202
    %v3503 = vpack.c.b16 %v2207, %v2203
    %v3504 = vpack.c.b16 %v2212, %v2208
    %v3505 = vpack.c.b16 %v2213, %v2209
    %v3506 = vpack.c.b16 %v2214, %v2210
    %v3507 = vpack.c.b16 %v2215, %v2211
    %v3508 = vpack.c.b16 %v2220, %v2216
    %v3509 = vpack.c.b16 %v2221, %v2217
    %v3510 = vpack.c.b16 %v2222, %v2218
    %v3511 = vpack.c.b16 %v2223, %v2219
    %v3512 = vpack.c.b16 %v2228, %v2224
    %v3513 = vpack.c.b16 %v2229, %v2225
    %v3514 = vpack.c.b16 %v2230, %v2226
    %v3515 = vpack.c.b16 %v2231, %v2227
    %v3516 = vpack.c.b16 %v2236, %v2232
    %v3517 = vpack.c.b16 %v2237, %v2233
    %v3518 = vpack.c.b16 %v2238, %v2234
    %v3519 = vpack.c.b16 %v2239, %v2235
    %v3520 = vpack.c.b16 %v2244, %v2240
    %v3521 = vpack.c.b16 %v2245, %v2241
    %v3522 = vpack.c.b16 %v2246, %v2242
    %v3523 = vpack.c.b16 %v2247, %v2243
    %v3524 = vpack.c.b16 %v2252, %v2248
    %v3525 = vpack.c.b16 %v2253, %v2249
    %v3526 = vpack.c.b16 %v2254, %v2250
    %v3527 = vpack.c.b16 %v2255, %v2251
    %v3528 = vpack.c.b16 %v2260, %v2256
    %v3529 = vpack.c.b16 %v2261, %v2257
    %v3530 = vpack.c.b16 %v2262, %v2258
    %v3531 = vpack.c.b16 %v2263, %v2259
    %v3532 = vpack.c.b16 %v2268, %v2264
    %v3533 = vpack.c.b16 %v2269, %v2265
    %v3534 = vpack.c.b16 %v2270, %v2266
    %v3535 = vpack.c.b16 %v2271, %v2267
    %v3536 = vpack.c.b16 %v2276, %v2272
    %v3537 = vpack.c.b16 %v2277, %v2273
    %v3538 = vpack.c.b16 %v2278, %v2274
    %v3539 = vpack.c.b16 %v2279, %v2275
    %v3540 = vpack.c.b16 %v2284, %v2280
    %v3541 = vpack.c.b16 %v2285, %v2281
    %v3542 = vpack.c.b16 %v2286, %v2282
    %v3543 = vpack.c.b16 %v2287, %v2283
    %v3544 = vpack.c.b16 %v2292, %v2288
    %v3545 = vpack.c.b16 %v2293, %v2289
    %v3546 = vpack.c.b16 %v2294, %v2290
    %v3547 = vpack.c.b16 %v2295, %v2291
    %v3548 = vpack.c.b16 %v2300, %v2296
    %v3549 = vpack.c.b16 %v2301, %v2297
    %v3550 = vpack.c.b16 %v2302, %v2298
    %v3551 = vpack.c.b16 %v2303, %v2299
    %v3552 = vpack.c.b16 %v2308, %v2304
    %v3553 = vpack.c.b16 %v2309, %v2305
    %v3554 = vpack.c.b16 %v2310, %v2306
    %v3555 = vpack.c.b16 %v2311, %v2307
    %v3556 = vpack.c.b16 %v2316, %v2312
    %v3557 = vpack.c.b16 %v2317, %v2313
    %v3558 = vpack.c.b16 %v2318, %v2314
    %v3559 = vpack.c.b16 %v2319, %v2315
    %v3560 = vpack.c.b16 %v2324, %v2320
    %v3561 = vpack.c.b16 %v2325, %v2321
    %v3562 = vpack.c.b16 %v2326, %v2322
    %v3563 = vpack.c.b16 %v2327, %v2323
    %v3564 = vpack.c.b16 %v2332, %v2328
    %v3565 = vpack.c.b16 %v2333, %v2329
    %v3566 = vpack.c.b16 %v2334, %v2330
    %v3567 = vpack.c.b16 %v2335, %v2331
    %v3568 = vpack.c.b16 %v2340, %v2336
    %v3569 = vpack.c.b16 %v2341, %v2337
    %v3570 = vpack.c.b16 %v2342, %v2338
    %v3571 = vpack.c.b16 %v2343, %v2339
    %v3572 = vpack.c.b16 %v2348, %v2344
    %v3573 = vpack.c.b16 %v2349, %v2345
    %v3574 = vpack.c.b16 %v2350, %v2346
    %v3575 = vpack.c.b16 %v2351, %v2347
    %v3576 = vpack.c.b16 %v2356, %v2352
    %v3577 = vpack.c.b16 %v2357, %v2353
    %v3578 = vpack.c.b16 %v2358, %v2354
    %v3579 = vpack.c.b16 %v2359, %v2355
    %v3580 = vpack.c.b16 %v2364, %v2360
    %v3581 = vpack.c.b16 %v2365, %v2361
    %v3582 = vpack.c.b16 %v2366, %v2362
    %v3583 = vpack.c.b16 %v2367, %v2363
    %v3584 = vpack.c.b16 %v2372, %v2368
    %v3585 = vpack.c.b16 %v2373, %v2369
    %v3586 = vpack.c.b16 %v2374, %v2370
    %v3587 = vpack.c.b16 %v2375, %v2371
    %v3588 = vpack.c.b16 %v2380, %v2376
    %v3589 = vpack.c.b16 %v2381, %v2377
    %v3590 = vpack.c.b16 %v2382, %v2378
    %v3591 = vpack.c.b16 %v2383, %v2379
    %v3592 = vpack.c.b16 %v2388, %v2384
    %v3593 = vpack.c.b16 %v2389, %v2385
    %v3594 = vpack.c.b16 %v2390, %v2386
    %v3595 = vpack.c.b16 %v2391, %v2387
    %v3596 = vpack.c.b16 %v2396, %v2392
    %v3597 = vpack.c.b16 %v2397, %v2393
    %v3598 = vpack.c.b16 %v2398, %v2394
    %v3599 = vpack.c.b16 %v2399, %v2395
    %v3600 = vpack.c.b16 %v2404, %v2400
    %v3601 = vpack.c.b16 %v2405, %v2401
    %v3602 = vpack.c.b16 %v2406, %v2402
    %v3603 = vpack.c.b16 %v2407, %v2403
    %v3604 = vpack.c.b16 %v2412, %v2408
    %v3605 = vpack.c.b16 %v2413, %v2409
    %v3606 = vpack.c.b16 %v2414, %v2410
    %v3607 = vpack.c.b16 %v2415, %v2411
    %v3608 = vpack.c.b16 %v2420, %v2416
    %v3609 = vpack.c.b16 %v2421, %v2417
    %v3610 = vpack.c.b16 %v2422, %v2418
    %v3611 = vpack.c.b16 %v2423, %v2419
    %v3612 = vpack.c.b16 %v2428, %v2424
    %v3613 = vpack.c.b16 %v2429, %v2425
    %v3614 = vpack.c.b16 %v2430, %v2426
    %v3615 = vpack.c.b16 %v2431, %v2427
    %v3616 = vpack.c.b16 %v2436, %v2432
    %v3617 = vpack.c.b16 %v2437, %v2433
    %v3618 = vpack.c.b16 %v2438, %v2434
    %v3619 = vpack.c.b16 %v2439, %v2435
    %v3620 = vpack.c.b16 %v2444, %v2440
    %v3621 = vpack.c.b16 %v2445, %v2441
    %v3622 = vpack.c.b16 %v2446, %v2442
    %v3623 = vpack.c.b16 %v2447, %v2443
    %v3624 = vpack.c.b16 %v2452, %v2448
    %v3625 = vpack.c.b16 %v2453, %v2449
    %v3626 = vpack.c.b16 %v2454, %v2450
    %v3627 = vpack.c.b16 %v2455, %v2451
    %v3628 = vpack.c.b16 %v2460, %v2456
    %v3629 = vpack.c.b16 %v2461, %v2457
    %v3630 = vpack.c.b16 %v2462, %v2458
    %v3631 = vpack.c.b16 %v2463, %v2459
    %v3632 = vpack.c.b16 %v2468, %v2464
    %v3633 = vpack.c.b16 %v2469, %v2465
    %v3634 = vpack.c.b16 %v2470, %v2466
    %v3635 = vpack.c.b16 %v2471, %v2467
    %v3636 = vpack.c.b16 %v2476, %v2472
    %v3637 = vpack.c.b16 %v2477, %v2473
    %v3638 = vpack.c.b16 %v2478, %v2474
    %v3639 = vpack.c.b16 %v2479, %v2475
    %v3640 = vpack.c.b16 %v2484, %v2480
    %v3641 = vpack.c.b16 %v2485, %v2481
    %v3642 = vpack.c.b16 %v2486, %v2482
    %v3643 = vpack.c.b16 %v2487, %v2483
    %v3644 = vpack.c.b16 %v2492, %v2488
    %v3645 = vpack.c.b16 %v2493, %v2489
    %v3646 = vpack.c.b16 %v2494, %v2490
    %v3647 = vpack.c.b16 %v2495, %v2491
    %v3648 = vpack.c.b16 %v2500, %v2496
    %v3649 = vpack.c.b16 %v2501, %v2497
    %v3650 = vpack.c.b16 %v2502, %v2498
    %v3651 = vpack.c.b16 %v2503, %v2499
    %v3652 = vpack.c.b16 %v2508, %v2504
    %v3653 = vpack.c.b16 %v2509, %v2505
    %v3654 = vpack.c.b16 %v2510, %v2506
    %v3655 = vpack.c.b16 %v2511, %v2507
    %v3656 = vpack.c.b16 %v2516, %v2512
    %v3657 = vpack.c.b16 %v2517, %v2513
    %v3658 = vpack.c.b16 %v2518, %v2514
    %v3659 = vpack.c.b16 %v2519, %v2515
    %v3660 = vpack.c.b16 %v2524, %v2520
    %v3661 = vpack.c.b16 %v2525, %v2521
    %v3662 = vpack.c.b16 %v2526, %v2522
    %v3663 = vpack.c.b16 %v2527, %v2523
    %v3664 = vpack.c.b16 %v2532, %v2528
    %v3665 = vpack.c.b16 %v2533, %v2529
    %v3666 = vpack.c.b16 %v2534, %v2530
    %v3667 = vpack.c.b16 %v2535, %v2531
    %v3668 = vpack.c.b16 %v2540, %v2536
    %v3669 = vpack.c.b16 %v2541, %v2537
    %v3670 = vpack.c.b16 %v2542, %v2538
    %v3671 = vpack.c.b16 %v2543, %v2539
    %v3672 = vpack.c.b16 %v2548, %v2544
    %v3673 = vpack.c.b16 %v2549, %v2545
    %v3674 = vpack.c.b16 %v2550, %v2546
    %v3675 = vpack.c.b16 %v2551, %v2547
    %v3676 = vpack.c.b16 %v2556, %v2552
    %v3677 = vpack.c.b16 %v2557, %v2553
    %v3678 = vpack.c.b16 %v2558, %v2554
    %v3679 = vpack.c.b16 %v2559, %v2555
    %v3680 = vpack.c.b16 %v2564, %v2560
    %v3681 = vpack.c.b16 %v2565, %v2561
    %v3682 = vpack.c.b16 %v2566, %v2562
    %v3683 = vpack.c.b16 %v2567, %v2563
    %v3684 = vpack.c.b16 %v2572, %v2568
    %v3685 = vpack.c.b16 %v2573, %v2569
    %v3686 = vpack.c.b16 %v2574, %v2570
    %v3687 = vpack.c.b16 %v2575, %v2571
    %v3688 = vpack.c.b16 %v2580, %v2576
    %v3689 = vpack.c.b16 %v2581, %v2577
    %v3690 = vpack.c.b16 %v2582, %v2578
    %v3691 = vpack.c.b16 %v2583, %v2579
    %v3692 = vpack.c.b16 %v2588, %v2584
    %v3693 = vpack.c.b16 %v2589, %v2585
    %v3694 = vpack.c.b16 %v2590, %v2586
    %v3695 = vpack.c.b16 %v2591, %v2587
    %v3696 = vpack.c.b16 %v2596, %v2592
    %v3697 = vpack.c.b16 %v2597, %v2593
    %v3698 = vpack.c.b16 %v2598, %v2594
    %v3699 = vpack.c.b16 %v2599, %v2595
    %v3700 = vpack.c.b16 %v2604, %v2600
    %v3701 = vpack.c.b16 %v2605, %v2601
    %v3702 = vpack.c.b16 %v2606, %v2602
    %v3703 = vpack.c.b16 %v2607, %v2603
    %v3704 = vpack.c.b16 %v2612, %v2608
    %v3705 = vpack.c.b16 %v2613, %v2609
    %v3706 = vpack.c.b16 %v2614, %v2610
    %v3707 = vpack.c.b16 %v2615, %v2611
    %v3708 = vpack.c.b16 %v2620, %v2616
    %v3709 = vpack.c.b16 %v2621, %v2617
    %v3710 = vpack.c.b16 %v2622, %v2618
    %v3711 = vpack.c.b16 %v2623, %v2619
    %v3712 = vpack.c.b16 %v2628, %v2624
    %v3713 = vpack.c.b16 %v2629, %v2625
    %v3714 = vpack.c.b16 %v2630, %v2626
    %v3715 = vpack.c.b16 %v2631, %v2627
    %v3716 = vpack.c.b16 %v2636, %v2632
    %v3717 = vpack.c.b16 %v2637, %v2633
    %v3718 = vpack.c.b16 %v2638, %v2634
    %v3719 = vpack.c.b16 %v2639, %v2635
    %v3720 = vpack.c.b16 %v2644, %v2640
    %v3721 = vpack.c.b16 %v2645, %v2641
    %v3722 = vpack.c.b16 %v2646, %v2642
    %v3723 = vpack.c.b16 %v2647, %v2643
    %v3724 = vpack.c.b16 %v2652, %v2648
    %v3725 = vpack.c.b16 %v2653, %v2649
    %v3726 = vpack.c.b16 %v2654, %v2650
    %v3727 = vpack.c.b16 %v2655, %v2651
    %v3728 = vpack.c.b16 %v2660, %v2656
    %v3729 = vpack.c.b16 %v2661, %v2657
    %v3730 = vpack.c.b16 %v2662, %v2658
    %v3731 = vpack.c.b16 %v2663, %v2659
    %v3732 = vpack.c.b16 %v2668, %v2664
    %v3733 = vpack.c.b16 %v2669, %v2665
    %v3734 = vpack.c.b16 %v2670, %v2666
    %v3735 = vpack.c.b16 %v2671, %v2667
    %v3736 = vpack.c.b16 %v2676, %v2672
    %v3737 = vpack.c.b16 %v2677, %v2673
    %v3738 = vpack.c.b16 %v2678, %v2674
    %v3739 = vpack.c.b16 %v2679, %v2675
    %v3740 = vpack.c.b16 %v2684, %v2680
    %v3741 = vpack.c.b16 %v2685, %v2681
    %v3742 = vpack.c.b16 %v2686, %v2682
    %v3743 = vpack.c.b16 %v2687, %v2683
    %v3744 = vpack.c.b16 %v2692, %v2688
    %v3745 = vpack.c.b16 %v2693, %v2689
    %v3746 = vpack.c.b16 %v2694, %v2690
    %v3747 = vpack.c.b16 %v2695, %v2691
    %v3748 = vpack.c.b16 %v2700, %v2696
    %v3749 = vpack.c.b16 %v2701, %v2697
    %v3750 = vpack.c.b16 %v2702, %v2698
    %v3751 = vpack.c.b16 %v2703, %v2699
    %v3752 = vpack.c.b16 %v2708, %v2704
    %v3753 = vpack.c.b16 %v2709, %v2705
    %v3754 = vpack.c.b16 %v2710, %v2706
    %v3755 = vpack.c.b16 %v2711, %v2707
    %v3756 = vpack.c.b16 %v2716, %v2712
    %v3757 = vpack.c.b16 %v2717, %v2713
    %v3758 = vpack.c.b16 %v2718, %v2714
    %v3759 = vpack.c.b16 %v2719, %v2715
    %v3760 = vpack.c.b16 %v2724, %v2720
    %v3761 = vpack.c.b16 %v2725, %v2721
    %v3762 = vpack.c.b16 %v2726, %v2722
    %v3763 = vpack.c.b16 %v2727, %v2723
    %v3764 = vpack.c.b16 %v2732, %v2728
    %v3765 = vpack.c.b16 %v2733, %v2729
    %v3766 = vpack.c.b16 %v2734, %v2730
    %v3767 = vpack.c.b16 %v2735, %v2731
    %v3768 = vpack.c.b16 %v2740, %v2736
    %v3769 = vpack.c.b16 %v2741, %v2737
    %v3770 = vpack.c.b16 %v2742, %v2738
    %v3771 = vpack.c.b16 %v2743, %v2739
    %v3772 = vpack.c.b16 %v2748, %v2744
    %v3773 = vpack.c.b16 %v2749, %v2745
    %v3774 = vpack.c.b16 %v2750, %v2746
    %v3775 = vpack.c.b16 %v2751, %v2747
    %v3776 = vpack.c.b16 %v2756, %v2752
    %v3777 = vpack.c.b16 %v2757, %v2753
    %v3778 = vpack.c.b16 %v2758, %v2754
    %v3779 = vpack.c.b16 %v2759, %v2755
    %v3780 = vpack.c.b16 %v2764, %v2760
    %v3781 = vpack.c.b16 %v2765, %v2761
    %v3782 = vpack.c.b16 %v2766, %v2762
    %v3783 = vpack.c.b16 %v2767, %v2763
    %v3784 = vpack.c.b16 %v2772, %v2768
    %v3785 = vpack.c.b16 %v2773, %v2769
    %v3786 = vpack.c.b16 %v2774, %v2770
    %v3787 = vpack.c.b16 %v2775, %v2771
    %v3788 = vpack.c.b16 %v2780, %v2776
    %v3789 = vpack.c.b16 %v2781, %v2777
    %v3790 = vpack.c.b16 %v2782, %v2778
    %v3791 = vpack.c.b16 %v2783, %v2779
    %v3792 = vpack.c.b16 %v2788, %v2784
    %v3793 = vpack.c.b16 %v2789, %v2785
    %v3794 = vpack.c.b16 %v2790, %v2786
    %v3795 = vpack.c.b16 %v2791, %v2787
    %v3796 = vpack.c.b16 %v2796, %v2792
    %v3797 = vpack.c.b16 %v2797, %v2793
    %v3798 = vpack.c.b16 %v2798, %v2794
    %v3799 = vpack.c.b16 %v2799, %v2795
    %v3800 = vpack.c.b16 %v2804, %v2800
    %v3801 = vpack.c.b16 %v2805, %v2801
    %v3802 = vpack.c.b16 %v2806, %v2802
    %v3803 = vpack.c.b16 %v2807, %v2803
    %v3804 = vpack.c.b16 %v2812, %v2808
    %v3805 = vpack.c.b16 %v2813, %v2809
    %v3806 = vpack.c.b16 %v2814, %v2810
    %v3807 = vpack.c.b16 %v2815, %v2811
    %v3808 = vpack.c.b16 %v2820, %v2816
    %v3809 = vpack.c.b16 %v2821, %v2817
    %v3810 = vpack.c.b16 %v2822, %v2818
    %v3811 = vpack.c.b16 %v2823, %v2819
    %v3812 = vpack.c.b16 %v2828, %v2824
    %v3813 = vpack.c.b16 %v2829, %v2825
    %v3814 = vpack.c.b16 %v2830, %v2826
    %v3815 = vpack.c.b16 %v2831, %v2827
    %v3816 = vpack.c.b16 %v2836, %v2832
    %v3817 = vpack.c.b16 %v2837, %v2833
    %v3818 = vpack.c.b16 %v2838, %v2834
    %v3819 = vpack.c.b16 %v2839, %v2835
    %v3820 = vpack.c.b16 %v2844, %v2840
    %v3821 = vpack.c.b16 %v2845, %v2841
    %v3822 = vpack.c.b16 %v2846, %v2842
    %v3823 = vpack.c.b16 %v2847, %v2843
    %v3824 = vpack.c.b16 %v2852, %v2848
    %v3825 = vpack.c.b16 %v2853, %v2849
    %v3826 = vpack.c.b16 %v2854, %v2850
    %v3827 = vpack.c.b16 %v2855, %v2851
    %v3828 = vpack.c.b16 %v2860, %v2856
    %v3829 = vpack.c.b16 %v2861, %v2857
    %v3830 = vpack.c.b16 %v2862, %v2858
    %v3831 = vpack.c.b16 %v2863, %v2859
    %v3832 = vpack.c.b16 %v2868, %v2864
    %v3833 = vpack.c.b16 %v2869, %v2865
    %v3834 = vpack.c.b16 %v2870, %v2866
    %v3835 = vpack.c.b16 %v2871, %v2867
    %v3836 = vpack.c.b16 %v2876, %v2872
    %v3837 = vpack.c.b16 %v2877, %v2873
    %v3838 = vpack.c.b16 %v2878, %v2874
    %v3839 = vpack.c.b16 %v2879, %v2875
    %v3840 = vpack.c.b16 %v2884, %v2880
    %v3841 = vpack.c.b16 %v2885, %v2881
    %v3842 = vpack.c.b16 %v2886, %v2882
    %v3843 = vpack.c.b16 %v2887, %v2883
    %v3844 = vpack.c.b16 %v2892, %v2888
    %v3845 = vpack.c.b16 %v2893, %v2889
    %v3846 = vpack.c.b16 %v2894, %v2890
    %v3847 = vpack.c.b16 %v2895, %v2891
    %v3848 = vpack.c.b16 %v2900, %v2896
    %v3849 = vpack.c.b16 %v2901, %v2897
    %v3850 = vpack.c.b16 %v2902, %v2898
    %v3851 = vpack.c.b16 %v2903, %v2899
    %v3852 = vpack.c.b16 %v2908, %v2904
    %v3853 = vpack.c.b16 %v2909, %v2905
    %v3854 = vpack.c.b16 %v2910, %v2906
    %v3855 = vpack.c.b16 %v2911, %v2907
    %v3856 = vpack.c.b16 %v2916, %v2912
    %v3857 = vpack.c.b16 %v2917, %v2913
    %v3858 = vpack.c.b16 %v2918, %v2914
    %v3859 = vpack.c.b16 %v2919, %v2915
    %v3860 = vpack.c.b16 %v2924, %v2920
    %v3861 = vpack.c.b16 %v2925, %v2921
    %v3862 = vpack.c.b16 %v2926, %v2922
    %v3863 = vpack.c.b16 %v2927, %v2923
    %v3864 = vpack.c.b16 %v2932, %v2928
    %v3865 = vpack.c.b16 %v2933, %v2929
    %v3866 = vpack.c.b16 %v2934, %v2930
    %v3867 = vpack.c.b16 %v2935, %v2931
    %v3868 = vpack.c.b16 %v2940, %v2936
    %v3869 = vpack.c.b16 %v2941, %v2937
    %v3870 = vpack.c.b16 %v2942, %v2938
    %v3871 = vpack.c.b16 %v2943, %v2939
    %v3872 = vpack.c.b16 %v2948, %v2944
    %v3873 = vpack.c.b16 %v2949, %v2945
    %v3874 = vpack.c.b16 %v2950, %v2946
    %v3875 = vpack.c.b16 %v2951, %v2947
    %v3876 = vpack.c.b16 %v2956, %v2952
    %v3877 = vpack.c.b16 %v2957, %v2953
    %v3878 = vpack.c.b16 %v2958, %v2954
    %v3879 = vpack.c.b16 %v2959, %v2955
    %v3880 = vpack.c.b16 %v2964, %v2960
    %v3881 = vpack.c.b16 %v2965, %v2961
    %v3882 = vpack.c.b16 %v2966, %v2962
    %v3883 = vpack.c.b16 %v2967, %v2963
    %v3884 = vpack.c.b16 %v2972, %v2968
    %v3885 = vpack.c.b16 %v2973, %v2969
    %v3886 = vpack.c.b16 %v2974, %v2970
    %v3887 = vpack.c.b16 %v2975, %v2971
    %v3888 = vpack.c.b16 %v2980, %v2976
    %v3889 = vpack.c.b16 %v2981, %v2977
    %v3890 = vpack.c.b16 %v2982, %v2978
    %v3891 = vpack.c.b16 %v2983, %v2979
    %v3892 = vpack.c.b16 %v2988, %v2984
    %v3893 = vpack.c.b16 %v2989, %v2985
    %v3894 = vpack.c.b16 %v2990, %v2986
    %v3895 = vpack.c.b16 %v2991, %v2987
    %v3896 = vpack.c.b16 %v2996, %v2992
    %v3897 = vpack.c.b16 %v2997, %v2993
    %v3898 = vpack.c.b16 %v2998, %v2994
    %v3899 = vpack.c.b16 %v2999, %v2995
    %v3900 = vpack.c.b16 %v3004, %v3000
    %v3901 = vpack.c.b16 %v3005, %v3001
    %v3902 = vpack.c.b16 %v3006, %v3002
    %v3903 = vpack.c.b16 %v3007, %v3003
    %v3904 = vpack.c.b16 %v3012, %v3008
    %v3905 = vpack.c.b16 %v3013, %v3009
    %v3906 = vpack.c.b16 %v3014, %v3010
    %v3907 = vpack.c.b16 %v3015, %v3011
    %v3908 = vpack.c.b16 %v3020, %v3016
    %v3909 = vpack.c.b16 %v3021, %v3017
    %v3910 = vpack.c.b16 %v3022, %v3018
    %v3911 = vpack.c.b16 %v3023, %v3019
    %v3912 = vpack.c.b16 %v3028, %v3024
    %v3913 = vpack.c.b16 %v3029, %v3025
    %v3914 = vpack.c.b16 %v3030, %v3026
    %v3915 = vpack.c.b16 %v3031, %v3027
    %v3916 = vpack.c.b16 %v3036, %v3032
    %v3917 = vpack.c.b16 %v3037, %v3033
    %v3918 = vpack.c.b16 %v3038, %v3034
    %v3919 = vpack.c.b16 %v3039, %v3035
    %v3920 = vpack.c.b16 %v3044, %v3040
    %v3921 = vpack.c.b16 %v3045, %v3041
    %v3922 = vpack.c.b16 %v3046, %v3042
    %v3923 = vpack.c.b16 %v3047, %v3043
    %v3924 = vpack.c.b16 %v3052, %v3048
    %v3925 = vpack.c.b16 %v3053, %v3049
    %v3926 = vpack.c.b16 %v3054, %v3050
    %v3927 = vpack.c.b16 %v3055, %v3051
    %v3928 = vpack.c.b16 %v3060, %v3056
    %v3929 = vpack.c.b16 %v3061, %v3057
    %v3930 = vpack.c.b16 %v3062, %v3058
    %v3931 = vpack.c.b16 %v3063, %v3059
    %v3932 = vpack.c.b16 %v3068, %v3064
    %v3933 = vpack.c.b16 %v3069, %v3065
    %v3934 = vpack.c.b16 %v3070, %v3066
    %v3935 = vpack.c.b16 %v3071, %v3067
    %v3936 = vpack.c.b16 %v3076, %v3072
    %v3937 = vpack.c.b16 %v3077, %v3073
    %v3938 = vpack.c.b16 %v3078, %v3074
    %v3939 = vpack.c.b16 %v3079, %v3075
    %v3940 = vpack.c.b16 %v3084, %v3080
    %v3941 = vpack.c.b16 %v3085, %v3081
    %v3942 = vpack.c.b16 %v3086, %v3082
    %v3943 = vpack.c.b16 %v3087, %v3083
    %v3944 = vpack.c.b16 %v3092, %v3088
    %v3945 = vpack.c.b16 %v3093, %v3089
    %v3946 = vpack.c.b16 %v3094, %v3090
    %v3947 = vpack.c.b16 %v3095, %v3091
    %v3948 = vpack.c.b16 %v3100, %v3096
    %v3949 = vpack.c.b16 %v3101, %v3097
    %v3950 = vpack.c.b16 %v3102, %v3098
    %v3951 = vpack.c.b16 %v3103, %v3099
    %v3952 = vpack.c.b16 %v3108, %v3104
    %v3953 = vpack.c.b16 %v3109, %v3105
    %v3954 = vpack.c.b16 %v3110, %v3106
    %v3955 = vpack.c.b16 %v3111, %v3107
    %v3956 = vpack.c.b16 %v3116, %v3112
    %v3957 = vpack.c.b16 %v3117, %v3113
    %v3958 = vpack.c.b16 %v3118, %v3114
    %v3959 = vpack.c.b16 %v3119, %v3115
    %v3960 = vpack.c.b16 %v3124, %v3120
    %v3961 = vpack.c.b16 %v3125, %v3121
    %v3962 = vpack.c.b16 %v3126, %v3122
    %v3963 = vpack.c.b16 %v3127, %v3123
    %v3964 = vpack.c.b16 %v3132, %v3128
    %v3965 = vpack.c.b16 %v3133, %v3129
    %v3966 = vpack.c.b16 %v3134, %v3130
    %v3967 = vpack.c.b16 %v3135, %v3131
    %v3968 = vpack.c.b16 %v3140, %v3136
    %v3969 = vpack.c.b16 %v3141, %v3137
    %v3970 = vpack.c.b16 %v3142, %v3138
    %v3971 = vpack.c.b16 %v3143, %v3139
    %v3972 = vpack.c.b16 %v3148, %v3144
    %v3973 = vpack.c.b16 %v3149, %v3145
    %v3974 = vpack.c.b16 %v3150, %v3146
    %v3975 = vpack.c.b16 %v3151, %v3147
    %v3976 = vpack.c.b16 %v3156, %v3152
    %v3977 = vpack.c.b16 %v3157, %v3153
    %v3978 = vpack.c.b16 %v3158, %v3154
    %v3979 = vpack.c.b16 %v3159, %v3155
    %v3980 = vpack.c.b16 %v3164, %v3160
    %v3981 = vpack.c.b16 %v3165, %v3161
    %v3982 = vpack.c.b16 %v3166, %v3162
    %v3983 = vpack.c.b16 %v3167, %v3163
    %v3984 = vpack.c.b16 %v3172, %v3168
    %v3985 = vpack.c.b16 %v3173, %v3169
    %v3986 = vpack.c.b16 %v3174, %v3170
    %v3987 = vpack.c.b16 %v3175, %v3171
    %v3988 = vpack.c.b16 %v3180, %v3176
    %v3989 = vpack.c.b16 %v3181, %v3177
    %v3990 = vpack.c.b16 %v3182, %v3178
    %v3991 = vpack.c.b16 %v3183, %v3179
    %v3992 = vpack.c.b16 %v3188, %v3184
    %v3993 = vpack.c.b16 %v3189, %v3185
    %v3994 = vpack.c.b16 %v3190, %v3186
    %v3995 = vpack.c.b16 %v3191, %v3187
    %v3996 = vpack.c.b16 %v3196, %v3192
    %v3997 = vpack.c.b16 %v3197, %v3193
    %v3998 = vpack.c.b16 %v3198, %v3194
    %v3999 = vpack.c.b16 %v3199, %v3195
    %v4000 = vpack.c.b16 %v3204, %v3200
    %v4001 = vpack.c.b16 %v3205, %v3201
    %v4002 = vpack.c.b16 %v3206, %v3202
    %v4003 = vpack.c.b16 %v3207, %v3203
    %v4004 = vpack.c.b16 %v3212, %v3208
    %v4005 = vpack.c.b16 %v3213, %v3209
    %v4006 = vpack.c.b16 %v3214, %v3210
    %v4007 = vpack.c.b16 %v3215, %v3211
    %v4008 = vpack.c.b16 %v3220, %v3216
    %v4009 = vpack.c.b16 %v3221, %v3217
    %v4010 = vpack.c.b16 %v3222, %v3218
    %v4011 = vpack.c.b16 %v3223, %v3219
    %v4012 = vpack.c.b16 %v3228, %v3224
    %v4013 = vpack.c.b16 %v3229, %v3225
    %v4014 = vpack.c.b16 %v3230, %v3226
    %v4015 = vpack.c.b16 %v3231, %v3227
    %vm4800 = vcmask 523264
    %v4801 = vsel %vm4800, %v855, 0
    %4803 = vmatpush.bf16.msra.mxu0 %v3260
    %4804 = vmatpush.bf16.msra.mxu0 %v3256
    %4805 = vmatpush.bf16.msra.mxu0 %v3252
    %4806 = vmatpush.bf16.msra.mxu0 %v3248
    %4807 = vmatpush.bf16.msra.mxu0 %v3244
    %4808 = vmatpush.bf16.msra.mxu0 %v3240
    %4809 = vmatpush.bf16.msra.mxu0 %v3236
    %4810 = vmatpush.bf16.msra.mxu0 %v3232
    %4811 = vmatmul.bf16.gmra.mxu0 %v825
    %v4812 = vpop.f32.mrf.mxu0
    %v4813 = vadd.f32 %v815, %v4812
    %v4814 = vpop.f32.mrf.mxu0
    %4815 = vdwg.mxu0
    %4816 = vmatpush.bf16.msra.mxu0 %v3292
    %4817 = vmatpush.bf16.msra.mxu0 %v3288
    %4818 = vmatpush.bf16.msra.mxu0 %v3284
    %4819 = vmatpush.bf16.msra.mxu0 %v3280
    %4820 = vmatpush.bf16.msra.mxu0 %v3276
    %4821 = vmatpush.bf16.msra.mxu0 %v3272
    %4822 = vmatpush.bf16.msra.mxu0 %v3268
    %4823 = vmatpush.bf16.msra.mxu0 %v3264
    %4824 = vmatmul.bf16.gmra.mxu0 %v826
    %v4825 = vpop.f32.mrf.mxu0
    %v4826 = vadd.f32 %v4813, %v4825
    %v4827 = vpop.f32.mrf.mxu0
    %4828 = vdwg.mxu0
    %4829 = vmatpush.bf16.msra.mxu0 %v3324
    %4830 = vmatpush.bf16.msra.mxu0 %v3320
    %4831 = vmatpush.bf16.msra.mxu0 %v3316
    %4832 = vmatpush.bf16.msra.mxu0 %v3312
    %4833 = vmatpush.bf16.msra.mxu0 %v3308
    %4834 = vmatpush.bf16.msra.mxu0 %v3304
    %4835 = vmatpush.bf16.msra.mxu0 %v3300
    %4836 = vmatpush.bf16.msra.mxu0 %v3296
    %4837 = vmatmul.bf16.gmra.mxu0 %v827
    %v4838 = vpop.f32.mrf.mxu0
    %v4839 = vadd.f32 %v4826, %v4838
    %v4840 = vpop.f32.mrf.mxu0
    %4841 = vdwg.mxu0
    %4842 = vmatpush.bf16.msra.mxu0 %v3356
    %4843 = vmatpush.bf16.msra.mxu0 %v3352
    %4844 = vmatpush.bf16.msra.mxu0 %v3348
    %4845 = vmatpush.bf16.msra.mxu0 %v3344
    %4846 = vmatpush.bf16.msra.mxu0 %v3340
    %4847 = vmatpush.bf16.msra.mxu0 %v3336
    %4848 = vmatpush.bf16.msra.mxu0 %v3332
    %4849 = vmatpush.bf16.msra.mxu0 %v3328
    %4850 = vmatmul.bf16.gmra.mxu0 %v828
    %v4851 = vpop.f32.mrf.mxu0
    %v4852 = vadd.f32 %v4839, %v4851
    %v4853 = vpop.f32.mrf.mxu0
    %4854 = vdwg.mxu0
    %4855 = vmatpush.bf16.msra.mxu0 %v3388
    %4856 = vmatpush.bf16.msra.mxu0 %v3384
    %4857 = vmatpush.bf16.msra.mxu0 %v3380
    %4858 = vmatpush.bf16.msra.mxu0 %v3376
    %4859 = vmatpush.bf16.msra.mxu0 %v3372
    %4860 = vmatpush.bf16.msra.mxu0 %v3368
    %4861 = vmatpush.bf16.msra.mxu0 %v3364
    %4862 = vmatpush.bf16.msra.mxu0 %v3360
    %4863 = vmatmul.bf16.gmra.mxu0 %v829
    %v4864 = vpop.f32.mrf.mxu0
    %v4865 = vadd.f32 %v4852, %v4864
    %v4866 = vpop.f32.mrf.mxu0
    %4867 = vdwg.mxu0
    %4868 = vmatpush.bf16.msra.mxu0 %v3420
    %4869 = vmatpush.bf16.msra.mxu0 %v3416
    %4870 = vmatpush.bf16.msra.mxu0 %v3412
    %4871 = vmatpush.bf16.msra.mxu0 %v3408
    %4872 = vmatpush.bf16.msra.mxu0 %v3404
    %4873 = vmatpush.bf16.msra.mxu0 %v3400
    %4874 = vmatpush.bf16.msra.mxu0 %v3396
    %4875 = vmatpush.bf16.msra.mxu0 %v3392
    %4876 = vmatmul.bf16.gmra.mxu0 %v830
    %v4877 = vpop.f32.mrf.mxu0
    %v4878 = vadd.f32 %v4865, %v4877
    %v4879 = vpop.f32.mrf.mxu0
    %4880 = vdwg.mxu0
    %4881 = vmatpush.bf16.msra.mxu0 %v3452
    %4882 = vmatpush.bf16.msra.mxu0 %v3448
    %4883 = vmatpush.bf16.msra.mxu0 %v3444
    %4884 = vmatpush.bf16.msra.mxu0 %v3440
    %4885 = vmatpush.bf16.msra.mxu0 %v3436
    %4886 = vmatpush.bf16.msra.mxu0 %v3432
    %4887 = vmatpush.bf16.msra.mxu0 %v3428
    %4888 = vmatpush.bf16.msra.mxu0 %v3424
    %4889 = vmatmul.bf16.gmra.mxu0 %v831
    %v4890 = vpop.f32.mrf.mxu0
    %v4891 = vadd.f32 %v4878, %v4890
    %v4892 = vpop.f32.mrf.mxu0
    %4893 = vdwg.mxu0
    %4894 = vmatpush.bf16.msra.mxu0 %v3484
    %4895 = vmatpush.bf16.msra.mxu0 %v3480
    %4896 = vmatpush.bf16.msra.mxu0 %v3476
    %4897 = vmatpush.bf16.msra.mxu0 %v3472
    %4898 = vmatpush.bf16.msra.mxu0 %v3468
    %4899 = vmatpush.bf16.msra.mxu0 %v3464
    %4900 = vmatpush.bf16.msra.mxu0 %v3460
    %4901 = vmatpush.bf16.msra.mxu0 %v3456
    %4902 = vmatmul.bf16.gmra.mxu0 %v832
    %v4903 = vpop.f32.mrf.mxu0
    %v4904 = vadd.f32 %v4891, %v4903
    %v4905 = vpop.f32.mrf.mxu0
    %4906 = vdwg.mxu0
    %4907 = vmatpush.bf16.msra.mxu0 %v3516
    %4908 = vmatpush.bf16.msra.mxu0 %v3512
    %4909 = vmatpush.bf16.msra.mxu0 %v3508
    %4910 = vmatpush.bf16.msra.mxu0 %v3504
    %4911 = vmatpush.bf16.msra.mxu0 %v3500
    %4912 = vmatpush.bf16.msra.mxu0 %v3496
    %4913 = vmatpush.bf16.msra.mxu0 %v3492
    %4914 = vmatpush.bf16.msra.mxu0 %v3488
    %4915 = vmatmul.bf16.gmra.mxu0 %v835
    %v4916 = vpop.f32.mrf.mxu0
    %v4917 = vadd.f32 %v4904, %v4916
    %v4918 = vpop.f32.mrf.mxu0
    %4919 = vdwg.mxu0
    %4920 = vmatpush.bf16.msra.mxu0 %v3548
    %4921 = vmatpush.bf16.msra.mxu0 %v3544
    %4922 = vmatpush.bf16.msra.mxu0 %v3540
    %4923 = vmatpush.bf16.msra.mxu0 %v3536
    %4924 = vmatpush.bf16.msra.mxu0 %v3532
    %4925 = vmatpush.bf16.msra.mxu0 %v3528
    %4926 = vmatpush.bf16.msra.mxu0 %v3524
    %4927 = vmatpush.bf16.msra.mxu0 %v3520
    %4928 = vmatmul.bf16.gmra.mxu0 %v836
    %v4929 = vpop.f32.mrf.mxu0
    %v4930 = vadd.f32 %v4917, %v4929
    %v4931 = vpop.f32.mrf.mxu0
    %4932 = vdwg.mxu0
    %4933 = vmatpush.bf16.msra.mxu0 %v3580
    %4934 = vmatpush.bf16.msra.mxu0 %v3576
    %4935 = vmatpush.bf16.msra.mxu0 %v3572
    %4936 = vmatpush.bf16.msra.mxu0 %v3568
    %4937 = vmatpush.bf16.msra.mxu0 %v3564
    %4938 = vmatpush.bf16.msra.mxu0 %v3560
    %4939 = vmatpush.bf16.msra.mxu0 %v3556
    %4940 = vmatpush.bf16.msra.mxu0 %v3552
    %4941 = vmatmul.bf16.gmra.mxu0 %v837
    %v4942 = vpop.f32.mrf.mxu0
    %v4943 = vadd.f32 %v4930, %v4942
    %v4944 = vpop.f32.mrf.mxu0
    %4945 = vdwg.mxu0
    %4946 = vmatpush.bf16.msra.mxu0 %v3612
    %4947 = vmatpush.bf16.msra.mxu0 %v3608
    %4948 = vmatpush.bf16.msra.mxu0 %v3604
    %4949 = vmatpush.bf16.msra.mxu0 %v3600
    %4950 = vmatpush.bf16.msra.mxu0 %v3596
    %4951 = vmatpush.bf16.msra.mxu0 %v3592
    %4952 = vmatpush.bf16.msra.mxu0 %v3588
    %4953 = vmatpush.bf16.msra.mxu0 %v3584
    %4954 = vmatmul.bf16.gmra.mxu0 %v838
    %v4955 = vpop.f32.mrf.mxu0
    %v4956 = vadd.f32 %v4943, %v4955
    %v4957 = vpop.f32.mrf.mxu0
    %4958 = vdwg.mxu0
    %4959 = vmatpush.bf16.msra.mxu0 %v3644
    %4960 = vmatpush.bf16.msra.mxu0 %v3640
    %4961 = vmatpush.bf16.msra.mxu0 %v3636
    %4962 = vmatpush.bf16.msra.mxu0 %v3632
    %4963 = vmatpush.bf16.msra.mxu0 %v3628
    %4964 = vmatpush.bf16.msra.mxu0 %v3624
    %4965 = vmatpush.bf16.msra.mxu0 %v3620
    %4966 = vmatpush.bf16.msra.mxu0 %v3616
    %4967 = vmatmul.bf16.gmra.mxu0 %v839
    %v4968 = vpop.f32.mrf.mxu0
    %v4969 = vadd.f32 %v4956, %v4968
    %v4970 = vpop.f32.mrf.mxu0
    %4971 = vdwg.mxu0
    %4972 = vmatpush.bf16.msra.mxu0 %v3676
    %4973 = vmatpush.bf16.msra.mxu0 %v3672
    %4974 = vmatpush.bf16.msra.mxu0 %v3668
    %4975 = vmatpush.bf16.msra.mxu0 %v3664
    %4976 = vmatpush.bf16.msra.mxu0 %v3660
    %4977 = vmatpush.bf16.msra.mxu0 %v3656
    %4978 = vmatpush.bf16.msra.mxu0 %v3652
    %4979 = vmatpush.bf16.msra.mxu0 %v3648
    %4980 = vmatmul.bf16.gmra.mxu0 %v840
    %v4981 = vpop.f32.mrf.mxu0
    %v4982 = vadd.f32 %v4969, %v4981
    %v4983 = vpop.f32.mrf.mxu0
    %4984 = vdwg.mxu0
    %4985 = vmatpush.bf16.msra.mxu0 %v3708
    %4986 = vmatpush.bf16.msra.mxu0 %v3704
    %4987 = vmatpush.bf16.msra.mxu0 %v3700
    %4988 = vmatpush.bf16.msra.mxu0 %v3696
    %4989 = vmatpush.bf16.msra.mxu0 %v3692
    %4990 = vmatpush.bf16.msra.mxu0 %v3688
    %4991 = vmatpush.bf16.msra.mxu0 %v3684
    %4992 = vmatpush.bf16.msra.mxu0 %v3680
    %4993 = vmatmul.bf16.gmra.mxu0 %v841
    %v4994 = vpop.f32.mrf.mxu0
    %v4995 = vadd.f32 %v4982, %v4994
    %v4996 = vpop.f32.mrf.mxu0
    %4997 = vdwg.mxu0
    %4998 = vmatpush.bf16.msra.mxu0 %v3740
    %4999 = vmatpush.bf16.msra.mxu0 %v3736
    %5000 = vmatpush.bf16.msra.mxu0 %v3732
    %5001 = vmatpush.bf16.msra.mxu0 %v3728
    %5002 = vmatpush.bf16.msra.mxu0 %v3724
    %5003 = vmatpush.bf16.msra.mxu0 %v3720
    %5004 = vmatpush.bf16.msra.mxu0 %v3716
    %5005 = vmatpush.bf16.msra.mxu0 %v3712
    %5006 = vmatmul.bf16.gmra.mxu0 %v842
    %v5007 = vpop.f32.mrf.mxu0
    %v5008 = vadd.f32 %v4995, %v5007
    %v5009 = vpop.f32.mrf.mxu0
    %5010 = vdwg.mxu0
    %5011 = vmatpush.bf16.msra.mxu0 %v3772
    %5012 = vmatpush.bf16.msra.mxu0 %v3768
    %5013 = vmatpush.bf16.msra.mxu0 %v3764
    %5014 = vmatpush.bf16.msra.mxu0 %v3760
    %5015 = vmatpush.bf16.msra.mxu0 %v3756
    %5016 = vmatpush.bf16.msra.mxu0 %v3752
    %5017 = vmatpush.bf16.msra.mxu0 %v3748
    %5018 = vmatpush.bf16.msra.mxu0 %v3744
    %5019 = vmatmul.bf16.gmra.mxu0 %v845
    %v5020 = vpop.f32.mrf.mxu0
    %v5021 = vadd.f32 %v5008, %v5020
    %v5022 = vpop.f32.mrf.mxu0
    %5023 = vdwg.mxu0
    %5024 = vmatpush.bf16.msra.mxu0 %v3804
    %5025 = vmatpush.bf16.msra.mxu0 %v3800
    %5026 = vmatpush.bf16.msra.mxu0 %v3796
    %5027 = vmatpush.bf16.msra.mxu0 %v3792
    %5028 = vmatpush.bf16.msra.mxu0 %v3788
    %5029 = vmatpush.bf16.msra.mxu0 %v3784
    %5030 = vmatpush.bf16.msra.mxu0 %v3780
    %5031 = vmatpush.bf16.msra.mxu0 %v3776
    %5032 = vmatmul.bf16.gmra.mxu0 %v846
    %v5033 = vpop.f32.mrf.mxu0
    %v5034 = vadd.f32 %v5021, %v5033
    %v5035 = vpop.f32.mrf.mxu0
    %5036 = vdwg.mxu0
    %5037 = vmatpush.bf16.msra.mxu0 %v3836
    %5038 = vmatpush.bf16.msra.mxu0 %v3832
    %5039 = vmatpush.bf16.msra.mxu0 %v3828
    %5040 = vmatpush.bf16.msra.mxu0 %v3824
    %5041 = vmatpush.bf16.msra.mxu0 %v3820
    %5042 = vmatpush.bf16.msra.mxu0 %v3816
    %5043 = vmatpush.bf16.msra.mxu0 %v3812
    %5044 = vmatpush.bf16.msra.mxu0 %v3808
    %5045 = vmatmul.bf16.gmra.mxu0 %v847
    %v5046 = vpop.f32.mrf.mxu0
    %v5047 = vadd.f32 %v5034, %v5046
    %v5048 = vpop.f32.mrf.mxu0
    %5049 = vdwg.mxu0
    %5050 = vmatpush.bf16.msra.mxu0 %v3868
    %5051 = vmatpush.bf16.msra.mxu0 %v3864
    %5052 = vmatpush.bf16.msra.mxu0 %v3860
    %5053 = vmatpush.bf16.msra.mxu0 %v3856
    %5054 = vmatpush.bf16.msra.mxu0 %v3852
    %5055 = vmatpush.bf16.msra.mxu0 %v3848
    %5056 = vmatpush.bf16.msra.mxu0 %v3844
    %5057 = vmatpush.bf16.msra.mxu0 %v3840
    %5058 = vmatmul.bf16.gmra.mxu0 %v848
    %v5059 = vpop.f32.mrf.mxu0
    %v5060 = vadd.f32 %v5047, %v5059
    %v5061 = vpop.f32.mrf.mxu0
    %5062 = vdwg.mxu0
    %5063 = vmatpush.bf16.msra.mxu0 %v3900
    %5064 = vmatpush.bf16.msra.mxu0 %v3896
    %5065 = vmatpush.bf16.msra.mxu0 %v3892
    %5066 = vmatpush.bf16.msra.mxu0 %v3888
    %5067 = vmatpush.bf16.msra.mxu0 %v3884
    %5068 = vmatpush.bf16.msra.mxu0 %v3880
    %5069 = vmatpush.bf16.msra.mxu0 %v3876
    %5070 = vmatpush.bf16.msra.mxu0 %v3872
    %5071 = vmatmul.bf16.gmra.mxu0 %v849
    %v5072 = vpop.f32.mrf.mxu0
    %v5073 = vadd.f32 %v5060, %v5072
    %v5074 = vpop.f32.mrf.mxu0
    %5075 = vdwg.mxu0
    %5076 = vmatpush.bf16.msra.mxu0 %v3932
    %5077 = vmatpush.bf16.msra.mxu0 %v3928
    %5078 = vmatpush.bf16.msra.mxu0 %v3924
    %5079 = vmatpush.bf16.msra.mxu0 %v3920
    %5080 = vmatpush.bf16.msra.mxu0 %v3916
    %5081 = vmatpush.bf16.msra.mxu0 %v3912
    %5082 = vmatpush.bf16.msra.mxu0 %v3908
    %5083 = vmatpush.bf16.msra.mxu0 %v3904
    %5084 = vmatmul.bf16.gmra.mxu0 %v850
    %v5085 = vpop.f32.mrf.mxu0
    %v5086 = vadd.f32 %v5073, %v5085
    %v5087 = vpop.f32.mrf.mxu0
    %5088 = vdwg.mxu0
    %5089 = vmatpush.bf16.msra.mxu0 %v3964
    %5090 = vmatpush.bf16.msra.mxu0 %v3960
    %5091 = vmatpush.bf16.msra.mxu0 %v3956
    %5092 = vmatpush.bf16.msra.mxu0 %v3952
    %5093 = vmatpush.bf16.msra.mxu0 %v3948
    %5094 = vmatpush.bf16.msra.mxu0 %v3944
    %5095 = vmatpush.bf16.msra.mxu0 %v3940
    %5096 = vmatpush.bf16.msra.mxu0 %v3936
    %5097 = vmatmul.bf16.gmra.mxu0 %v851
    %v5098 = vpop.f32.mrf.mxu0
    %v5099 = vadd.f32 %v5086, %v5098
    %v5100 = vpop.f32.mrf.mxu0
    %5101 = vdwg.mxu0
    %5102 = vmatpush.bf16.msra.mxu0 %v3996
    %5103 = vmatpush.bf16.msra.mxu0 %v3992
    %5104 = vmatpush.bf16.msra.mxu0 %v3988
    %5105 = vmatpush.bf16.msra.mxu0 %v3984
    %5106 = vmatpush.bf16.msra.mxu0 %v3980
    %5107 = vmatpush.bf16.msra.mxu0 %v3976
    %5108 = vmatpush.bf16.msra.mxu0 %v3972
    %5109 = vmatpush.bf16.msra.mxu0 %v3968
    %5110 = vmatmul.bf16.gmra.mxu0 %v852
    %v5111 = vpop.f32.mrf.mxu0
    %v5112 = vadd.f32 %v5099, %v5111
    %v5113 = vpop.f32.mrf.mxu0
    %5114 = vdwg.mxu0
    %5115 = vmatpush.bf16.msra.mxu0 0
    %5116 = vmatpush.bf16.msra.mxu0 0
    %5117 = vmatpush.bf16.msra.mxu0 0
    %5118 = vmatpush.bf16.msra.mxu0 0
    %5119 = vmatpush.bf16.msra.mxu0 %v4012
    %5120 = vmatpush.bf16.msra.mxu0 %v4008
    %5121 = vmatpush.bf16.msra.mxu0 %v4004
    %5122 = vmatpush.bf16.msra.mxu0 %v4000
    %5123 = vmatmul.bf16.gmra.mxu0 %v4801
    %v5124 = vpop.f32.mrf.mxu0
    %v5125 = vadd.f32 %v5112, %v5124
    %v5126 = vpop.f32.mrf.mxu0
    %5127 = vdwg.mxu0
    %5128 = vmatpush.bf16.msra.mxu0 %v3261
    %5129 = vmatpush.bf16.msra.mxu0 %v3257
    %5130 = vmatpush.bf16.msra.mxu0 %v3253
    %5131 = vmatpush.bf16.msra.mxu0 %v3249
    %5132 = vmatpush.bf16.msra.mxu0 %v3245
    %5133 = vmatpush.bf16.msra.mxu0 %v3241
    %5134 = vmatpush.bf16.msra.mxu0 %v3237
    %5135 = vmatpush.bf16.msra.mxu0 %v3233
    %5136 = vmatmul.bf16.gmra.mxu0 %v825
    %v5137 = vpop.f32.mrf.mxu0
    %v5138 = vadd.f32 %v816, %v5137
    %v5139 = vpop.f32.mrf.mxu0
    %5140 = vdwg.mxu0
    %5141 = vmatpush.bf16.msra.mxu0 %v3293
    %5142 = vmatpush.bf16.msra.mxu0 %v3289
    %5143 = vmatpush.bf16.msra.mxu0 %v3285
    %5144 = vmatpush.bf16.msra.mxu0 %v3281
    %5145 = vmatpush.bf16.msra.mxu0 %v3277
    %5146 = vmatpush.bf16.msra.mxu0 %v3273
    %5147 = vmatpush.bf16.msra.mxu0 %v3269
    %5148 = vmatpush.bf16.msra.mxu0 %v3265
    %5149 = vmatmul.bf16.gmra.mxu0 %v826
    %v5150 = vpop.f32.mrf.mxu0
    %v5151 = vadd.f32 %v5138, %v5150
    %v5152 = vpop.f32.mrf.mxu0
    %5153 = vdwg.mxu0
    %5154 = vmatpush.bf16.msra.mxu0 %v3325
    %5155 = vmatpush.bf16.msra.mxu0 %v3321
    %5156 = vmatpush.bf16.msra.mxu0 %v3317
    %5157 = vmatpush.bf16.msra.mxu0 %v3313
    %5158 = vmatpush.bf16.msra.mxu0 %v3309
    %5159 = vmatpush.bf16.msra.mxu0 %v3305
    %5160 = vmatpush.bf16.msra.mxu0 %v3301
    %5161 = vmatpush.bf16.msra.mxu0 %v3297
    %5162 = vmatmul.bf16.gmra.mxu0 %v827
    %v5163 = vpop.f32.mrf.mxu0
    %v5164 = vadd.f32 %v5151, %v5163
    %v5165 = vpop.f32.mrf.mxu0
    %5166 = vdwg.mxu0
    %5167 = vmatpush.bf16.msra.mxu0 %v3357
    %5168 = vmatpush.bf16.msra.mxu0 %v3353
    %5169 = vmatpush.bf16.msra.mxu0 %v3349
    %5170 = vmatpush.bf16.msra.mxu0 %v3345
    %5171 = vmatpush.bf16.msra.mxu0 %v3341
    %5172 = vmatpush.bf16.msra.mxu0 %v3337
    %5173 = vmatpush.bf16.msra.mxu0 %v3333
    %5174 = vmatpush.bf16.msra.mxu0 %v3329
    %5175 = vmatmul.bf16.gmra.mxu0 %v828
    %v5176 = vpop.f32.mrf.mxu0
    %v5177 = vadd.f32 %v5164, %v5176
    %v5178 = vpop.f32.mrf.mxu0
    %5179 = vdwg.mxu0
    %5180 = vmatpush.bf16.msra.mxu0 %v3389
    %5181 = vmatpush.bf16.msra.mxu0 %v3385
    %5182 = vmatpush.bf16.msra.mxu0 %v3381
    %5183 = vmatpush.bf16.msra.mxu0 %v3377
    %5184 = vmatpush.bf16.msra.mxu0 %v3373
    %5185 = vmatpush.bf16.msra.mxu0 %v3369
    %5186 = vmatpush.bf16.msra.mxu0 %v3365
    %5187 = vmatpush.bf16.msra.mxu0 %v3361
    %5188 = vmatmul.bf16.gmra.mxu0 %v829
    %v5189 = vpop.f32.mrf.mxu0
    %v5190 = vadd.f32 %v5177, %v5189
    %v5191 = vpop.f32.mrf.mxu0
    %5192 = vdwg.mxu0
    %5193 = vmatpush.bf16.msra.mxu0 %v3421
    %5194 = vmatpush.bf16.msra.mxu0 %v3417
    %5195 = vmatpush.bf16.msra.mxu0 %v3413
    %5196 = vmatpush.bf16.msra.mxu0 %v3409
    %5197 = vmatpush.bf16.msra.mxu0 %v3405
    %5198 = vmatpush.bf16.msra.mxu0 %v3401
    %5199 = vmatpush.bf16.msra.mxu0 %v3397
    %5200 = vmatpush.bf16.msra.mxu0 %v3393
    %5201 = vmatmul.bf16.gmra.mxu0 %v830
    %v5202 = vpop.f32.mrf.mxu0
    %v5203 = vadd.f32 %v5190, %v5202
    %v5204 = vpop.f32.mrf.mxu0
    %5205 = vdwg.mxu0
    %5206 = vmatpush.bf16.msra.mxu0 %v3453
    %5207 = vmatpush.bf16.msra.mxu0 %v3449
    %5208 = vmatpush.bf16.msra.mxu0 %v3445
    %5209 = vmatpush.bf16.msra.mxu0 %v3441
    %5210 = vmatpush.bf16.msra.mxu0 %v3437
    %5211 = vmatpush.bf16.msra.mxu0 %v3433
    %5212 = vmatpush.bf16.msra.mxu0 %v3429
    %5213 = vmatpush.bf16.msra.mxu0 %v3425
    %5214 = vmatmul.bf16.gmra.mxu0 %v831
    %v5215 = vpop.f32.mrf.mxu0
    %v5216 = vadd.f32 %v5203, %v5215
    %v5217 = vpop.f32.mrf.mxu0
    %5218 = vdwg.mxu0
    %5219 = vmatpush.bf16.msra.mxu0 %v3485
    %5220 = vmatpush.bf16.msra.mxu0 %v3481
    %5221 = vmatpush.bf16.msra.mxu0 %v3477
    %5222 = vmatpush.bf16.msra.mxu0 %v3473
    %5223 = vmatpush.bf16.msra.mxu0 %v3469
    %5224 = vmatpush.bf16.msra.mxu0 %v3465
    %5225 = vmatpush.bf16.msra.mxu0 %v3461
    %5226 = vmatpush.bf16.msra.mxu0 %v3457
    %5227 = vmatmul.bf16.gmra.mxu0 %v832
    %v5228 = vpop.f32.mrf.mxu0
    %v5229 = vadd.f32 %v5216, %v5228
    %v5230 = vpop.f32.mrf.mxu0
    %5231 = vdwg.mxu0
    %5232 = vmatpush.bf16.msra.mxu0 %v3517
    %5233 = vmatpush.bf16.msra.mxu0 %v3513
    %5234 = vmatpush.bf16.msra.mxu0 %v3509
    %5235 = vmatpush.bf16.msra.mxu0 %v3505
    %5236 = vmatpush.bf16.msra.mxu0 %v3501
    %5237 = vmatpush.bf16.msra.mxu0 %v3497
    %5238 = vmatpush.bf16.msra.mxu0 %v3493
    %5239 = vmatpush.bf16.msra.mxu0 %v3489
    %5240 = vmatmul.bf16.gmra.mxu0 %v835
    %v5241 = vpop.f32.mrf.mxu0
    %v5242 = vadd.f32 %v5229, %v5241
    %v5243 = vpop.f32.mrf.mxu0
    %5244 = vdwg.mxu0
    %5245 = vmatpush.bf16.msra.mxu0 %v3549
    %5246 = vmatpush.bf16.msra.mxu0 %v3545
    %5247 = vmatpush.bf16.msra.mxu0 %v3541
    %5248 = vmatpush.bf16.msra.mxu0 %v3537
    %5249 = vmatpush.bf16.msra.mxu0 %v3533
    %5250 = vmatpush.bf16.msra.mxu0 %v3529
    %5251 = vmatpush.bf16.msra.mxu0 %v3525
    %5252 = vmatpush.bf16.msra.mxu0 %v3521
    %5253 = vmatmul.bf16.gmra.mxu0 %v836
    %v5254 = vpop.f32.mrf.mxu0
    %v5255 = vadd.f32 %v5242, %v5254
    %v5256 = vpop.f32.mrf.mxu0
    %5257 = vdwg.mxu0
    %5258 = vmatpush.bf16.msra.mxu0 %v3581
    %5259 = vmatpush.bf16.msra.mxu0 %v3577
    %5260 = vmatpush.bf16.msra.mxu0 %v3573
    %5261 = vmatpush.bf16.msra.mxu0 %v3569
    %5262 = vmatpush.bf16.msra.mxu0 %v3565
    %5263 = vmatpush.bf16.msra.mxu0 %v3561
    %5264 = vmatpush.bf16.msra.mxu0 %v3557
    %5265 = vmatpush.bf16.msra.mxu0 %v3553
    %5266 = vmatmul.bf16.gmra.mxu0 %v837
    %v5267 = vpop.f32.mrf.mxu0
    %v5268 = vadd.f32 %v5255, %v5267
    %v5269 = vpop.f32.mrf.mxu0
    %5270 = vdwg.mxu0
    %5271 = vmatpush.bf16.msra.mxu0 %v3613
    %5272 = vmatpush.bf16.msra.mxu0 %v3609
    %5273 = vmatpush.bf16.msra.mxu0 %v3605
    %5274 = vmatpush.bf16.msra.mxu0 %v3601
    %5275 = vmatpush.bf16.msra.mxu0 %v3597
    %5276 = vmatpush.bf16.msra.mxu0 %v3593
    %5277 = vmatpush.bf16.msra.mxu0 %v3589
    %5278 = vmatpush.bf16.msra.mxu0 %v3585
    %5279 = vmatmul.bf16.gmra.mxu0 %v838
    %v5280 = vpop.f32.mrf.mxu0
    %v5281 = vadd.f32 %v5268, %v5280
    %v5282 = vpop.f32.mrf.mxu0
    %5283 = vdwg.mxu0
    %5284 = vmatpush.bf16.msra.mxu0 %v3645
    %5285 = vmatpush.bf16.msra.mxu0 %v3641
    %5286 = vmatpush.bf16.msra.mxu0 %v3637
    %5287 = vmatpush.bf16.msra.mxu0 %v3633
    %5288 = vmatpush.bf16.msra.mxu0 %v3629
    %5289 = vmatpush.bf16.msra.mxu0 %v3625
    %5290 = vmatpush.bf16.msra.mxu0 %v3621
    %5291 = vmatpush.bf16.msra.mxu0 %v3617
    %5292 = vmatmul.bf16.gmra.mxu0 %v839
    %v5293 = vpop.f32.mrf.mxu0
    %v5294 = vadd.f32 %v5281, %v5293
    %v5295 = vpop.f32.mrf.mxu0
    %5296 = vdwg.mxu0
    %5297 = vmatpush.bf16.msra.mxu0 %v3677
    %5298 = vmatpush.bf16.msra.mxu0 %v3673
    %5299 = vmatpush.bf16.msra.mxu0 %v3669
    %5300 = vmatpush.bf16.msra.mxu0 %v3665
    %5301 = vmatpush.bf16.msra.mxu0 %v3661
    %5302 = vmatpush.bf16.msra.mxu0 %v3657
    %5303 = vmatpush.bf16.msra.mxu0 %v3653
    %5304 = vmatpush.bf16.msra.mxu0 %v3649
    %5305 = vmatmul.bf16.gmra.mxu0 %v840
    %v5306 = vpop.f32.mrf.mxu0
    %v5307 = vadd.f32 %v5294, %v5306
    %v5308 = vpop.f32.mrf.mxu0
    %5309 = vdwg.mxu0
    %5310 = vmatpush.bf16.msra.mxu0 %v3709
    %5311 = vmatpush.bf16.msra.mxu0 %v3705
    %5312 = vmatpush.bf16.msra.mxu0 %v3701
    %5313 = vmatpush.bf16.msra.mxu0 %v3697
    %5314 = vmatpush.bf16.msra.mxu0 %v3693
    %5315 = vmatpush.bf16.msra.mxu0 %v3689
    %5316 = vmatpush.bf16.msra.mxu0 %v3685
    %5317 = vmatpush.bf16.msra.mxu0 %v3681
    %5318 = vmatmul.bf16.gmra.mxu0 %v841
    %v5319 = vpop.f32.mrf.mxu0
    %v5320 = vadd.f32 %v5307, %v5319
    %v5321 = vpop.f32.mrf.mxu0
    %5322 = vdwg.mxu0
    %5323 = vmatpush.bf16.msra.mxu0 %v3741
    %5324 = vmatpush.bf16.msra.mxu0 %v3737
    %5325 = vmatpush.bf16.msra.mxu0 %v3733
    %5326 = vmatpush.bf16.msra.mxu0 %v3729
    %5327 = vmatpush.bf16.msra.mxu0 %v3725
    %5328 = vmatpush.bf16.msra.mxu0 %v3721
    %5329 = vmatpush.bf16.msra.mxu0 %v3717
    %5330 = vmatpush.bf16.msra.mxu0 %v3713
    %5331 = vmatmul.bf16.gmra.mxu0 %v842
    %v5332 = vpop.f32.mrf.mxu0
    %v5333 = vadd.f32 %v5320, %v5332
    %v5334 = vpop.f32.mrf.mxu0
    %5335 = vdwg.mxu0
    %5336 = vmatpush.bf16.msra.mxu0 %v3773
    %5337 = vmatpush.bf16.msra.mxu0 %v3769
    %5338 = vmatpush.bf16.msra.mxu0 %v3765
    %5339 = vmatpush.bf16.msra.mxu0 %v3761
    %5340 = vmatpush.bf16.msra.mxu0 %v3757
    %5341 = vmatpush.bf16.msra.mxu0 %v3753
    %5342 = vmatpush.bf16.msra.mxu0 %v3749
    %5343 = vmatpush.bf16.msra.mxu0 %v3745
    %5344 = vmatmul.bf16.gmra.mxu0 %v845
    %v5345 = vpop.f32.mrf.mxu0
    %v5346 = vadd.f32 %v5333, %v5345
    %v5347 = vpop.f32.mrf.mxu0
    %5348 = vdwg.mxu0
    %5349 = vmatpush.bf16.msra.mxu0 %v3805
    %5350 = vmatpush.bf16.msra.mxu0 %v3801
    %5351 = vmatpush.bf16.msra.mxu0 %v3797
    %5352 = vmatpush.bf16.msra.mxu0 %v3793
    %5353 = vmatpush.bf16.msra.mxu0 %v3789
    %5354 = vmatpush.bf16.msra.mxu0 %v3785
    %5355 = vmatpush.bf16.msra.mxu0 %v3781
    %5356 = vmatpush.bf16.msra.mxu0 %v3777
    %5357 = vmatmul.bf16.gmra.mxu0 %v846
    %v5358 = vpop.f32.mrf.mxu0
    %v5359 = vadd.f32 %v5346, %v5358
    %v5360 = vpop.f32.mrf.mxu0
    %5361 = vdwg.mxu0
    %5362 = vmatpush.bf16.msra.mxu0 %v3837
    %5363 = vmatpush.bf16.msra.mxu0 %v3833
    %5364 = vmatpush.bf16.msra.mxu0 %v3829
    %5365 = vmatpush.bf16.msra.mxu0 %v3825
    %5366 = vmatpush.bf16.msra.mxu0 %v3821
    %5367 = vmatpush.bf16.msra.mxu0 %v3817
    %5368 = vmatpush.bf16.msra.mxu0 %v3813
    %5369 = vmatpush.bf16.msra.mxu0 %v3809
    %5370 = vmatmul.bf16.gmra.mxu0 %v847
    %v5371 = vpop.f32.mrf.mxu0
    %v5372 = vadd.f32 %v5359, %v5371
    %v5373 = vpop.f32.mrf.mxu0
    %5374 = vdwg.mxu0
    %5375 = vmatpush.bf16.msra.mxu0 %v3869
    %5376 = vmatpush.bf16.msra.mxu0 %v3865
    %5377 = vmatpush.bf16.msra.mxu0 %v3861
    %5378 = vmatpush.bf16.msra.mxu0 %v3857
    %5379 = vmatpush.bf16.msra.mxu0 %v3853
    %5380 = vmatpush.bf16.msra.mxu0 %v3849
    %5381 = vmatpush.bf16.msra.mxu0 %v3845
    %5382 = vmatpush.bf16.msra.mxu0 %v3841
    %5383 = vmatmul.bf16.gmra.mxu0 %v848
    %v5384 = vpop.f32.mrf.mxu0
    %v5385 = vadd.f32 %v5372, %v5384
    %v5386 = vpop.f32.mrf.mxu0
    %5387 = vdwg.mxu0
    %5388 = vmatpush.bf16.msra.mxu0 %v3901
    %5389 = vmatpush.bf16.msra.mxu0 %v3897
    %5390 = vmatpush.bf16.msra.mxu0 %v3893
    %5391 = vmatpush.bf16.msra.mxu0 %v3889
    %5392 = vmatpush.bf16.msra.mxu0 %v3885
    %5393 = vmatpush.bf16.msra.mxu0 %v3881
    %5394 = vmatpush.bf16.msra.mxu0 %v3877
    %5395 = vmatpush.bf16.msra.mxu0 %v3873
    %5396 = vmatmul.bf16.gmra.mxu0 %v849
    %v5397 = vpop.f32.mrf.mxu0
    %v5398 = vadd.f32 %v5385, %v5397
    %v5399 = vpop.f32.mrf.mxu0
    %5400 = vdwg.mxu0
    %5401 = vmatpush.bf16.msra.mxu0 %v3933
    %5402 = vmatpush.bf16.msra.mxu0 %v3929
    %5403 = vmatpush.bf16.msra.mxu0 %v3925
    %5404 = vmatpush.bf16.msra.mxu0 %v3921
    %5405 = vmatpush.bf16.msra.mxu0 %v3917
    %5406 = vmatpush.bf16.msra.mxu0 %v3913
    %5407 = vmatpush.bf16.msra.mxu0 %v3909
    %5408 = vmatpush.bf16.msra.mxu0 %v3905
    %5409 = vmatmul.bf16.gmra.mxu0 %v850
    %v5410 = vpop.f32.mrf.mxu0
    %v5411 = vadd.f32 %v5398, %v5410
    %v5412 = vpop.f32.mrf.mxu0
    %5413 = vdwg.mxu0
    %5414 = vmatpush.bf16.msra.mxu0 %v3965
    %5415 = vmatpush.bf16.msra.mxu0 %v3961
    %5416 = vmatpush.bf16.msra.mxu0 %v3957
    %5417 = vmatpush.bf16.msra.mxu0 %v3953
    %5418 = vmatpush.bf16.msra.mxu0 %v3949
    %5419 = vmatpush.bf16.msra.mxu0 %v3945
    %5420 = vmatpush.bf16.msra.mxu0 %v3941
    %5421 = vmatpush.bf16.msra.mxu0 %v3937
    %5422 = vmatmul.bf16.gmra.mxu0 %v851
    %v5423 = vpop.f32.mrf.mxu0
    %v5424 = vadd.f32 %v5411, %v5423
    %v5425 = vpop.f32.mrf.mxu0
    %5426 = vdwg.mxu0
    %5427 = vmatpush.bf16.msra.mxu0 %v3997
    %5428 = vmatpush.bf16.msra.mxu0 %v3993
    %5429 = vmatpush.bf16.msra.mxu0 %v3989
    %5430 = vmatpush.bf16.msra.mxu0 %v3985
    %5431 = vmatpush.bf16.msra.mxu0 %v3981
    %5432 = vmatpush.bf16.msra.mxu0 %v3977
    %5433 = vmatpush.bf16.msra.mxu0 %v3973
    %5434 = vmatpush.bf16.msra.mxu0 %v3969
    %5435 = vmatmul.bf16.gmra.mxu0 %v852
    %v5436 = vpop.f32.mrf.mxu0
    %v5437 = vadd.f32 %v5424, %v5436
    %v5438 = vpop.f32.mrf.mxu0
    %5439 = vdwg.mxu0
    %5440 = vmatpush.bf16.msra.mxu0 0
    %5441 = vmatpush.bf16.msra.mxu0 0
    %5442 = vmatpush.bf16.msra.mxu0 0
    %5443 = vmatpush.bf16.msra.mxu0 0
    %5444 = vmatpush.bf16.msra.mxu0 %v4013
    %5445 = vmatpush.bf16.msra.mxu0 %v4009
    %5446 = vmatpush.bf16.msra.mxu0 %v4005
    %5447 = vmatpush.bf16.msra.mxu0 %v4001
    %5448 = vmatmul.bf16.gmra.mxu0 %v4801
    %v5449 = vpop.f32.mrf.mxu0
    %v5450 = vadd.f32 %v5437, %v5449
    %v5451 = vpop.f32.mrf.mxu0
    %5452 = vdwg.mxu0
    %5453 = vmatpush.bf16.msra.mxu0 %v3262
    %5454 = vmatpush.bf16.msra.mxu0 %v3258
    %5455 = vmatpush.bf16.msra.mxu0 %v3254
    %5456 = vmatpush.bf16.msra.mxu0 %v3250
    %5457 = vmatpush.bf16.msra.mxu0 %v3246
    %5458 = vmatpush.bf16.msra.mxu0 %v3242
    %5459 = vmatpush.bf16.msra.mxu0 %v3238
    %5460 = vmatpush.bf16.msra.mxu0 %v3234
    %5461 = vmatmul.bf16.gmra.mxu0 %v825
    %v5462 = vpop.f32.mrf.mxu0
    %v5463 = vadd.f32 %v817, %v5462
    %v5464 = vpop.f32.mrf.mxu0
    %5465 = vdwg.mxu0
    %5466 = vmatpush.bf16.msra.mxu0 %v3294
    %5467 = vmatpush.bf16.msra.mxu0 %v3290
    %5468 = vmatpush.bf16.msra.mxu0 %v3286
    %5469 = vmatpush.bf16.msra.mxu0 %v3282
    %5470 = vmatpush.bf16.msra.mxu0 %v3278
    %5471 = vmatpush.bf16.msra.mxu0 %v3274
    %5472 = vmatpush.bf16.msra.mxu0 %v3270
    %5473 = vmatpush.bf16.msra.mxu0 %v3266
    %5474 = vmatmul.bf16.gmra.mxu0 %v826
    %v5475 = vpop.f32.mrf.mxu0
    %v5476 = vadd.f32 %v5463, %v5475
    %v5477 = vpop.f32.mrf.mxu0
    %5478 = vdwg.mxu0
    %5479 = vmatpush.bf16.msra.mxu0 %v3326
    %5480 = vmatpush.bf16.msra.mxu0 %v3322
    %5481 = vmatpush.bf16.msra.mxu0 %v3318
    %5482 = vmatpush.bf16.msra.mxu0 %v3314
    %5483 = vmatpush.bf16.msra.mxu0 %v3310
    %5484 = vmatpush.bf16.msra.mxu0 %v3306
    %5485 = vmatpush.bf16.msra.mxu0 %v3302
    %5486 = vmatpush.bf16.msra.mxu0 %v3298
    %5487 = vmatmul.bf16.gmra.mxu0 %v827
    %v5488 = vpop.f32.mrf.mxu0
    %v5489 = vadd.f32 %v5476, %v5488
    %v5490 = vpop.f32.mrf.mxu0
    %5491 = vdwg.mxu0
    %5492 = vmatpush.bf16.msra.mxu0 %v3358
    %5493 = vmatpush.bf16.msra.mxu0 %v3354
    %5494 = vmatpush.bf16.msra.mxu0 %v3350
    %5495 = vmatpush.bf16.msra.mxu0 %v3346
    %5496 = vmatpush.bf16.msra.mxu0 %v3342
    %5497 = vmatpush.bf16.msra.mxu0 %v3338
    %5498 = vmatpush.bf16.msra.mxu0 %v3334
    %5499 = vmatpush.bf16.msra.mxu0 %v3330
    %5500 = vmatmul.bf16.gmra.mxu0 %v828
    %v5501 = vpop.f32.mrf.mxu0
    %v5502 = vadd.f32 %v5489, %v5501
    %v5503 = vpop.f32.mrf.mxu0
    %5504 = vdwg.mxu0
    %5505 = vmatpush.bf16.msra.mxu0 %v3390
    %5506 = vmatpush.bf16.msra.mxu0 %v3386
    %5507 = vmatpush.bf16.msra.mxu0 %v3382
    %5508 = vmatpush.bf16.msra.mxu0 %v3378
    %5509 = vmatpush.bf16.msra.mxu0 %v3374
    %5510 = vmatpush.bf16.msra.mxu0 %v3370
    %5511 = vmatpush.bf16.msra.mxu0 %v3366
    %5512 = vmatpush.bf16.msra.mxu0 %v3362
    %5513 = vmatmul.bf16.gmra.mxu0 %v829
    %v5514 = vpop.f32.mrf.mxu0
    %v5515 = vadd.f32 %v5502, %v5514
    %v5516 = vpop.f32.mrf.mxu0
    %5517 = vdwg.mxu0
    %5518 = vmatpush.bf16.msra.mxu0 %v3422
    %5519 = vmatpush.bf16.msra.mxu0 %v3418
    %5520 = vmatpush.bf16.msra.mxu0 %v3414
    %5521 = vmatpush.bf16.msra.mxu0 %v3410
    %5522 = vmatpush.bf16.msra.mxu0 %v3406
    %5523 = vmatpush.bf16.msra.mxu0 %v3402
    %5524 = vmatpush.bf16.msra.mxu0 %v3398
    %5525 = vmatpush.bf16.msra.mxu0 %v3394
    %5526 = vmatmul.bf16.gmra.mxu0 %v830
    %v5527 = vpop.f32.mrf.mxu0
    %v5528 = vadd.f32 %v5515, %v5527
    %v5529 = vpop.f32.mrf.mxu0
    %5530 = vdwg.mxu0
    %5531 = vmatpush.bf16.msra.mxu0 %v3454
    %5532 = vmatpush.bf16.msra.mxu0 %v3450
    %5533 = vmatpush.bf16.msra.mxu0 %v3446
    %5534 = vmatpush.bf16.msra.mxu0 %v3442
    %5535 = vmatpush.bf16.msra.mxu0 %v3438
    %5536 = vmatpush.bf16.msra.mxu0 %v3434
    %5537 = vmatpush.bf16.msra.mxu0 %v3430
    %5538 = vmatpush.bf16.msra.mxu0 %v3426
    %5539 = vmatmul.bf16.gmra.mxu0 %v831
    %v5540 = vpop.f32.mrf.mxu0
    %v5541 = vadd.f32 %v5528, %v5540
    %v5542 = vpop.f32.mrf.mxu0
    %5543 = vdwg.mxu0
    %5544 = vmatpush.bf16.msra.mxu0 %v3486
    %5545 = vmatpush.bf16.msra.mxu0 %v3482
    %5546 = vmatpush.bf16.msra.mxu0 %v3478
    %5547 = vmatpush.bf16.msra.mxu0 %v3474
    %5548 = vmatpush.bf16.msra.mxu0 %v3470
    %5549 = vmatpush.bf16.msra.mxu0 %v3466
    %5550 = vmatpush.bf16.msra.mxu0 %v3462
    %5551 = vmatpush.bf16.msra.mxu0 %v3458
    %5552 = vmatmul.bf16.gmra.mxu0 %v832
    %v5553 = vpop.f32.mrf.mxu0
    %v5554 = vadd.f32 %v5541, %v5553
    %v5555 = vpop.f32.mrf.mxu0
    %5556 = vdwg.mxu0
    %5557 = vmatpush.bf16.msra.mxu0 %v3518
    %5558 = vmatpush.bf16.msra.mxu0 %v3514
    %5559 = vmatpush.bf16.msra.mxu0 %v3510
    %5560 = vmatpush.bf16.msra.mxu0 %v3506
    %5561 = vmatpush.bf16.msra.mxu0 %v3502
    %5562 = vmatpush.bf16.msra.mxu0 %v3498
    %5563 = vmatpush.bf16.msra.mxu0 %v3494
    %5564 = vmatpush.bf16.msra.mxu0 %v3490
    %5565 = vmatmul.bf16.gmra.mxu0 %v835
    %v5566 = vpop.f32.mrf.mxu0
    %v5567 = vadd.f32 %v5554, %v5566
    %v5568 = vpop.f32.mrf.mxu0
    %5569 = vdwg.mxu0
    %5570 = vmatpush.bf16.msra.mxu0 %v3550
    %5571 = vmatpush.bf16.msra.mxu0 %v3546
    %5572 = vmatpush.bf16.msra.mxu0 %v3542
    %5573 = vmatpush.bf16.msra.mxu0 %v3538
    %5574 = vmatpush.bf16.msra.mxu0 %v3534
    %5575 = vmatpush.bf16.msra.mxu0 %v3530
    %5576 = vmatpush.bf16.msra.mxu0 %v3526
    %5577 = vmatpush.bf16.msra.mxu0 %v3522
    %5578 = vmatmul.bf16.gmra.mxu0 %v836
    %v5579 = vpop.f32.mrf.mxu0
    %v5580 = vadd.f32 %v5567, %v5579
    %v5581 = vpop.f32.mrf.mxu0
    %5582 = vdwg.mxu0
    %5583 = vmatpush.bf16.msra.mxu0 %v3582
    %5584 = vmatpush.bf16.msra.mxu0 %v3578
    %5585 = vmatpush.bf16.msra.mxu0 %v3574
    %5586 = vmatpush.bf16.msra.mxu0 %v3570
    %5587 = vmatpush.bf16.msra.mxu0 %v3566
    %5588 = vmatpush.bf16.msra.mxu0 %v3562
    %5589 = vmatpush.bf16.msra.mxu0 %v3558
    %5590 = vmatpush.bf16.msra.mxu0 %v3554
    %5591 = vmatmul.bf16.gmra.mxu0 %v837
    %v5592 = vpop.f32.mrf.mxu0
    %v5593 = vadd.f32 %v5580, %v5592
    %v5594 = vpop.f32.mrf.mxu0
    %5595 = vdwg.mxu0
    %5596 = vmatpush.bf16.msra.mxu0 %v3614
    %5597 = vmatpush.bf16.msra.mxu0 %v3610
    %5598 = vmatpush.bf16.msra.mxu0 %v3606
    %5599 = vmatpush.bf16.msra.mxu0 %v3602
    %5600 = vmatpush.bf16.msra.mxu0 %v3598
    %5601 = vmatpush.bf16.msra.mxu0 %v3594
    %5602 = vmatpush.bf16.msra.mxu0 %v3590
    %5603 = vmatpush.bf16.msra.mxu0 %v3586
    %5604 = vmatmul.bf16.gmra.mxu0 %v838
    %v5605 = vpop.f32.mrf.mxu0
    %v5606 = vadd.f32 %v5593, %v5605
    %v5607 = vpop.f32.mrf.mxu0
    %5608 = vdwg.mxu0
    %5609 = vmatpush.bf16.msra.mxu0 %v3646
    %5610 = vmatpush.bf16.msra.mxu0 %v3642
    %5611 = vmatpush.bf16.msra.mxu0 %v3638
    %5612 = vmatpush.bf16.msra.mxu0 %v3634
    %5613 = vmatpush.bf16.msra.mxu0 %v3630
    %5614 = vmatpush.bf16.msra.mxu0 %v3626
    %5615 = vmatpush.bf16.msra.mxu0 %v3622
    %5616 = vmatpush.bf16.msra.mxu0 %v3618
    %5617 = vmatmul.bf16.gmra.mxu0 %v839
    %v5618 = vpop.f32.mrf.mxu0
    %v5619 = vadd.f32 %v5606, %v5618
    %v5620 = vpop.f32.mrf.mxu0
    %5621 = vdwg.mxu0
    %5622 = vmatpush.bf16.msra.mxu0 %v3678
    %5623 = vmatpush.bf16.msra.mxu0 %v3674
    %5624 = vmatpush.bf16.msra.mxu0 %v3670
    %5625 = vmatpush.bf16.msra.mxu0 %v3666
    %5626 = vmatpush.bf16.msra.mxu0 %v3662
    %5627 = vmatpush.bf16.msra.mxu0 %v3658
    %5628 = vmatpush.bf16.msra.mxu0 %v3654
    %5629 = vmatpush.bf16.msra.mxu0 %v3650
    %5630 = vmatmul.bf16.gmra.mxu0 %v840
    %v5631 = vpop.f32.mrf.mxu0
    %v5632 = vadd.f32 %v5619, %v5631
    %v5633 = vpop.f32.mrf.mxu0
    %5634 = vdwg.mxu0
    %5635 = vmatpush.bf16.msra.mxu0 %v3710
    %5636 = vmatpush.bf16.msra.mxu0 %v3706
    %5637 = vmatpush.bf16.msra.mxu0 %v3702
    %5638 = vmatpush.bf16.msra.mxu0 %v3698
    %5639 = vmatpush.bf16.msra.mxu0 %v3694
    %5640 = vmatpush.bf16.msra.mxu0 %v3690
    %5641 = vmatpush.bf16.msra.mxu0 %v3686
    %5642 = vmatpush.bf16.msra.mxu0 %v3682
    %5643 = vmatmul.bf16.gmra.mxu0 %v841
    %v5644 = vpop.f32.mrf.mxu0
    %v5645 = vadd.f32 %v5632, %v5644
    %v5646 = vpop.f32.mrf.mxu0
    %5647 = vdwg.mxu0
    %5648 = vmatpush.bf16.msra.mxu0 %v3742
    %5649 = vmatpush.bf16.msra.mxu0 %v3738
    %5650 = vmatpush.bf16.msra.mxu0 %v3734
    %5651 = vmatpush.bf16.msra.mxu0 %v3730
    %5652 = vmatpush.bf16.msra.mxu0 %v3726
    %5653 = vmatpush.bf16.msra.mxu0 %v3722
    %5654 = vmatpush.bf16.msra.mxu0 %v3718
    %5655 = vmatpush.bf16.msra.mxu0 %v3714
    %5656 = vmatmul.bf16.gmra.mxu0 %v842
    %v5657 = vpop.f32.mrf.mxu0
    %v5658 = vadd.f32 %v5645, %v5657
    %v5659 = vpop.f32.mrf.mxu0
    %5660 = vdwg.mxu0
    %5661 = vmatpush.bf16.msra.mxu0 %v3774
    %5662 = vmatpush.bf16.msra.mxu0 %v3770
    %5663 = vmatpush.bf16.msra.mxu0 %v3766
    %5664 = vmatpush.bf16.msra.mxu0 %v3762
    %5665 = vmatpush.bf16.msra.mxu0 %v3758
    %5666 = vmatpush.bf16.msra.mxu0 %v3754
    %5667 = vmatpush.bf16.msra.mxu0 %v3750
    %5668 = vmatpush.bf16.msra.mxu0 %v3746
    %5669 = vmatmul.bf16.gmra.mxu0 %v845
    %v5670 = vpop.f32.mrf.mxu0
    %v5671 = vadd.f32 %v5658, %v5670
    %v5672 = vpop.f32.mrf.mxu0
    %5673 = vdwg.mxu0
    %5674 = vmatpush.bf16.msra.mxu0 %v3806
    %5675 = vmatpush.bf16.msra.mxu0 %v3802
    %5676 = vmatpush.bf16.msra.mxu0 %v3798
    %5677 = vmatpush.bf16.msra.mxu0 %v3794
    %5678 = vmatpush.bf16.msra.mxu0 %v3790
    %5679 = vmatpush.bf16.msra.mxu0 %v3786
    %5680 = vmatpush.bf16.msra.mxu0 %v3782
    %5681 = vmatpush.bf16.msra.mxu0 %v3778
    %5682 = vmatmul.bf16.gmra.mxu0 %v846
    %v5683 = vpop.f32.mrf.mxu0
    %v5684 = vadd.f32 %v5671, %v5683
    %v5685 = vpop.f32.mrf.mxu0
    %5686 = vdwg.mxu0
    %5687 = vmatpush.bf16.msra.mxu0 %v3838
    %5688 = vmatpush.bf16.msra.mxu0 %v3834
    %5689 = vmatpush.bf16.msra.mxu0 %v3830
    %5690 = vmatpush.bf16.msra.mxu0 %v3826
    %5691 = vmatpush.bf16.msra.mxu0 %v3822
    %5692 = vmatpush.bf16.msra.mxu0 %v3818
    %5693 = vmatpush.bf16.msra.mxu0 %v3814
    %5694 = vmatpush.bf16.msra.mxu0 %v3810
    %5695 = vmatmul.bf16.gmra.mxu0 %v847
    %v5696 = vpop.f32.mrf.mxu0
    %v5697 = vadd.f32 %v5684, %v5696
    %v5698 = vpop.f32.mrf.mxu0
    %5699 = vdwg.mxu0
    %5700 = vmatpush.bf16.msra.mxu0 %v3870
    %5701 = vmatpush.bf16.msra.mxu0 %v3866
    %5702 = vmatpush.bf16.msra.mxu0 %v3862
    %5703 = vmatpush.bf16.msra.mxu0 %v3858
    %5704 = vmatpush.bf16.msra.mxu0 %v3854
    %5705 = vmatpush.bf16.msra.mxu0 %v3850
    %5706 = vmatpush.bf16.msra.mxu0 %v3846
    %5707 = vmatpush.bf16.msra.mxu0 %v3842
    %5708 = vmatmul.bf16.gmra.mxu0 %v848
    %v5709 = vpop.f32.mrf.mxu0
    %v5710 = vadd.f32 %v5697, %v5709
    %v5711 = vpop.f32.mrf.mxu0
    %5712 = vdwg.mxu0
    %5713 = vmatpush.bf16.msra.mxu0 %v3902
    %5714 = vmatpush.bf16.msra.mxu0 %v3898
    %5715 = vmatpush.bf16.msra.mxu0 %v3894
    %5716 = vmatpush.bf16.msra.mxu0 %v3890
    %5717 = vmatpush.bf16.msra.mxu0 %v3886
    %5718 = vmatpush.bf16.msra.mxu0 %v3882
    %5719 = vmatpush.bf16.msra.mxu0 %v3878
    %5720 = vmatpush.bf16.msra.mxu0 %v3874
    %5721 = vmatmul.bf16.gmra.mxu0 %v849
    %v5722 = vpop.f32.mrf.mxu0
    %v5723 = vadd.f32 %v5710, %v5722
    %v5724 = vpop.f32.mrf.mxu0
    %5725 = vdwg.mxu0
    %5726 = vmatpush.bf16.msra.mxu0 %v3934
    %5727 = vmatpush.bf16.msra.mxu0 %v3930
    %5728 = vmatpush.bf16.msra.mxu0 %v3926
    %5729 = vmatpush.bf16.msra.mxu0 %v3922
    %5730 = vmatpush.bf16.msra.mxu0 %v3918
    %5731 = vmatpush.bf16.msra.mxu0 %v3914
    %5732 = vmatpush.bf16.msra.mxu0 %v3910
    %5733 = vmatpush.bf16.msra.mxu0 %v3906
    %5734 = vmatmul.bf16.gmra.mxu0 %v850
    %v5735 = vpop.f32.mrf.mxu0
    %v5736 = vadd.f32 %v5723, %v5735
    %v5737 = vpop.f32.mrf.mxu0
    %5738 = vdwg.mxu0
    %5739 = vmatpush.bf16.msra.mxu0 %v3966
    %5740 = vmatpush.bf16.msra.mxu0 %v3962
    %5741 = vmatpush.bf16.msra.mxu0 %v3958
    %5742 = vmatpush.bf16.msra.mxu0 %v3954
    %5743 = vmatpush.bf16.msra.mxu0 %v3950
    %5744 = vmatpush.bf16.msra.mxu0 %v3946
    %5745 = vmatpush.bf16.msra.mxu0 %v3942
    %5746 = vmatpush.bf16.msra.mxu0 %v3938
    %5747 = vmatmul.bf16.gmra.mxu0 %v851
    %v5748 = vpop.f32.mrf.mxu0
    %v5749 = vadd.f32 %v5736, %v5748
    %v5750 = vpop.f32.mrf.mxu0
    %5751 = vdwg.mxu0
    %5752 = vmatpush.bf16.msra.mxu0 %v3998
    %5753 = vmatpush.bf16.msra.mxu0 %v3994
    %5754 = vmatpush.bf16.msra.mxu0 %v3990
    %5755 = vmatpush.bf16.msra.mxu0 %v3986
    %5756 = vmatpush.bf16.msra.mxu0 %v3982
    %5757 = vmatpush.bf16.msra.mxu0 %v3978
    %5758 = vmatpush.bf16.msra.mxu0 %v3974
    %5759 = vmatpush.bf16.msra.mxu0 %v3970
    %5760 = vmatmul.bf16.gmra.mxu0 %v852
    %v5761 = vpop.f32.mrf.mxu0
    %v5762 = vadd.f32 %v5749, %v5761
    %v5763 = vpop.f32.mrf.mxu0
    %5764 = vdwg.mxu0
    %5765 = vmatpush.bf16.msra.mxu0 0
    %5766 = vmatpush.bf16.msra.mxu0 0
    %5767 = vmatpush.bf16.msra.mxu0 0
    %5768 = vmatpush.bf16.msra.mxu0 0
    %5769 = vmatpush.bf16.msra.mxu0 %v4014
    %5770 = vmatpush.bf16.msra.mxu0 %v4010
    %5771 = vmatpush.bf16.msra.mxu0 %v4006
    %5772 = vmatpush.bf16.msra.mxu0 %v4002
    %5773 = vmatmul.bf16.gmra.mxu0 %v4801
    %v5774 = vpop.f32.mrf.mxu0
    %v5775 = vadd.f32 %v5762, %v5774
    %v5776 = vpop.f32.mrf.mxu0
    %5777 = vdwg.mxu0
    %5778 = vmatpush.bf16.msra.mxu0 %v3263
    %5779 = vmatpush.bf16.msra.mxu0 %v3259
    %5780 = vmatpush.bf16.msra.mxu0 %v3255
    %5781 = vmatpush.bf16.msra.mxu0 %v3251
    %5782 = vmatpush.bf16.msra.mxu0 %v3247
    %5783 = vmatpush.bf16.msra.mxu0 %v3243
    %5784 = vmatpush.bf16.msra.mxu0 %v3239
    %5785 = vmatpush.bf16.msra.mxu0 %v3235
    %5786 = vmatmul.bf16.gmra.mxu0 %v825
    %v5787 = vpop.f32.mrf.mxu0
    %v5788 = vadd.f32 %v818, %v5787
    %v5789 = vpop.f32.mrf.mxu0
    %5790 = vdwg.mxu0
    %5791 = vmatpush.bf16.msra.mxu0 %v3295
    %5792 = vmatpush.bf16.msra.mxu0 %v3291
    %5793 = vmatpush.bf16.msra.mxu0 %v3287
    %5794 = vmatpush.bf16.msra.mxu0 %v3283
    %5795 = vmatpush.bf16.msra.mxu0 %v3279
    %5796 = vmatpush.bf16.msra.mxu0 %v3275
    %5797 = vmatpush.bf16.msra.mxu0 %v3271
    %5798 = vmatpush.bf16.msra.mxu0 %v3267
    %5799 = vmatmul.bf16.gmra.mxu0 %v826
    %v5800 = vpop.f32.mrf.mxu0
    %v5801 = vadd.f32 %v5788, %v5800
    %v5802 = vpop.f32.mrf.mxu0
    %5803 = vdwg.mxu0
    %5804 = vmatpush.bf16.msra.mxu0 %v3327
    %5805 = vmatpush.bf16.msra.mxu0 %v3323
    %5806 = vmatpush.bf16.msra.mxu0 %v3319
    %5807 = vmatpush.bf16.msra.mxu0 %v3315
    %5808 = vmatpush.bf16.msra.mxu0 %v3311
    %5809 = vmatpush.bf16.msra.mxu0 %v3307
    %5810 = vmatpush.bf16.msra.mxu0 %v3303
    %5811 = vmatpush.bf16.msra.mxu0 %v3299
    %5812 = vmatmul.bf16.gmra.mxu0 %v827
    %v5813 = vpop.f32.mrf.mxu0
    %v5814 = vadd.f32 %v5801, %v5813
    %v5815 = vpop.f32.mrf.mxu0
    %5816 = vdwg.mxu0
    %5817 = vmatpush.bf16.msra.mxu0 %v3359
    %5818 = vmatpush.bf16.msra.mxu0 %v3355
    %5819 = vmatpush.bf16.msra.mxu0 %v3351
    %5820 = vmatpush.bf16.msra.mxu0 %v3347
    %5821 = vmatpush.bf16.msra.mxu0 %v3343
    %5822 = vmatpush.bf16.msra.mxu0 %v3339
    %5823 = vmatpush.bf16.msra.mxu0 %v3335
    %5824 = vmatpush.bf16.msra.mxu0 %v3331
    %5825 = vmatmul.bf16.gmra.mxu0 %v828
    %v5826 = vpop.f32.mrf.mxu0
    %v5827 = vadd.f32 %v5814, %v5826
    %v5828 = vpop.f32.mrf.mxu0
    %5829 = vdwg.mxu0
    %5830 = vmatpush.bf16.msra.mxu0 %v3391
    %5831 = vmatpush.bf16.msra.mxu0 %v3387
    %5832 = vmatpush.bf16.msra.mxu0 %v3383
    %5833 = vmatpush.bf16.msra.mxu0 %v3379
    %5834 = vmatpush.bf16.msra.mxu0 %v3375
    %5835 = vmatpush.bf16.msra.mxu0 %v3371
    %5836 = vmatpush.bf16.msra.mxu0 %v3367
    %5837 = vmatpush.bf16.msra.mxu0 %v3363
    %5838 = vmatmul.bf16.gmra.mxu0 %v829
    %v5839 = vpop.f32.mrf.mxu0
    %v5840 = vadd.f32 %v5827, %v5839
    %v5841 = vpop.f32.mrf.mxu0
    %5842 = vdwg.mxu0
    %5843 = vmatpush.bf16.msra.mxu0 %v3423
    %5844 = vmatpush.bf16.msra.mxu0 %v3419
    %5845 = vmatpush.bf16.msra.mxu0 %v3415
    %5846 = vmatpush.bf16.msra.mxu0 %v3411
    %5847 = vmatpush.bf16.msra.mxu0 %v3407
    %5848 = vmatpush.bf16.msra.mxu0 %v3403
    %5849 = vmatpush.bf16.msra.mxu0 %v3399
    %5850 = vmatpush.bf16.msra.mxu0 %v3395
    %5851 = vmatmul.bf16.gmra.mxu0 %v830
    %v5852 = vpop.f32.mrf.mxu0
    %v5853 = vadd.f32 %v5840, %v5852
    %v5854 = vpop.f32.mrf.mxu0
    %5855 = vdwg.mxu0
    %5856 = vmatpush.bf16.msra.mxu0 %v3455
    %5857 = vmatpush.bf16.msra.mxu0 %v3451
    %5858 = vmatpush.bf16.msra.mxu0 %v3447
    %5859 = vmatpush.bf16.msra.mxu0 %v3443
    %5860 = vmatpush.bf16.msra.mxu0 %v3439
    %5861 = vmatpush.bf16.msra.mxu0 %v3435
    %5862 = vmatpush.bf16.msra.mxu0 %v3431
    %5863 = vmatpush.bf16.msra.mxu0 %v3427
    %5864 = vmatmul.bf16.gmra.mxu0 %v831
    %v5865 = vpop.f32.mrf.mxu0
    %v5866 = vadd.f32 %v5853, %v5865
    %v5867 = vpop.f32.mrf.mxu0
    %5868 = vdwg.mxu0
    %5869 = vmatpush.bf16.msra.mxu0 %v3487
    %5870 = vmatpush.bf16.msra.mxu0 %v3483
    %5871 = vmatpush.bf16.msra.mxu0 %v3479
    %5872 = vmatpush.bf16.msra.mxu0 %v3475
    %5873 = vmatpush.bf16.msra.mxu0 %v3471
    %5874 = vmatpush.bf16.msra.mxu0 %v3467
    %5875 = vmatpush.bf16.msra.mxu0 %v3463
    %5876 = vmatpush.bf16.msra.mxu0 %v3459
    %5877 = vmatmul.bf16.gmra.mxu0 %v832
    %v5878 = vpop.f32.mrf.mxu0
    %v5879 = vadd.f32 %v5866, %v5878
    %v5880 = vpop.f32.mrf.mxu0
    %5881 = vdwg.mxu0
    %5882 = vmatpush.bf16.msra.mxu0 %v3519
    %5883 = vmatpush.bf16.msra.mxu0 %v3515
    %5884 = vmatpush.bf16.msra.mxu0 %v3511
    %5885 = vmatpush.bf16.msra.mxu0 %v3507
    %5886 = vmatpush.bf16.msra.mxu0 %v3503
    %5887 = vmatpush.bf16.msra.mxu0 %v3499
    %5888 = vmatpush.bf16.msra.mxu0 %v3495
    %5889 = vmatpush.bf16.msra.mxu0 %v3491
    %5890 = vmatmul.bf16.gmra.mxu0 %v835
    %v5891 = vpop.f32.mrf.mxu0
    %v5892 = vadd.f32 %v5879, %v5891
    %v5893 = vpop.f32.mrf.mxu0
    %5894 = vdwg.mxu0
    %5895 = vmatpush.bf16.msra.mxu0 %v3551
    %5896 = vmatpush.bf16.msra.mxu0 %v3547
    %5897 = vmatpush.bf16.msra.mxu0 %v3543
    %5898 = vmatpush.bf16.msra.mxu0 %v3539
    %5899 = vmatpush.bf16.msra.mxu0 %v3535
    %5900 = vmatpush.bf16.msra.mxu0 %v3531
    %5901 = vmatpush.bf16.msra.mxu0 %v3527
    %5902 = vmatpush.bf16.msra.mxu0 %v3523
    %5903 = vmatmul.bf16.gmra.mxu0 %v836
    %v5904 = vpop.f32.mrf.mxu0
    %v5905 = vadd.f32 %v5892, %v5904
    %v5906 = vpop.f32.mrf.mxu0
    %5907 = vdwg.mxu0
    %5908 = vmatpush.bf16.msra.mxu0 %v3583
    %5909 = vmatpush.bf16.msra.mxu0 %v3579
    %5910 = vmatpush.bf16.msra.mxu0 %v3575
    %5911 = vmatpush.bf16.msra.mxu0 %v3571
    %5912 = vmatpush.bf16.msra.mxu0 %v3567
    %5913 = vmatpush.bf16.msra.mxu0 %v3563
    %5914 = vmatpush.bf16.msra.mxu0 %v3559
    %5915 = vmatpush.bf16.msra.mxu0 %v3555
    %5916 = vmatmul.bf16.gmra.mxu0 %v837
    %v5917 = vpop.f32.mrf.mxu0
    %v5918 = vadd.f32 %v5905, %v5917
    %v5919 = vpop.f32.mrf.mxu0
    %5920 = vdwg.mxu0
    %5921 = vmatpush.bf16.msra.mxu0 %v3615
    %5922 = vmatpush.bf16.msra.mxu0 %v3611
    %5923 = vmatpush.bf16.msra.mxu0 %v3607
    %5924 = vmatpush.bf16.msra.mxu0 %v3603
    %5925 = vmatpush.bf16.msra.mxu0 %v3599
    %5926 = vmatpush.bf16.msra.mxu0 %v3595
    %5927 = vmatpush.bf16.msra.mxu0 %v3591
    %5928 = vmatpush.bf16.msra.mxu0 %v3587
    %5929 = vmatmul.bf16.gmra.mxu0 %v838
    %v5930 = vpop.f32.mrf.mxu0
    %v5931 = vadd.f32 %v5918, %v5930
    %v5932 = vpop.f32.mrf.mxu0
    %5933 = vdwg.mxu0
    %5934 = vmatpush.bf16.msra.mxu0 %v3647
    %5935 = vmatpush.bf16.msra.mxu0 %v3643
    %5936 = vmatpush.bf16.msra.mxu0 %v3639
    %5937 = vmatpush.bf16.msra.mxu0 %v3635
    %5938 = vmatpush.bf16.msra.mxu0 %v3631
    %5939 = vmatpush.bf16.msra.mxu0 %v3627
    %5940 = vmatpush.bf16.msra.mxu0 %v3623
    %5941 = vmatpush.bf16.msra.mxu0 %v3619
    %5942 = vmatmul.bf16.gmra.mxu0 %v839
    %v5943 = vpop.f32.mrf.mxu0
    %v5944 = vadd.f32 %v5931, %v5943
    %v5945 = vpop.f32.mrf.mxu0
    %5946 = vdwg.mxu0
    %5947 = vmatpush.bf16.msra.mxu0 %v3679
    %5948 = vmatpush.bf16.msra.mxu0 %v3675
    %5949 = vmatpush.bf16.msra.mxu0 %v3671
    %5950 = vmatpush.bf16.msra.mxu0 %v3667
    %5951 = vmatpush.bf16.msra.mxu0 %v3663
    %5952 = vmatpush.bf16.msra.mxu0 %v3659
    %5953 = vmatpush.bf16.msra.mxu0 %v3655
    %5954 = vmatpush.bf16.msra.mxu0 %v3651
    %5955 = vmatmul.bf16.gmra.mxu0 %v840
    %v5956 = vpop.f32.mrf.mxu0
    %v5957 = vadd.f32 %v5944, %v5956
    %v5958 = vpop.f32.mrf.mxu0
    %5959 = vdwg.mxu0
    %5960 = vmatpush.bf16.msra.mxu0 %v3711
    %5961 = vmatpush.bf16.msra.mxu0 %v3707
    %5962 = vmatpush.bf16.msra.mxu0 %v3703
    %5963 = vmatpush.bf16.msra.mxu0 %v3699
    %5964 = vmatpush.bf16.msra.mxu0 %v3695
    %5965 = vmatpush.bf16.msra.mxu0 %v3691
    %5966 = vmatpush.bf16.msra.mxu0 %v3687
    %5967 = vmatpush.bf16.msra.mxu0 %v3683
    %5968 = vmatmul.bf16.gmra.mxu0 %v841
    %v5969 = vpop.f32.mrf.mxu0
    %v5970 = vadd.f32 %v5957, %v5969
    %v5971 = vpop.f32.mrf.mxu0
    %5972 = vdwg.mxu0
    %5973 = vmatpush.bf16.msra.mxu0 %v3743
    %5974 = vmatpush.bf16.msra.mxu0 %v3739
    %5975 = vmatpush.bf16.msra.mxu0 %v3735
    %5976 = vmatpush.bf16.msra.mxu0 %v3731
    %5977 = vmatpush.bf16.msra.mxu0 %v3727
    %5978 = vmatpush.bf16.msra.mxu0 %v3723
    %5979 = vmatpush.bf16.msra.mxu0 %v3719
    %5980 = vmatpush.bf16.msra.mxu0 %v3715
    %5981 = vmatmul.bf16.gmra.mxu0 %v842
    %v5982 = vpop.f32.mrf.mxu0
    %v5983 = vadd.f32 %v5970, %v5982
    %v5984 = vpop.f32.mrf.mxu0
    %5985 = vdwg.mxu0
    %5986 = vmatpush.bf16.msra.mxu0 %v3775
    %5987 = vmatpush.bf16.msra.mxu0 %v3771
    %5988 = vmatpush.bf16.msra.mxu0 %v3767
    %5989 = vmatpush.bf16.msra.mxu0 %v3763
    %5990 = vmatpush.bf16.msra.mxu0 %v3759
    %5991 = vmatpush.bf16.msra.mxu0 %v3755
    %5992 = vmatpush.bf16.msra.mxu0 %v3751
    %5993 = vmatpush.bf16.msra.mxu0 %v3747
    %5994 = vmatmul.bf16.gmra.mxu0 %v845
    %v5995 = vpop.f32.mrf.mxu0
    %v5996 = vadd.f32 %v5983, %v5995
    %v5997 = vpop.f32.mrf.mxu0
    %5998 = vdwg.mxu0
    %5999 = vmatpush.bf16.msra.mxu0 %v3807
    %6000 = vmatpush.bf16.msra.mxu0 %v3803
    %6001 = vmatpush.bf16.msra.mxu0 %v3799
    %6002 = vmatpush.bf16.msra.mxu0 %v3795
    %6003 = vmatpush.bf16.msra.mxu0 %v3791
    %6004 = vmatpush.bf16.msra.mxu0 %v3787
    %6005 = vmatpush.bf16.msra.mxu0 %v3783
    %6006 = vmatpush.bf16.msra.mxu0 %v3779
    %6007 = vmatmul.bf16.gmra.mxu0 %v846
    %v6008 = vpop.f32.mrf.mxu0
    %v6009 = vadd.f32 %v5996, %v6008
    %v6010 = vpop.f32.mrf.mxu0
    %6011 = vdwg.mxu0
    %6012 = vmatpush.bf16.msra.mxu0 %v3839
    %6013 = vmatpush.bf16.msra.mxu0 %v3835
    %6014 = vmatpush.bf16.msra.mxu0 %v3831
    %6015 = vmatpush.bf16.msra.mxu0 %v3827
    %6016 = vmatpush.bf16.msra.mxu0 %v3823
    %6017 = vmatpush.bf16.msra.mxu0 %v3819
    %6018 = vmatpush.bf16.msra.mxu0 %v3815
    %6019 = vmatpush.bf16.msra.mxu0 %v3811
    %6020 = vmatmul.bf16.gmra.mxu0 %v847
    %v6021 = vpop.f32.mrf.mxu0
    %v6022 = vadd.f32 %v6009, %v6021
    %v6023 = vpop.f32.mrf.mxu0
    %6024 = vdwg.mxu0
    %6025 = vmatpush.bf16.msra.mxu0 %v3871
    %6026 = vmatpush.bf16.msra.mxu0 %v3867
    %6027 = vmatpush.bf16.msra.mxu0 %v3863
    %6028 = vmatpush.bf16.msra.mxu0 %v3859
    %6029 = vmatpush.bf16.msra.mxu0 %v3855
    %6030 = vmatpush.bf16.msra.mxu0 %v3851
    %6031 = vmatpush.bf16.msra.mxu0 %v3847
    %6032 = vmatpush.bf16.msra.mxu0 %v3843
    %6033 = vmatmul.bf16.gmra.mxu0 %v848
    %v6034 = vpop.f32.mrf.mxu0
    %v6035 = vadd.f32 %v6022, %v6034
    %v6036 = vpop.f32.mrf.mxu0
    %6037 = vdwg.mxu0
    %6038 = vmatpush.bf16.msra.mxu0 %v3903
    %6039 = vmatpush.bf16.msra.mxu0 %v3899
    %6040 = vmatpush.bf16.msra.mxu0 %v3895
    %6041 = vmatpush.bf16.msra.mxu0 %v3891
    %6042 = vmatpush.bf16.msra.mxu0 %v3887
    %6043 = vmatpush.bf16.msra.mxu0 %v3883
    %6044 = vmatpush.bf16.msra.mxu0 %v3879
    %6045 = vmatpush.bf16.msra.mxu0 %v3875
    %6046 = vmatmul.bf16.gmra.mxu0 %v849
    %v6047 = vpop.f32.mrf.mxu0
    %v6048 = vadd.f32 %v6035, %v6047
    %v6049 = vpop.f32.mrf.mxu0
    %6050 = vdwg.mxu0
    %6051 = vmatpush.bf16.msra.mxu0 %v3935
    %6052 = vmatpush.bf16.msra.mxu0 %v3931
    %6053 = vmatpush.bf16.msra.mxu0 %v3927
    %6054 = vmatpush.bf16.msra.mxu0 %v3923
    %6055 = vmatpush.bf16.msra.mxu0 %v3919
    %6056 = vmatpush.bf16.msra.mxu0 %v3915
    %6057 = vmatpush.bf16.msra.mxu0 %v3911
    %6058 = vmatpush.bf16.msra.mxu0 %v3907
    %6059 = vmatmul.bf16.gmra.mxu0 %v850
    %v6060 = vpop.f32.mrf.mxu0
    %v6061 = vadd.f32 %v6048, %v6060
    %v6062 = vpop.f32.mrf.mxu0
    %6063 = vdwg.mxu0
    %6064 = vmatpush.bf16.msra.mxu0 %v3967
    %6065 = vmatpush.bf16.msra.mxu0 %v3963
    %6066 = vmatpush.bf16.msra.mxu0 %v3959
    %6067 = vmatpush.bf16.msra.mxu0 %v3955
    %6068 = vmatpush.bf16.msra.mxu0 %v3951
    %6069 = vmatpush.bf16.msra.mxu0 %v3947
    %6070 = vmatpush.bf16.msra.mxu0 %v3943
    %6071 = vmatpush.bf16.msra.mxu0 %v3939
    %6072 = vmatmul.bf16.gmra.mxu0 %v851
    %v6073 = vpop.f32.mrf.mxu0
    %v6074 = vadd.f32 %v6061, %v6073
    %v6075 = vpop.f32.mrf.mxu0
    %6076 = vdwg.mxu0
    %6077 = vmatpush.bf16.msra.mxu0 %v3999
    %6078 = vmatpush.bf16.msra.mxu0 %v3995
    %6079 = vmatpush.bf16.msra.mxu0 %v3991
    %6080 = vmatpush.bf16.msra.mxu0 %v3987
    %6081 = vmatpush.bf16.msra.mxu0 %v3983
    %6082 = vmatpush.bf16.msra.mxu0 %v3979
    %6083 = vmatpush.bf16.msra.mxu0 %v3975
    %6084 = vmatpush.bf16.msra.mxu0 %v3971
    %6085 = vmatmul.bf16.gmra.mxu0 %v852
    %v6086 = vpop.f32.mrf.mxu0
    %v6087 = vadd.f32 %v6074, %v6086
    %v6088 = vpop.f32.mrf.mxu0
    %6089 = vdwg.mxu0
    %6090 = vmatpush.bf16.msra.mxu0 0
    %6091 = vmatpush.bf16.msra.mxu0 0
    %6092 = vmatpush.bf16.msra.mxu0 0
    %6093 = vmatpush.bf16.msra.mxu0 0
    %6094 = vmatpush.bf16.msra.mxu0 %v4015
    %6095 = vmatpush.bf16.msra.mxu0 %v4011
    %6096 = vmatpush.bf16.msra.mxu0 %v4007
    %6097 = vmatpush.bf16.msra.mxu0 %v4003
    %6098 = vmatmul.bf16.gmra.mxu0 %v4801
    %v6099 = vpop.f32.mrf.mxu0
    %v6100 = vadd.f32 %v6087, %v6099
    %v6101 = vpop.f32.mrf.mxu0
    %6102 = vdwg.mxu0
    %v6103 = vmax.f32 %v5125, 0.0
    %v6104 = vmax.f32 %v5450, 0.0
    %v6105 = vmax.f32 %v5775, 0.0
    %v6106 = vmax.f32 %v6100, 0.0
    %v6107 = vpack.c.bf16 %v6103, %v6103
    %v6108 = vpack.c.bf16 %v6104, %v6104
    %v6109 = vpack.c.bf16 %v6105, %v6105
    %v6110 = vpack.c.bf16 %v6106, %v6106
    %v6111 = vld [vmem:[%s3] sm:$0xf]
    %v6112 = vld [vmem:[%s3 + $0x4] sm:$0xf]
    %v6113 = vld [vmem:[%s3 + $0x8] sm:$0xf]
    %v6114 = vld [vmem:[%s3 + $0xc] sm:$0xf]
    %v6115 = vld [vmem:[%s3 + $0x10] sm:$0xf]
    %v6116 = vld [vmem:[%s3 + $0x14] sm:$0xf]
    %v6117 = vld [vmem:[%s3 + $0x18] sm:$0xf]
    %v6118 = vld [vmem:[%s3 + $0x1c] sm:$0xf]
    %v6119 = vld [vmem:[%s3 + $0x20] sm:$0xf]
    %v6120 = vld [vmem:[%s3 + $0x24] sm:$0xf]
    %v6121 = vld [vmem:[%s3 + $0x28] sm:$0xf]
    %v6122 = vld [vmem:[%s3 + $0x2c] sm:$0xf]
    %v6123 = vld [vmem:[%s3 + $0x30] sm:$0xf]
    %v6124 = vld [vmem:[%s3 + $0x34] sm:$0xf]
    %v6125 = vld [vmem:[%s3 + $0x38] sm:$0xf]
    %v6126 = vld [vmem:[%s3 + $0x3c] sm:$0xf]
    %v6127 = vld [vmem:[%s3 + $0x40] sm:$0xf]
    %v6128 = vld [vmem:[%s3 + $0x44] sm:$0xf]
    %v6129 = vld [vmem:[%s3 + $0x48] sm:$0xf]
    %v6130 = vld [vmem:[%s3 + $0x4c] sm:$0xf]
    %v6131 = vld [vmem:[%s3 + $0x50] sm:$0xf]
    %v6132 = vld [vmem:[%s3 + $0x54] sm:$0xf]
    %v6133 = vld [vmem:[%s3 + $0x58] sm:$0xf]
    %v6134 = vld [vmem:[%s3 + $0x5c] sm:$0xf]
    %v6135 = vld [vmem:[%s3 + $0x60] sm:$0xf]
    %v6136 = vld [vmem:[%s3 + $0x64] sm:$0xf]
    %v6137 = vld [vmem:[%s3 + $0x68] sm:$0xf]
    %v6138 = vld [vmem:[%s3 + $0x6c] sm:$0xf]
    %v6139 = vld [vmem:[%s3 + $0x70] sm:$0xf]
    %v6140 = vld [vmem:[%s3 + $0x74] sm:$0xf]
    %v6141 = vld [vmem:[%s3 + $0x78] sm:$0xf]
    %v6142 = vld [vmem:[%s3 + $0x7c] sm:$0xf]
    %v6143 = vld [vmem:[%s3 + $0x80] sm:$0xf]
    %v6144 = vld [vmem:[%s3 + $0x84] sm:$0xf]
    %v6145 = vld [vmem:[%s3 + $0x88] sm:$0xf]
    %v6146 = vld [vmem:[%s3 + $0x8c] sm:$0xf]
    %v6147 = vld [vmem:[%s3 + $0x90] sm:$0xf]
    %v6148 = vld [vmem:[%s3 + $0x94] sm:$0xf]
    %v6149 = vld [vmem:[%s3 + $0x98] sm:$0xf]
    %v6150 = vld [vmem:[%s3 + $0x9c] sm:$0xf]
    %v6151 = vld [vmem:[%s3 + $0xa0] sm:$0xf]
    %v6152 = vld [vmem:[%s3 + $0xa4] sm:$0xf]
    %v6153 = vld [vmem:[%s3 + $0xa8] sm:$0xf]
    %v6154 = vld [vmem:[%s3 + $0xac] sm:$0xf]
    %v6155 = vld [vmem:[%s3 + $0xb0] sm:$0xf]
    %v6156 = vld [vmem:[%s3 + $0xb4] sm:$0xf]
    %v6157 = vld [vmem:[%s3 + $0xb8] sm:$0xf]
    %v6158 = vld [vmem:[%s3 + $0xbc] sm:$0xf]
    %v6159 = vld [vmem:[%s3 + $0xc0] sm:$0xf]
    %v6160 = vld [vmem:[%s3 + $0xc4] sm:$0xf]
    %v6161 = vld [vmem:[%s3 + $0xc8] sm:$0xf]
    %v6162 = vld [vmem:[%s3 + $0xcc] sm:$0xf]
    %v6163 = vld [vmem:[%s3 + $0xd0] sm:$0xf]
    %v6164 = vld [vmem:[%s3 + $0xd4] sm:$0xf]
    %v6165 = vld [vmem:[%s3 + $0xd8] sm:$0xf]
    %v6166 = vld [vmem:[%s3 + $0xdc] sm:$0xf]
    %v6167 = vld [vmem:[%s3 + $0xe0] sm:$0xf]
    %v6168 = vld [vmem:[%s3 + $0xe4] sm:$0xf]
    %v6169 = vld [vmem:[%s3 + $0xe8] sm:$0xf]
    %v6170 = vld [vmem:[%s3 + $0xec] sm:$0xf]
    %v6171 = vld [vmem:[%s3 + $0xf0] sm:$0xf]
    %v6172 = vld [vmem:[%s3 + $0xf4] sm:$0xf]
    %v6173 = vld [vmem:[%s3 + $0xf8] sm:$0xf]
    %v6174 = vld [vmem:[%s3 + $0xfc] sm:$0xf]
    %v6175 = vld [vmem:[%s4] sm:$0x1]
    %v6177 = vperm.slane %v6175, 0
    %v6243 = vunpack.c.l.b16 %v6111
    %v6244 = vunpack.c.l.b16 %v6112
    %v6245 = vunpack.c.l.b16 %v6113
    %v6246 = vunpack.c.l.b16 %v6114
    %v6247 = vunpack.c.l.b16 %v6115
    %v6248 = vunpack.c.l.b16 %v6116
    %v6249 = vunpack.c.l.b16 %v6117
    %v6250 = vunpack.c.l.b16 %v6118
    %v6251 = vunpack.c.l.b16 %v6119
    %v6252 = vunpack.c.l.b16 %v6120
    %v6253 = vunpack.c.l.b16 %v6121
    %v6254 = vunpack.c.l.b16 %v6122
    %v6255 = vunpack.c.l.b16 %v6123
    %v6256 = vunpack.c.l.b16 %v6124
    %v6257 = vunpack.c.l.b16 %v6125
    %v6258 = vunpack.c.l.b16 %v6126
    %v6259 = vunpack.c.l.b16 %v6127
    %v6260 = vunpack.c.l.b16 %v6128
    %v6261 = vunpack.c.l.b16 %v6129
    %v6262 = vunpack.c.l.b16 %v6130
    %v6263 = vunpack.c.l.b16 %v6131
    %v6264 = vunpack.c.l.b16 %v6132
    %v6265 = vunpack.c.l.b16 %v6133
    %v6266 = vunpack.c.l.b16 %v6134
    %v6267 = vunpack.c.l.b16 %v6135
    %v6268 = vunpack.c.l.b16 %v6136
    %v6269 = vunpack.c.l.b16 %v6137
    %v6270 = vunpack.c.l.b16 %v6138
    %v6271 = vunpack.c.l.b16 %v6139
    %v6272 = vunpack.c.l.b16 %v6140
    %v6273 = vunpack.c.l.b16 %v6141
    %v6274 = vunpack.c.l.b16 %v6142
    %v6275 = vunpack.c.l.b16 %v6143
    %v6276 = vunpack.c.l.b16 %v6144
    %v6277 = vunpack.c.l.b16 %v6145
    %v6278 = vunpack.c.l.b16 %v6146
    %v6279 = vunpack.c.l.b16 %v6147
    %v6280 = vunpack.c.l.b16 %v6148
    %v6281 = vunpack.c.l.b16 %v6149
    %v6282 = vunpack.c.l.b16 %v6150
    %v6283 = vunpack.c.l.b16 %v6151
    %v6284 = vunpack.c.l.b16 %v6152
    %v6285 = vunpack.c.l.b16 %v6153
    %v6286 = vunpack.c.l.b16 %v6154
    %v6287 = vunpack.c.l.b16 %v6155
    %v6288 = vunpack.c.l.b16 %v6156
    %v6289 = vunpack.c.l.b16 %v6157
    %v6290 = vunpack.c.l.b16 %v6158
    %v6291 = vunpack.c.l.b16 %v6159
    %v6292 = vunpack.c.l.b16 %v6160
    %v6293 = vunpack.c.l.b16 %v6161
    %v6294 = vunpack.c.l.b16 %v6162
    %v6295 = vunpack.c.l.b16 %v6163
    %v6296 = vunpack.c.l.b16 %v6164
    %v6297 = vunpack.c.l.b16 %v6165
    %v6298 = vunpack.c.l.b16 %v6166
    %v6299 = vunpack.c.l.b16 %v6167
    %v6300 = vunpack.c.l.b16 %v6168
    %v6301 = vunpack.c.l.b16 %v6169
    %v6302 = vunpack.c.l.b16 %v6170
    %v6303 = vunpack.c.l.b16 %v6171
    %v6304 = vunpack.c.l.b16 %v6172
    %v6305 = vunpack.c.l.b16 %v6173
    %v6306 = vunpack.c.l.b16 %v6174
    %v6307 = vpack.c.b16 %v6244, %v6243
    %v6308 = vpack.c.b16 %v6246, %v6245
    %v6309 = vpack.c.b16 %v6248, %v6247
    %v6310 = vpack.c.b16 %v6250, %v6249
    %v6311 = vpack.c.b16 %v6252, %v6251
    %v6312 = vpack.c.b16 %v6254, %v6253
    %v6313 = vpack.c.b16 %v6256, %v6255
    %v6314 = vpack.c.b16 %v6258, %v6257
    %v6315 = vpack.c.b16 %v6260, %v6259
    %v6316 = vpack.c.b16 %v6262, %v6261
    %v6317 = vpack.c.b16 %v6264, %v6263
    %v6318 = vpack.c.b16 %v6266, %v6265
    %v6319 = vpack.c.b16 %v6268, %v6267
    %v6320 = vpack.c.b16 %v6270, %v6269
    %v6321 = vpack.c.b16 %v6272, %v6271
    %v6322 = vpack.c.b16 %v6274, %v6273
    %v6323 = vpack.c.b16 %v6276, %v6275
    %v6324 = vpack.c.b16 %v6278, %v6277
    %v6325 = vpack.c.b16 %v6280, %v6279
    %v6326 = vpack.c.b16 %v6282, %v6281
    %v6327 = vpack.c.b16 %v6284, %v6283
    %v6328 = vpack.c.b16 %v6286, %v6285
    %v6329 = vpack.c.b16 %v6288, %v6287
    %v6330 = vpack.c.b16 %v6290, %v6289
    %v6331 = vpack.c.b16 %v6292, %v6291
    %v6332 = vpack.c.b16 %v6294, %v6293
    %v6333 = vpack.c.b16 %v6296, %v6295
    %v6334 = vpack.c.b16 %v6298, %v6297
    %v6335 = vpack.c.b16 %v6300, %v6299
    %v6336 = vpack.c.b16 %v6302, %v6301
    %v6337 = vpack.c.b16 %v6304, %v6303
    %v6338 = vpack.c.b16 %v6306, %v6305
    %6371 = vmatpush.bf16.msra.mxu0 %v6314
    %6372 = vmatpush.bf16.msra.mxu0 %v6313
    %6373 = vmatpush.bf16.msra.mxu0 %v6312
    %6374 = vmatpush.bf16.msra.mxu0 %v6311
    %6375 = vmatpush.bf16.msra.mxu0 %v6310
    %6376 = vmatpush.bf16.msra.mxu0 %v6309
    %6377 = vmatpush.bf16.msra.mxu0 %v6308
    %6378 = vmatpush.bf16.msra.mxu0 %v6307
    %6379 = vmatmul.bf16.gmra.mxu0 %v6107
    %v6380 = vpop.f32.mrf.mxu0
    %v6381 = vadd.f32 %v6177, %v6380
    %v6382 = vpop.f32.mrf.mxu0
    %6383 = vdwg.mxu0
    %6384 = vmatpush.bf16.msra.mxu0 %v6322
    %6385 = vmatpush.bf16.msra.mxu0 %v6321
    %6386 = vmatpush.bf16.msra.mxu0 %v6320
    %6387 = vmatpush.bf16.msra.mxu0 %v6319
    %6388 = vmatpush.bf16.msra.mxu0 %v6318
    %6389 = vmatpush.bf16.msra.mxu0 %v6317
    %6390 = vmatpush.bf16.msra.mxu0 %v6316
    %6391 = vmatpush.bf16.msra.mxu0 %v6315
    %6392 = vmatmul.bf16.gmra.mxu0 %v6108
    %v6393 = vpop.f32.mrf.mxu0
    %v6394 = vadd.f32 %v6381, %v6393
    %v6395 = vpop.f32.mrf.mxu0
    %6396 = vdwg.mxu0
    %6397 = vmatpush.bf16.msra.mxu0 %v6330
    %6398 = vmatpush.bf16.msra.mxu0 %v6329
    %6399 = vmatpush.bf16.msra.mxu0 %v6328
    %6400 = vmatpush.bf16.msra.mxu0 %v6327
    %6401 = vmatpush.bf16.msra.mxu0 %v6326
    %6402 = vmatpush.bf16.msra.mxu0 %v6325
    %6403 = vmatpush.bf16.msra.mxu0 %v6324
    %6404 = vmatpush.bf16.msra.mxu0 %v6323
    %6405 = vmatmul.bf16.gmra.mxu0 %v6109
    %v6406 = vpop.f32.mrf.mxu0
    %v6407 = vadd.f32 %v6394, %v6406
    %v6408 = vpop.f32.mrf.mxu0
    %6409 = vdwg.mxu0
    %6410 = vmatpush.bf16.msra.mxu0 %v6338
    %6411 = vmatpush.bf16.msra.mxu0 %v6337
    %6412 = vmatpush.bf16.msra.mxu0 %v6336
    %6413 = vmatpush.bf16.msra.mxu0 %v6335
    %6414 = vmatpush.bf16.msra.mxu0 %v6334
    %6415 = vmatpush.bf16.msra.mxu0 %v6333
    %6416 = vmatpush.bf16.msra.mxu0 %v6332
    %6417 = vmatpush.bf16.msra.mxu0 %v6331
    %6418 = vmatmul.bf16.gmra.mxu0 %v6110
    %v6419 = vpop.f32.mrf.mxu0
    %v6420 = vadd.f32 %v6407, %v6419
    %v6421 = vpop.f32.mrf.mxu0
    %6422 = vdwg.mxu0
    %vm6423 = vcmask 25600
    %6424 = vst.msk [vmem:[#allocation2] sm:$0x3] %vm6423, %v6420
    %v6429 = vrot.slane %v6104, 6
    %v6430 = vrot.slane %v6105, 4
    %v6431 = vrot.slane %v6106, 2
    %vm6432 = vcmask 1041408
    %v6433 = vsel %vm6432, %v6103, %v6429
    %vm6434 = vcmask 1045508
    %v6435 = vsel %vm6434, %v6430, %v6431
    %vm6436 = vcmask 1043456
    %v6437 = vsel %vm6436, %v6433, %v6435
    %6439 = vst [vmem:[#allocation4] sm:$0xff] %v6437
    // Predicated region
    $region22: #{forward.7} parent=1 // pred_check
      _
    $region23: #{forward.7} parent=1 // pred_check_branch
      %6441 = sbr.rel (0) target = $region25
    $region24: #{forward.7} parent=1 // pred_region
      %6443 = vsyncadd [#allocation3], 0
      %s6445 = sshll.u32 [#allocation2], 4
      %s6446 = int_to_ptr.vmem [resolvable:$true] %s6445
      %s6447 = sshll.u32 %s5, 4
      %s6448 = int_to_ptr.hbm [resolvable:$true] %s6447
      %6450 = dma.vmem_to_hbm [thread:$0]  %s6446, 32, %s6448, [#allocation3]
    $region25: #{forward.7} parent=1 // pred_fallthru
      _
    // Predicated region
    $region26: #{forward.7} parent=1 // pred_check
      _
    $region27: #{forward.7} parent=1 // pred_check_branch
      %6452 = sbr.rel (0) target = $region29
    $region28: #{forward.7} parent=1 // pred_region
      %6454 = vsyncadd [#allocation5], 0
      %s6456 = sshll.u32 [#allocation4], 4
      %s6457 = int_to_ptr.vmem [resolvable:$true] %s6456
      %s6458 = sshll.u32 %s6, 4
      %s6459 = int_to_ptr.hbm [resolvable:$true] %s6458
      %6461 = dma.vmem_to_hbm [thread:$0]  %s6457, 128, %s6459, [#allocation5]
    $region29: #{forward.7} parent=1 // pred_fallthru
      _
    // Predicated region
    $region30: #{forward.7} parent=1 // pred_check
      _
    $region31: #{forward.7} parent=1 // pred_check_branch
      %6463 = sbr.rel (0) target = $region33
    $region32: #{forward.7} parent=1 // pred_region
      %6465 = dma.done [#allocation3], 32
    $region33: #{forward.7} parent=1 // pred_fallthru
      _
    // Predicated region
    $region34: #{forward.7} parent=1 // pred_check
      _
    $region35: #{forward.7} parent=1 // pred_check_branch
      %6467 = sbr.rel (0) target = $region37
    $region36: #{forward.7} parent=1 // pred_region
      %6469 = dma.done [#allocation5], 128
    $region37: #{forward.7} parent=1 // pred_fallthru
      _
    %6470 = vsyncpa [#allocation3], 1
    %6471 = vsyncpa [#allocation5], 1

</llo_original>
